<compile_context>
chip_gen: v7x
topology: tpu7x:2x2x1
jax: 0.10.0
libtpu: 0.0.40
codegen_flags: <defaults>
</compile_context>

<pallas_src>
import functools

import jax
import jax.numpy as jnp
from jax import lax
from jax.experimental import pallas as pl
from jax.experimental.pallas import tpu as pltpu

LANE = 128


def _pad_to(n, m):
    return ((n + m - 1) // m) * m


def _network_kernel(
    # inputs ------------------------------------------------------------
    xi_ref, xj_ref,                       # flattened images [tb, D_in_pad] f32
    wr_ref, br_ref,                       # stand-in resnet: D_in -> rep
    wp1_ref, bp1_ref, wp2_ref, bp2_ref,   # instance projector
    we1_ref, be1_ref, we2_ref, be2_ref,   # encoder enc_1, enc_2
    we3_ref, be3_ref, wz_ref, bz_ref,     # encoder enc_3, z_layer
    wd1_ref, bd1_ref, wd2_ref, bd2_ref,   # encoder dec_1, dec_2
    wd3_ref, bd3_ref, wxb_ref, bxb_ref,   # encoder dec_3, x_bar_layer
    # outputs -----------------------------------------------------------
    zi_ref, zj_ref, ci_ref, hi_ref, bar_ref,
    *, class_num,
):
    f32 = jnp.float32
    bf16 = jnp.bfloat16

    def dense(x, w_ref, b_ref):
        # bf16 MXU matmul with f32 accumulation; bias-add stays f32 (VPU).
        y = jnp.dot(x.astype(bf16), w_ref[...], preferred_element_type=f32)
        return y + b_ref[...]

    def relu(x):
        return jnp.maximum(x, 0.0)

    tb = xi_ref.shape[0]

    # --- stand-in resnet backbone (Linear + ReLU), i/j branches fused ---
    xc = jnp.concatenate([xi_ref[...], xj_ref[...]], axis=0)     # [2*tb, D_in]
    h = relu(dense(xc, wr_ref, br_ref))                          # [2*tb, rep_pad]

    # --- instance projector (shared weights for both branches) + L2 normalize ---
    p = relu(dense(h, wp1_ref, bp1_ref))
    p = dense(p, wp2_ref, bp2_ref)
    sumsq = jnp.sum(p * p, axis=1, keepdims=True)
    # torch.nn.functional.normalize: x / max(||x||_2, 1e-12)  ==  x * rsqrt(max(ss, 1e-24))
    z = p * lax.rsqrt(jnp.maximum(sumsq, 1e-24))
    zi_ref[...] = z[:tb]
    zj_ref[...] = z[tb:]

    h_i = h[:tb]
    hi_ref[...] = h_i

    # --- Encoder (AE) on h_i (the torch forward feeds h_i for both c_i and c_j) ---
    e1 = relu(dense(h_i, we1_ref, be1_ref))
    e2 = relu(dense(e1, we2_ref, be2_ref))
    e3 = relu(dense(e2, we3_ref, be3_ref))
    logits = dense(e3, wz_ref, bz_ref)
    # Mask lane-padding columns out of the softmax.
    col = lax.broadcasted_iota(jnp.int32, logits.shape, 1)
    logits = jnp.where(col < class_num, logits, -1e30)
    m = jnp.max(logits, axis=1, keepdims=True)
    e = jnp.exp(logits - m)
    c = e * pl.reciprocal(jnp.sum(e, axis=1, keepdims=True), approx=True)
    ci_ref[...] = c

    d1 = relu(dense(c, wd1_ref, bd1_ref))
    d2 = relu(dense(d1, wd2_ref, bd2_ref))
    d3 = relu(dense(d2, wd3_ref, bd3_ref))
    bar_ref[...] = dense(d3, wxb_ref, bxb_ref)


def init_params(key, d_in, rep_dim, feature_dim, class_num):
    """torch.nn.Linear-style init U(-1/sqrt(fan_in), 1/sqrt(fan_in)) on the real
    (unpadded) dims, then zero-padded to lane multiples. Weights are stored as
    bf16 [fi_pad, fo_pad] (y = x @ W + b); biases as f32 [1, fo_pad]."""
    dims = [
        (d_in, rep_dim),         # stand-in resnet
        (rep_dim, rep_dim),      # instance_projector[0]
        (rep_dim, feature_dim),  # instance_projector[2]
        (rep_dim, 500),          # enc_1
        (500, 500),              # enc_2
        (500, 2000),             # enc_3
        (2000, class_num),       # z_layer
        (class_num, 2000),       # dec_1
        (2000, 500),             # dec_2
        (500, 500),              # dec_3
        (500, rep_dim),          # x_bar_layer
    ]
    params = []
    keys = jax.random.split(key, 2 * len(dims))
    for i, (fi, fo) in enumerate(dims):
        bound = 1.0 / float(fi) ** 0.5
        w = jax.random.uniform(keys[2 * i], (fi, fo), jnp.float32, -bound, bound)
        b = jax.random.uniform(keys[2 * i + 1], (fo,), jnp.float32, -bound, bound)
        fi_p, fo_p = _pad_to(fi, LANE), _pad_to(fo, LANE)
        w_p = jnp.zeros((fi_p, fo_p), jnp.float32).at[:fi, :fo].set(w)
        b_p = jnp.zeros((1, fo_p), jnp.float32).at[0, :fo].set(b)
        params.append((w_p.astype(jnp.bfloat16), b_p))
    return params


@functools.partial(jax.jit, static_argnames=("rep_dim", "feature_dim", "class_num"))
def network_forward(x_i, x_j, params, *, rep_dim, feature_dim, class_num):
    B = x_i.shape[0]
    d_in = 1
    for s in x_i.shape[1:]:
        d_in *= int(s)

    d_in_p = _pad_to(d_in, LANE)
    rep_p = _pad_to(rep_dim, LANE)
    feat_p = _pad_to(feature_dim, LANE)
    cls_p = _pad_to(class_num, LANE)

    # Batch tiling: one sublane-aligned block for tiny batches, else 128-row tiles.
    if B <= 128:
        tb = max(8, _pad_to(B, 8))
        b_pad = tb
    else:
        tb = 128
        b_pad = _pad_to(B, 128)
    nb = b_pad // tb

    def flat_pad(x):
        xf = x.reshape(B, -1).astype(jnp.float32)
        return jnp.pad(xf, ((0, b_pad - B), (0, d_in_p - d_in)))

    xi = flat_pad(x_i)
    xj = flat_pad(x_j)

    flat_params = [t for wb in params for t in wb]

    # Activations tiled over the batch grid; weights grid-invariant (VMEM-resident).
    x_spec = pl.BlockSpec((tb, d_in_p), lambda i: (i, 0))
    w_specs = []
    for w, b in params:
        w_specs.append(pl.BlockSpec(w.shape, lambda i: (0, 0)))
        w_specs.append(pl.BlockSpec(b.shape, lambda i: (0, 0)))

    out_shape = (
        jax.ShapeDtypeStruct((b_pad, feat_p), jnp.float32),  # z_i
        jax.ShapeDtypeStruct((b_pad, feat_p), jnp.float32),  # z_j
        jax.ShapeDtypeStruct((b_pad, cls_p), jnp.float32),   # c (== c_i == c_j)
        jax.ShapeDtypeStruct((b_pad, rep_p), jnp.float32),   # h_i
        jax.ShapeDtypeStruct((b_pad, rep_p), jnp.float32),   # x_bar_i
    )
    out_specs = tuple(
        pl.BlockSpec((tb, s.shape[1]), lambda i: (i, 0)) for s in out_shape
    )

    kernel = functools.partial(_network_kernel, class_num=class_num)

    z_i, z_j, c, h_i, bar = pl.pallas_call(
        kernel,
        out_shape=out_shape,
        grid=(nb,),
        in_specs=[x_spec, x_spec, *w_specs],
        out_specs=out_specs,
        compiler_params=pltpu.CompilerParams(
            dimension_semantics=("parallel",),
            # bf16 weights (~7 MiB) double-buffered + activation tiles fit with
            # ample headroom; stays well under v7x's 64 MiB physical VMEM.
            vmem_limit_bytes=48 * 1024 * 1024,
        ),
    )(xi, xj, *flat_params)

    return (
        z_i[:B, :feature_dim],
        z_j[:B, :feature_dim],
        c[:B, :class_num],
        c[:B, :class_num],  # torch forward uses self.enc(h_i) for c_j as well
        h_i[:B, :rep_dim],
        bar[:B, :rep_dim],
    )


if __name__ == "__main__":
    key = jax.random.PRNGKey(0)
    k_xi, k_xj, k_par = jax.random.split(key, 3)

    # Small, module-consistent shapes.
    B, C, H, W = 2, 3, 16, 16
    rep_dim, feature_dim, class_num = 32, 16, 4

    x_i = jax.random.normal(k_xi, (B, C, H, W), jnp.float32)
    x_j = jax.random.normal(k_xj, (B, C, H, W), jnp.float32)
    params = init_params(k_par, C * H * W, rep_dim, feature_dim, class_num)

    outs = network_forward(
        x_i, x_j, params,
        rep_dim=rep_dim, feature_dim=feature_dim, class_num=class_num,
    )
    jax.block_until_ready(outs)

    z_i, z_j, c_i, c_j, h_i, bar_i = outs
    assert z_i.shape == (B, feature_dim) and z_j.shape == (B, feature_dim)
    assert c_i.shape == (B, class_num) and c_j.shape == (B, class_num)
    assert h_i.shape == (B, rep_dim) and bar_i.shape == (B, rep_dim)
    assert bool(jnp.all(jnp.isfinite(z_i))) and bool(jnp.all(jnp.isfinite(c_i)))
    # softmax rows sum to ~1, L2-normalized rows have unit norm
    assert bool(jnp.allclose(jnp.sum(c_i, axis=1), 1.0, atol=1e-3))
    assert bool(jnp.allclose(jnp.sum(z_i * z_i, axis=1), 1.0, atol=1e-3))
    print("KERNEL_OK")
</pallas_src>

<mosaic_0001>
module attributes {stable_mosaic.version = 11 : i64} {
  func.func @_network_kernel(%arg0: i32, %arg1: memref<8x768xf32, #tpu.memory_space<vmem>>, %arg2: memref<8x768xf32, #tpu.memory_space<vmem>>, %arg3: memref<768x128xbf16, #tpu.memory_space<vmem>>, %arg4: memref<1x128xf32, #tpu.memory_space<vmem>>, %arg5: memref<128x128xbf16, #tpu.memory_space<vmem>>, %arg6: memref<1x128xf32, #tpu.memory_space<vmem>>, %arg7: memref<128x128xbf16, #tpu.memory_space<vmem>>, %arg8: memref<1x128xf32, #tpu.memory_space<vmem>>, %arg9: memref<128x512xbf16, #tpu.memory_space<vmem>>, %arg10: memref<1x512xf32, #tpu.memory_space<vmem>>, %arg11: memref<512x512xbf16, #tpu.memory_space<vmem>>, %arg12: memref<1x512xf32, #tpu.memory_space<vmem>>, %arg13: memref<512x2048xbf16, #tpu.memory_space<vmem>>, %arg14: memref<1x2048xf32, #tpu.memory_space<vmem>>, %arg15: memref<2048x128xbf16, #tpu.memory_space<vmem>>, %arg16: memref<1x128xf32, #tpu.memory_space<vmem>>, %arg17: memref<128x2048xbf16, #tpu.memory_space<vmem>>, %arg18: memref<1x2048xf32, #tpu.memory_space<vmem>>, %arg19: memref<2048x512xbf16, #tpu.memory_space<vmem>>, %arg20: memref<1x512xf32, #tpu.memory_space<vmem>>, %arg21: memref<512x512xbf16, #tpu.memory_space<vmem>>, %arg22: memref<1x512xf32, #tpu.memory_space<vmem>>, %arg23: memref<512x128xbf16, #tpu.memory_space<vmem>>, %arg24: memref<1x128xf32, #tpu.memory_space<vmem>>, %arg25: memref<8x128xf32, #tpu.memory_space<vmem>>, %arg26: memref<8x128xf32, #tpu.memory_space<vmem>>, %arg27: memref<8x128xf32, #tpu.memory_space<vmem>>, %arg28: memref<8x128xf32, #tpu.memory_space<vmem>>, %arg29: memref<8x128xf32, #tpu.memory_space<vmem>>) attributes {dimension_semantics = [#tpu.dimension_semantics<parallel>], iteration_bounds = array<i64: 1>, scalar_prefetch = 0 : i64, scratch_operands = 0 : i64, tpu.core_type = #tpu.core_type<tc>, window_params = [{transform_indices = @transform_0, window_bounds = array<i64: 8, 768>}, {transform_indices = @transform_1, window_bounds = array<i64: 8, 768>}, {pipeline_mode = #tpu.pipeline_mode<synchronous>, transform_indices = @transform_2, window_bounds = array<i64: 768, 128>}, {pipeline_mode = #tpu.pipeline_mode<synchronous>, transform_indices = @transform_3, window_bounds = array<i64: 1, 128>}, {pipeline_mode = #tpu.pipeline_mode<synchronous>, transform_indices = @transform_4, window_bounds = array<i64: 128, 128>}, {pipeline_mode = #tpu.pipeline_mode<synchronous>, transform_indices = @transform_5, window_bounds = array<i64: 1, 128>}, {pipeline_mode = #tpu.pipeline_mode<synchronous>, transform_indices = @transform_6, window_bounds = array<i64: 128, 128>}, {pipeline_mode = #tpu.pipeline_mode<synchronous>, transform_indices = @transform_7, window_bounds = array<i64: 1, 128>}, {pipeline_mode = #tpu.pipeline_mode<synchronous>, transform_indices = @transform_8, window_bounds = array<i64: 128, 512>}, {pipeline_mode = #tpu.pipeline_mode<synchronous>, transform_indices = @transform_9, window_bounds = array<i64: 1, 512>}, {pipeline_mode = #tpu.pipeline_mode<synchronous>, transform_indices = @transform_10, window_bounds = array<i64: 512, 512>}, {pipeline_mode = #tpu.pipeline_mode<synchronous>, transform_indices = @transform_11, window_bounds = array<i64: 1, 512>}, {pipeline_mode = #tpu.pipeline_mode<synchronous>, transform_indices = @transform_12, window_bounds = array<i64: 512, 2048>}, {pipeline_mode = #tpu.pipeline_mode<synchronous>, transform_indices = @transform_13, window_bounds = array<i64: 1, 2048>}, {pipeline_mode = #tpu.pipeline_mode<synchronous>, transform_indices = @transform_14, window_bounds = array<i64: 2048, 128>}, {pipeline_mode = #tpu.pipeline_mode<synchronous>, transform_indices = @transform_15, window_bounds = array<i64: 1, 128>}, {pipeline_mode = #tpu.pipeline_mode<synchronous>, transform_indices = @transform_16, window_bounds = array<i64: 128, 2048>}, {pipeline_mode = #tpu.pipeline_mode<synchronous>, transform_indices = @transform_17, window_bounds = array<i64: 1, 2048>}, {pipeline_mode = #tpu.pipeline_mode<synchronous>, transform_indices = @transform_18, window_bounds = array<i64: 2048, 512>}, {pipeline_mode = #tpu.pipeline_mode<synchronous>, transform_indices = @transform_19, window_bounds = array<i64: 1, 512>}, {pipeline_mode = #tpu.pipeline_mode<synchronous>, transform_indices = @transform_20, window_bounds = array<i64: 512, 512>}, {pipeline_mode = #tpu.pipeline_mode<synchronous>, transform_indices = @transform_21, window_bounds = array<i64: 1, 512>}, {pipeline_mode = #tpu.pipeline_mode<synchronous>, transform_indices = @transform_22, window_bounds = array<i64: 512, 128>}, {pipeline_mode = #tpu.pipeline_mode<synchronous>, transform_indices = @transform_23, window_bounds = array<i64: 1, 128>}, {transform_indices = @transform_24, window_bounds = array<i64: 8, 128>}, {transform_indices = @transform_25, window_bounds = array<i64: 8, 128>}, {transform_indices = @transform_26, window_bounds = array<i64: 8, 128>}, {transform_indices = @transform_27, window_bounds = array<i64: 8, 128>}, {transform_indices = @transform_28, window_bounds = array<i64: 8, 128>}]} {
    %c0 = arith.constant 0 : index
    %c0_0 = arith.constant 0 : index
    %0 = vector.load %arg1[%c0, %c0_0] : memref<8x768xf32, #tpu.memory_space<vmem>>, vector<8x768xf32>
    %c0_1 = arith.constant 0 : index
    %c0_2 = arith.constant 0 : index
    %1 = vector.load %arg2[%c0_1, %c0_2] : memref<8x768xf32, #tpu.memory_space<vmem>>, vector<8x768xf32>
    %2 = tpu.concatenate %0, %1 in 0 : vector<8x768xf32>, vector<8x768xf32> -> vector<16x768xf32>
    %3 = arith.truncf %2 : vector<16x768xf32> to vector<16x768xbf16>
    %c0_3 = arith.constant 0 : index
    %c0_4 = arith.constant 0 : index
    %4 = vector.load %arg3[%c0_3, %c0_4] : memref<768x128xbf16, #tpu.memory_space<vmem>>, vector<768x128xbf16>
    %cst = arith.constant dense<0.000000e+00> : vector<16x128xf32>
    %5 = tpu.matmul %3, %4, %cst {dimension_numbers = #tpu.dot_dimension_numbers<[1], [0], [0], [1], [0, 0, 1, 1], [], []>} : vector<16x768xbf16>, vector<768x128xbf16>, vector<16x128xf32> -> vector<16x128xf32>
    %c0_5 = arith.constant 0 : index
    %c0_6 = arith.constant 0 : index
    %6 = vector.load %arg4[%c0_5, %c0_6] : memref<1x128xf32, #tpu.memory_space<vmem>>, vector<1x128xf32>
    %7 = vector.broadcast %6 : vector<1x128xf32> to vector<16x128xf32>
    %8 = arith.addf %5, %7 : vector<16x128xf32>
    %cst_7 = arith.constant 0.000000e+00 : f32
    %9 = vector.broadcast %cst_7 : f32 to vector<16x128xf32>
    %10 = arith.maximumf %8, %9 : vector<16x128xf32>
    %11 = arith.truncf %10 : vector<16x128xf32> to vector<16x128xbf16>
    %c0_8 = arith.constant 0 : index
    %c0_9 = arith.constant 0 : index
    %12 = vector.load %arg5[%c0_8, %c0_9] : memref<128x128xbf16, #tpu.memory_space<vmem>>, vector<128x128xbf16>
    %cst_10 = arith.constant dense<0.000000e+00> : vector<16x128xf32>
    %13 = tpu.matmul %11, %12, %cst_10 {dimension_numbers = #tpu.dot_dimension_numbers<[1], [0], [0], [1], [0, 0, 1, 1], [], []>} : vector<16x128xbf16>, vector<128x128xbf16>, vector<16x128xf32> -> vector<16x128xf32>
    %c0_11 = arith.constant 0 : index
    %c0_12 = arith.constant 0 : index
    %14 = vector.load %arg6[%c0_11, %c0_12] : memref<1x128xf32, #tpu.memory_space<vmem>>, vector<1x128xf32>
    %15 = vector.broadcast %14 : vector<1x128xf32> to vector<16x128xf32>
    %16 = arith.addf %13, %15 : vector<16x128xf32>
    %cst_13 = arith.constant 0.000000e+00 : f32
    %17 = vector.broadcast %cst_13 : f32 to vector<16x128xf32>
    %18 = arith.maximumf %16, %17 : vector<16x128xf32>
    %19 = arith.truncf %18 : vector<16x128xf32> to vector<16x128xbf16>
    %c0_14 = arith.constant 0 : index
    %c0_15 = arith.constant 0 : index
    %20 = vector.load %arg7[%c0_14, %c0_15] : memref<128x128xbf16, #tpu.memory_space<vmem>>, vector<128x128xbf16>
    %cst_16 = arith.constant dense<0.000000e+00> : vector<16x128xf32>
    %21 = tpu.matmul %19, %20, %cst_16 {dimension_numbers = #tpu.dot_dimension_numbers<[1], [0], [0], [1], [0, 0, 1, 1], [], []>} : vector<16x128xbf16>, vector<128x128xbf16>, vector<16x128xf32> -> vector<16x128xf32>
    %c0_17 = arith.constant 0 : index
    %c0_18 = arith.constant 0 : index
    %22 = vector.load %arg8[%c0_17, %c0_18] : memref<1x128xf32, #tpu.memory_space<vmem>>, vector<1x128xf32>
    %23 = vector.broadcast %22 : vector<1x128xf32> to vector<16x128xf32>
    %24 = arith.addf %21, %23 : vector<16x128xf32>
    %25 = arith.mulf %24, %24 : vector<16x128xf32>
    %cst_19 = arith.constant dense<0.000000e+00> : vector<16xf32>
    %26 = vector.multi_reduction <add>, %25, %cst_19 [1] : vector<16x128xf32> to vector<16xf32>
    %27 = vector.shape_cast %26 : vector<16xf32> to vector<16x1xf32>
    %cst_20 = arith.constant 1.000000e-24 : f32
    %28 = vector.broadcast %cst_20 : f32 to vector<16x1xf32>
    %29 = arith.maximumf %27, %28 : vector<16x1xf32>
    %30 = math.rsqrt %29 : vector<16x1xf32>
    %31 = vector.broadcast %30 : vector<16x1xf32> to vector<16x128xf32>
    %32 = arith.mulf %24, %31 : vector<16x128xf32>
    %33 = vector.extract_strided_slice %32 {offsets = [0, 0], sizes = [8, 128], strides = [1, 1]} : vector<16x128xf32> to vector<8x128xf32>
    %c0_21 = arith.constant 0 : index
    %c0_22 = arith.constant 0 : index
    %34 = vector.load %arg25[%c0_21, %c0_22] : memref<8x128xf32, #tpu.memory_space<vmem>>, vector<8x128xf32>
    tpu.vector_store %arg25[%c0_21, %c0_22], %33 {strides = array<i32>} : memref<8x128xf32, #tpu.memory_space<vmem>>, vector<8x128xf32>,
    %35 = vector.extract_strided_slice %32 {offsets = [8, 0], sizes = [8, 128], strides = [1, 1]} : vector<16x128xf32> to vector<8x128xf32>
    %c0_23 = arith.constant 0 : index
    %c0_24 = arith.constant 0 : index
    %36 = vector.load %arg26[%c0_23, %c0_24] : memref<8x128xf32, #tpu.memory_space<vmem>>, vector<8x128xf32>
    tpu.vector_store %arg26[%c0_23, %c0_24], %35 {strides = array<i32>} : memref<8x128xf32, #tpu.memory_space<vmem>>, vector<8x128xf32>,
    %37 = vector.extract_strided_slice %10 {offsets = [0, 0], sizes = [8, 128], strides = [1, 1]} : vector<16x128xf32> to vector<8x128xf32>
    %c0_25 = arith.constant 0 : index
    %c0_26 = arith.constant 0 : index
    %38 = vector.load %arg28[%c0_25, %c0_26] : memref<8x128xf32, #tpu.memory_space<vmem>>, vector<8x128xf32>
    tpu.vector_store %arg28[%c0_25, %c0_26], %37 {strides = array<i32>} : memref<8x128xf32, #tpu.memory_space<vmem>>, vector<8x128xf32>,
    %39 = arith.truncf %37 : vector<8x128xf32> to vector<8x128xbf16>
    %c0_27 = arith.constant 0 : index
    %c0_28 = arith.constant 0 : index
    %40 = vector.load %arg9[%c0_27, %c0_28] : memref<128x512xbf16, #tpu.memory_space<vmem>>, vector<128x512xbf16>
    %cst_29 = arith.constant dense<0.000000e+00> : vector<8x512xf32>
    %41 = tpu.matmul %39, %40, %cst_29 {dimension_numbers = #tpu.dot_dimension_numbers<[1], [0], [0], [1], [0, 0, 1, 1], [], []>} : vector<8x128xbf16>, vector<128x512xbf16>, vector<8x512xf32> -> vector<8x512xf32>
    %c0_30 = arith.constant 0 : index
    %c0_31 = arith.constant 0 : index
    %42 = vector.load %arg10[%c0_30, %c0_31] : memref<1x512xf32, #tpu.memory_space<vmem>>, vector<1x512xf32>
    %43 = vector.broadcast %42 : vector<1x512xf32> to vector<8x512xf32>
    %44 = arith.addf %41, %43 : vector<8x512xf32>
    %cst_32 = arith.constant 0.000000e+00 : f32
    %45 = vector.broadcast %cst_32 : f32 to vector<8x512xf32>
    %46 = arith.maximumf %44, %45 : vector<8x512xf32>
    %47 = arith.truncf %46 : vector<8x512xf32> to vector<8x512xbf16>
    %c0_33 = arith.constant 0 : index
    %c0_34 = arith.constant 0 : index
    %48 = vector.load %arg11[%c0_33, %c0_34] : memref<512x512xbf16, #tpu.memory_space<vmem>>, vector<512x512xbf16>
    %cst_35 = arith.constant dense<0.000000e+00> : vector<8x512xf32>
    %49 = tpu.matmul %47, %48, %cst_35 {dimension_numbers = #tpu.dot_dimension_numbers<[1], [0], [0], [1], [0, 0, 1, 1], [], []>} : vector<8x512xbf16>, vector<512x512xbf16>, vector<8x512xf32> -> vector<8x512xf32>
    %c0_36 = arith.constant 0 : index
    %c0_37 = arith.constant 0 : index
    %50 = vector.load %arg12[%c0_36, %c0_37] : memref<1x512xf32, #tpu.memory_space<vmem>>, vector<1x512xf32>
    %51 = vector.broadcast %50 : vector<1x512xf32> to vector<8x512xf32>
    %52 = arith.addf %49, %51 : vector<8x512xf32>
    %cst_38 = arith.constant 0.000000e+00 : f32
    %53 = vector.broadcast %cst_38 : f32 to vector<8x512xf32>
    %54 = arith.maximumf %52, %53 : vector<8x512xf32>
    %55 = arith.truncf %54 : vector<8x512xf32> to vector<8x512xbf16>
    %c0_39 = arith.constant 0 : index
    %c0_40 = arith.constant 0 : index
    %56 = vector.load %arg13[%c0_39, %c0_40] : memref<512x2048xbf16, #tpu.memory_space<vmem>>, vector<512x2048xbf16>
    %cst_41 = arith.constant dense<0.000000e+00> : vector<8x2048xf32>
    %57 = tpu.matmul %55, %56, %cst_41 {dimension_numbers = #tpu.dot_dimension_numbers<[1], [0], [0], [1], [0, 0, 1, 1], [], []>} : vector<8x512xbf16>, vector<512x2048xbf16>, vector<8x2048xf32> -> vector<8x2048xf32>
    %c0_42 = arith.constant 0 : index
    %c0_43 = arith.constant 0 : index
    %58 = vector.load %arg14[%c0_42, %c0_43] : memref<1x2048xf32, #tpu.memory_space<vmem>>, vector<1x2048xf32>
    %59 = vector.broadcast %58 : vector<1x2048xf32> to vector<8x2048xf32>
    %60 = arith.addf %57, %59 : vector<8x2048xf32>
    %cst_44 = arith.constant 0.000000e+00 : f32
    %61 = vector.broadcast %cst_44 : f32 to vector<8x2048xf32>
    %62 = arith.maximumf %60, %61 : vector<8x2048xf32>
    %63 = arith.truncf %62 : vector<8x2048xf32> to vector<8x2048xbf16>
    %c0_45 = arith.constant 0 : index
    %c0_46 = arith.constant 0 : index
    %64 = vector.load %arg15[%c0_45, %c0_46] : memref<2048x128xbf16, #tpu.memory_space<vmem>>, vector<2048x128xbf16>
    %cst_47 = arith.constant dense<0.000000e+00> : vector<8x128xf32>
    %65 = tpu.matmul %63, %64, %cst_47 {dimension_numbers = #tpu.dot_dimension_numbers<[1], [0], [0], [1], [0, 0, 1, 1], [], []>} : vector<8x2048xbf16>, vector<2048x128xbf16>, vector<8x128xf32> -> vector<8x128xf32>
    %c0_48 = arith.constant 0 : index
    %c0_49 = arith.constant 0 : index
    %66 = vector.load %arg16[%c0_48, %c0_49] : memref<1x128xf32, #tpu.memory_space<vmem>>, vector<1x128xf32>
    %67 = vector.broadcast %66 : vector<1x128xf32> to vector<8x128xf32>
    %68 = arith.addf %65, %67 : vector<8x128xf32>
    %69 = tpu.iota {dimensions = array<i32: 1>} : vector<8x128xi32>
    %c4_i32 = arith.constant 4 : i32
    %70 = vector.broadcast %c4_i32 : i32 to vector<8x128xi32>
    %71 = arith.cmpi slt, %69, %70 : vector<8x128xi32>
    %cst_50 = arith.constant -1.000000e+30 : f32
    %72 = vector.broadcast %cst_50 : f32 to vector<8x128xf32>
    %73 = arith.select %71, %68, %72 : vector<8x128xi1>, vector<8x128xf32>
    %cst_51 = arith.constant dense<0xFF800000> : vector<8xf32>
    %74 = vector.multi_reduction <maximumf>, %73, %cst_51 [1] : vector<8x128xf32> to vector<8xf32>
    %75 = vector.shape_cast %74 : vector<8xf32> to vector<8x1xf32>
    %76 = vector.broadcast %75 : vector<8x1xf32> to vector<8x128xf32>
    %77 = arith.subf %73, %76 : vector<8x128xf32>
    %78 = math.exp %77 : vector<8x128xf32>
    %cst_52 = arith.constant dense<0.000000e+00> : vector<8xf32>
    %79 = vector.multi_reduction <add>, %78, %cst_52 [1] : vector<8x128xf32> to vector<8xf32>
    %80 = vector.shape_cast %79 : vector<8xf32> to vector<8x1xf32>
    %81 = tpu.reciprocal %80 {approx = true} : vector<8x1xf32> -> vector<8x1xf32>
    %82 = vector.broadcast %81 : vector<8x1xf32> to vector<8x128xf32>
    %83 = arith.mulf %78, %82 : vector<8x128xf32>
    %c0_53 = arith.constant 0 : index
    %c0_54 = arith.constant 0 : index
    %84 = vector.load %arg27[%c0_53, %c0_54] : memref<8x128xf32, #tpu.memory_space<vmem>>, vector<8x128xf32>
    tpu.vector_store %arg27[%c0_53, %c0_54], %83 {strides = array<i32>} : memref<8x128xf32, #tpu.memory_space<vmem>>, vector<8x128xf32>,
    %85 = arith.truncf %83 : vector<8x128xf32> to vector<8x128xbf16>
    %c0_55 = arith.constant 0 : index
    %c0_56 = arith.constant 0 : index
    %86 = vector.load %arg17[%c0_55, %c0_56] : memref<128x2048xbf16, #tpu.memory_space<vmem>>, vector<128x2048xbf16>
    %cst_57 = arith.constant dense<0.000000e+00> : vector<8x2048xf32>
    %87 = tpu.matmul %85, %86, %cst_57 {dimension_numbers = #tpu.dot_dimension_numbers<[1], [0], [0], [1], [0, 0, 1, 1], [], []>} : vector<8x128xbf16>, vector<128x2048xbf16>, vector<8x2048xf32> -> vector<8x2048xf32>
    %c0_58 = arith.constant 0 : index
    %c0_59 = arith.constant 0 : index
    %88 = vector.load %arg18[%c0_58, %c0_59] : memref<1x2048xf32, #tpu.memory_space<vmem>>, vector<1x2048xf32>
    %89 = vector.broadcast %88 : vector<1x2048xf32> to vector<8x2048xf32>
    %90 = arith.addf %87, %89 : vector<8x2048xf32>
    %cst_60 = arith.constant 0.000000e+00 : f32
    %91 = vector.broadcast %cst_60 : f32 to vector<8x2048xf32>
    %92 = arith.maximumf %90, %91 : vector<8x2048xf32>
    %93 = arith.truncf %92 : vector<8x2048xf32> to vector<8x2048xbf16>
    %c0_61 = arith.constant 0 : index
    %c0_62 = arith.constant 0 : index
    %94 = vector.load %arg19[%c0_61, %c0_62] : memref<2048x512xbf16, #tpu.memory_space<vmem>>, vector<2048x512xbf16>
    %cst_63 = arith.constant dense<0.000000e+00> : vector<8x512xf32>
    %95 = tpu.matmul %93, %94, %cst_63 {dimension_numbers = #tpu.dot_dimension_numbers<[1], [0], [0], [1], [0, 0, 1, 1], [], []>} : vector<8x2048xbf16>, vector<2048x512xbf16>, vector<8x512xf32> -> vector<8x512xf32>
    %c0_64 = arith.constant 0 : index
    %c0_65 = arith.constant 0 : index
    %96 = vector.load %arg20[%c0_64, %c0_65] : memref<1x512xf32, #tpu.memory_space<vmem>>, vector<1x512xf32>
    %97 = vector.broadcast %96 : vector<1x512xf32> to vector<8x512xf32>
    %98 = arith.addf %95, %97 : vector<8x512xf32>
    %cst_66 = arith.constant 0.000000e+00 : f32
    %99 = vector.broadcast %cst_66 : f32 to vector<8x512xf32>
    %100 = arith.maximumf %98, %99 : vector<8x512xf32>
    %101 = arith.truncf %100 : vector<8x512xf32> to vector<8x512xbf16>
    %c0_67 = arith.constant 0 : index
    %c0_68 = arith.constant 0 : index
    %102 = vector.load %arg21[%c0_67, %c0_68] : memref<512x512xbf16, #tpu.memory_space<vmem>>, vector<512x512xbf16>
    %cst_69 = arith.constant dense<0.000000e+00> : vector<8x512xf32>
    %103 = tpu.matmul %101, %102, %cst_69 {dimension_numbers = #tpu.dot_dimension_numbers<[1], [0], [0], [1], [0, 0, 1, 1], [], []>} : vector<8x512xbf16>, vector<512x512xbf16>, vector<8x512xf32> -> vector<8x512xf32>
    %c0_70 = arith.constant 0 : index
    %c0_71 = arith.constant 0 : index
    %104 = vector.load %arg22[%c0_70, %c0_71] : memref<1x512xf32, #tpu.memory_space<vmem>>, vector<1x512xf32>
    %105 = vector.broadcast %104 : vector<1x512xf32> to vector<8x512xf32>
    %106 = arith.addf %103, %105 : vector<8x512xf32>
    %cst_72 = arith.constant 0.000000e+00 : f32
    %107 = vector.broadcast %cst_72 : f32 to vector<8x512xf32>
    %108 = arith.maximumf %106, %107 : vector<8x512xf32>
    %109 = arith.truncf %108 : vector<8x512xf32> to vector<8x512xbf16>
    %c0_73 = arith.constant 0 : index
    %c0_74 = arith.constant 0 : index
    %110 = vector.load %arg23[%c0_73, %c0_74] : memref<512x128xbf16, #tpu.memory_space<vmem>>, vector<512x128xbf16>
    %cst_75 = arith.constant dense<0.000000e+00> : vector<8x128xf32>
    %111 = tpu.matmul %109, %110, %cst_75 {dimension_numbers = #tpu.dot_dimension_numbers<[1], [0], [0], [1], [0, 0, 1, 1], [], []>} : vector<8x512xbf16>, vector<512x128xbf16>, vector<8x128xf32> -> vector<8x128xf32>
    %c0_76 = arith.constant 0 : index
    %c0_77 = arith.constant 0 : index
    %112 = vector.load %arg24[%c0_76, %c0_77] : memref<1x128xf32, #tpu.memory_space<vmem>>, vector<1x128xf32>
    %113 = vector.broadcast %112 : vector<1x128xf32> to vector<8x128xf32>
    %114 = arith.addf %111, %113 : vector<8x128xf32>
    %c0_78 = arith.constant 0 : index
    %c0_79 = arith.constant 0 : index
    %115 = vector.load %arg29[%c0_78, %c0_79] : memref<8x128xf32, #tpu.memory_space<vmem>>, vector<8x128xf32>
    tpu.vector_store %arg29[%c0_78, %c0_79], %114 {strides = array<i32>} : memref<8x128xf32, #tpu.memory_space<vmem>>, vector<8x128xf32>,
    return
  }
  func.func @transform_0(%arg0: i32) -> (i32, i32) {
    %c0_i32 = arith.constant 0 : i32
    %c0_i32_0 = arith.constant 0 : i32
    return %arg0, %c0_i32 : i32, i32
  }
  func.func @transform_1(%arg0: i32) -> (i32, i32) {
    %c0_i32 = arith.constant 0 : i32
    %c0_i32_0 = arith.constant 0 : i32
    return %arg0, %c0_i32 : i32, i32
  }
  func.func @transform_2(%arg0: i32) -> (i32, i32) {
    %c0_i32 = arith.constant 0 : i32
    %c0_i32_0 = arith.constant 0 : i32
    %c0_i32_1 = arith.constant 0 : i32
    return %c0_i32, %c0_i32_0 : i32, i32
  }
  func.func @transform_3(%arg0: i32) -> (i32, i32) {
    %c0_i32 = arith.constant 0 : i32
    %c0_i32_0 = arith.constant 0 : i32
    %c0_i32_1 = arith.constant 0 : i32
    return %c0_i32, %c0_i32_0 : i32, i32
  }
  func.func @transform_4(%arg0: i32) -> (i32, i32) {
    %c0_i32 = arith.constant 0 : i32
    %c0_i32_0 = arith.constant 0 : i32
    %c0_i32_1 = arith.constant 0 : i32
    return %c0_i32, %c0_i32_0 : i32, i32
  }
  func.func @transform_5(%arg0: i32) -> (i32, i32) {
    %c0_i32 = arith.constant 0 : i32
    %c0_i32_0 = arith.constant 0 : i32
    %c0_i32_1 = arith.constant 0 : i32
    return %c0_i32, %c0_i32_0 : i32, i32
  }
  func.func @transform_6(%arg0: i32) -> (i32, i32) {
    %c0_i32 = arith.constant 0 : i32
    %c0_i32_0 = arith.constant 0 : i32
    %c0_i32_1 = arith.constant 0 : i32
    return %c0_i32, %c0_i32_0 : i32, i32
  }
  func.func @transform_7(%arg0: i32) -> (i32, i32) {
    %c0_i32 = arith.constant 0 : i32
    %c0_i32_0 = arith.constant 0 : i32
    %c0_i32_1 = arith.constant 0 : i32
    return %c0_i32, %c0_i32_0 : i32, i32
  }
  func.func @transform_8(%arg0: i32) -> (i32, i32) {
    %c0_i32 = arith.constant 0 : i32
    %c0_i32_0 = arith.constant 0 : i32
    %c0_i32_1 = arith.constant 0 : i32
    return %c0_i32, %c0_i32_0 : i32, i32
  }
  func.func @transform_9(%arg0: i32) -> (i32, i32) {
    %c0_i32 = arith.constant 0 : i32
    %c0_i32_0 = arith.constant 0 : i32
    %c0_i32_1 = arith.constant 0 : i32
    return %c0_i32, %c0_i32_0 : i32, i32
  }
  func.func @transform_10(%arg0: i32) -> (i32, i32) {
    %c0_i32 = arith.constant 0 : i32
    %c0_i32_0 = arith.constant 0 : i32
    %c0_i32_1 = arith.constant 0 : i32
    return %c0_i32, %c0_i32_0 : i32, i32
  }
  func.func @transform_11(%arg0: i32) -> (i32, i32) {
    %c0_i32 = arith.constant 0 : i32
    %c0_i32_0 = arith.constant 0 : i32
    %c0_i32_1 = arith.constant 0 : i32
    return %c0_i32, %c0_i32_0 : i32, i32
  }
  func.func @transform_12(%arg0: i32) -> (i32, i32) {
    %c0_i32 = arith.constant 0 : i32
    %c0_i32_0 = arith.constant 0 : i32
    %c0_i32_1 = arith.constant 0 : i32
    return %c0_i32, %c0_i32_0 : i32, i32
  }
  func.func @transform_13(%arg0: i32) -> (i32, i32) {
    %c0_i32 = arith.constant 0 : i32
    %c0_i32_0 = arith.constant 0 : i32
    %c0_i32_1 = arith.constant 0 : i32
    return %c0_i32, %c0_i32_0 : i32, i32
  }
  func.func @transform_14(%arg0: i32) -> (i32, i32) {
    %c0_i32 = arith.constant 0 : i32
    %c0_i32_0 = arith.constant 0 : i32
    %c0_i32_1 = arith.constant 0 : i32
    return %c0_i32, %c0_i32_0 : i32, i32
  }
  func.func @transform_15(%arg0: i32) -> (i32, i32) {
    %c0_i32 = arith.constant 0 : i32
    %c0_i32_0 = arith.constant 0 : i32
    %c0_i32_1 = arith.constant 0 : i32
    return %c0_i32, %c0_i32_0 : i32, i32
  }
  func.func @transform_16(%arg0: i32) -> (i32, i32) {
    %c0_i32 = arith.constant 0 : i32
    %c0_i32_0 = arith.constant 0 : i32
    %c0_i32_1 = arith.constant 0 : i32
    return %c0_i32, %c0_i32_0 : i32, i32
  }
  func.func @transform_17(%arg0: i32) -> (i32, i32) {
    %c0_i32 = arith.constant 0 : i32
    %c0_i32_0 = arith.constant 0 : i32
    %c0_i32_1 = arith.constant 0 : i32
    return %c0_i32, %c0_i32_0 : i32, i32
  }
  func.func @transform_18(%arg0: i32) -> (i32, i32) {
    %c0_i32 = arith.constant 0 : i32
    %c0_i32_0 = arith.constant 0 : i32
    %c0_i32_1 = arith.constant 0 : i32
    return %c0_i32, %c0_i32_0 : i32, i32
  }
  func.func @transform_19(%arg0: i32) -> (i32, i32) {
    %c0_i32 = arith.constant 0 : i32
    %c0_i32_0 = arith.constant 0 : i32
    %c0_i32_1 = arith.constant 0 : i32
    return %c0_i32, %c0_i32_0 : i32, i32
  }
  func.func @transform_20(%arg0: i32) -> (i32, i32) {
    %c0_i32 = arith.constant 0 : i32
    %c0_i32_0 = arith.constant 0 : i32
    %c0_i32_1 = arith.constant 0 : i32
    return %c0_i32, %c0_i32_0 : i32, i32
  }
  func.func @transform_21(%arg0: i32) -> (i32, i32) {
    %c0_i32 = arith.constant 0 : i32
    %c0_i32_0 = arith.constant 0 : i32
    %c0_i32_1 = arith.constant 0 : i32
    return %c0_i32, %c0_i32_0 : i32, i32
  }
  func.func @transform_22(%arg0: i32) -> (i32, i32) {
    %c0_i32 = arith.constant 0 : i32
    %c0_i32_0 = arith.constant 0 : i32
    %c0_i32_1 = arith.constant 0 : i32
    return %c0_i32, %c0_i32_0 : i32, i32
  }
  func.func @transform_23(%arg0: i32) -> (i32, i32) {
    %c0_i32 = arith.constant 0 : i32
    %c0_i32_0 = arith.constant 0 : i32
    %c0_i32_1 = arith.constant 0 : i32
    return %c0_i32, %c0_i32_0 : i32, i32
  }
  func.func @transform_24(%arg0: i32) -> (i32, i32) {
    %c0_i32 = arith.constant 0 : i32
    %c0_i32_0 = arith.constant 0 : i32
    return %arg0, %c0_i32 : i32, i32
  }
  func.func @transform_25(%arg0: i32) -> (i32, i32) {
    %c0_i32 = arith.constant 0 : i32
    %c0_i32_0 = arith.constant 0 : i32
    return %arg0, %c0_i32 : i32, i32
  }
  func.func @transform_26(%arg0: i32) -> (i32, i32) {
    %c0_i32 = arith.constant 0 : i32
    %c0_i32_0 = arith.constant 0 : i32
    return %arg0, %c0_i32 : i32, i32
  }
  func.func @transform_27(%arg0: i32) -> (i32, i32) {
    %c0_i32 = arith.constant 0 : i32
    %c0_i32_0 = arith.constant 0 : i32
    return %arg0, %c0_i32 : i32, i32
  }
  func.func @transform_28(%arg0: i32) -> (i32, i32) {
    %c0_i32 = arith.constant 0 : i32
    %c0_i32_0 = arith.constant 0 : i32
    return %arg0, %c0_i32 : i32, i32
  }
}

</mosaic_0001>

<llo_original>
// kernel: network_forward.1
$region0: #{network_forward.1}
  #allocation0 [shape = 'u32[]', space=smem, size = 0x4, offset = 0x4, fixed_abs, tag = 'smem constant byte address 0x4 - core index']
  #allocation1 [shape = 'u32[144,128]{1,0:T(1,128)}', space=vmem, size = 0x12000, scoped, tag = 'internal scratch']
  %s0 = inlined_call_operand.vmem [shape: f32[8,768], index: 0, kind: input, shape index: {}]
  %s1 = inlined_call_operand.vmem [shape: f32[8,768], index: 1, kind: input, shape index: {}]
  %s2 = inlined_call_operand.hbm [shape: bf16[768,128], index: 2, kind: input, shape index: {}]
  %s3 = inlined_call_operand.hbm [shape: f32[1,128], index: 3, kind: input, shape index: {}]
  %s4 = inlined_call_operand.hbm [shape: bf16[128,128], index: 4, kind: input, shape index: {}]
  %s5 = inlined_call_operand.hbm [shape: f32[1,128], index: 5, kind: input, shape index: {}]
  %s6 = inlined_call_operand.hbm [shape: bf16[128,128], index: 6, kind: input, shape index: {}]
  %s7 = inlined_call_operand.hbm [shape: f32[1,128], index: 7, kind: input, shape index: {}]
  %s8 = inlined_call_operand.hbm [shape: bf16[128,512], index: 8, kind: input, shape index: {}]
  %s9 = inlined_call_operand.hbm [shape: f32[1,512], index: 9, kind: input, shape index: {}]
  %s10 = inlined_call_operand.hbm [shape: bf16[512,512], index: 10, kind: input, shape index: {}]
  %s11 = inlined_call_operand.hbm [shape: f32[1,512], index: 11, kind: input, shape index: {}]
  %s12 = inlined_call_operand.hbm [shape: bf16[512,2048], index: 12, kind: input, shape index: {}]
  %s13 = inlined_call_operand.hbm [shape: f32[1,2048], index: 13, kind: input, shape index: {}]
  %s14 = inlined_call_operand.hbm [shape: bf16[2048,128], index: 14, kind: input, shape index: {}]
  %s15 = inlined_call_operand.hbm [shape: f32[1,128], index: 15, kind: input, shape index: {}]
  %s16 = inlined_call_operand.hbm [shape: bf16[128,2048], index: 16, kind: input, shape index: {}]
  %s17 = inlined_call_operand.hbm [shape: f32[1,2048], index: 17, kind: input, shape index: {}]
  %s18 = inlined_call_operand.hbm [shape: bf16[2048,512], index: 18, kind: input, shape index: {}]
  %s19 = inlined_call_operand.hbm [shape: f32[1,512], index: 19, kind: input, shape index: {}]
  %s20 = inlined_call_operand.hbm [shape: bf16[512,512], index: 20, kind: input, shape index: {}]
  %s21 = inlined_call_operand.hbm [shape: f32[1,512], index: 21, kind: input, shape index: {}]
  %s22 = inlined_call_operand.hbm [shape: bf16[512,128], index: 22, kind: input, shape index: {}]
  %s23 = inlined_call_operand.hbm [shape: f32[1,128], index: 23, kind: input, shape index: {}]
  %s24 = inlined_call_operand.vmem [shape: f32[8,128], index: 24, kind: output, shape index: {0}]
  %s25 = inlined_call_operand.vmem [shape: f32[8,128], index: 25, kind: output, shape index: {1}]
  %s26 = inlined_call_operand.vmem [shape: f32[8,128], index: 26, kind: output, shape index: {2}]
  %s27 = inlined_call_operand.vmem [shape: f32[8,128], index: 27, kind: output, shape index: {3}]
  %s28 = inlined_call_operand.vmem [shape: f32[8,128], index: 28, kind: output, shape index: {4}]
  %29 = xla_tuple %s24, %s25, %s26, %s27, %s28
  %s30 = sld [smem:[#allocation0]]
  $region226: #{network_forward.1} parent=0
    _
  %s32 = ssub.s32 1, %s30
  %s33 = scalar_select 0, %s32, %s30
  $region1: #{network_forward.1} parent=0
    #allocation2 [shape = 'u8[196608]{0}', space=vmem, size = 0x30000, scoped, tag = 'input window, operand 2, single buffered']
    #allocation3 [shape = 's32[1]{0}', space=sflag, size = 0x4, scoped, tag = 'scoped memory for network_forward.1']
    #allocation4 [shape = 'u8[512]{0}', space=vmem, size = 0x400, scoped, tag = 'input window, operand 3, single buffered']
    #allocation5 [shape = 's32[1]{0}', space=sflag, size = 0x4, scoped, tag = 'scoped memory for network_forward.1']
    #allocation6 [shape = 'u8[32768]{0}', space=vmem, size = 0x8000, scoped, tag = 'input window, operand 4, single buffered']
    #allocation7 [shape = 'u8[512]{0}', space=vmem, size = 0x400, scoped, tag = 'input window, operand 5, single buffered']
    #allocation8 [shape = 's32[1]{0}', space=sflag, size = 0x4, scoped, tag = 'scoped memory for network_forward.1']
    #allocation9 [shape = 'u8[32768]{0}', space=vmem, size = 0x8000, scoped, tag = 'input window, operand 6, single buffered']
    #allocation10 [shape = 'u8[512]{0}', space=vmem, size = 0x400, scoped, tag = 'input window, operand 7, single buffered']
    #allocation11 [shape = 's32[1]{0}', space=sflag, size = 0x4, scoped, tag = 'scoped memory for network_forward.1']
    #allocation12 [shape = 'u8[131072]{0}', space=vmem, size = 0x20000, scoped, tag = 'input window, operand 8, single buffered']
    #allocation13 [shape = 'u8[2048]{0}', space=vmem, size = 0x800, scoped, tag = 'input window, operand 9, single buffered']
    #allocation14 [shape = 's32[1]{0}', space=sflag, size = 0x4, scoped, tag = 'scoped memory for network_forward.1']
    #allocation15 [shape = 'u8[524288]{0}', space=vmem, size = 0x80000, scoped, tag = 'input window, operand 10, single buffered']
    #allocation16 [shape = 'u8[2048]{0}', space=vmem, size = 0x800, scoped, tag = 'input window, operand 11, single buffered']
    #allocation17 [shape = 's32[1]{0}', space=sflag, size = 0x4, scoped, tag = 'scoped memory for network_forward.1']
    #allocation18 [shape = 'u8[2097152]{0}', space=vmem, size = 0x200000, scoped, tag = 'input window, operand 12, single buffered']
    #allocation19 [shape = 'u8[8192]{0}', space=vmem, size = 0x2000, scoped, tag = 'input window, operand 13, single buffered']
    #allocation20 [shape = 's32[1]{0}', space=sflag, size = 0x4, scoped, tag = 'scoped memory for network_forward.1']
    #allocation21 [shape = 'u8[524288]{0}', space=vmem, size = 0x80000, scoped, tag = 'input window, operand 14, single buffered']
    #allocation22 [shape = 'u8[512]{0}', space=vmem, size = 0x400, scoped, tag = 'input window, operand 15, single buffered']
    #allocation23 [shape = 's32[1]{0}', space=sflag, size = 0x4, scoped, tag = 'scoped memory for network_forward.1']
    #allocation24 [shape = 'u8[524288]{0}', space=vmem, size = 0x80000, scoped, tag = 'input window, operand 16, single buffered']
    #allocation25 [shape = 'u8[8192]{0}', space=vmem, size = 0x2000, scoped, tag = 'input window, operand 17, single buffered']
    #allocation26 [shape = 's32[1]{0}', space=sflag, size = 0x4, scoped, tag = 'scoped memory for network_forward.1']
    #allocation27 [shape = 'u8[2097152]{0}', space=vmem, size = 0x200000, scoped, tag = 'input window, operand 18, single buffered']
    #allocation28 [shape = 'u8[2048]{0}', space=vmem, size = 0x800, scoped, tag = 'input window, operand 19, single buffered']
    #allocation29 [shape = 's32[1]{0}', space=sflag, size = 0x4, scoped, tag = 'scoped memory for network_forward.1']
    #allocation30 [shape = 'u8[524288]{0}', space=vmem, size = 0x80000, scoped, tag = 'input window, operand 20, single buffered']
    #allocation31 [shape = 'u8[2048]{0}', space=vmem, size = 0x800, scoped, tag = 'input window, operand 21, single buffered']
    #allocation32 [shape = 's32[1]{0}', space=sflag, size = 0x4, scoped, tag = 'scoped memory for network_forward.1']
    #allocation33 [shape = 'u8[131072]{0}', space=vmem, size = 0x20000, scoped, tag = 'input window, operand 22, single buffered']
    #allocation34 [shape = 'u8[512]{0}', space=vmem, size = 0x400, scoped, tag = 'input window, operand 23, single buffered']
    #allocation35 [shape = 's32[1]{0}', space=sflag, size = 0x4, scoped, tag = 'scoped memory for network_forward.1']
    %34 = vsyncpa [#allocation3], 0
    %35 = vsyncpa [#allocation5], 0
    %36 = vsyncpa [#allocation8], 0
    %37 = vsyncpa [#allocation11], 0
    %38 = vsyncpa [#allocation14], 0
    %39 = vsyncpa [#allocation17], 0
    %40 = vsyncpa [#allocation20], 0
    %41 = vsyncpa [#allocation23], 0
    %42 = vsyncpa [#allocation26], 0
    %43 = vsyncpa [#allocation29], 0
    %44 = vsyncpa [#allocation32], 0
    %45 = vsyncpa [#allocation35], 0
    // Predicated region
    $region2: #{network_forward.1} parent=1 // pred_check
      _
    $region3: #{network_forward.1} parent=1 // pred_check_branch
      %47 = sbr.rel (0) target = $region5
    $region4: #{network_forward.1} parent=1 // pred_region
      _
    $region5: #{network_forward.1} parent=1 // pred_fallthru
      _
    // Predicated region
    $region6: #{network_forward.1} parent=1 // pred_check
      _
    $region7: #{network_forward.1} parent=1 // pred_check_branch
      %49 = sbr.rel (0) target = $region9
    $region8: #{network_forward.1} parent=1 // pred_region
      _
    $region9: #{network_forward.1} parent=1 // pred_fallthru
      _
    // Predicated region
    $region10: #{network_forward.1} parent=1 // pred_check
      _
    $region11: #{network_forward.1} parent=1 // pred_check_branch
      %51 = sbr.rel (0) target = $region13
    $region12: #{network_forward.1} parent=1 // pred_region
      %s53 = ssub.s32 6144, 6144
      %54 = vsyncadd [#allocation3], %s53
      %s55 = sshll.u32 [#allocation2], 4
      %s56 = int_to_ptr.vmem [resolvable:$true] %s55
      %61 = dma.hbm_to_vmem [thread:$0]  %s2, 6144, %s56, [#allocation3], 64, 64, 4
    $region13: #{network_forward.1} parent=1 // pred_fallthru
      _
    // Predicated region
    $region14: #{network_forward.1} parent=1 // pred_check
      _
    $region15: #{network_forward.1} parent=1 // pred_check_branch
      %63 = sbr.rel (0) target = $region17
    $region16: #{network_forward.1} parent=1 // pred_region
      %s65 = ssub.s32 16, 16
      %66 = vsyncadd [#allocation5], %s65
      %s68 = sshll.u32 [#allocation4], 4
      %s69 = int_to_ptr.vmem [resolvable:$true] %s68
      %71 = dma.hbm_to_vmem [thread:$0]  %s3, 16, %s69, [#allocation5]
    $region17: #{network_forward.1} parent=1 // pred_fallthru
      _
    // Predicated region
    $region18: #{network_forward.1} parent=1 // pred_check
      _
    $region19: #{network_forward.1} parent=1 // pred_check_branch
      %73 = sbr.rel (0) target = $region21
    $region20: #{network_forward.1} parent=1 // pred_region
      %s75 = ssub.s32 1024, 1024
      %76 = vsyncadd [#allocation5], %s75
      %s77 = sshll.u32 [#allocation6], 4
      %s78 = int_to_ptr.vmem [resolvable:$true] %s77
      %83 = dma.hbm_to_vmem [thread:$0]  %s4, 1024, %s78, [#allocation5], 64, 64, 4
    $region21: #{network_forward.1} parent=1 // pred_fallthru
      _
    // Predicated region
    $region22: #{network_forward.1} parent=1 // pred_check
      _
    $region23: #{network_forward.1} parent=1 // pred_check_branch
      %85 = sbr.rel (0) target = $region25
    $region24: #{network_forward.1} parent=1 // pred_region
      %s87 = ssub.s32 16, 16
      %88 = vsyncadd [#allocation8], %s87
      %s90 = sshll.u32 [#allocation7], 4
      %s91 = int_to_ptr.vmem [resolvable:$true] %s90
      %93 = dma.hbm_to_vmem [thread:$0]  %s5, 16, %s91, [#allocation8]
    $region25: #{network_forward.1} parent=1 // pred_fallthru
      _
    // Predicated region
    $region26: #{network_forward.1} parent=1 // pred_check
      _
    $region27: #{network_forward.1} parent=1 // pred_check_branch
      %95 = sbr.rel (0) target = $region29
    $region28: #{network_forward.1} parent=1 // pred_region
      %s97 = ssub.s32 1024, 1024
      %98 = vsyncadd [#allocation8], %s97
      %s99 = sshll.u32 [#allocation9], 4
      %s100 = int_to_ptr.vmem [resolvable:$true] %s99
      %105 = dma.hbm_to_vmem [thread:$0]  %s6, 1024, %s100, [#allocation8], 64, 64, 4
    $region29: #{network_forward.1} parent=1 // pred_fallthru
      _
    // Predicated region
    $region30: #{network_forward.1} parent=1 // pred_check
      _
    $region31: #{network_forward.1} parent=1 // pred_check_branch
      %107 = sbr.rel (0) target = $region33
    $region32: #{network_forward.1} parent=1 // pred_region
      %s109 = ssub.s32 16, 16
      %110 = vsyncadd [#allocation11], %s109
      %s112 = sshll.u32 [#allocation10], 4
      %s113 = int_to_ptr.vmem [resolvable:$true] %s112
      %115 = dma.hbm_to_vmem [thread:$0]  %s7, 16, %s113, [#allocation11]
    $region33: #{network_forward.1} parent=1 // pred_fallthru
      _
    // Predicated region
    $region34: #{network_forward.1} parent=1 // pred_check
      _
    $region35: #{network_forward.1} parent=1 // pred_check_branch
      %117 = sbr.rel (0) target = $region37
    $region36: #{network_forward.1} parent=1 // pred_region
      %s119 = ssub.s32 4096, 4096
      %120 = vsyncadd [#allocation11], %s119
      %s121 = sshll.u32 [#allocation12], 4
      %s122 = int_to_ptr.vmem [resolvable:$true] %s121
      %127 = dma.hbm_to_vmem [thread:$0]  %s8, 4096, %s122, [#allocation11], 256, 256, 16
    $region37: #{network_forward.1} parent=1 // pred_fallthru
      _
    // Predicated region
    $region38: #{network_forward.1} parent=1 // pred_check
      _
    $region39: #{network_forward.1} parent=1 // pred_check_branch
      %129 = sbr.rel (0) target = $region41
    $region40: #{network_forward.1} parent=1 // pred_region
      %s131 = ssub.s32 64, 64
      %132 = vsyncadd [#allocation14], %s131
      %s134 = sshll.u32 [#allocation13], 4
      %s135 = int_to_ptr.vmem [resolvable:$true] %s134
      %137 = dma.hbm_to_vmem [thread:$0]  %s9, 64, %s135, [#allocation14]
    $region41: #{network_forward.1} parent=1 // pred_fallthru
      _
    // Predicated region
    $region42: #{network_forward.1} parent=1 // pred_check
      _
    $region43: #{network_forward.1} parent=1 // pred_check_branch
      %139 = sbr.rel (0) target = $region45
    $region44: #{network_forward.1} parent=1 // pred_region
      %s141 = ssub.s32 16384, 16384
      %142 = vsyncadd [#allocation14], %s141
      %s143 = sshll.u32 [#allocation15], 4
      %s144 = int_to_ptr.vmem [resolvable:$true] %s143
      %149 = dma.hbm_to_vmem [thread:$0]  %s10, 16384, %s144, [#allocation14], 256, 256, 16
    $region45: #{network_forward.1} parent=1 // pred_fallthru
      _
    // Predicated region
    $region46: #{network_forward.1} parent=1 // pred_check
      _
    $region47: #{network_forward.1} parent=1 // pred_check_branch
      %151 = sbr.rel (0) target = $region49
    $region48: #{network_forward.1} parent=1 // pred_region
      %s153 = ssub.s32 64, 64
      %154 = vsyncadd [#allocation17], %s153
      %s156 = sshll.u32 [#allocation16], 4
      %s157 = int_to_ptr.vmem [resolvable:$true] %s156
      %159 = dma.hbm_to_vmem [thread:$0]  %s11, 64, %s157, [#allocation17]
    $region49: #{network_forward.1} parent=1 // pred_fallthru
      _
    // Predicated region
    $region50: #{network_forward.1} parent=1 // pred_check
      _
    $region51: #{network_forward.1} parent=1 // pred_check_branch
      %161 = sbr.rel (0) target = $region53
    $region52: #{network_forward.1} parent=1 // pred_region
      %s163 = ssub.s32 65536, 65536
      %164 = vsyncadd [#allocation17], %s163
      %s165 = sshll.u32 [#allocation18], 4
      %s166 = int_to_ptr.vmem [resolvable:$true] %s165
      %171 = dma.hbm_to_vmem [thread:$0]  %s12, 65536, %s166, [#allocation17], 1024, 1024, 64
    $region53: #{network_forward.1} parent=1 // pred_fallthru
      _
    // Predicated region
    $region54: #{network_forward.1} parent=1 // pred_check
      _
    $region55: #{network_forward.1} parent=1 // pred_check_branch
      %173 = sbr.rel (0) target = $region57
    $region56: #{network_forward.1} parent=1 // pred_region
      %s175 = ssub.s32 256, 256
      %176 = vsyncadd [#allocation20], %s175
      %s178 = sshll.u32 [#allocation19], 4
      %s179 = int_to_ptr.vmem [resolvable:$true] %s178
      %181 = dma.hbm_to_vmem [thread:$0]  %s13, 256, %s179, [#allocation20]
    $region57: #{network_forward.1} parent=1 // pred_fallthru
      _
    // Predicated region
    $region58: #{network_forward.1} parent=1 // pred_check
      _
    $region59: #{network_forward.1} parent=1 // pred_check_branch
      %183 = sbr.rel (0) target = $region61
    $region60: #{network_forward.1} parent=1 // pred_region
      %s185 = ssub.s32 16384, 16384
      %186 = vsyncadd [#allocation20], %s185
      %s187 = sshll.u32 [#allocation21], 4
      %s188 = int_to_ptr.vmem [resolvable:$true] %s187
      %193 = dma.hbm_to_vmem [thread:$0]  %s14, 16384, %s188, [#allocation20], 64, 64, 4
    $region61: #{network_forward.1} parent=1 // pred_fallthru
      _
    // Predicated region
    $region62: #{network_forward.1} parent=1 // pred_check
      _
    $region63: #{network_forward.1} parent=1 // pred_check_branch
      %195 = sbr.rel (0) target = $region65
    $region64: #{network_forward.1} parent=1 // pred_region
      %s197 = ssub.s32 16, 16
      %198 = vsyncadd [#allocation23], %s197
      %s200 = sshll.u32 [#allocation22], 4
      %s201 = int_to_ptr.vmem [resolvable:$true] %s200
      %203 = dma.hbm_to_vmem [thread:$0]  %s15, 16, %s201, [#allocation23]
    $region65: #{network_forward.1} parent=1 // pred_fallthru
      _
    // Predicated region
    $region66: #{network_forward.1} parent=1 // pred_check
      _
    $region67: #{network_forward.1} parent=1 // pred_check_branch
      %205 = sbr.rel (0) target = $region69
    $region68: #{network_forward.1} parent=1 // pred_region
      %s207 = ssub.s32 16384, 16384
      %208 = vsyncadd [#allocation23], %s207
      %s209 = sshll.u32 [#allocation24], 4
      %s210 = int_to_ptr.vmem [resolvable:$true] %s209
      %215 = dma.hbm_to_vmem [thread:$0]  %s16, 16384, %s210, [#allocation23], 1024, 1024, 64
    $region69: #{network_forward.1} parent=1 // pred_fallthru
      _
    // Predicated region
    $region70: #{network_forward.1} parent=1 // pred_check
      _
    $region71: #{network_forward.1} parent=1 // pred_check_branch
      %217 = sbr.rel (0) target = $region73
    $region72: #{network_forward.1} parent=1 // pred_region
      %s219 = ssub.s32 256, 256
      %220 = vsyncadd [#allocation26], %s219
      %s222 = sshll.u32 [#allocation25], 4
      %s223 = int_to_ptr.vmem [resolvable:$true] %s222
      %225 = dma.hbm_to_vmem [thread:$0]  %s17, 256, %s223, [#allocation26]
    $region73: #{network_forward.1} parent=1 // pred_fallthru
      _
    // Predicated region
    $region74: #{network_forward.1} parent=1 // pred_check
      _
    $region75: #{network_forward.1} parent=1 // pred_check_branch
      %227 = sbr.rel (0) target = $region77
    $region76: #{network_forward.1} parent=1 // pred_region
      %s229 = ssub.s32 65536, 65536
      %230 = vsyncadd [#allocation26], %s229
      %s231 = sshll.u32 [#allocation27], 4
      %s232 = int_to_ptr.vmem [resolvable:$true] %s231
      %237 = dma.hbm_to_vmem [thread:$0]  %s18, 65536, %s232, [#allocation26], 256, 256, 16
    $region77: #{network_forward.1} parent=1 // pred_fallthru
      _
    // Predicated region
    $region78: #{network_forward.1} parent=1 // pred_check
      _
    $region79: #{network_forward.1} parent=1 // pred_check_branch
      %239 = sbr.rel (0) target = $region81
    $region80: #{network_forward.1} parent=1 // pred_region
      %s241 = ssub.s32 64, 64
      %242 = vsyncadd [#allocation29], %s241
      %s244 = sshll.u32 [#allocation28], 4
      %s245 = int_to_ptr.vmem [resolvable:$true] %s244
      %247 = dma.hbm_to_vmem [thread:$0]  %s19, 64, %s245, [#allocation29]
    $region81: #{network_forward.1} parent=1 // pred_fallthru
      _
    // Predicated region
    $region82: #{network_forward.1} parent=1 // pred_check
      _
    $region83: #{network_forward.1} parent=1 // pred_check_branch
      %249 = sbr.rel (0) target = $region85
    $region84: #{network_forward.1} parent=1 // pred_region
      %s251 = ssub.s32 16384, 16384
      %252 = vsyncadd [#allocation29], %s251
      %s253 = sshll.u32 [#allocation30], 4
      %s254 = int_to_ptr.vmem [resolvable:$true] %s253
      %259 = dma.hbm_to_vmem [thread:$0]  %s20, 16384, %s254, [#allocation29], 256, 256, 16
    $region85: #{network_forward.1} parent=1 // pred_fallthru
      _
    // Predicated region
    $region86: #{network_forward.1} parent=1 // pred_check
      _
    $region87: #{network_forward.1} parent=1 // pred_check_branch
      %261 = sbr.rel (0) target = $region89
    $region88: #{network_forward.1} parent=1 // pred_region
      %s263 = ssub.s32 64, 64
      %264 = vsyncadd [#allocation32], %s263
      %s266 = sshll.u32 [#allocation31], 4
      %s267 = int_to_ptr.vmem [resolvable:$true] %s266
      %269 = dma.hbm_to_vmem [thread:$0]  %s21, 64, %s267, [#allocation32]
    $region89: #{network_forward.1} parent=1 // pred_fallthru
      _
    // Predicated region
    $region90: #{network_forward.1} parent=1 // pred_check
      _
    $region91: #{network_forward.1} parent=1 // pred_check_branch
      %271 = sbr.rel (0) target = $region93
    $region92: #{network_forward.1} parent=1 // pred_region
      %s273 = ssub.s32 4096, 4096
      %274 = vsyncadd [#allocation32], %s273
      %s275 = sshll.u32 [#allocation33], 4
      %s276 = int_to_ptr.vmem [resolvable:$true] %s275
      %281 = dma.hbm_to_vmem [thread:$0]  %s22, 4096, %s276, [#allocation32], 64, 64, 4
    $region93: #{network_forward.1} parent=1 // pred_fallthru
      _
    // Predicated region
    $region94: #{network_forward.1} parent=1 // pred_check
      _
    $region95: #{network_forward.1} parent=1 // pred_check_branch
      %283 = sbr.rel (0) target = $region97
    $region96: #{network_forward.1} parent=1 // pred_region
      %s285 = ssub.s32 16, 16
      %286 = vsyncadd [#allocation35], %s285
      %s288 = sshll.u32 [#allocation34], 4
      %s289 = int_to_ptr.vmem [resolvable:$true] %s288
      %291 = dma.hbm_to_vmem [thread:$0]  %s23, 16, %s289, [#allocation35]
    $region97: #{network_forward.1} parent=1 // pred_fallthru
      _
    // Predicated region
    $region98: #{network_forward.1} parent=1 // pred_check
      _
    $region99: #{network_forward.1} parent=1 // pred_check_branch
      %293 = sbr.rel (0) target = $region101
    $region100: #{network_forward.1} parent=1 // pred_region
      %294 = dma.done [#allocation3], 6144
    $region101: #{network_forward.1} parent=1 // pred_fallthru
      _
    // Predicated region
    $region102: #{network_forward.1} parent=1 // pred_check
      _
    $region103: #{network_forward.1} parent=1 // pred_check_branch
      %296 = sbr.rel (0) target = $region105
    $region104: #{network_forward.1} parent=1 // pred_region
      %297 = dma.done [#allocation5], 16
    $region105: #{network_forward.1} parent=1 // pred_fallthru
      _
    // Predicated region
    $region106: #{network_forward.1} parent=1 // pred_check
      _
    $region107: #{network_forward.1} parent=1 // pred_check_branch
      %299 = sbr.rel (0) target = $region109
    $region108: #{network_forward.1} parent=1 // pred_region
      %300 = dma.done [#allocation5], 1024
    $region109: #{network_forward.1} parent=1 // pred_fallthru
      _
    // Predicated region
    $region110: #{network_forward.1} parent=1 // pred_check
      _
    $region111: #{network_forward.1} parent=1 // pred_check_branch
      %302 = sbr.rel (0) target = $region113
    $region112: #{network_forward.1} parent=1 // pred_region
      %303 = dma.done [#allocation8], 16
    $region113: #{network_forward.1} parent=1 // pred_fallthru
      _
    // Predicated region
    $region114: #{network_forward.1} parent=1 // pred_check
      _
    $region115: #{network_forward.1} parent=1 // pred_check_branch
      %305 = sbr.rel (0) target = $region117
    $region116: #{network_forward.1} parent=1 // pred_region
      %306 = dma.done [#allocation8], 1024
    $region117: #{network_forward.1} parent=1 // pred_fallthru
      _
    // Predicated region
    $region118: #{network_forward.1} parent=1 // pred_check
      _
    $region119: #{network_forward.1} parent=1 // pred_check_branch
      %308 = sbr.rel (0) target = $region121
    $region120: #{network_forward.1} parent=1 // pred_region
      %309 = dma.done [#allocation11], 16
    $region121: #{network_forward.1} parent=1 // pred_fallthru
      _
    // Predicated region
    $region122: #{network_forward.1} parent=1 // pred_check
      _
    $region123: #{network_forward.1} parent=1 // pred_check_branch
      %311 = sbr.rel (0) target = $region125
    $region124: #{network_forward.1} parent=1 // pred_region
      %312 = dma.done [#allocation11], 4096
    $region125: #{network_forward.1} parent=1 // pred_fallthru
      _
    // Predicated region
    $region126: #{network_forward.1} parent=1 // pred_check
      _
    $region127: #{network_forward.1} parent=1 // pred_check_branch
      %314 = sbr.rel (0) target = $region129
    $region128: #{network_forward.1} parent=1 // pred_region
      %315 = dma.done [#allocation14], 64
    $region129: #{network_forward.1} parent=1 // pred_fallthru
      _
    // Predicated region
    $region130: #{network_forward.1} parent=1 // pred_check
      _
    $region131: #{network_forward.1} parent=1 // pred_check_branch
      %317 = sbr.rel (0) target = $region133
    $region132: #{network_forward.1} parent=1 // pred_region
      %318 = dma.done [#allocation14], 16384
    $region133: #{network_forward.1} parent=1 // pred_fallthru
      _
    // Predicated region
    $region134: #{network_forward.1} parent=1 // pred_check
      _
    $region135: #{network_forward.1} parent=1 // pred_check_branch
      %320 = sbr.rel (0) target = $region137
    $region136: #{network_forward.1} parent=1 // pred_region
      %321 = dma.done [#allocation17], 64
    $region137: #{network_forward.1} parent=1 // pred_fallthru
      _
    // Predicated region
    $region138: #{network_forward.1} parent=1 // pred_check
      _
    $region139: #{network_forward.1} parent=1 // pred_check_branch
      %323 = sbr.rel (0) target = $region141
    $region140: #{network_forward.1} parent=1 // pred_region
      %324 = dma.done [#allocation17], 65536
    $region141: #{network_forward.1} parent=1 // pred_fallthru
      _
    // Predicated region
    $region142: #{network_forward.1} parent=1 // pred_check
      _
    $region143: #{network_forward.1} parent=1 // pred_check_branch
      %326 = sbr.rel (0) target = $region145
    $region144: #{network_forward.1} parent=1 // pred_region
      %327 = dma.done [#allocation20], 256
    $region145: #{network_forward.1} parent=1 // pred_fallthru
      _
    // Predicated region
    $region146: #{network_forward.1} parent=1 // pred_check
      _
    $region147: #{network_forward.1} parent=1 // pred_check_branch
      %329 = sbr.rel (0) target = $region149
    $region148: #{network_forward.1} parent=1 // pred_region
      %330 = dma.done [#allocation20], 16384
    $region149: #{network_forward.1} parent=1 // pred_fallthru
      _
    // Predicated region
    $region150: #{network_forward.1} parent=1 // pred_check
      _
    $region151: #{network_forward.1} parent=1 // pred_check_branch
      %332 = sbr.rel (0) target = $region153
    $region152: #{network_forward.1} parent=1 // pred_region
      %333 = dma.done [#allocation23], 16
    $region153: #{network_forward.1} parent=1 // pred_fallthru
      _
    // Predicated region
    $region154: #{network_forward.1} parent=1 // pred_check
      _
    $region155: #{network_forward.1} parent=1 // pred_check_branch
      %335 = sbr.rel (0) target = $region157
    $region156: #{network_forward.1} parent=1 // pred_region
      %336 = dma.done [#allocation23], 16384
    $region157: #{network_forward.1} parent=1 // pred_fallthru
      _
    // Predicated region
    $region158: #{network_forward.1} parent=1 // pred_check
      _
    $region159: #{network_forward.1} parent=1 // pred_check_branch
      %338 = sbr.rel (0) target = $region161
    $region160: #{network_forward.1} parent=1 // pred_region
      %339 = dma.done [#allocation26], 256
    $region161: #{network_forward.1} parent=1 // pred_fallthru
      _
    // Predicated region
    $region162: #{network_forward.1} parent=1 // pred_check
      _
    $region163: #{network_forward.1} parent=1 // pred_check_branch
      %341 = sbr.rel (0) target = $region165
    $region164: #{network_forward.1} parent=1 // pred_region
      %342 = dma.done [#allocation26], 65536
    $region165: #{network_forward.1} parent=1 // pred_fallthru
      _
    // Predicated region
    $region166: #{network_forward.1} parent=1 // pred_check
      _
    $region167: #{network_forward.1} parent=1 // pred_check_branch
      %344 = sbr.rel (0) target = $region169
    $region168: #{network_forward.1} parent=1 // pred_region
      %345 = dma.done [#allocation29], 64
    $region169: #{network_forward.1} parent=1 // pred_fallthru
      _
    // Predicated region
    $region170: #{network_forward.1} parent=1 // pred_check
      _
    $region171: #{network_forward.1} parent=1 // pred_check_branch
      %347 = sbr.rel (0) target = $region173
    $region172: #{network_forward.1} parent=1 // pred_region
      %348 = dma.done [#allocation29], 16384
    $region173: #{network_forward.1} parent=1 // pred_fallthru
      _
    // Predicated region
    $region174: #{network_forward.1} parent=1 // pred_check
      _
    $region175: #{network_forward.1} parent=1 // pred_check_branch
      %350 = sbr.rel (0) target = $region177
    $region176: #{network_forward.1} parent=1 // pred_region
      %351 = dma.done [#allocation32], 64
    $region177: #{network_forward.1} parent=1 // pred_fallthru
      _
    // Predicated region
    $region178: #{network_forward.1} parent=1 // pred_check
      _
    $region179: #{network_forward.1} parent=1 // pred_check_branch
      %353 = sbr.rel (0) target = $region181
    $region180: #{network_forward.1} parent=1 // pred_region
      %354 = dma.done [#allocation32], 4096
    $region181: #{network_forward.1} parent=1 // pred_fallthru
      _
    // Predicated region
    $region182: #{network_forward.1} parent=1 // pred_check
      _
    $region183: #{network_forward.1} parent=1 // pred_check_branch
      %356 = sbr.rel (0) target = $region185
    $region184: #{network_forward.1} parent=1 // pred_region
      %357 = dma.done [#allocation35], 16
    $region185: #{network_forward.1} parent=1 // pred_fallthru
      _
    %v359 = vld [vmem:[%s0] sm:$0xff]
    %v360 = vld [vmem:[%s0 + $0x8] sm:$0xff]
    %v361 = vld [vmem:[%s0 + $0x10] sm:$0xff]
    %v362 = vld [vmem:[%s0 + $0x18] sm:$0xff]
    %v363 = vld [vmem:[%s0 + $0x20] sm:$0xff]
    %v364 = vld [vmem:[%s0 + $0x28] sm:$0xff]
    %v365 = vld [vmem:[%s1] sm:$0xff]
    %v366 = vld [vmem:[%s1 + $0x8] sm:$0xff]
    %v367 = vld [vmem:[%s1 + $0x10] sm:$0xff]
    %v368 = vld [vmem:[%s1 + $0x18] sm:$0xff]
    %v369 = vld [vmem:[%s1 + $0x20] sm:$0xff]
    %v370 = vld [vmem:[%s1 + $0x28] sm:$0xff]
    %v371 = vpack.c.bf16 %v365, %v359
    %v372 = vpack.c.bf16 %v366, %v360
    %v373 = vpack.c.bf16 %v367, %v361
    %v374 = vpack.c.bf16 %v368, %v362
    %v375 = vpack.c.bf16 %v369, %v363
    %v376 = vpack.c.bf16 %v370, %v364
    %v377 = vld [vmem:[#allocation2] sm:$0xf]
    %v378 = vld [vmem:[#allocation2 + $0x4] sm:$0xf]
    %v379 = vld [vmem:[#allocation2 + $0x8] sm:$0xf]
    %v380 = vld [vmem:[#allocation2 + $0xc] sm:$0xf]
    %v381 = vld [vmem:[#allocation2 + $0x10] sm:$0xf]
    %v382 = vld [vmem:[#allocation2 + $0x14] sm:$0xf]
    %v383 = vld [vmem:[#allocation2 + $0x18] sm:$0xf]
    %v384 = vld [vmem:[#allocation2 + $0x1c] sm:$0xf]
    %v385 = vld [vmem:[#allocation2 + $0x20] sm:$0xf]
    %v386 = vld [vmem:[#allocation2 + $0x24] sm:$0xf]
    %v387 = vld [vmem:[#allocation2 + $0x28] sm:$0xf]
    %v388 = vld [vmem:[#allocation2 + $0x2c] sm:$0xf]
    %v389 = vld [vmem:[#allocation2 + $0x30] sm:$0xf]
    %v390 = vld [vmem:[#allocation2 + $0x34] sm:$0xf]
    %v391 = vld [vmem:[#allocation2 + $0x38] sm:$0xf]
    %v392 = vld [vmem:[#allocation2 + $0x3c] sm:$0xf]
    %v393 = vld [vmem:[#allocation2 + $0x40] sm:$0xf]
    %v394 = vld [vmem:[#allocation2 + $0x44] sm:$0xf]
    %v395 = vld [vmem:[#allocation2 + $0x48] sm:$0xf]
    %v396 = vld [vmem:[#allocation2 + $0x4c] sm:$0xf]
    %v397 = vld [vmem:[#allocation2 + $0x50] sm:$0xf]
    %v398 = vld [vmem:[#allocation2 + $0x54] sm:$0xf]
    %v399 = vld [vmem:[#allocation2 + $0x58] sm:$0xf]
    %v400 = vld [vmem:[#allocation2 + $0x5c] sm:$0xf]
    %v401 = vld [vmem:[#allocation2 + $0x60] sm:$0xf]
    %v402 = vld [vmem:[#allocation2 + $0x64] sm:$0xf]
    %v403 = vld [vmem:[#allocation2 + $0x68] sm:$0xf]
    %v404 = vld [vmem:[#allocation2 + $0x6c] sm:$0xf]
    %v405 = vld [vmem:[#allocation2 + $0x70] sm:$0xf]
    %v406 = vld [vmem:[#allocation2 + $0x74] sm:$0xf]
    %v407 = vld [vmem:[#allocation2 + $0x78] sm:$0xf]
    %v408 = vld [vmem:[#allocation2 + $0x7c] sm:$0xf]
    %v409 = vld [vmem:[#allocation2 + $0x80] sm:$0xf]
    %v410 = vld [vmem:[#allocation2 + $0x84] sm:$0xf]
    %v411 = vld [vmem:[#allocation2 + $0x88] sm:$0xf]
    %v412 = vld [vmem:[#allocation2 + $0x8c] sm:$0xf]
    %v413 = vld [vmem:[#allocation2 + $0x90] sm:$0xf]
    %v414 = vld [vmem:[#allocation2 + $0x94] sm:$0xf]
    %v415 = vld [vmem:[#allocation2 + $0x98] sm:$0xf]
    %v416 = vld [vmem:[#allocation2 + $0x9c] sm:$0xf]
    %v417 = vld [vmem:[#allocation2 + $0xa0] sm:$0xf]
    %v418 = vld [vmem:[#allocation2 + $0xa4] sm:$0xf]
    %v419 = vld [vmem:[#allocation2 + $0xa8] sm:$0xf]
    %v420 = vld [vmem:[#allocation2 + $0xac] sm:$0xf]
    %v421 = vld [vmem:[#allocation2 + $0xb0] sm:$0xf]
    %v422 = vld [vmem:[#allocation2 + $0xb4] sm:$0xf]
    %v423 = vld [vmem:[#allocation2 + $0xb8] sm:$0xf]
    %v424 = vld [vmem:[#allocation2 + $0xbc] sm:$0xf]
    %v425 = vld [vmem:[#allocation2 + $0xc0] sm:$0xf]
    %v426 = vld [vmem:[#allocation2 + $0xc4] sm:$0xf]
    %v427 = vld [vmem:[#allocation2 + $0xc8] sm:$0xf]
    %v428 = vld [vmem:[#allocation2 + $0xcc] sm:$0xf]
    %v429 = vld [vmem:[#allocation2 + $0xd0] sm:$0xf]
    %v430 = vld [vmem:[#allocation2 + $0xd4] sm:$0xf]
    %v431 = vld [vmem:[#allocation2 + $0xd8] sm:$0xf]
    %v432 = vld [vmem:[#allocation2 + $0xdc] sm:$0xf]
    %v433 = vld [vmem:[#allocation2 + $0xe0] sm:$0xf]
    %v434 = vld [vmem:[#allocation2 + $0xe4] sm:$0xf]
    %v435 = vld [vmem:[#allocation2 + $0xe8] sm:$0xf]
    %v436 = vld [vmem:[#allocation2 + $0xec] sm:$0xf]
    %v437 = vld [vmem:[#allocation2 + $0xf0] sm:$0xf]
    %v438 = vld [vmem:[#allocation2 + $0xf4] sm:$0xf]
    %v439 = vld [vmem:[#allocation2 + $0xf8] sm:$0xf]
    %v440 = vld [vmem:[#allocation2 + $0xfc] sm:$0xf]
    %v441 = vld [vmem:[#allocation2 + $0x100] sm:$0xf]
    %v442 = vld [vmem:[#allocation2 + $0x104] sm:$0xf]
    %v443 = vld [vmem:[#allocation2 + $0x108] sm:$0xf]
    %v444 = vld [vmem:[#allocation2 + $0x10c] sm:$0xf]
    %v445 = vld [vmem:[#allocation2 + $0x110] sm:$0xf]
    %v446 = vld [vmem:[#allocation2 + $0x114] sm:$0xf]
    %v447 = vld [vmem:[#allocation2 + $0x118] sm:$0xf]
    %v448 = vld [vmem:[#allocation2 + $0x11c] sm:$0xf]
    %v449 = vld [vmem:[#allocation2 + $0x120] sm:$0xf]
    %v450 = vld [vmem:[#allocation2 + $0x124] sm:$0xf]
    %v451 = vld [vmem:[#allocation2 + $0x128] sm:$0xf]
    %v452 = vld [vmem:[#allocation2 + $0x12c] sm:$0xf]
    %v453 = vld [vmem:[#allocation2 + $0x130] sm:$0xf]
    %v454 = vld [vmem:[#allocation2 + $0x134] sm:$0xf]
    %v455 = vld [vmem:[#allocation2 + $0x138] sm:$0xf]
    %v456 = vld [vmem:[#allocation2 + $0x13c] sm:$0xf]
    %v457 = vld [vmem:[#allocation2 + $0x140] sm:$0xf]
    %v458 = vld [vmem:[#allocation2 + $0x144] sm:$0xf]
    %v459 = vld [vmem:[#allocation2 + $0x148] sm:$0xf]
    %v460 = vld [vmem:[#allocation2 + $0x14c] sm:$0xf]
    %v461 = vld [vmem:[#allocation2 + $0x150] sm:$0xf]
    %v462 = vld [vmem:[#allocation2 + $0x154] sm:$0xf]
    %v463 = vld [vmem:[#allocation2 + $0x158] sm:$0xf]
    %v464 = vld [vmem:[#allocation2 + $0x15c] sm:$0xf]
    %v465 = vld [vmem:[#allocation2 + $0x160] sm:$0xf]
    %v466 = vld [vmem:[#allocation2 + $0x164] sm:$0xf]
    %v467 = vld [vmem:[#allocation2 + $0x168] sm:$0xf]
    %v468 = vld [vmem:[#allocation2 + $0x16c] sm:$0xf]
    %v469 = vld [vmem:[#allocation2 + $0x170] sm:$0xf]
    %v470 = vld [vmem:[#allocation2 + $0x174] sm:$0xf]
    %v471 = vld [vmem:[#allocation2 + $0x178] sm:$0xf]
    %v472 = vld [vmem:[#allocation2 + $0x17c] sm:$0xf]
    %v473 = vld [vmem:[#allocation4] sm:$0x1]
    %v475 = vlaneseq
    %v476 = vshrl.u32 %v475, 7
    %v477 = vsub.s32 0, %v476
    %v478 = vrot.slane %v473, %v477
    %v576 = vunpack.c.l.b16 %v377
    %v577 = vunpack.c.l.b16 %v378
    %v578 = vunpack.c.l.b16 %v379
    %v579 = vunpack.c.l.b16 %v380
    %v580 = vunpack.c.l.b16 %v381
    %v581 = vunpack.c.l.b16 %v382
    %v582 = vunpack.c.l.b16 %v383
    %v583 = vunpack.c.l.b16 %v384
    %v584 = vunpack.c.l.b16 %v385
    %v585 = vunpack.c.l.b16 %v386
    %v586 = vunpack.c.l.b16 %v387
    %v587 = vunpack.c.l.b16 %v388
    %v588 = vunpack.c.l.b16 %v389
    %v589 = vunpack.c.l.b16 %v390
    %v590 = vunpack.c.l.b16 %v391
    %v591 = vunpack.c.l.b16 %v392
    %v592 = vunpack.c.l.b16 %v393
    %v593 = vunpack.c.l.b16 %v394
    %v594 = vunpack.c.l.b16 %v395
    %v595 = vunpack.c.l.b16 %v396
    %v596 = vunpack.c.l.b16 %v397
    %v597 = vunpack.c.l.b16 %v398
    %v598 = vunpack.c.l.b16 %v399
    %v599 = vunpack.c.l.b16 %v400
    %v600 = vunpack.c.l.b16 %v401
    %v601 = vunpack.c.l.b16 %v402
    %v602 = vunpack.c.l.b16 %v403
    %v603 = vunpack.c.l.b16 %v404
    %v604 = vunpack.c.l.b16 %v405
    %v605 = vunpack.c.l.b16 %v406
    %v606 = vunpack.c.l.b16 %v407
    %v607 = vunpack.c.l.b16 %v408
    %v608 = vunpack.c.l.b16 %v409
    %v609 = vunpack.c.l.b16 %v410
    %v610 = vunpack.c.l.b16 %v411
    %v611 = vunpack.c.l.b16 %v412
    %v612 = vunpack.c.l.b16 %v413
    %v613 = vunpack.c.l.b16 %v414
    %v614 = vunpack.c.l.b16 %v415
    %v615 = vunpack.c.l.b16 %v416
    %v616 = vunpack.c.l.b16 %v417
    %v617 = vunpack.c.l.b16 %v418
    %v618 = vunpack.c.l.b16 %v419
    %v619 = vunpack.c.l.b16 %v420
    %v620 = vunpack.c.l.b16 %v421
    %v621 = vunpack.c.l.b16 %v422
    %v622 = vunpack.c.l.b16 %v423
    %v623 = vunpack.c.l.b16 %v424
    %v624 = vunpack.c.l.b16 %v425
    %v625 = vunpack.c.l.b16 %v426
    %v626 = vunpack.c.l.b16 %v427
    %v627 = vunpack.c.l.b16 %v428
    %v628 = vunpack.c.l.b16 %v429
    %v629 = vunpack.c.l.b16 %v430
    %v630 = vunpack.c.l.b16 %v431
    %v631 = vunpack.c.l.b16 %v432
    %v632 = vunpack.c.l.b16 %v433
    %v633 = vunpack.c.l.b16 %v434
    %v634 = vunpack.c.l.b16 %v435
    %v635 = vunpack.c.l.b16 %v436
    %v636 = vunpack.c.l.b16 %v437
    %v637 = vunpack.c.l.b16 %v438
    %v638 = vunpack.c.l.b16 %v439
    %v639 = vunpack.c.l.b16 %v440
    %v640 = vunpack.c.l.b16 %v441
    %v641 = vunpack.c.l.b16 %v442
    %v642 = vunpack.c.l.b16 %v443
    %v643 = vunpack.c.l.b16 %v444
    %v644 = vunpack.c.l.b16 %v445
    %v645 = vunpack.c.l.b16 %v446
    %v646 = vunpack.c.l.b16 %v447
    %v647 = vunpack.c.l.b16 %v448
    %v648 = vunpack.c.l.b16 %v449
    %v649 = vunpack.c.l.b16 %v450
    %v650 = vunpack.c.l.b16 %v451
    %v651 = vunpack.c.l.b16 %v452
    %v652 = vunpack.c.l.b16 %v453
    %v653 = vunpack.c.l.b16 %v454
    %v654 = vunpack.c.l.b16 %v455
    %v655 = vunpack.c.l.b16 %v456
    %v656 = vunpack.c.l.b16 %v457
    %v657 = vunpack.c.l.b16 %v458
    %v658 = vunpack.c.l.b16 %v459
    %v659 = vunpack.c.l.b16 %v460
    %v660 = vunpack.c.l.b16 %v461
    %v661 = vunpack.c.l.b16 %v462
    %v662 = vunpack.c.l.b16 %v463
    %v663 = vunpack.c.l.b16 %v464
    %v664 = vunpack.c.l.b16 %v465
    %v665 = vunpack.c.l.b16 %v466
    %v666 = vunpack.c.l.b16 %v467
    %v667 = vunpack.c.l.b16 %v468
    %v668 = vunpack.c.l.b16 %v469
    %v669 = vunpack.c.l.b16 %v470
    %v670 = vunpack.c.l.b16 %v471
    %v671 = vunpack.c.l.b16 %v472
    %v672 = vpack.c.b16 %v577, %v576
    %v673 = vpack.c.b16 %v579, %v578
    %v674 = vpack.c.b16 %v581, %v580
    %v675 = vpack.c.b16 %v583, %v582
    %v676 = vpack.c.b16 %v585, %v584
    %v677 = vpack.c.b16 %v587, %v586
    %v678 = vpack.c.b16 %v589, %v588
    %v679 = vpack.c.b16 %v591, %v590
    %v680 = vpack.c.b16 %v593, %v592
    %v681 = vpack.c.b16 %v595, %v594
    %v682 = vpack.c.b16 %v597, %v596
    %v683 = vpack.c.b16 %v599, %v598
    %v684 = vpack.c.b16 %v601, %v600
    %v685 = vpack.c.b16 %v603, %v602
    %v686 = vpack.c.b16 %v605, %v604
    %v687 = vpack.c.b16 %v607, %v606
    %v688 = vpack.c.b16 %v609, %v608
    %v689 = vpack.c.b16 %v611, %v610
    %v690 = vpack.c.b16 %v613, %v612
    %v691 = vpack.c.b16 %v615, %v614
    %v692 = vpack.c.b16 %v617, %v616
    %v693 = vpack.c.b16 %v619, %v618
    %v694 = vpack.c.b16 %v621, %v620
    %v695 = vpack.c.b16 %v623, %v622
    %v696 = vpack.c.b16 %v625, %v624
    %v697 = vpack.c.b16 %v627, %v626
    %v698 = vpack.c.b16 %v629, %v628
    %v699 = vpack.c.b16 %v631, %v630
    %v700 = vpack.c.b16 %v633, %v632
    %v701 = vpack.c.b16 %v635, %v634
    %v702 = vpack.c.b16 %v637, %v636
    %v703 = vpack.c.b16 %v639, %v638
    %v704 = vpack.c.b16 %v641, %v640
    %v705 = vpack.c.b16 %v643, %v642
    %v706 = vpack.c.b16 %v645, %v644
    %v707 = vpack.c.b16 %v647, %v646
    %v708 = vpack.c.b16 %v649, %v648
    %v709 = vpack.c.b16 %v651, %v650
    %v710 = vpack.c.b16 %v653, %v652
    %v711 = vpack.c.b16 %v655, %v654
    %v712 = vpack.c.b16 %v657, %v656
    %v713 = vpack.c.b16 %v659, %v658
    %v714 = vpack.c.b16 %v661, %v660
    %v715 = vpack.c.b16 %v663, %v662
    %v716 = vpack.c.b16 %v665, %v664
    %v717 = vpack.c.b16 %v667, %v666
    %v718 = vpack.c.b16 %v669, %v668
    %v719 = vpack.c.b16 %v671, %v670
    %768 = vmatprep.subr.bf16.mxu0 0
    %769 = vmatpush1.bf16.msra.mxu0 %v672
    %770 = vmatprep.subr.bf16.mxu0 0
    %771 = vmatpush1.bf16.msra.mxu0 %v673
    %772 = vmatprep.subr.bf16.mxu0 0
    %773 = vmatpush1.bf16.msra.mxu0 %v674
    %774 = vmatprep.subr.bf16.mxu0 0
    %775 = vmatpush1.bf16.msra.mxu0 %v675
    %776 = vmatprep.subr.bf16.mxu0 0
    %777 = vmatpush1.bf16.msra.mxu0 %v676
    %778 = vmatprep.subr.bf16.mxu0 0
    %779 = vmatpush1.bf16.msra.mxu0 %v677
    %780 = vmatprep.subr.bf16.mxu0 0
    %781 = vmatpush1.bf16.msra.mxu0 %v678
    %782 = vmatprep.subr.bf16.mxu0 0
    %783 = vmatpush1.bf16.msra.mxu0 %v679
    %784 = vmatprep.subr.bf16.mxu0 0
    %785 = vmatpush1.bf16.msra.mxu0 %v680
    %786 = vmatprep.subr.bf16.mxu0 0
    %787 = vmatpush1.bf16.msra.mxu0 %v681
    %788 = vmatprep.subr.bf16.mxu0 0
    %789 = vmatpush1.bf16.msra.mxu0 %v682
    %790 = vmatprep.subr.bf16.mxu0 0
    %791 = vmatpush1.bf16.msra.mxu0 %v683
    %792 = vmatprep.subr.bf16.mxu0 0
    %793 = vmatpush1.bf16.msra.mxu0 %v684
    %794 = vmatprep.subr.bf16.mxu0 0
    %795 = vmatpush1.bf16.msra.mxu0 %v685
    %796 = vmatprep.subr.bf16.mxu0 0
    %797 = vmatpush1.bf16.msra.mxu0 %v686
    %798 = vmatprep.subr.bf16.mxu0 0
    %799 = vmatpush1.bf16.msra.mxu0 %v687
    %800 = vmatprep.mubr.bf16.mxu0 %v372
    %801 = vmatmul.mubr.bf16.gmra.mrb[0].mxu0 %v371
    %v802 = vpop.f32.mrb[0].mxu0
    %v803 = vadd.f32 %v478, %v802
    %v804 = vpop.f32.mrb[0].mxu0
    %v805 = vpop.f32.mrb[0].mxu0
    %v806 = vadd.f32 %v478, %v805
    %v807 = vpop.f32.mrb[0].mxu0
    %808 = vdwg.mxu0
    %809 = vmatprep.subr.bf16.mxu0 0
    %810 = vmatpush1.bf16.msra.mxu0 %v688
    %811 = vmatprep.subr.bf16.mxu0 0
    %812 = vmatpush1.bf16.msra.mxu0 %v689
    %813 = vmatprep.subr.bf16.mxu0 0
    %814 = vmatpush1.bf16.msra.mxu0 %v690
    %815 = vmatprep.subr.bf16.mxu0 0
    %816 = vmatpush1.bf16.msra.mxu0 %v691
    %817 = vmatprep.subr.bf16.mxu0 0
    %818 = vmatpush1.bf16.msra.mxu0 %v692
    %819 = vmatprep.subr.bf16.mxu0 0
    %820 = vmatpush1.bf16.msra.mxu0 %v693
    %821 = vmatprep.subr.bf16.mxu0 0
    %822 = vmatpush1.bf16.msra.mxu0 %v694
    %823 = vmatprep.subr.bf16.mxu0 0
    %824 = vmatpush1.bf16.msra.mxu0 %v695
    %825 = vmatprep.subr.bf16.mxu0 0
    %826 = vmatpush1.bf16.msra.mxu0 %v696
    %827 = vmatprep.subr.bf16.mxu0 0
    %828 = vmatpush1.bf16.msra.mxu0 %v697
    %829 = vmatprep.subr.bf16.mxu0 0
    %830 = vmatpush1.bf16.msra.mxu0 %v698
    %831 = vmatprep.subr.bf16.mxu0 0
    %832 = vmatpush1.bf16.msra.mxu0 %v699
    %833 = vmatprep.subr.bf16.mxu0 0
    %834 = vmatpush1.bf16.msra.mxu0 %v700
    %835 = vmatprep.subr.bf16.mxu0 0
    %836 = vmatpush1.bf16.msra.mxu0 %v701
    %837 = vmatprep.subr.bf16.mxu0 0
    %838 = vmatpush1.bf16.msra.mxu0 %v702
    %839 = vmatprep.subr.bf16.mxu0 0
    %840 = vmatpush1.bf16.msra.mxu0 %v703
    %841 = vmatprep.mubr.bf16.mxu0 %v374
    %842 = vmatmul.mubr.bf16.gmra.mrb[0].mxu0 %v373
    %v843 = vpop.f32.mrb[0].mxu0
    %v844 = vadd.f32 %v803, %v843
    %v845 = vpop.f32.mrb[0].mxu0
    %v846 = vpop.f32.mrb[0].mxu0
    %v847 = vadd.f32 %v806, %v846
    %v848 = vpop.f32.mrb[0].mxu0
    %849 = vdwg.mxu0
    %850 = vmatprep.subr.bf16.mxu0 0
    %851 = vmatpush1.bf16.msra.mxu0 %v704
    %852 = vmatprep.subr.bf16.mxu0 0
    %853 = vmatpush1.bf16.msra.mxu0 %v705
    %854 = vmatprep.subr.bf16.mxu0 0
    %855 = vmatpush1.bf16.msra.mxu0 %v706
    %856 = vmatprep.subr.bf16.mxu0 0
    %857 = vmatpush1.bf16.msra.mxu0 %v707
    %858 = vmatprep.subr.bf16.mxu0 0
    %859 = vmatpush1.bf16.msra.mxu0 %v708
    %860 = vmatprep.subr.bf16.mxu0 0
    %861 = vmatpush1.bf16.msra.mxu0 %v709
    %862 = vmatprep.subr.bf16.mxu0 0
    %863 = vmatpush1.bf16.msra.mxu0 %v710
    %864 = vmatprep.subr.bf16.mxu0 0
    %865 = vmatpush1.bf16.msra.mxu0 %v711
    %866 = vmatprep.subr.bf16.mxu0 0
    %867 = vmatpush1.bf16.msra.mxu0 %v712
    %868 = vmatprep.subr.bf16.mxu0 0
    %869 = vmatpush1.bf16.msra.mxu0 %v713
    %870 = vmatprep.subr.bf16.mxu0 0
    %871 = vmatpush1.bf16.msra.mxu0 %v714
    %872 = vmatprep.subr.bf16.mxu0 0
    %873 = vmatpush1.bf16.msra.mxu0 %v715
    %874 = vmatprep.subr.bf16.mxu0 0
    %875 = vmatpush1.bf16.msra.mxu0 %v716
    %876 = vmatprep.subr.bf16.mxu0 0
    %877 = vmatpush1.bf16.msra.mxu0 %v717
    %878 = vmatprep.subr.bf16.mxu0 0
    %879 = vmatpush1.bf16.msra.mxu0 %v718
    %880 = vmatprep.subr.bf16.mxu0 0
    %881 = vmatpush1.bf16.msra.mxu0 %v719
    %882 = vmatprep.mubr.bf16.mxu0 %v376
    %883 = vmatmul.mubr.bf16.gmra.mrb[0].mxu0 %v375
    %v884 = vpop.f32.mrb[0].mxu0
    %v885 = vadd.f32 %v844, %v884
    %v886 = vpop.f32.mrb[0].mxu0
    %v887 = vpop.f32.mrb[0].mxu0
    %v888 = vadd.f32 %v847, %v887
    %v889 = vpop.f32.mrb[0].mxu0
    %890 = vdwg.mxu0
    %v891 = vmax.f32 %v885, 0.0
    %v892 = vmax.f32 %v888, 0.0
    %v893 = vpack.c.bf16 %v892, %v891
    %v894 = vld [vmem:[#allocation6] sm:$0xf]
    %v895 = vld [vmem:[#allocation6 + $0x4] sm:$0xf]
    %v896 = vld [vmem:[#allocation6 + $0x8] sm:$0xf]
    %v897 = vld [vmem:[#allocation6 + $0xc] sm:$0xf]
    %v898 = vld [vmem:[#allocation6 + $0x10] sm:$0xf]
    %v899 = vld [vmem:[#allocation6 + $0x14] sm:$0xf]
    %v900 = vld [vmem:[#allocation6 + $0x18] sm:$0xf]
    %v901 = vld [vmem:[#allocation6 + $0x1c] sm:$0xf]
    %v902 = vld [vmem:[#allocation6 + $0x20] sm:$0xf]
    %v903 = vld [vmem:[#allocation6 + $0x24] sm:$0xf]
    %v904 = vld [vmem:[#allocation6 + $0x28] sm:$0xf]
    %v905 = vld [vmem:[#allocation6 + $0x2c] sm:$0xf]
    %v906 = vld [vmem:[#allocation6 + $0x30] sm:$0xf]
    %v907 = vld [vmem:[#allocation6 + $0x34] sm:$0xf]
    %v908 = vld [vmem:[#allocation6 + $0x38] sm:$0xf]
    %v909 = vld [vmem:[#allocation6 + $0x3c] sm:$0xf]
    %v910 = vld [vmem:[#allocation7] sm:$0x1]
    %v912 = vlaneseq
    %v913 = vshrl.u32 %v912, 7
    %v914 = vsub.s32 0, %v913
    %v915 = vrot.slane %v910, %v914
    %v933 = vunpack.c.l.b16 %v894
    %v934 = vunpack.c.l.b16 %v895
    %v935 = vunpack.c.l.b16 %v896
    %v936 = vunpack.c.l.b16 %v897
    %v937 = vunpack.c.l.b16 %v898
    %v938 = vunpack.c.l.b16 %v899
    %v939 = vunpack.c.l.b16 %v900
    %v940 = vunpack.c.l.b16 %v901
    %v941 = vunpack.c.l.b16 %v902
    %v942 = vunpack.c.l.b16 %v903
    %v943 = vunpack.c.l.b16 %v904
    %v944 = vunpack.c.l.b16 %v905
    %v945 = vunpack.c.l.b16 %v906
    %v946 = vunpack.c.l.b16 %v907
    %v947 = vunpack.c.l.b16 %v908
    %v948 = vunpack.c.l.b16 %v909
    %v949 = vpack.c.b16 %v934, %v933
    %v950 = vpack.c.b16 %v936, %v935
    %v951 = vpack.c.b16 %v938, %v937
    %v952 = vpack.c.b16 %v940, %v939
    %v953 = vpack.c.b16 %v942, %v941
    %v954 = vpack.c.b16 %v944, %v943
    %v955 = vpack.c.b16 %v946, %v945
    %v956 = vpack.c.b16 %v948, %v947
    %965 = vmatprep.subr.bf16.mxu0 0
    %966 = vmatpush1.bf16.msra.mxu0 %v949
    %967 = vmatprep.subr.bf16.mxu0 0
    %968 = vmatpush1.bf16.msra.mxu0 %v950
    %969 = vmatprep.subr.bf16.mxu0 0
    %970 = vmatpush1.bf16.msra.mxu0 %v951
    %971 = vmatprep.subr.bf16.mxu0 0
    %972 = vmatpush1.bf16.msra.mxu0 %v952
    %973 = vmatprep.subr.bf16.mxu0 0
    %974 = vmatpush1.bf16.msra.mxu0 %v953
    %975 = vmatprep.subr.bf16.mxu0 0
    %976 = vmatpush1.bf16.msra.mxu0 %v954
    %977 = vmatprep.subr.bf16.mxu0 0
    %978 = vmatpush1.bf16.msra.mxu0 %v955
    %979 = vmatprep.subr.bf16.mxu0 0
    %980 = vmatpush1.bf16.msra.mxu0 %v956
    %981 = vmatprep.subr.bf16.mxu0 0
    %982 = vmatpush1.bf16.msra.mxu0 0
    %983 = vmatprep.subr.bf16.mxu0 0
    %984 = vmatpush1.bf16.msra.mxu0 0
    %985 = vmatprep.subr.bf16.mxu0 0
    %986 = vmatpush1.bf16.msra.mxu0 0
    %987 = vmatprep.subr.bf16.mxu0 0
    %988 = vmatpush1.bf16.msra.mxu0 0
    %989 = vmatprep.subr.bf16.mxu0 0
    %990 = vmatpush1.bf16.msra.mxu0 0
    %991 = vmatprep.subr.bf16.mxu0 0
    %992 = vmatpush1.bf16.msra.mxu0 0
    %993 = vmatprep.subr.bf16.mxu0 0
    %994 = vmatpush1.bf16.msra.mxu0 0
    %995 = vmatprep.subr.bf16.mxu0 0
    %996 = vmatpush1.bf16.msra.mxu0 0
    %997 = vmatprep.mubr.bf16.mxu0 0
    %998 = vmatmul.mubr.bf16.gmra.mrb[0].mxu0 %v893
    %v999 = vpop.f32.mrb[0].mxu0
    %v1000 = vadd.f32 %v915, %v999
    %v1001 = vpop.f32.mrb[0].mxu0
    %v1002 = vpop.f32.mrb[0].mxu0
    %v1003 = vadd.f32 %v915, %v1002
    %v1004 = vpop.f32.mrb[0].mxu0
    %1005 = vdwg.mxu0
    %v1006 = vmax.f32 %v1000, 0.0
    %v1007 = vmax.f32 %v1003, 0.0
    %v1008 = vpack.c.bf16 %v1007, %v1006
    %v1009 = vld [vmem:[#allocation9] sm:$0xf]
    %v1010 = vld [vmem:[#allocation9 + $0x4] sm:$0xf]
    %v1011 = vld [vmem:[#allocation9 + $0x8] sm:$0xf]
    %v1012 = vld [vmem:[#allocation9 + $0xc] sm:$0xf]
    %v1013 = vld [vmem:[#allocation9 + $0x10] sm:$0xf]
    %v1014 = vld [vmem:[#allocation9 + $0x14] sm:$0xf]
    %v1015 = vld [vmem:[#allocation9 + $0x18] sm:$0xf]
    %v1016 = vld [vmem:[#allocation9 + $0x1c] sm:$0xf]
    %v1017 = vld [vmem:[#allocation9 + $0x20] sm:$0xf]
    %v1018 = vld [vmem:[#allocation9 + $0x24] sm:$0xf]
    %v1019 = vld [vmem:[#allocation9 + $0x28] sm:$0xf]
    %v1020 = vld [vmem:[#allocation9 + $0x2c] sm:$0xf]
    %v1021 = vld [vmem:[#allocation9 + $0x30] sm:$0xf]
    %v1022 = vld [vmem:[#allocation9 + $0x34] sm:$0xf]
    %v1023 = vld [vmem:[#allocation9 + $0x38] sm:$0xf]
    %v1024 = vld [vmem:[#allocation9 + $0x3c] sm:$0xf]
    %v1025 = vld [vmem:[#allocation10] sm:$0x1]
    %v1027 = vlaneseq
    %v1028 = vshrl.u32 %v1027, 7
    %v1029 = vsub.s32 0, %v1028
    %v1030 = vrot.slane %v1025, %v1029
    %v1048 = vunpack.c.l.b16 %v1009
    %v1049 = vunpack.c.l.b16 %v1010
    %v1050 = vunpack.c.l.b16 %v1011
    %v1051 = vunpack.c.l.b16 %v1012
    %v1052 = vunpack.c.l.b16 %v1013
    %v1053 = vunpack.c.l.b16 %v1014
    %v1054 = vunpack.c.l.b16 %v1015
    %v1055 = vunpack.c.l.b16 %v1016
    %v1056 = vunpack.c.l.b16 %v1017
    %v1057 = vunpack.c.l.b16 %v1018
    %v1058 = vunpack.c.l.b16 %v1019
    %v1059 = vunpack.c.l.b16 %v1020
    %v1060 = vunpack.c.l.b16 %v1021
    %v1061 = vunpack.c.l.b16 %v1022
    %v1062 = vunpack.c.l.b16 %v1023
    %v1063 = vunpack.c.l.b16 %v1024
    %v1064 = vpack.c.b16 %v1049, %v1048
    %v1065 = vpack.c.b16 %v1051, %v1050
    %v1066 = vpack.c.b16 %v1053, %v1052
    %v1067 = vpack.c.b16 %v1055, %v1054
    %v1068 = vpack.c.b16 %v1057, %v1056
    %v1069 = vpack.c.b16 %v1059, %v1058
    %v1070 = vpack.c.b16 %v1061, %v1060
    %v1071 = vpack.c.b16 %v1063, %v1062
    %1080 = vmatprep.subr.bf16.mxu0 0
    %1081 = vmatpush1.bf16.msra.mxu0 %v1064
    %1082 = vmatprep.subr.bf16.mxu0 0
    %1083 = vmatpush1.bf16.msra.mxu0 %v1065
    %1084 = vmatprep.subr.bf16.mxu0 0
    %1085 = vmatpush1.bf16.msra.mxu0 %v1066
    %1086 = vmatprep.subr.bf16.mxu0 0
    %1087 = vmatpush1.bf16.msra.mxu0 %v1067
    %1088 = vmatprep.subr.bf16.mxu0 0
    %1089 = vmatpush1.bf16.msra.mxu0 %v1068
    %1090 = vmatprep.subr.bf16.mxu0 0
    %1091 = vmatpush1.bf16.msra.mxu0 %v1069
    %1092 = vmatprep.subr.bf16.mxu0 0
    %1093 = vmatpush1.bf16.msra.mxu0 %v1070
    %1094 = vmatprep.subr.bf16.mxu0 0
    %1095 = vmatpush1.bf16.msra.mxu0 %v1071
    %1096 = vmatprep.subr.bf16.mxu0 0
    %1097 = vmatpush1.bf16.msra.mxu0 0
    %1098 = vmatprep.subr.bf16.mxu0 0
    %1099 = vmatpush1.bf16.msra.mxu0 0
    %1100 = vmatprep.subr.bf16.mxu0 0
    %1101 = vmatpush1.bf16.msra.mxu0 0
    %1102 = vmatprep.subr.bf16.mxu0 0
    %1103 = vmatpush1.bf16.msra.mxu0 0
    %1104 = vmatprep.subr.bf16.mxu0 0
    %1105 = vmatpush1.bf16.msra.mxu0 0
    %1106 = vmatprep.subr.bf16.mxu0 0
    %1107 = vmatpush1.bf16.msra.mxu0 0
    %1108 = vmatprep.subr.bf16.mxu0 0
    %1109 = vmatpush1.bf16.msra.mxu0 0
    %1110 = vmatprep.subr.bf16.mxu0 0
    %1111 = vmatpush1.bf16.msra.mxu0 0
    %1112 = vmatprep.mubr.bf16.mxu0 0
    %1113 = vmatmul.mubr.bf16.gmra.mrb[0].mxu0 %v1008
    %v1114 = vpop.f32.mrb[0].mxu0
    %v1115 = vadd.f32 %v1030, %v1114
    %v1116 = vpop.f32.mrb[0].mxu0
    %v1117 = vpop.f32.mrb[0].mxu0
    %v1118 = vadd.f32 %v1030, %v1117
    %v1119 = vpop.f32.mrb[0].mxu0
    %1120 = vdwg.mxu0
    %v1121 = vmul.f32 %v1115, %v1115
    %v1122 = vmul.f32 %v1118, %v1118
    %1123 = vadd.xlane.f32.xlu0 %v1121
    %v1124 = vpop.xlane.xlu0 %1123
    %1125 = vadd.xlane.f32.xlu0 %v1122
    %v1126 = vpop.xlane.xlu0 %1125
    %v1127 = vmax.f32 %v1124, 1e-24
    %v1128 = vmax.f32 %v1126, 1e-24
    %v1129 = vrsqrt.pop %v1127
    %v1130 = vrsqrt.pop %v1128
    %v1131 = vmul.f32 %v1115, %v1129
    %v1132 = vmul.f32 %v1118, %v1130
    %1133 = vst [vmem:[%s24] sm:$0xff] %v1131
    %1134 = vst [vmem:[%s25] sm:$0xff] %v1132
    %1135 = vst [vmem:[%s27] sm:$0xff] %v891
    %v1136 = vpack.c.bf16 %v891, %v891
    %v1137 = vld [vmem:[#allocation12] sm:$0xff]
    %v1138 = vld [vmem:[#allocation12 + $0x8] sm:$0xff]
    %v1139 = vld [vmem:[#allocation12 + $0x10] sm:$0xff]
    %v1140 = vld [vmem:[#allocation12 + $0x18] sm:$0xff]
    %v1141 = vld [vmem:[#allocation12 + $0x20] sm:$0xff]
    %v1142 = vld [vmem:[#allocation12 + $0x28] sm:$0xff]
    %v1143 = vld [vmem:[#allocation12 + $0x30] sm:$0xff]
    %v1144 = vld [vmem:[#allocation12 + $0x38] sm:$0xff]
    %v1145 = vld [vmem:[#allocation12 + $0x40] sm:$0xff]
    %v1146 = vld [vmem:[#allocation12 + $0x48] sm:$0xff]
    %v1147 = vld [vmem:[#allocation12 + $0x50] sm:$0xff]
    %v1148 = vld [vmem:[#allocation12 + $0x58] sm:$0xff]
    %v1149 = vld [vmem:[#allocation12 + $0x60] sm:$0xff]
    %v1150 = vld [vmem:[#allocation12 + $0x68] sm:$0xff]
    %v1151 = vld [vmem:[#allocation12 + $0x70] sm:$0xff]
    %v1152 = vld [vmem:[#allocation12 + $0x78] sm:$0xff]
    %v1153 = vld [vmem:[#allocation12 + $0x80] sm:$0xff]
    %v1154 = vld [vmem:[#allocation12 + $0x88] sm:$0xff]
    %v1155 = vld [vmem:[#allocation12 + $0x90] sm:$0xff]
    %v1156 = vld [vmem:[#allocation12 + $0x98] sm:$0xff]
    %v1157 = vld [vmem:[#allocation12 + $0xa0] sm:$0xff]
    %v1158 = vld [vmem:[#allocation12 + $0xa8] sm:$0xff]
    %v1159 = vld [vmem:[#allocation12 + $0xb0] sm:$0xff]
    %v1160 = vld [vmem:[#allocation12 + $0xb8] sm:$0xff]
    %v1161 = vld [vmem:[#allocation12 + $0xc0] sm:$0xff]
    %v1162 = vld [vmem:[#allocation12 + $0xc8] sm:$0xff]
    %v1163 = vld [vmem:[#allocation12 + $0xd0] sm:$0xff]
    %v1164 = vld [vmem:[#allocation12 + $0xd8] sm:$0xff]
    %v1165 = vld [vmem:[#allocation12 + $0xe0] sm:$0xff]
    %v1166 = vld [vmem:[#allocation12 + $0xe8] sm:$0xff]
    %v1167 = vld [vmem:[#allocation12 + $0xf0] sm:$0xff]
    %v1168 = vld [vmem:[#allocation12 + $0xf8] sm:$0xff]
    %v1169 = vld [vmem:[#allocation13] sm:$0xf]
    %v1171 = vlaneseq
    %v1172 = vshrl.u32 %v1171, 7
    %v1173 = vsub.s32 0, %v1172
    %v1174 = vrot.slane %v1169, %v1173
    %v1175 = vlaneseq
    %v1176 = vshrl.u32 %v1175, 7
    %v1177 = vsub.s32 1, %v1176
    %v1178 = vrot.slane %v1169, %v1177
    %v1179 = vlaneseq
    %v1180 = vshrl.u32 %v1179, 7
    %v1181 = vsub.s32 2, %v1180
    %v1182 = vrot.slane %v1169, %v1181
    %v1183 = vlaneseq
    %v1184 = vshrl.u32 %v1183, 7
    %v1185 = vsub.s32 3, %v1184
    %v1186 = vrot.slane %v1169, %v1185
    %v1223 = vunpack.c.l.b16 %v1137
    %v1224 = vunpack.c.h.b16 %v1137
    %v1225 = vunpack.c.l.b16 %v1138
    %v1226 = vunpack.c.h.b16 %v1138
    %v1227 = vunpack.c.l.b16 %v1139
    %v1228 = vunpack.c.h.b16 %v1139
    %v1229 = vunpack.c.l.b16 %v1140
    %v1230 = vunpack.c.h.b16 %v1140
    %v1231 = vunpack.c.l.b16 %v1141
    %v1232 = vunpack.c.h.b16 %v1141
    %v1233 = vunpack.c.l.b16 %v1142
    %v1234 = vunpack.c.h.b16 %v1142
    %v1235 = vunpack.c.l.b16 %v1143
    %v1236 = vunpack.c.h.b16 %v1143
    %v1237 = vunpack.c.l.b16 %v1144
    %v1238 = vunpack.c.h.b16 %v1144
    %v1239 = vunpack.c.l.b16 %v1145
    %v1240 = vunpack.c.h.b16 %v1145
    %v1241 = vunpack.c.l.b16 %v1146
    %v1242 = vunpack.c.h.b16 %v1146
    %v1243 = vunpack.c.l.b16 %v1147
    %v1244 = vunpack.c.h.b16 %v1147
    %v1245 = vunpack.c.l.b16 %v1148
    %v1246 = vunpack.c.h.b16 %v1148
    %v1247 = vunpack.c.l.b16 %v1149
    %v1248 = vunpack.c.h.b16 %v1149
    %v1249 = vunpack.c.l.b16 %v1150
    %v1250 = vunpack.c.h.b16 %v1150
    %v1251 = vunpack.c.l.b16 %v1151
    %v1252 = vunpack.c.h.b16 %v1151
    %v1253 = vunpack.c.l.b16 %v1152
    %v1254 = vunpack.c.h.b16 %v1152
    %v1255 = vunpack.c.l.b16 %v1153
    %v1256 = vunpack.c.h.b16 %v1153
    %v1257 = vunpack.c.l.b16 %v1154
    %v1258 = vunpack.c.h.b16 %v1154
    %v1259 = vunpack.c.l.b16 %v1155
    %v1260 = vunpack.c.h.b16 %v1155
    %v1261 = vunpack.c.l.b16 %v1156
    %v1262 = vunpack.c.h.b16 %v1156
    %v1263 = vunpack.c.l.b16 %v1157
    %v1264 = vunpack.c.h.b16 %v1157
    %v1265 = vunpack.c.l.b16 %v1158
    %v1266 = vunpack.c.h.b16 %v1158
    %v1267 = vunpack.c.l.b16 %v1159
    %v1268 = vunpack.c.h.b16 %v1159
    %v1269 = vunpack.c.l.b16 %v1160
    %v1270 = vunpack.c.h.b16 %v1160
    %v1271 = vunpack.c.l.b16 %v1161
    %v1272 = vunpack.c.h.b16 %v1161
    %v1273 = vunpack.c.l.b16 %v1162
    %v1274 = vunpack.c.h.b16 %v1162
    %v1275 = vunpack.c.l.b16 %v1163
    %v1276 = vunpack.c.h.b16 %v1163
    %v1277 = vunpack.c.l.b16 %v1164
    %v1278 = vunpack.c.h.b16 %v1164
    %v1279 = vunpack.c.l.b16 %v1165
    %v1280 = vunpack.c.h.b16 %v1165
    %v1281 = vunpack.c.l.b16 %v1166
    %v1282 = vunpack.c.h.b16 %v1166
    %v1283 = vunpack.c.l.b16 %v1167
    %v1284 = vunpack.c.h.b16 %v1167
    %v1285 = vunpack.c.l.b16 %v1168
    %v1286 = vunpack.c.h.b16 %v1168
    %v1287 = vpack.c.b16 %v1227, %v1223
    %v1288 = vpack.c.b16 %v1228, %v1224
    %v1289 = vpack.c.b16 %v1229, %v1225
    %v1290 = vpack.c.b16 %v1230, %v1226
    %v1291 = vpack.c.b16 %v1235, %v1231
    %v1292 = vpack.c.b16 %v1236, %v1232
    %v1293 = vpack.c.b16 %v1237, %v1233
    %v1294 = vpack.c.b16 %v1238, %v1234
    %v1295 = vpack.c.b16 %v1243, %v1239
    %v1296 = vpack.c.b16 %v1244, %v1240
    %v1297 = vpack.c.b16 %v1245, %v1241
    %v1298 = vpack.c.b16 %v1246, %v1242
    %v1299 = vpack.c.b16 %v1251, %v1247
    %v1300 = vpack.c.b16 %v1252, %v1248
    %v1301 = vpack.c.b16 %v1253, %v1249
    %v1302 = vpack.c.b16 %v1254, %v1250
    %v1303 = vpack.c.b16 %v1259, %v1255
    %v1304 = vpack.c.b16 %v1260, %v1256
    %v1305 = vpack.c.b16 %v1261, %v1257
    %v1306 = vpack.c.b16 %v1262, %v1258
    %v1307 = vpack.c.b16 %v1267, %v1263
    %v1308 = vpack.c.b16 %v1268, %v1264
    %v1309 = vpack.c.b16 %v1269, %v1265
    %v1310 = vpack.c.b16 %v1270, %v1266
    %v1311 = vpack.c.b16 %v1275, %v1271
    %v1312 = vpack.c.b16 %v1276, %v1272
    %v1313 = vpack.c.b16 %v1277, %v1273
    %v1314 = vpack.c.b16 %v1278, %v1274
    %v1315 = vpack.c.b16 %v1283, %v1279
    %v1316 = vpack.c.b16 %v1284, %v1280
    %v1317 = vpack.c.b16 %v1285, %v1281
    %v1318 = vpack.c.b16 %v1286, %v1282
    %1351 = vmatprep.subr.bf16.mxu0 %v1288
    %1352 = vmatpush1.bf16.msra.mxu0 %v1287
    %1353 = vmatprep.subr.bf16.mxu0 %v1292
    %1354 = vmatpush1.bf16.msra.mxu0 %v1291
    %1355 = vmatprep.subr.bf16.mxu0 %v1296
    %1356 = vmatpush1.bf16.msra.mxu0 %v1295
    %1357 = vmatprep.subr.bf16.mxu0 %v1300
    %1358 = vmatpush1.bf16.msra.mxu0 %v1299
    %1359 = vmatprep.subr.bf16.mxu0 %v1304
    %1360 = vmatpush1.bf16.msra.mxu0 %v1303
    %1361 = vmatprep.subr.bf16.mxu0 %v1308
    %1362 = vmatpush1.bf16.msra.mxu0 %v1307
    %1363 = vmatprep.subr.bf16.mxu0 %v1312
    %1364 = vmatpush1.bf16.msra.mxu0 %v1311
    %1365 = vmatprep.subr.bf16.mxu0 %v1316
    %1366 = vmatpush1.bf16.msra.mxu0 %v1315
    %1367 = vmatprep.subr.bf16.mxu0 0
    %1368 = vmatpush1.bf16.msra.mxu0 0
    %1369 = vmatprep.subr.bf16.mxu0 0
    %1370 = vmatpush1.bf16.msra.mxu0 0
    %1371 = vmatprep.subr.bf16.mxu0 0
    %1372 = vmatpush1.bf16.msra.mxu0 0
    %1373 = vmatprep.subr.bf16.mxu0 0
    %1374 = vmatpush1.bf16.msra.mxu0 0
    %1375 = vmatprep.subr.bf16.mxu0 0
    %1376 = vmatpush1.bf16.msra.mxu0 0
    %1377 = vmatprep.subr.bf16.mxu0 0
    %1378 = vmatpush1.bf16.msra.mxu0 0
    %1379 = vmatprep.subr.bf16.mxu0 0
    %1380 = vmatpush1.bf16.msra.mxu0 0
    %1381 = vmatprep.subr.bf16.mxu0 0
    %1382 = vmatpush1.bf16.msra.mxu0 0
    %1383 = vmatprep.mubr.bf16.mxu0 0
    %1384 = vmatmul.mubr.bf16.gmra.mrb[0].mxu0 %v1136
    %v1385 = vpop.f32.mrb[0].mxu0
    %v1386 = vadd.f32 %v1174, %v1385
    %v1387 = vpop.f32.mrb[0].mxu0
    %v1388 = vadd.f32 %v1178, %v1387
    %v1389 = vpop.f32.mrb[0].mxu0
    %v1390 = vpop.f32.mrb[0].mxu0
    %1391 = vdwg.mxu0
    %1392 = vmatprep.subr.bf16.mxu0 %v1290
    %1393 = vmatpush1.bf16.msra.mxu0 %v1289
    %1394 = vmatprep.subr.bf16.mxu0 %v1294
    %1395 = vmatpush1.bf16.msra.mxu0 %v1293
    %1396 = vmatprep.subr.bf16.mxu0 %v1298
    %1397 = vmatpush1.bf16.msra.mxu0 %v1297
    %1398 = vmatprep.subr.bf16.mxu0 %v1302
    %1399 = vmatpush1.bf16.msra.mxu0 %v1301
    %1400 = vmatprep.subr.bf16.mxu0 %v1306
    %1401 = vmatpush1.bf16.msra.mxu0 %v1305
    %1402 = vmatprep.subr.bf16.mxu0 %v1310
    %1403 = vmatpush1.bf16.msra.mxu0 %v1309
    %1404 = vmatprep.subr.bf16.mxu0 %v1314
    %1405 = vmatpush1.bf16.msra.mxu0 %v1313
    %1406 = vmatprep.subr.bf16.mxu0 %v1318
    %1407 = vmatpush1.bf16.msra.mxu0 %v1317
    %1408 = vmatprep.subr.bf16.mxu0 0
    %1409 = vmatpush1.bf16.msra.mxu0 0
    %1410 = vmatprep.subr.bf16.mxu0 0
    %1411 = vmatpush1.bf16.msra.mxu0 0
    %1412 = vmatprep.subr.bf16.mxu0 0
    %1413 = vmatpush1.bf16.msra.mxu0 0
    %1414 = vmatprep.subr.bf16.mxu0 0
    %1415 = vmatpush1.bf16.msra.mxu0 0
    %1416 = vmatprep.subr.bf16.mxu0 0
    %1417 = vmatpush1.bf16.msra.mxu0 0
    %1418 = vmatprep.subr.bf16.mxu0 0
    %1419 = vmatpush1.bf16.msra.mxu0 0
    %1420 = vmatprep.subr.bf16.mxu0 0
    %1421 = vmatpush1.bf16.msra.mxu0 0
    %1422 = vmatprep.subr.bf16.mxu0 0
    %1423 = vmatpush1.bf16.msra.mxu0 0
    %1424 = vmatprep.mubr.bf16.mxu0 0
    %1425 = vmatmul.mubr.bf16.gmra.mrb[0].mxu0 %v1136
    %v1426 = vpop.f32.mrb[0].mxu0
    %v1427 = vadd.f32 %v1182, %v1426
    %v1428 = vpop.f32.mrb[0].mxu0
    %v1429 = vadd.f32 %v1186, %v1428
    %v1430 = vpop.f32.mrb[0].mxu0
    %v1431 = vpop.f32.mrb[0].mxu0
    %1432 = vdwg.mxu0
    %v1433 = vmax.f32 %v1386, 0.0
    %v1434 = vmax.f32 %v1388, 0.0
    %v1435 = vmax.f32 %v1427, 0.0
    %v1436 = vmax.f32 %v1429, 0.0
    %v1437 = vpack.c.bf16 %v1433, %v1433
    %v1438 = vpack.c.bf16 %v1434, %v1434
    %v1439 = vpack.c.bf16 %v1435, %v1435
    %v1440 = vpack.c.bf16 %v1436, %v1436
    %v1441 = vld [vmem:[#allocation15] sm:$0xff]
    %v1442 = vld [vmem:[#allocation15 + $0x8] sm:$0xff]
    %v1443 = vld [vmem:[#allocation15 + $0x10] sm:$0xff]
    %v1444 = vld [vmem:[#allocation15 + $0x18] sm:$0xff]
    %v1445 = vld [vmem:[#allocation15 + $0x20] sm:$0xff]
    %v1446 = vld [vmem:[#allocation15 + $0x28] sm:$0xff]
    %v1447 = vld [vmem:[#allocation15 + $0x30] sm:$0xff]
    %v1448 = vld [vmem:[#allocation15 + $0x38] sm:$0xff]
    %v1449 = vld [vmem:[#allocation15 + $0x40] sm:$0xff]
    %v1450 = vld [vmem:[#allocation15 + $0x48] sm:$0xff]
    %v1451 = vld [vmem:[#allocation15 + $0x50] sm:$0xff]
    %v1452 = vld [vmem:[#allocation15 + $0x58] sm:$0xff]
    %v1453 = vld [vmem:[#allocation15 + $0x60] sm:$0xff]
    %v1454 = vld [vmem:[#allocation15 + $0x68] sm:$0xff]
    %v1455 = vld [vmem:[#allocation15 + $0x70] sm:$0xff]
    %v1456 = vld [vmem:[#allocation15 + $0x78] sm:$0xff]
    %v1457 = vld [vmem:[#allocation15 + $0x80] sm:$0xff]
    %v1458 = vld [vmem:[#allocation15 + $0x88] sm:$0xff]
    %v1459 = vld [vmem:[#allocation15 + $0x90] sm:$0xff]
    %v1460 = vld [vmem:[#allocation15 + $0x98] sm:$0xff]
    %v1461 = vld [vmem:[#allocation15 + $0xa0] sm:$0xff]
    %v1462 = vld [vmem:[#allocation15 + $0xa8] sm:$0xff]
    %v1463 = vld [vmem:[#allocation15 + $0xb0] sm:$0xff]
    %v1464 = vld [vmem:[#allocation15 + $0xb8] sm:$0xff]
    %v1465 = vld [vmem:[#allocation15 + $0xc0] sm:$0xff]
    %v1466 = vld [vmem:[#allocation15 + $0xc8] sm:$0xff]
    %v1467 = vld [vmem:[#allocation15 + $0xd0] sm:$0xff]
    %v1468 = vld [vmem:[#allocation15 + $0xd8] sm:$0xff]
    %v1469 = vld [vmem:[#allocation15 + $0xe0] sm:$0xff]
    %v1470 = vld [vmem:[#allocation15 + $0xe8] sm:$0xff]
    %v1471 = vld [vmem:[#allocation15 + $0xf0] sm:$0xff]
    %v1472 = vld [vmem:[#allocation15 + $0xf8] sm:$0xff]
    %v1473 = vld [vmem:[#allocation15 + $0x100] sm:$0xff]
    %v1474 = vld [vmem:[#allocation15 + $0x108] sm:$0xff]
    %v1475 = vld [vmem:[#allocation15 + $0x110] sm:$0xff]
    %v1476 = vld [vmem:[#allocation15 + $0x118] sm:$0xff]
    %v1477 = vld [vmem:[#allocation15 + $0x120] sm:$0xff]
    %v1478 = vld [vmem:[#allocation15 + $0x128] sm:$0xff]
    %v1479 = vld [vmem:[#allocation15 + $0x130] sm:$0xff]
    %v1480 = vld [vmem:[#allocation15 + $0x138] sm:$0xff]
    %v1481 = vld [vmem:[#allocation15 + $0x140] sm:$0xff]
    %v1482 = vld [vmem:[#allocation15 + $0x148] sm:$0xff]
    %v1483 = vld [vmem:[#allocation15 + $0x150] sm:$0xff]
    %v1484 = vld [vmem:[#allocation15 + $0x158] sm:$0xff]
    %v1485 = vld [vmem:[#allocation15 + $0x160] sm:$0xff]
    %v1486 = vld [vmem:[#allocation15 + $0x168] sm:$0xff]
    %v1487 = vld [vmem:[#allocation15 + $0x170] sm:$0xff]
    %v1488 = vld [vmem:[#allocation15 + $0x178] sm:$0xff]
    %v1489 = vld [vmem:[#allocation15 + $0x180] sm:$0xff]
    %v1490 = vld [vmem:[#allocation15 + $0x188] sm:$0xff]
    %v1491 = vld [vmem:[#allocation15 + $0x190] sm:$0xff]
    %v1492 = vld [vmem:[#allocation15 + $0x198] sm:$0xff]
    %v1493 = vld [vmem:[#allocation15 + $0x1a0] sm:$0xff]
    %v1494 = vld [vmem:[#allocation15 + $0x1a8] sm:$0xff]
    %v1495 = vld [vmem:[#allocation15 + $0x1b0] sm:$0xff]
    %v1496 = vld [vmem:[#allocation15 + $0x1b8] sm:$0xff]
    %v1497 = vld [vmem:[#allocation15 + $0x1c0] sm:$0xff]
    %v1498 = vld [vmem:[#allocation15 + $0x1c8] sm:$0xff]
    %v1499 = vld [vmem:[#allocation15 + $0x1d0] sm:$0xff]
    %v1500 = vld [vmem:[#allocation15 + $0x1d8] sm:$0xff]
    %v1501 = vld [vmem:[#allocation15 + $0x1e0] sm:$0xff]
    %v1502 = vld [vmem:[#allocation15 + $0x1e8] sm:$0xff]
    %v1503 = vld [vmem:[#allocation15 + $0x1f0] sm:$0xff]
    %v1504 = vld [vmem:[#allocation15 + $0x1f8] sm:$0xff]
    %v1505 = vld [vmem:[#allocation15 + $0x200] sm:$0xff]
    %v1506 = vld [vmem:[#allocation15 + $0x208] sm:$0xff]
    %v1507 = vld [vmem:[#allocation15 + $0x210] sm:$0xff]
    %v1508 = vld [vmem:[#allocation15 + $0x218] sm:$0xff]
    %v1509 = vld [vmem:[#allocation15 + $0x220] sm:$0xff]
    %v1510 = vld [vmem:[#allocation15 + $0x228] sm:$0xff]
    %v1511 = vld [vmem:[#allocation15 + $0x230] sm:$0xff]
    %v1512 = vld [vmem:[#allocation15 + $0x238] sm:$0xff]
    %v1513 = vld [vmem:[#allocation15 + $0x240] sm:$0xff]
    %v1514 = vld [vmem:[#allocation15 + $0x248] sm:$0xff]
    %v1515 = vld [vmem:[#allocation15 + $0x250] sm:$0xff]
    %v1516 = vld [vmem:[#allocation15 + $0x258] sm:$0xff]
    %v1517 = vld [vmem:[#allocation15 + $0x260] sm:$0xff]
    %v1518 = vld [vmem:[#allocation15 + $0x268] sm:$0xff]
    %v1519 = vld [vmem:[#allocation15 + $0x270] sm:$0xff]
    %v1520 = vld [vmem:[#allocation15 + $0x278] sm:$0xff]
    %v1521 = vld [vmem:[#allocation15 + $0x280] sm:$0xff]
    %v1522 = vld [vmem:[#allocation15 + $0x288] sm:$0xff]
    %v1523 = vld [vmem:[#allocation15 + $0x290] sm:$0xff]
    %v1524 = vld [vmem:[#allocation15 + $0x298] sm:$0xff]
    %v1525 = vld [vmem:[#allocation15 + $0x2a0] sm:$0xff]
    %v1526 = vld [vmem:[#allocation15 + $0x2a8] sm:$0xff]
    %v1527 = vld [vmem:[#allocation15 + $0x2b0] sm:$0xff]
    %v1528 = vld [vmem:[#allocation15 + $0x2b8] sm:$0xff]
    %v1529 = vld [vmem:[#allocation15 + $0x2c0] sm:$0xff]
    %v1530 = vld [vmem:[#allocation15 + $0x2c8] sm:$0xff]
    %v1531 = vld [vmem:[#allocation15 + $0x2d0] sm:$0xff]
    %v1532 = vld [vmem:[#allocation15 + $0x2d8] sm:$0xff]
    %v1533 = vld [vmem:[#allocation15 + $0x2e0] sm:$0xff]
    %v1534 = vld [vmem:[#allocation15 + $0x2e8] sm:$0xff]
    %v1535 = vld [vmem:[#allocation15 + $0x2f0] sm:$0xff]
    %v1536 = vld [vmem:[#allocation15 + $0x2f8] sm:$0xff]
    %v1537 = vld [vmem:[#allocation15 + $0x300] sm:$0xff]
    %v1538 = vld [vmem:[#allocation15 + $0x308] sm:$0xff]
    %v1539 = vld [vmem:[#allocation15 + $0x310] sm:$0xff]
    %v1540 = vld [vmem:[#allocation15 + $0x318] sm:$0xff]
    %v1541 = vld [vmem:[#allocation15 + $0x320] sm:$0xff]
    %v1542 = vld [vmem:[#allocation15 + $0x328] sm:$0xff]
    %v1543 = vld [vmem:[#allocation15 + $0x330] sm:$0xff]
    %v1544 = vld [vmem:[#allocation15 + $0x338] sm:$0xff]
    %v1545 = vld [vmem:[#allocation15 + $0x340] sm:$0xff]
    %v1546 = vld [vmem:[#allocation15 + $0x348] sm:$0xff]
    %v1547 = vld [vmem:[#allocation15 + $0x350] sm:$0xff]
    %v1548 = vld [vmem:[#allocation15 + $0x358] sm:$0xff]
    %v1549 = vld [vmem:[#allocation15 + $0x360] sm:$0xff]
    %v1550 = vld [vmem:[#allocation15 + $0x368] sm:$0xff]
    %v1551 = vld [vmem:[#allocation15 + $0x370] sm:$0xff]
    %v1552 = vld [vmem:[#allocation15 + $0x378] sm:$0xff]
    %v1553 = vld [vmem:[#allocation15 + $0x380] sm:$0xff]
    %v1554 = vld [vmem:[#allocation15 + $0x388] sm:$0xff]
    %v1555 = vld [vmem:[#allocation15 + $0x390] sm:$0xff]
    %v1556 = vld [vmem:[#allocation15 + $0x398] sm:$0xff]
    %v1557 = vld [vmem:[#allocation15 + $0x3a0] sm:$0xff]
    %v1558 = vld [vmem:[#allocation15 + $0x3a8] sm:$0xff]
    %v1559 = vld [vmem:[#allocation15 + $0x3b0] sm:$0xff]
    %v1560 = vld [vmem:[#allocation15 + $0x3b8] sm:$0xff]
    %v1561 = vld [vmem:[#allocation15 + $0x3c0] sm:$0xff]
    %v1562 = vld [vmem:[#allocation15 + $0x3c8] sm:$0xff]
    %v1563 = vld [vmem:[#allocation15 + $0x3d0] sm:$0xff]
    %v1564 = vld [vmem:[#allocation15 + $0x3d8] sm:$0xff]
    %v1565 = vld [vmem:[#allocation15 + $0x3e0] sm:$0xff]
    %v1566 = vld [vmem:[#allocation15 + $0x3e8] sm:$0xff]
    %v1567 = vld [vmem:[#allocation15 + $0x3f0] sm:$0xff]
    %v1568 = vld [vmem:[#allocation15 + $0x3f8] sm:$0xff]
    %v1569 = vld [vmem:[#allocation16] sm:$0xf]
    %v1571 = vlaneseq
    %v1572 = vshrl.u32 %v1571, 7
    %v1573 = vsub.s32 0, %v1572
    %v1574 = vrot.slane %v1569, %v1573
    %v1575 = vlaneseq
    %v1576 = vshrl.u32 %v1575, 7
    %v1577 = vsub.s32 1, %v1576
    %v1578 = vrot.slane %v1569, %v1577
    %v1579 = vlaneseq
    %v1580 = vshrl.u32 %v1579, 7
    %v1581 = vsub.s32 2, %v1580
    %v1582 = vrot.slane %v1569, %v1581
    %v1583 = vlaneseq
    %v1584 = vshrl.u32 %v1583, 7
    %v1585 = vsub.s32 3, %v1584
    %v1586 = vrot.slane %v1569, %v1585
    %v1719 = vunpack.c.l.b16 %v1441
    %v1720 = vunpack.c.h.b16 %v1441
    %v1721 = vunpack.c.l.b16 %v1442
    %v1722 = vunpack.c.h.b16 %v1442
    %v1723 = vunpack.c.l.b16 %v1443
    %v1724 = vunpack.c.h.b16 %v1443
    %v1725 = vunpack.c.l.b16 %v1444
    %v1726 = vunpack.c.h.b16 %v1444
    %v1727 = vunpack.c.l.b16 %v1445
    %v1728 = vunpack.c.h.b16 %v1445
    %v1729 = vunpack.c.l.b16 %v1446
    %v1730 = vunpack.c.h.b16 %v1446
    %v1731 = vunpack.c.l.b16 %v1447
    %v1732 = vunpack.c.h.b16 %v1447
    %v1733 = vunpack.c.l.b16 %v1448
    %v1734 = vunpack.c.h.b16 %v1448
    %v1735 = vunpack.c.l.b16 %v1449
    %v1736 = vunpack.c.h.b16 %v1449
    %v1737 = vunpack.c.l.b16 %v1450
    %v1738 = vunpack.c.h.b16 %v1450
    %v1739 = vunpack.c.l.b16 %v1451
    %v1740 = vunpack.c.h.b16 %v1451
    %v1741 = vunpack.c.l.b16 %v1452
    %v1742 = vunpack.c.h.b16 %v1452
    %v1743 = vunpack.c.l.b16 %v1453
    %v1744 = vunpack.c.h.b16 %v1453
    %v1745 = vunpack.c.l.b16 %v1454
    %v1746 = vunpack.c.h.b16 %v1454
    %v1747 = vunpack.c.l.b16 %v1455
    %v1748 = vunpack.c.h.b16 %v1455
    %v1749 = vunpack.c.l.b16 %v1456
    %v1750 = vunpack.c.h.b16 %v1456
    %v1751 = vunpack.c.l.b16 %v1457
    %v1752 = vunpack.c.h.b16 %v1457
    %v1753 = vunpack.c.l.b16 %v1458
    %v1754 = vunpack.c.h.b16 %v1458
    %v1755 = vunpack.c.l.b16 %v1459
    %v1756 = vunpack.c.h.b16 %v1459
    %v1757 = vunpack.c.l.b16 %v1460
    %v1758 = vunpack.c.h.b16 %v1460
    %v1759 = vunpack.c.l.b16 %v1461
    %v1760 = vunpack.c.h.b16 %v1461
    %v1761 = vunpack.c.l.b16 %v1462
    %v1762 = vunpack.c.h.b16 %v1462
    %v1763 = vunpack.c.l.b16 %v1463
    %v1764 = vunpack.c.h.b16 %v1463
    %v1765 = vunpack.c.l.b16 %v1464
    %v1766 = vunpack.c.h.b16 %v1464
    %v1767 = vunpack.c.l.b16 %v1465
    %v1768 = vunpack.c.h.b16 %v1465
    %v1769 = vunpack.c.l.b16 %v1466
    %v1770 = vunpack.c.h.b16 %v1466
    %v1771 = vunpack.c.l.b16 %v1467
    %v1772 = vunpack.c.h.b16 %v1467
    %v1773 = vunpack.c.l.b16 %v1468
    %v1774 = vunpack.c.h.b16 %v1468
    %v1775 = vunpack.c.l.b16 %v1469
    %v1776 = vunpack.c.h.b16 %v1469
    %v1777 = vunpack.c.l.b16 %v1470
    %v1778 = vunpack.c.h.b16 %v1470
    %v1779 = vunpack.c.l.b16 %v1471
    %v1780 = vunpack.c.h.b16 %v1471
    %v1781 = vunpack.c.l.b16 %v1472
    %v1782 = vunpack.c.h.b16 %v1472
    %v1783 = vunpack.c.l.b16 %v1473
    %v1784 = vunpack.c.h.b16 %v1473
    %v1785 = vunpack.c.l.b16 %v1474
    %v1786 = vunpack.c.h.b16 %v1474
    %v1787 = vunpack.c.l.b16 %v1475
    %v1788 = vunpack.c.h.b16 %v1475
    %v1789 = vunpack.c.l.b16 %v1476
    %v1790 = vunpack.c.h.b16 %v1476
    %v1791 = vunpack.c.l.b16 %v1477
    %v1792 = vunpack.c.h.b16 %v1477
    %v1793 = vunpack.c.l.b16 %v1478
    %v1794 = vunpack.c.h.b16 %v1478
    %v1795 = vunpack.c.l.b16 %v1479
    %v1796 = vunpack.c.h.b16 %v1479
    %v1797 = vunpack.c.l.b16 %v1480
    %v1798 = vunpack.c.h.b16 %v1480
    %v1799 = vunpack.c.l.b16 %v1481
    %v1800 = vunpack.c.h.b16 %v1481
    %v1801 = vunpack.c.l.b16 %v1482
    %v1802 = vunpack.c.h.b16 %v1482
    %v1803 = vunpack.c.l.b16 %v1483
    %v1804 = vunpack.c.h.b16 %v1483
    %v1805 = vunpack.c.l.b16 %v1484
    %v1806 = vunpack.c.h.b16 %v1484
    %v1807 = vunpack.c.l.b16 %v1485
    %v1808 = vunpack.c.h.b16 %v1485
    %v1809 = vunpack.c.l.b16 %v1486
    %v1810 = vunpack.c.h.b16 %v1486
    %v1811 = vunpack.c.l.b16 %v1487
    %v1812 = vunpack.c.h.b16 %v1487
    %v1813 = vunpack.c.l.b16 %v1488
    %v1814 = vunpack.c.h.b16 %v1488
    %v1815 = vunpack.c.l.b16 %v1489
    %v1816 = vunpack.c.h.b16 %v1489
    %v1817 = vunpack.c.l.b16 %v1490
    %v1818 = vunpack.c.h.b16 %v1490
    %v1819 = vunpack.c.l.b16 %v1491
    %v1820 = vunpack.c.h.b16 %v1491
    %v1821 = vunpack.c.l.b16 %v1492
    %v1822 = vunpack.c.h.b16 %v1492
    %v1823 = vunpack.c.l.b16 %v1493
    %v1824 = vunpack.c.h.b16 %v1493
    %v1825 = vunpack.c.l.b16 %v1494
    %v1826 = vunpack.c.h.b16 %v1494
    %v1827 = vunpack.c.l.b16 %v1495
    %v1828 = vunpack.c.h.b16 %v1495
    %v1829 = vunpack.c.l.b16 %v1496
    %v1830 = vunpack.c.h.b16 %v1496
    %v1831 = vunpack.c.l.b16 %v1497
    %v1832 = vunpack.c.h.b16 %v1497
    %v1833 = vunpack.c.l.b16 %v1498
    %v1834 = vunpack.c.h.b16 %v1498
    %v1835 = vunpack.c.l.b16 %v1499
    %v1836 = vunpack.c.h.b16 %v1499
    %v1837 = vunpack.c.l.b16 %v1500
    %v1838 = vunpack.c.h.b16 %v1500
    %v1839 = vunpack.c.l.b16 %v1501
    %v1840 = vunpack.c.h.b16 %v1501
    %v1841 = vunpack.c.l.b16 %v1502
    %v1842 = vunpack.c.h.b16 %v1502
    %v1843 = vunpack.c.l.b16 %v1503
    %v1844 = vunpack.c.h.b16 %v1503
    %v1845 = vunpack.c.l.b16 %v1504
    %v1846 = vunpack.c.h.b16 %v1504
    %v1847 = vunpack.c.l.b16 %v1505
    %v1848 = vunpack.c.h.b16 %v1505
    %v1849 = vunpack.c.l.b16 %v1506
    %v1850 = vunpack.c.h.b16 %v1506
    %v1851 = vunpack.c.l.b16 %v1507
    %v1852 = vunpack.c.h.b16 %v1507
    %v1853 = vunpack.c.l.b16 %v1508
    %v1854 = vunpack.c.h.b16 %v1508
    %v1855 = vunpack.c.l.b16 %v1509
    %v1856 = vunpack.c.h.b16 %v1509
    %v1857 = vunpack.c.l.b16 %v1510
    %v1858 = vunpack.c.h.b16 %v1510
    %v1859 = vunpack.c.l.b16 %v1511
    %v1860 = vunpack.c.h.b16 %v1511
    %v1861 = vunpack.c.l.b16 %v1512
    %v1862 = vunpack.c.h.b16 %v1512
    %v1863 = vunpack.c.l.b16 %v1513
    %v1864 = vunpack.c.h.b16 %v1513
    %v1865 = vunpack.c.l.b16 %v1514
    %v1866 = vunpack.c.h.b16 %v1514
    %v1867 = vunpack.c.l.b16 %v1515
    %v1868 = vunpack.c.h.b16 %v1515
    %v1869 = vunpack.c.l.b16 %v1516
    %v1870 = vunpack.c.h.b16 %v1516
    %v1871 = vunpack.c.l.b16 %v1517
    %v1872 = vunpack.c.h.b16 %v1517
    %v1873 = vunpack.c.l.b16 %v1518
    %v1874 = vunpack.c.h.b16 %v1518
    %v1875 = vunpack.c.l.b16 %v1519
    %v1876 = vunpack.c.h.b16 %v1519
    %v1877 = vunpack.c.l.b16 %v1520
    %v1878 = vunpack.c.h.b16 %v1520
    %v1879 = vunpack.c.l.b16 %v1521
    %v1880 = vunpack.c.h.b16 %v1521
    %v1881 = vunpack.c.l.b16 %v1522
    %v1882 = vunpack.c.h.b16 %v1522
    %v1883 = vunpack.c.l.b16 %v1523
    %v1884 = vunpack.c.h.b16 %v1523
    %v1885 = vunpack.c.l.b16 %v1524
    %v1886 = vunpack.c.h.b16 %v1524
    %v1887 = vunpack.c.l.b16 %v1525
    %v1888 = vunpack.c.h.b16 %v1525
    %v1889 = vunpack.c.l.b16 %v1526
    %v1890 = vunpack.c.h.b16 %v1526
    %v1891 = vunpack.c.l.b16 %v1527
    %v1892 = vunpack.c.h.b16 %v1527
    %v1893 = vunpack.c.l.b16 %v1528
    %v1894 = vunpack.c.h.b16 %v1528
    %v1895 = vunpack.c.l.b16 %v1529
    %v1896 = vunpack.c.h.b16 %v1529
    %v1897 = vunpack.c.l.b16 %v1530
    %v1898 = vunpack.c.h.b16 %v1530
    %v1899 = vunpack.c.l.b16 %v1531
    %v1900 = vunpack.c.h.b16 %v1531
    %v1901 = vunpack.c.l.b16 %v1532
    %v1902 = vunpack.c.h.b16 %v1532
    %v1903 = vunpack.c.l.b16 %v1533
    %v1904 = vunpack.c.h.b16 %v1533
    %v1905 = vunpack.c.l.b16 %v1534
    %v1906 = vunpack.c.h.b16 %v1534
    %v1907 = vunpack.c.l.b16 %v1535
    %v1908 = vunpack.c.h.b16 %v1535
    %v1909 = vunpack.c.l.b16 %v1536
    %v1910 = vunpack.c.h.b16 %v1536
    %v1911 = vunpack.c.l.b16 %v1537
    %v1912 = vunpack.c.h.b16 %v1537
    %v1913 = vunpack.c.l.b16 %v1538
    %v1914 = vunpack.c.h.b16 %v1538
    %v1915 = vunpack.c.l.b16 %v1539
    %v1916 = vunpack.c.h.b16 %v1539
    %v1917 = vunpack.c.l.b16 %v1540
    %v1918 = vunpack.c.h.b16 %v1540
    %v1919 = vunpack.c.l.b16 %v1541
    %v1920 = vunpack.c.h.b16 %v1541
    %v1921 = vunpack.c.l.b16 %v1542
    %v1922 = vunpack.c.h.b16 %v1542
    %v1923 = vunpack.c.l.b16 %v1543
    %v1924 = vunpack.c.h.b16 %v1543
    %v1925 = vunpack.c.l.b16 %v1544
    %v1926 = vunpack.c.h.b16 %v1544
    %v1927 = vunpack.c.l.b16 %v1545
    %v1928 = vunpack.c.h.b16 %v1545
    %v1929 = vunpack.c.l.b16 %v1546
    %v1930 = vunpack.c.h.b16 %v1546
    %v1931 = vunpack.c.l.b16 %v1547
    %v1932 = vunpack.c.h.b16 %v1547
    %v1933 = vunpack.c.l.b16 %v1548
    %v1934 = vunpack.c.h.b16 %v1548
    %v1935 = vunpack.c.l.b16 %v1549
    %v1936 = vunpack.c.h.b16 %v1549
    %v1937 = vunpack.c.l.b16 %v1550
    %v1938 = vunpack.c.h.b16 %v1550
    %v1939 = vunpack.c.l.b16 %v1551
    %v1940 = vunpack.c.h.b16 %v1551
    %v1941 = vunpack.c.l.b16 %v1552
    %v1942 = vunpack.c.h.b16 %v1552
    %v1943 = vunpack.c.l.b16 %v1553
    %v1944 = vunpack.c.h.b16 %v1553
    %v1945 = vunpack.c.l.b16 %v1554
    %v1946 = vunpack.c.h.b16 %v1554
    %v1947 = vunpack.c.l.b16 %v1555
    %v1948 = vunpack.c.h.b16 %v1555
    %v1949 = vunpack.c.l.b16 %v1556
    %v1950 = vunpack.c.h.b16 %v1556
    %v1951 = vunpack.c.l.b16 %v1557
    %v1952 = vunpack.c.h.b16 %v1557
    %v1953 = vunpack.c.l.b16 %v1558
    %v1954 = vunpack.c.h.b16 %v1558
    %v1955 = vunpack.c.l.b16 %v1559
    %v1956 = vunpack.c.h.b16 %v1559
    %v1957 = vunpack.c.l.b16 %v1560
    %v1958 = vunpack.c.h.b16 %v1560
    %v1959 = vunpack.c.l.b16 %v1561
    %v1960 = vunpack.c.h.b16 %v1561
    %v1961 = vunpack.c.l.b16 %v1562
    %v1962 = vunpack.c.h.b16 %v1562
    %v1963 = vunpack.c.l.b16 %v1563
    %v1964 = vunpack.c.h.b16 %v1563
    %v1965 = vunpack.c.l.b16 %v1564
    %v1966 = vunpack.c.h.b16 %v1564
    %v1967 = vunpack.c.l.b16 %v1565
    %v1968 = vunpack.c.h.b16 %v1565
    %v1969 = vunpack.c.l.b16 %v1566
    %v1970 = vunpack.c.h.b16 %v1566
    %v1971 = vunpack.c.l.b16 %v1567
    %v1972 = vunpack.c.h.b16 %v1567
    %v1973 = vunpack.c.l.b16 %v1568
    %v1974 = vunpack.c.h.b16 %v1568
    %v1975 = vpack.c.b16 %v1723, %v1719
    %v1976 = vpack.c.b16 %v1724, %v1720
    %v1977 = vpack.c.b16 %v1725, %v1721
    %v1978 = vpack.c.b16 %v1726, %v1722
    %v1979 = vpack.c.b16 %v1731, %v1727
    %v1980 = vpack.c.b16 %v1732, %v1728
    %v1981 = vpack.c.b16 %v1733, %v1729
    %v1982 = vpack.c.b16 %v1734, %v1730
    %v1983 = vpack.c.b16 %v1739, %v1735
    %v1984 = vpack.c.b16 %v1740, %v1736
    %v1985 = vpack.c.b16 %v1741, %v1737
    %v1986 = vpack.c.b16 %v1742, %v1738
    %v1987 = vpack.c.b16 %v1747, %v1743
    %v1988 = vpack.c.b16 %v1748, %v1744
    %v1989 = vpack.c.b16 %v1749, %v1745
    %v1990 = vpack.c.b16 %v1750, %v1746
    %v1991 = vpack.c.b16 %v1755, %v1751
    %v1992 = vpack.c.b16 %v1756, %v1752
    %v1993 = vpack.c.b16 %v1757, %v1753
    %v1994 = vpack.c.b16 %v1758, %v1754
    %v1995 = vpack.c.b16 %v1763, %v1759
    %v1996 = vpack.c.b16 %v1764, %v1760
    %v1997 = vpack.c.b16 %v1765, %v1761
    %v1998 = vpack.c.b16 %v1766, %v1762
    %v1999 = vpack.c.b16 %v1771, %v1767
    %v2000 = vpack.c.b16 %v1772, %v1768
    %v2001 = vpack.c.b16 %v1773, %v1769
    %v2002 = vpack.c.b16 %v1774, %v1770
    %v2003 = vpack.c.b16 %v1779, %v1775
    %v2004 = vpack.c.b16 %v1780, %v1776
    %v2005 = vpack.c.b16 %v1781, %v1777
    %v2006 = vpack.c.b16 %v1782, %v1778
    %v2007 = vpack.c.b16 %v1787, %v1783
    %v2008 = vpack.c.b16 %v1788, %v1784
    %v2009 = vpack.c.b16 %v1789, %v1785
    %v2010 = vpack.c.b16 %v1790, %v1786
    %v2011 = vpack.c.b16 %v1795, %v1791
    %v2012 = vpack.c.b16 %v1796, %v1792
    %v2013 = vpack.c.b16 %v1797, %v1793
    %v2014 = vpack.c.b16 %v1798, %v1794
    %v2015 = vpack.c.b16 %v1803, %v1799
    %v2016 = vpack.c.b16 %v1804, %v1800
    %v2017 = vpack.c.b16 %v1805, %v1801
    %v2018 = vpack.c.b16 %v1806, %v1802
    %v2019 = vpack.c.b16 %v1811, %v1807
    %v2020 = vpack.c.b16 %v1812, %v1808
    %v2021 = vpack.c.b16 %v1813, %v1809
    %v2022 = vpack.c.b16 %v1814, %v1810
    %v2023 = vpack.c.b16 %v1819, %v1815
    %v2024 = vpack.c.b16 %v1820, %v1816
    %v2025 = vpack.c.b16 %v1821, %v1817
    %v2026 = vpack.c.b16 %v1822, %v1818
    %v2027 = vpack.c.b16 %v1827, %v1823
    %v2028 = vpack.c.b16 %v1828, %v1824
    %v2029 = vpack.c.b16 %v1829, %v1825
    %v2030 = vpack.c.b16 %v1830, %v1826
    %v2031 = vpack.c.b16 %v1835, %v1831
    %v2032 = vpack.c.b16 %v1836, %v1832
    %v2033 = vpack.c.b16 %v1837, %v1833
    %v2034 = vpack.c.b16 %v1838, %v1834
    %v2035 = vpack.c.b16 %v1843, %v1839
    %v2036 = vpack.c.b16 %v1844, %v1840
    %v2037 = vpack.c.b16 %v1845, %v1841
    %v2038 = vpack.c.b16 %v1846, %v1842
    %v2039 = vpack.c.b16 %v1851, %v1847
    %v2040 = vpack.c.b16 %v1852, %v1848
    %v2041 = vpack.c.b16 %v1853, %v1849
    %v2042 = vpack.c.b16 %v1854, %v1850
    %v2043 = vpack.c.b16 %v1859, %v1855
    %v2044 = vpack.c.b16 %v1860, %v1856
    %v2045 = vpack.c.b16 %v1861, %v1857
    %v2046 = vpack.c.b16 %v1862, %v1858
    %v2047 = vpack.c.b16 %v1867, %v1863
    %v2048 = vpack.c.b16 %v1868, %v1864
    %v2049 = vpack.c.b16 %v1869, %v1865
    %v2050 = vpack.c.b16 %v1870, %v1866
    %v2051 = vpack.c.b16 %v1875, %v1871
    %v2052 = vpack.c.b16 %v1876, %v1872
    %v2053 = vpack.c.b16 %v1877, %v1873
    %v2054 = vpack.c.b16 %v1878, %v1874
    %v2055 = vpack.c.b16 %v1883, %v1879
    %v2056 = vpack.c.b16 %v1884, %v1880
    %v2057 = vpack.c.b16 %v1885, %v1881
    %v2058 = vpack.c.b16 %v1886, %v1882
    %v2059 = vpack.c.b16 %v1891, %v1887
    %v2060 = vpack.c.b16 %v1892, %v1888
    %v2061 = vpack.c.b16 %v1893, %v1889
    %v2062 = vpack.c.b16 %v1894, %v1890
    %v2063 = vpack.c.b16 %v1899, %v1895
    %v2064 = vpack.c.b16 %v1900, %v1896
    %v2065 = vpack.c.b16 %v1901, %v1897
    %v2066 = vpack.c.b16 %v1902, %v1898
    %v2067 = vpack.c.b16 %v1907, %v1903
    %v2068 = vpack.c.b16 %v1908, %v1904
    %v2069 = vpack.c.b16 %v1909, %v1905
    %v2070 = vpack.c.b16 %v1910, %v1906
    %v2071 = vpack.c.b16 %v1915, %v1911
    %v2072 = vpack.c.b16 %v1916, %v1912
    %v2073 = vpack.c.b16 %v1917, %v1913
    %v2074 = vpack.c.b16 %v1918, %v1914
    %v2075 = vpack.c.b16 %v1923, %v1919
    %v2076 = vpack.c.b16 %v1924, %v1920
    %v2077 = vpack.c.b16 %v1925, %v1921
    %v2078 = vpack.c.b16 %v1926, %v1922
    %v2079 = vpack.c.b16 %v1931, %v1927
    %v2080 = vpack.c.b16 %v1932, %v1928
    %v2081 = vpack.c.b16 %v1933, %v1929
    %v2082 = vpack.c.b16 %v1934, %v1930
    %v2083 = vpack.c.b16 %v1939, %v1935
    %v2084 = vpack.c.b16 %v1940, %v1936
    %v2085 = vpack.c.b16 %v1941, %v1937
    %v2086 = vpack.c.b16 %v1942, %v1938
    %v2087 = vpack.c.b16 %v1947, %v1943
    %v2088 = vpack.c.b16 %v1948, %v1944
    %v2089 = vpack.c.b16 %v1949, %v1945
    %v2090 = vpack.c.b16 %v1950, %v1946
    %v2091 = vpack.c.b16 %v1955, %v1951
    %v2092 = vpack.c.b16 %v1956, %v1952
    %v2093 = vpack.c.b16 %v1957, %v1953
    %v2094 = vpack.c.b16 %v1958, %v1954
    %v2095 = vpack.c.b16 %v1963, %v1959
    %v2096 = vpack.c.b16 %v1964, %v1960
    %v2097 = vpack.c.b16 %v1965, %v1961
    %v2098 = vpack.c.b16 %v1966, %v1962
    %v2099 = vpack.c.b16 %v1971, %v1967
    %v2100 = vpack.c.b16 %v1972, %v1968
    %v2101 = vpack.c.b16 %v1973, %v1969
    %v2102 = vpack.c.b16 %v1974, %v1970
    %2231 = vmatprep.subr.bf16.mxu0 %v1976
    %2232 = vmatpush1.bf16.msra.mxu0 %v1975
    %2233 = vmatprep.subr.bf16.mxu0 %v1980
    %2234 = vmatpush1.bf16.msra.mxu0 %v1979
    %2235 = vmatprep.subr.bf16.mxu0 %v1984
    %2236 = vmatpush1.bf16.msra.mxu0 %v1983
    %2237 = vmatprep.subr.bf16.mxu0 %v1988
    %2238 = vmatpush1.bf16.msra.mxu0 %v1987
    %2239 = vmatprep.subr.bf16.mxu0 %v1992
    %2240 = vmatpush1.bf16.msra.mxu0 %v1991
    %2241 = vmatprep.subr.bf16.mxu0 %v1996
    %2242 = vmatpush1.bf16.msra.mxu0 %v1995
    %2243 = vmatprep.subr.bf16.mxu0 %v2000
    %2244 = vmatpush1.bf16.msra.mxu0 %v1999
    %2245 = vmatprep.subr.bf16.mxu0 %v2004
    %2246 = vmatpush1.bf16.msra.mxu0 %v2003
    %2247 = vmatprep.subr.bf16.mxu0 %v2008
    %2248 = vmatpush1.bf16.msra.mxu0 %v2007
    %2249 = vmatprep.subr.bf16.mxu0 %v2012
    %2250 = vmatpush1.bf16.msra.mxu0 %v2011
    %2251 = vmatprep.subr.bf16.mxu0 %v2016
    %2252 = vmatpush1.bf16.msra.mxu0 %v2015
    %2253 = vmatprep.subr.bf16.mxu0 %v2020
    %2254 = vmatpush1.bf16.msra.mxu0 %v2019
    %2255 = vmatprep.subr.bf16.mxu0 %v2024
    %2256 = vmatpush1.bf16.msra.mxu0 %v2023
    %2257 = vmatprep.subr.bf16.mxu0 %v2028
    %2258 = vmatpush1.bf16.msra.mxu0 %v2027
    %2259 = vmatprep.subr.bf16.mxu0 %v2032
    %2260 = vmatpush1.bf16.msra.mxu0 %v2031
    %2261 = vmatprep.subr.bf16.mxu0 %v2036
    %2262 = vmatpush1.bf16.msra.mxu0 %v2035
    %2263 = vmatprep.mubr.bf16.mxu0 %v1438
    %2264 = vmatmul.mubr.bf16.gmra.mrb[0].mxu0 %v1437
    %v2265 = vpop.f32.mrb[0].mxu0
    %v2266 = vadd.f32 %v1574, %v2265
    %v2267 = vpop.f32.mrb[0].mxu0
    %v2268 = vadd.f32 %v1578, %v2267
    %v2269 = vpop.f32.mrb[0].mxu0
    %v2270 = vpop.f32.mrb[0].mxu0
    %2271 = vdwg.mxu0
    %2272 = vmatprep.subr.bf16.mxu0 %v2040
    %2273 = vmatpush1.bf16.msra.mxu0 %v2039
    %2274 = vmatprep.subr.bf16.mxu0 %v2044
    %2275 = vmatpush1.bf16.msra.mxu0 %v2043
    %2276 = vmatprep.subr.bf16.mxu0 %v2048
    %2277 = vmatpush1.bf16.msra.mxu0 %v2047
    %2278 = vmatprep.subr.bf16.mxu0 %v2052
    %2279 = vmatpush1.bf16.msra.mxu0 %v2051
    %2280 = vmatprep.subr.bf16.mxu0 %v2056
    %2281 = vmatpush1.bf16.msra.mxu0 %v2055
    %2282 = vmatprep.subr.bf16.mxu0 %v2060
    %2283 = vmatpush1.bf16.msra.mxu0 %v2059
    %2284 = vmatprep.subr.bf16.mxu0 %v2064
    %2285 = vmatpush1.bf16.msra.mxu0 %v2063
    %2286 = vmatprep.subr.bf16.mxu0 %v2068
    %2287 = vmatpush1.bf16.msra.mxu0 %v2067
    %2288 = vmatprep.subr.bf16.mxu0 %v2072
    %2289 = vmatpush1.bf16.msra.mxu0 %v2071
    %2290 = vmatprep.subr.bf16.mxu0 %v2076
    %2291 = vmatpush1.bf16.msra.mxu0 %v2075
    %2292 = vmatprep.subr.bf16.mxu0 %v2080
    %2293 = vmatpush1.bf16.msra.mxu0 %v2079
    %2294 = vmatprep.subr.bf16.mxu0 %v2084
    %2295 = vmatpush1.bf16.msra.mxu0 %v2083
    %2296 = vmatprep.subr.bf16.mxu0 %v2088
    %2297 = vmatpush1.bf16.msra.mxu0 %v2087
    %2298 = vmatprep.subr.bf16.mxu0 %v2092
    %2299 = vmatpush1.bf16.msra.mxu0 %v2091
    %2300 = vmatprep.subr.bf16.mxu0 %v2096
    %2301 = vmatpush1.bf16.msra.mxu0 %v2095
    %2302 = vmatprep.subr.bf16.mxu0 %v2100
    %2303 = vmatpush1.bf16.msra.mxu0 %v2099
    %2304 = vmatprep.mubr.bf16.mxu0 %v1440
    %2305 = vmatmul.mubr.bf16.gmra.mrb[0].mxu0 %v1439
    %v2306 = vpop.f32.mrb[0].mxu0
    %v2307 = vadd.f32 %v2266, %v2306
    %v2308 = vpop.f32.mrb[0].mxu0
    %v2309 = vadd.f32 %v2268, %v2308
    %v2310 = vpop.f32.mrb[0].mxu0
    %v2311 = vpop.f32.mrb[0].mxu0
    %2312 = vdwg.mxu0
    %2313 = vmatprep.subr.bf16.mxu0 %v1978
    %2314 = vmatpush1.bf16.msra.mxu0 %v1977
    %2315 = vmatprep.subr.bf16.mxu0 %v1982
    %2316 = vmatpush1.bf16.msra.mxu0 %v1981
    %2317 = vmatprep.subr.bf16.mxu0 %v1986
    %2318 = vmatpush1.bf16.msra.mxu0 %v1985
    %2319 = vmatprep.subr.bf16.mxu0 %v1990
    %2320 = vmatpush1.bf16.msra.mxu0 %v1989
    %2321 = vmatprep.subr.bf16.mxu0 %v1994
    %2322 = vmatpush1.bf16.msra.mxu0 %v1993
    %2323 = vmatprep.subr.bf16.mxu0 %v1998
    %2324 = vmatpush1.bf16.msra.mxu0 %v1997
    %2325 = vmatprep.subr.bf16.mxu0 %v2002
    %2326 = vmatpush1.bf16.msra.mxu0 %v2001
    %2327 = vmatprep.subr.bf16.mxu0 %v2006
    %2328 = vmatpush1.bf16.msra.mxu0 %v2005
    %2329 = vmatprep.subr.bf16.mxu0 %v2010
    %2330 = vmatpush1.bf16.msra.mxu0 %v2009
    %2331 = vmatprep.subr.bf16.mxu0 %v2014
    %2332 = vmatpush1.bf16.msra.mxu0 %v2013
    %2333 = vmatprep.subr.bf16.mxu0 %v2018
    %2334 = vmatpush1.bf16.msra.mxu0 %v2017
    %2335 = vmatprep.subr.bf16.mxu0 %v2022
    %2336 = vmatpush1.bf16.msra.mxu0 %v2021
    %2337 = vmatprep.subr.bf16.mxu0 %v2026
    %2338 = vmatpush1.bf16.msra.mxu0 %v2025
    %2339 = vmatprep.subr.bf16.mxu0 %v2030
    %2340 = vmatpush1.bf16.msra.mxu0 %v2029
    %2341 = vmatprep.subr.bf16.mxu0 %v2034
    %2342 = vmatpush1.bf16.msra.mxu0 %v2033
    %2343 = vmatprep.subr.bf16.mxu0 %v2038
    %2344 = vmatpush1.bf16.msra.mxu0 %v2037
    %2345 = vmatprep.mubr.bf16.mxu0 %v1438
    %2346 = vmatmul.mubr.bf16.gmra.mrb[0].mxu0 %v1437
    %v2347 = vpop.f32.mrb[0].mxu0
    %v2348 = vadd.f32 %v1582, %v2347
    %v2349 = vpop.f32.mrb[0].mxu0
    %v2350 = vadd.f32 %v1586, %v2349
    %v2351 = vpop.f32.mrb[0].mxu0
    %v2352 = vpop.f32.mrb[0].mxu0
    %2353 = vdwg.mxu0
    %2354 = vmatprep.subr.bf16.mxu0 %v2042
    %2355 = vmatpush1.bf16.msra.mxu0 %v2041
    %2356 = vmatprep.subr.bf16.mxu0 %v2046
    %2357 = vmatpush1.bf16.msra.mxu0 %v2045
    %2358 = vmatprep.subr.bf16.mxu0 %v2050
    %2359 = vmatpush1.bf16.msra.mxu0 %v2049
    %2360 = vmatprep.subr.bf16.mxu0 %v2054
    %2361 = vmatpush1.bf16.msra.mxu0 %v2053
    %2362 = vmatprep.subr.bf16.mxu0 %v2058
    %2363 = vmatpush1.bf16.msra.mxu0 %v2057
    %2364 = vmatprep.subr.bf16.mxu0 %v2062
    %2365 = vmatpush1.bf16.msra.mxu0 %v2061
    %2366 = vmatprep.subr.bf16.mxu0 %v2066
    %2367 = vmatpush1.bf16.msra.mxu0 %v2065
    %2368 = vmatprep.subr.bf16.mxu0 %v2070
    %2369 = vmatpush1.bf16.msra.mxu0 %v2069
    %2370 = vmatprep.subr.bf16.mxu0 %v2074
    %2371 = vmatpush1.bf16.msra.mxu0 %v2073
    %2372 = vmatprep.subr.bf16.mxu0 %v2078
    %2373 = vmatpush1.bf16.msra.mxu0 %v2077
    %2374 = vmatprep.subr.bf16.mxu0 %v2082
    %2375 = vmatpush1.bf16.msra.mxu0 %v2081
    %2376 = vmatprep.subr.bf16.mxu0 %v2086
    %2377 = vmatpush1.bf16.msra.mxu0 %v2085
    %2378 = vmatprep.subr.bf16.mxu0 %v2090
    %2379 = vmatpush1.bf16.msra.mxu0 %v2089
    %2380 = vmatprep.subr.bf16.mxu0 %v2094
    %2381 = vmatpush1.bf16.msra.mxu0 %v2093
    %2382 = vmatprep.subr.bf16.mxu0 %v2098
    %2383 = vmatpush1.bf16.msra.mxu0 %v2097
    %2384 = vmatprep.subr.bf16.mxu0 %v2102
    %2385 = vmatpush1.bf16.msra.mxu0 %v2101
    %2386 = vmatprep.mubr.bf16.mxu0 %v1440
    %2387 = vmatmul.mubr.bf16.gmra.mrb[0].mxu0 %v1439
    %v2388 = vpop.f32.mrb[0].mxu0
    %v2389 = vadd.f32 %v2348, %v2388
    %v2390 = vpop.f32.mrb[0].mxu0
    %v2391 = vadd.f32 %v2350, %v2390
    %v2392 = vpop.f32.mrb[0].mxu0
    %v2393 = vpop.f32.mrb[0].mxu0
    %2394 = vdwg.mxu0
    %v2395 = vmax.f32 %v2307, 0.0
    %v2396 = vmax.f32 %v2309, 0.0
    %v2397 = vmax.f32 %v2389, 0.0
    %v2398 = vmax.f32 %v2391, 0.0
    %v2399 = vpack.c.bf16 %v2395, %v2395
    %v2400 = vpack.c.bf16 %v2396, %v2396
    %v2401 = vpack.c.bf16 %v2397, %v2397
    %v2402 = vpack.c.bf16 %v2398, %v2398
    %v2403 = vld [vmem:[#allocation18] sm:$0xff]
    %v2404 = vld [vmem:[#allocation18 + $0x8] sm:$0xff]
    %v2405 = vld [vmem:[#allocation18 + $0x10] sm:$0xff]
    %v2406 = vld [vmem:[#allocation18 + $0x18] sm:$0xff]
    %v2407 = vld [vmem:[#allocation18 + $0x20] sm:$0xff]
    %v2408 = vld [vmem:[#allocation18 + $0x28] sm:$0xff]
    %v2409 = vld [vmem:[#allocation18 + $0x30] sm:$0xff]
    %v2410 = vld [vmem:[#allocation18 + $0x38] sm:$0xff]
    %v2411 = vld [vmem:[#allocation18 + $0x40] sm:$0xff]
    %v2412 = vld [vmem:[#allocation18 + $0x48] sm:$0xff]
    %v2413 = vld [vmem:[#allocation18 + $0x50] sm:$0xff]
    %v2414 = vld [vmem:[#allocation18 + $0x58] sm:$0xff]
    %v2415 = vld [vmem:[#allocation18 + $0x60] sm:$0xff]
    %v2416 = vld [vmem:[#allocation18 + $0x68] sm:$0xff]
    %v2417 = vld [vmem:[#allocation18 + $0x70] sm:$0xff]
    %v2418 = vld [vmem:[#allocation18 + $0x78] sm:$0xff]
    %v2419 = vld [vmem:[#allocation18 + $0x80] sm:$0xff]
    %v2420 = vld [vmem:[#allocation18 + $0x88] sm:$0xff]
    %v2421 = vld [vmem:[#allocation18 + $0x90] sm:$0xff]
    %v2422 = vld [vmem:[#allocation18 + $0x98] sm:$0xff]
    %v2423 = vld [vmem:[#allocation18 + $0xa0] sm:$0xff]
    %v2424 = vld [vmem:[#allocation18 + $0xa8] sm:$0xff]
    %v2425 = vld [vmem:[#allocation18 + $0xb0] sm:$0xff]
    %v2426 = vld [vmem:[#allocation18 + $0xb8] sm:$0xff]
    %v2427 = vld [vmem:[#allocation18 + $0xc0] sm:$0xff]
    %v2428 = vld [vmem:[#allocation18 + $0xc8] sm:$0xff]
    %v2429 = vld [vmem:[#allocation18 + $0xd0] sm:$0xff]
    %v2430 = vld [vmem:[#allocation18 + $0xd8] sm:$0xff]
    %v2431 = vld [vmem:[#allocation18 + $0xe0] sm:$0xff]
    %v2432 = vld [vmem:[#allocation18 + $0xe8] sm:$0xff]
    %v2433 = vld [vmem:[#allocation18 + $0xf0] sm:$0xff]
    %v2434 = vld [vmem:[#allocation18 + $0xf8] sm:$0xff]
    %v2435 = vld [vmem:[#allocation18 + $0x100] sm:$0xff]
    %v2436 = vld [vmem:[#allocation18 + $0x108] sm:$0xff]
    %v2437 = vld [vmem:[#allocation18 + $0x110] sm:$0xff]
    %v2438 = vld [vmem:[#allocation18 + $0x118] sm:$0xff]
    %v2439 = vld [vmem:[#allocation18 + $0x120] sm:$0xff]
    %v2440 = vld [vmem:[#allocation18 + $0x128] sm:$0xff]
    %v2441 = vld [vmem:[#allocation18 + $0x130] sm:$0xff]
    %v2442 = vld [vmem:[#allocation18 + $0x138] sm:$0xff]
    %v2443 = vld [vmem:[#allocation18 + $0x140] sm:$0xff]
    %v2444 = vld [vmem:[#allocation18 + $0x148] sm:$0xff]
    %v2445 = vld [vmem:[#allocation18 + $0x150] sm:$0xff]
    %v2446 = vld [vmem:[#allocation18 + $0x158] sm:$0xff]
    %v2447 = vld [vmem:[#allocation18 + $0x160] sm:$0xff]
    %v2448 = vld [vmem:[#allocation18 + $0x168] sm:$0xff]
    %v2449 = vld [vmem:[#allocation18 + $0x170] sm:$0xff]
    %v2450 = vld [vmem:[#allocation18 + $0x178] sm:$0xff]
    %v2451 = vld [vmem:[#allocation18 + $0x180] sm:$0xff]
    %v2452 = vld [vmem:[#allocation18 + $0x188] sm:$0xff]
    %v2453 = vld [vmem:[#allocation18 + $0x190] sm:$0xff]
    %v2454 = vld [vmem:[#allocation18 + $0x198] sm:$0xff]
    %v2455 = vld [vmem:[#allocation18 + $0x1a0] sm:$0xff]
    %v2456 = vld [vmem:[#allocation18 + $0x1a8] sm:$0xff]
    %v2457 = vld [vmem:[#allocation18 + $0x1b0] sm:$0xff]
    %v2458 = vld [vmem:[#allocation18 + $0x1b8] sm:$0xff]
    %v2459 = vld [vmem:[#allocation18 + $0x1c0] sm:$0xff]
    %v2460 = vld [vmem:[#allocation18 + $0x1c8] sm:$0xff]
    %v2461 = vld [vmem:[#allocation18 + $0x1d0] sm:$0xff]
    %v2462 = vld [vmem:[#allocation18 + $0x1d8] sm:$0xff]
    %v2463 = vld [vmem:[#allocation18 + $0x1e0] sm:$0xff]
    %v2464 = vld [vmem:[#allocation18 + $0x1e8] sm:$0xff]
    %v2465 = vld [vmem:[#allocation18 + $0x1f0] sm:$0xff]
    %v2466 = vld [vmem:[#allocation18 + $0x1f8] sm:$0xff]
    %v2467 = vld [vmem:[#allocation18 + $0x200] sm:$0xff]
    %v2468 = vld [vmem:[#allocation18 + $0x208] sm:$0xff]
    %v2469 = vld [vmem:[#allocation18 + $0x210] sm:$0xff]
    %v2470 = vld [vmem:[#allocation18 + $0x218] sm:$0xff]
    %v2471 = vld [vmem:[#allocation18 + $0x220] sm:$0xff]
    %v2472 = vld [vmem:[#allocation18 + $0x228] sm:$0xff]
    %v2473 = vld [vmem:[#allocation18 + $0x230] sm:$0xff]
    %v2474 = vld [vmem:[#allocation18 + $0x238] sm:$0xff]
    %v2475 = vld [vmem:[#allocation18 + $0x240] sm:$0xff]
    %v2476 = vld [vmem:[#allocation18 + $0x248] sm:$0xff]
    %v2477 = vld [vmem:[#allocation18 + $0x250] sm:$0xff]
    %v2478 = vld [vmem:[#allocation18 + $0x258] sm:$0xff]
    %v2479 = vld [vmem:[#allocation18 + $0x260] sm:$0xff]
    %v2480 = vld [vmem:[#allocation18 + $0x268] sm:$0xff]
    %v2481 = vld [vmem:[#allocation18 + $0x270] sm:$0xff]
    %v2482 = vld [vmem:[#allocation18 + $0x278] sm:$0xff]
    %v2483 = vld [vmem:[#allocation18 + $0x280] sm:$0xff]
    %v2484 = vld [vmem:[#allocation18 + $0x288] sm:$0xff]
    %v2485 = vld [vmem:[#allocation18 + $0x290] sm:$0xff]
    %v2486 = vld [vmem:[#allocation18 + $0x298] sm:$0xff]
    %v2487 = vld [vmem:[#allocation18 + $0x2a0] sm:$0xff]
    %v2488 = vld [vmem:[#allocation18 + $0x2a8] sm:$0xff]
    %v2489 = vld [vmem:[#allocation18 + $0x2b0] sm:$0xff]
    %v2490 = vld [vmem:[#allocation18 + $0x2b8] sm:$0xff]
    %v2491 = vld [vmem:[#allocation18 + $0x2c0] sm:$0xff]
    %v2492 = vld [vmem:[#allocation18 + $0x2c8] sm:$0xff]
    %v2493 = vld [vmem:[#allocation18 + $0x2d0] sm:$0xff]
    %v2494 = vld [vmem:[#allocation18 + $0x2d8] sm:$0xff]
    %v2495 = vld [vmem:[#allocation18 + $0x2e0] sm:$0xff]
    %v2496 = vld [vmem:[#allocation18 + $0x2e8] sm:$0xff]
    %v2497 = vld [vmem:[#allocation18 + $0x2f0] sm:$0xff]
    %v2498 = vld [vmem:[#allocation18 + $0x2f8] sm:$0xff]
    %v2499 = vld [vmem:[#allocation18 + $0x300] sm:$0xff]
    %v2500 = vld [vmem:[#allocation18 + $0x308] sm:$0xff]
    %v2501 = vld [vmem:[#allocation18 + $0x310] sm:$0xff]
    %v2502 = vld [vmem:[#allocation18 + $0x318] sm:$0xff]
    %v2503 = vld [vmem:[#allocation18 + $0x320] sm:$0xff]
    %v2504 = vld [vmem:[#allocation18 + $0x328] sm:$0xff]
    %v2505 = vld [vmem:[#allocation18 + $0x330] sm:$0xff]
    %v2506 = vld [vmem:[#allocation18 + $0x338] sm:$0xff]
    %v2507 = vld [vmem:[#allocation18 + $0x340] sm:$0xff]
    %v2508 = vld [vmem:[#allocation18 + $0x348] sm:$0xff]
    %v2509 = vld [vmem:[#allocation18 + $0x350] sm:$0xff]
    %v2510 = vld [vmem:[#allocation18 + $0x358] sm:$0xff]
    %v2511 = vld [vmem:[#allocation18 + $0x360] sm:$0xff]
    %v2512 = vld [vmem:[#allocation18 + $0x368] sm:$0xff]
    %v2513 = vld [vmem:[#allocation18 + $0x370] sm:$0xff]
    %v2514 = vld [vmem:[#allocation18 + $0x378] sm:$0xff]
    %v2515 = vld [vmem:[#allocation18 + $0x380] sm:$0xff]
    %v2516 = vld [vmem:[#allocation18 + $0x388] sm:$0xff]
    %v2517 = vld [vmem:[#allocation18 + $0x390] sm:$0xff]
    %v2518 = vld [vmem:[#allocation18 + $0x398] sm:$0xff]
    %v2519 = vld [vmem:[#allocation18 + $0x3a0] sm:$0xff]
    %v2520 = vld [vmem:[#allocation18 + $0x3a8] sm:$0xff]
    %v2521 = vld [vmem:[#allocation18 + $0x3b0] sm:$0xff]
    %v2522 = vld [vmem:[#allocation18 + $0x3b8] sm:$0xff]
    %v2523 = vld [vmem:[#allocation18 + $0x3c0] sm:$0xff]
    %v2524 = vld [vmem:[#allocation18 + $0x3c8] sm:$0xff]
    %v2525 = vld [vmem:[#allocation18 + $0x3d0] sm:$0xff]
    %v2526 = vld [vmem:[#allocation18 + $0x3d8] sm:$0xff]
    %v2527 = vld [vmem:[#allocation18 + $0x3e0] sm:$0xff]
    %v2528 = vld [vmem:[#allocation18 + $0x3e8] sm:$0xff]
    %v2529 = vld [vmem:[#allocation18 + $0x3f0] sm:$0xff]
    %v2530 = vld [vmem:[#allocation18 + $0x3f8] sm:$0xff]
    %v2531 = vld [vmem:[#allocation18 + $0x400] sm:$0xff]
    %v2532 = vld [vmem:[#allocation18 + $0x408] sm:$0xff]
    %v2533 = vld [vmem:[#allocation18 + $0x410] sm:$0xff]
    %v2534 = vld [vmem:[#allocation18 + $0x418] sm:$0xff]
    %v2535 = vld [vmem:[#allocation18 + $0x420] sm:$0xff]
    %v2536 = vld [vmem:[#allocation18 + $0x428] sm:$0xff]
    %v2537 = vld [vmem:[#allocation18 + $0x430] sm:$0xff]
    %v2538 = vld [vmem:[#allocation18 + $0x438] sm:$0xff]
    %v2539 = vld [vmem:[#allocation18 + $0x440] sm:$0xff]
    %v2540 = vld [vmem:[#allocation18 + $0x448] sm:$0xff]
    %v2541 = vld [vmem:[#allocation18 + $0x450] sm:$0xff]
    %v2542 = vld [vmem:[#allocation18 + $0x458] sm:$0xff]
    %v2543 = vld [vmem:[#allocation18 + $0x460] sm:$0xff]
    %v2544 = vld [vmem:[#allocation18 + $0x468] sm:$0xff]
    %v2545 = vld [vmem:[#allocation18 + $0x470] sm:$0xff]
    %v2546 = vld [vmem:[#allocation18 + $0x478] sm:$0xff]
    %v2547 = vld [vmem:[#allocation18 + $0x480] sm:$0xff]
    %v2548 = vld [vmem:[#allocation18 + $0x488] sm:$0xff]
    %v2549 = vld [vmem:[#allocation18 + $0x490] sm:$0xff]
    %v2550 = vld [vmem:[#allocation18 + $0x498] sm:$0xff]
    %v2551 = vld [vmem:[#allocation18 + $0x4a0] sm:$0xff]
    %v2552 = vld [vmem:[#allocation18 + $0x4a8] sm:$0xff]
    %v2553 = vld [vmem:[#allocation18 + $0x4b0] sm:$0xff]
    %v2554 = vld [vmem:[#allocation18 + $0x4b8] sm:$0xff]
    %v2555 = vld [vmem:[#allocation18 + $0x4c0] sm:$0xff]
    %v2556 = vld [vmem:[#allocation18 + $0x4c8] sm:$0xff]
    %v2557 = vld [vmem:[#allocation18 + $0x4d0] sm:$0xff]
    %v2558 = vld [vmem:[#allocation18 + $0x4d8] sm:$0xff]
    %v2559 = vld [vmem:[#allocation18 + $0x4e0] sm:$0xff]
    %v2560 = vld [vmem:[#allocation18 + $0x4e8] sm:$0xff]
    %v2561 = vld [vmem:[#allocation18 + $0x4f0] sm:$0xff]
    %v2562 = vld [vmem:[#allocation18 + $0x4f8] sm:$0xff]
    %v2563 = vld [vmem:[#allocation18 + $0x500] sm:$0xff]
    %v2564 = vld [vmem:[#allocation18 + $0x508] sm:$0xff]
    %v2565 = vld [vmem:[#allocation18 + $0x510] sm:$0xff]
    %v2566 = vld [vmem:[#allocation18 + $0x518] sm:$0xff]
    %v2567 = vld [vmem:[#allocation18 + $0x520] sm:$0xff]
    %v2568 = vld [vmem:[#allocation18 + $0x528] sm:$0xff]
    %v2569 = vld [vmem:[#allocation18 + $0x530] sm:$0xff]
    %v2570 = vld [vmem:[#allocation18 + $0x538] sm:$0xff]
    %v2571 = vld [vmem:[#allocation18 + $0x540] sm:$0xff]
    %v2572 = vld [vmem:[#allocation18 + $0x548] sm:$0xff]
    %v2573 = vld [vmem:[#allocation18 + $0x550] sm:$0xff]
    %v2574 = vld [vmem:[#allocation18 + $0x558] sm:$0xff]
    %v2575 = vld [vmem:[#allocation18 + $0x560] sm:$0xff]
    %v2576 = vld [vmem:[#allocation18 + $0x568] sm:$0xff]
    %v2577 = vld [vmem:[#allocation18 + $0x570] sm:$0xff]
    %v2578 = vld [vmem:[#allocation18 + $0x578] sm:$0xff]
    %v2579 = vld [vmem:[#allocation18 + $0x580] sm:$0xff]
    %v2580 = vld [vmem:[#allocation18 + $0x588] sm:$0xff]
    %v2581 = vld [vmem:[#allocation18 + $0x590] sm:$0xff]
    %v2582 = vld [vmem:[#allocation18 + $0x598] sm:$0xff]
    %v2583 = vld [vmem:[#allocation18 + $0x5a0] sm:$0xff]
    %v2584 = vld [vmem:[#allocation18 + $0x5a8] sm:$0xff]
    %v2585 = vld [vmem:[#allocation18 + $0x5b0] sm:$0xff]
    %v2586 = vld [vmem:[#allocation18 + $0x5b8] sm:$0xff]
    %v2587 = vld [vmem:[#allocation18 + $0x5c0] sm:$0xff]
    %v2588 = vld [vmem:[#allocation18 + $0x5c8] sm:$0xff]
    %v2589 = vld [vmem:[#allocation18 + $0x5d0] sm:$0xff]
    %v2590 = vld [vmem:[#allocation18 + $0x5d8] sm:$0xff]
    %v2591 = vld [vmem:[#allocation18 + $0x5e0] sm:$0xff]
    %v2592 = vld [vmem:[#allocation18 + $0x5e8] sm:$0xff]
    %v2593 = vld [vmem:[#allocation18 + $0x5f0] sm:$0xff]
    %v2594 = vld [vmem:[#allocation18 + $0x5f8] sm:$0xff]
    %v2595 = vld [vmem:[#allocation18 + $0x600] sm:$0xff]
    %v2596 = vld [vmem:[#allocation18 + $0x608] sm:$0xff]
    %v2597 = vld [vmem:[#allocation18 + $0x610] sm:$0xff]
    %v2598 = vld [vmem:[#allocation18 + $0x618] sm:$0xff]
    %v2599 = vld [vmem:[#allocation18 + $0x620] sm:$0xff]
    %v2600 = vld [vmem:[#allocation18 + $0x628] sm:$0xff]
    %v2601 = vld [vmem:[#allocation18 + $0x630] sm:$0xff]
    %v2602 = vld [vmem:[#allocation18 + $0x638] sm:$0xff]
    %v2603 = vld [vmem:[#allocation18 + $0x640] sm:$0xff]
    %v2604 = vld [vmem:[#allocation18 + $0x648] sm:$0xff]
    %v2605 = vld [vmem:[#allocation18 + $0x650] sm:$0xff]
    %v2606 = vld [vmem:[#allocation18 + $0x658] sm:$0xff]
    %v2607 = vld [vmem:[#allocation18 + $0x660] sm:$0xff]
    %v2608 = vld [vmem:[#allocation18 + $0x668] sm:$0xff]
    %v2609 = vld [vmem:[#allocation18 + $0x670] sm:$0xff]
    %v2610 = vld [vmem:[#allocation18 + $0x678] sm:$0xff]
    %v2611 = vld [vmem:[#allocation18 + $0x680] sm:$0xff]
    %v2612 = vld [vmem:[#allocation18 + $0x688] sm:$0xff]
    %v2613 = vld [vmem:[#allocation18 + $0x690] sm:$0xff]
    %v2614 = vld [vmem:[#allocation18 + $0x698] sm:$0xff]
    %v2615 = vld [vmem:[#allocation18 + $0x6a0] sm:$0xff]
    %v2616 = vld [vmem:[#allocation18 + $0x6a8] sm:$0xff]
    %v2617 = vld [vmem:[#allocation18 + $0x6b0] sm:$0xff]
    %v2618 = vld [vmem:[#allocation18 + $0x6b8] sm:$0xff]
    %v2619 = vld [vmem:[#allocation18 + $0x6c0] sm:$0xff]
    %v2620 = vld [vmem:[#allocation18 + $0x6c8] sm:$0xff]
    %v2621 = vld [vmem:[#allocation18 + $0x6d0] sm:$0xff]
    %v2622 = vld [vmem:[#allocation18 + $0x6d8] sm:$0xff]
    %v2623 = vld [vmem:[#allocation18 + $0x6e0] sm:$0xff]
    %v2624 = vld [vmem:[#allocation18 + $0x6e8] sm:$0xff]
    %v2625 = vld [vmem:[#allocation18 + $0x6f0] sm:$0xff]
    %v2626 = vld [vmem:[#allocation18 + $0x6f8] sm:$0xff]
    %v2627 = vld [vmem:[#allocation18 + $0x700] sm:$0xff]
    %v2628 = vld [vmem:[#allocation18 + $0x708] sm:$0xff]
    %v2629 = vld [vmem:[#allocation18 + $0x710] sm:$0xff]
    %v2630 = vld [vmem:[#allocation18 + $0x718] sm:$0xff]
    %v2631 = vld [vmem:[#allocation18 + $0x720] sm:$0xff]
    %v2632 = vld [vmem:[#allocation18 + $0x728] sm:$0xff]
    %v2633 = vld [vmem:[#allocation18 + $0x730] sm:$0xff]
    %v2634 = vld [vmem:[#allocation18 + $0x738] sm:$0xff]
    %v2635 = vld [vmem:[#allocation18 + $0x740] sm:$0xff]
    %v2636 = vld [vmem:[#allocation18 + $0x748] sm:$0xff]
    %v2637 = vld [vmem:[#allocation18 + $0x750] sm:$0xff]
    %v2638 = vld [vmem:[#allocation18 + $0x758] sm:$0xff]
    %v2639 = vld [vmem:[#allocation18 + $0x760] sm:$0xff]
    %v2640 = vld [vmem:[#allocation18 + $0x768] sm:$0xff]
    %v2641 = vld [vmem:[#allocation18 + $0x770] sm:$0xff]
    %v2642 = vld [vmem:[#allocation18 + $0x778] sm:$0xff]
    %v2643 = vld [vmem:[#allocation18 + $0x780] sm:$0xff]
    %v2644 = vld [vmem:[#allocation18 + $0x788] sm:$0xff]
    %v2645 = vld [vmem:[#allocation18 + $0x790] sm:$0xff]
    %v2646 = vld [vmem:[#allocation18 + $0x798] sm:$0xff]
    %v2647 = vld [vmem:[#allocation18 + $0x7a0] sm:$0xff]
    %v2648 = vld [vmem:[#allocation18 + $0x7a8] sm:$0xff]
    %v2649 = vld [vmem:[#allocation18 + $0x7b0] sm:$0xff]
    %v2650 = vld [vmem:[#allocation18 + $0x7b8] sm:$0xff]
    %v2651 = vld [vmem:[#allocation18 + $0x7c0] sm:$0xff]
    %v2652 = vld [vmem:[#allocation18 + $0x7c8] sm:$0xff]
    %v2653 = vld [vmem:[#allocation18 + $0x7d0] sm:$0xff]
    %v2654 = vld [vmem:[#allocation18 + $0x7d8] sm:$0xff]
    %v2655 = vld [vmem:[#allocation18 + $0x7e0] sm:$0xff]
    %v2656 = vld [vmem:[#allocation18 + $0x7e8] sm:$0xff]
    %v2657 = vld [vmem:[#allocation18 + $0x7f0] sm:$0xff]
    %v2658 = vld [vmem:[#allocation18 + $0x7f8] sm:$0xff]
    %v2659 = vld [vmem:[#allocation18 + $0x800] sm:$0xff]
    %v2660 = vld [vmem:[#allocation18 + $0x808] sm:$0xff]
    %v2661 = vld [vmem:[#allocation18 + $0x810] sm:$0xff]
    %v2662 = vld [vmem:[#allocation18 + $0x818] sm:$0xff]
    %v2663 = vld [vmem:[#allocation18 + $0x820] sm:$0xff]
    %v2664 = vld [vmem:[#allocation18 + $0x828] sm:$0xff]
    %v2665 = vld [vmem:[#allocation18 + $0x830] sm:$0xff]
    %v2666 = vld [vmem:[#allocation18 + $0x838] sm:$0xff]
    %v2667 = vld [vmem:[#allocation18 + $0x840] sm:$0xff]
    %v2668 = vld [vmem:[#allocation18 + $0x848] sm:$0xff]
    %v2669 = vld [vmem:[#allocation18 + $0x850] sm:$0xff]
    %v2670 = vld [vmem:[#allocation18 + $0x858] sm:$0xff]
    %v2671 = vld [vmem:[#allocation18 + $0x860] sm:$0xff]
    %v2672 = vld [vmem:[#allocation18 + $0x868] sm:$0xff]
    %v2673 = vld [vmem:[#allocation18 + $0x870] sm:$0xff]
    %v2674 = vld [vmem:[#allocation18 + $0x878] sm:$0xff]
    %v2675 = vld [vmem:[#allocation18 + $0x880] sm:$0xff]
    %v2676 = vld [vmem:[#allocation18 + $0x888] sm:$0xff]
    %v2677 = vld [vmem:[#allocation18 + $0x890] sm:$0xff]
    %v2678 = vld [vmem:[#allocation18 + $0x898] sm:$0xff]
    %v2679 = vld [vmem:[#allocation18 + $0x8a0] sm:$0xff]
    %v2680 = vld [vmem:[#allocation18 + $0x8a8] sm:$0xff]
    %v2681 = vld [vmem:[#allocation18 + $0x8b0] sm:$0xff]
    %v2682 = vld [vmem:[#allocation18 + $0x8b8] sm:$0xff]
    %v2683 = vld [vmem:[#allocation18 + $0x8c0] sm:$0xff]
    %v2684 = vld [vmem:[#allocation18 + $0x8c8] sm:$0xff]
    %v2685 = vld [vmem:[#allocation18 + $0x8d0] sm:$0xff]
    %v2686 = vld [vmem:[#allocation18 + $0x8d8] sm:$0xff]
    %v2687 = vld [vmem:[#allocation18 + $0x8e0] sm:$0xff]
    %v2688 = vld [vmem:[#allocation18 + $0x8e8] sm:$0xff]
    %v2689 = vld [vmem:[#allocation18 + $0x8f0] sm:$0xff]
    %v2690 = vld [vmem:[#allocation18 + $0x8f8] sm:$0xff]
    %v2691 = vld [vmem:[#allocation18 + $0x900] sm:$0xff]
    %v2692 = vld [vmem:[#allocation18 + $0x908] sm:$0xff]
    %v2693 = vld [vmem:[#allocation18 + $0x910] sm:$0xff]
    %v2694 = vld [vmem:[#allocation18 + $0x918] sm:$0xff]
    %v2695 = vld [vmem:[#allocation18 + $0x920] sm:$0xff]
    %v2696 = vld [vmem:[#allocation18 + $0x928] sm:$0xff]
    %v2697 = vld [vmem:[#allocation18 + $0x930] sm:$0xff]
    %v2698 = vld [vmem:[#allocation18 + $0x938] sm:$0xff]
    %v2699 = vld [vmem:[#allocation18 + $0x940] sm:$0xff]
    %v2700 = vld [vmem:[#allocation18 + $0x948] sm:$0xff]
    %v2701 = vld [vmem:[#allocation18 + $0x950] sm:$0xff]
    %v2702 = vld [vmem:[#allocation18 + $0x958] sm:$0xff]
    %v2703 = vld [vmem:[#allocation18 + $0x960] sm:$0xff]
    %v2704 = vld [vmem:[#allocation18 + $0x968] sm:$0xff]
    %v2705 = vld [vmem:[#allocation18 + $0x970] sm:$0xff]
    %v2706 = vld [vmem:[#allocation18 + $0x978] sm:$0xff]
    %v2707 = vld [vmem:[#allocation18 + $0x980] sm:$0xff]
    %v2708 = vld [vmem:[#allocation18 + $0x988] sm:$0xff]
    %v2709 = vld [vmem:[#allocation18 + $0x990] sm:$0xff]
    %v2710 = vld [vmem:[#allocation18 + $0x998] sm:$0xff]
    %v2711 = vld [vmem:[#allocation18 + $0x9a0] sm:$0xff]
    %v2712 = vld [vmem:[#allocation18 + $0x9a8] sm:$0xff]
    %v2713 = vld [vmem:[#allocation18 + $0x9b0] sm:$0xff]
    %v2714 = vld [vmem:[#allocation18 + $0x9b8] sm:$0xff]
    %v2715 = vld [vmem:[#allocation18 + $0x9c0] sm:$0xff]
    %v2716 = vld [vmem:[#allocation18 + $0x9c8] sm:$0xff]
    %v2717 = vld [vmem:[#allocation18 + $0x9d0] sm:$0xff]
    %v2718 = vld [vmem:[#allocation18 + $0x9d8] sm:$0xff]
    %v2719 = vld [vmem:[#allocation18 + $0x9e0] sm:$0xff]
    %v2720 = vld [vmem:[#allocation18 + $0x9e8] sm:$0xff]
    %v2721 = vld [vmem:[#allocation18 + $0x9f0] sm:$0xff]
    %v2722 = vld [vmem:[#allocation18 + $0x9f8] sm:$0xff]
    %v2723 = vld [vmem:[#allocation18 + $0xa00] sm:$0xff]
    %v2724 = vld [vmem:[#allocation18 + $0xa08] sm:$0xff]
    %v2725 = vld [vmem:[#allocation18 + $0xa10] sm:$0xff]
    %v2726 = vld [vmem:[#allocation18 + $0xa18] sm:$0xff]
    %v2727 = vld [vmem:[#allocation18 + $0xa20] sm:$0xff]
    %v2728 = vld [vmem:[#allocation18 + $0xa28] sm:$0xff]
    %v2729 = vld [vmem:[#allocation18 + $0xa30] sm:$0xff]
    %v2730 = vld [vmem:[#allocation18 + $0xa38] sm:$0xff]
    %v2731 = vld [vmem:[#allocation18 + $0xa40] sm:$0xff]
    %v2732 = vld [vmem:[#allocation18 + $0xa48] sm:$0xff]
    %v2733 = vld [vmem:[#allocation18 + $0xa50] sm:$0xff]
    %v2734 = vld [vmem:[#allocation18 + $0xa58] sm:$0xff]
    %v2735 = vld [vmem:[#allocation18 + $0xa60] sm:$0xff]
    %v2736 = vld [vmem:[#allocation18 + $0xa68] sm:$0xff]
    %v2737 = vld [vmem:[#allocation18 + $0xa70] sm:$0xff]
    %v2738 = vld [vmem:[#allocation18 + $0xa78] sm:$0xff]
    %v2739 = vld [vmem:[#allocation18 + $0xa80] sm:$0xff]
    %v2740 = vld [vmem:[#allocation18 + $0xa88] sm:$0xff]
    %v2741 = vld [vmem:[#allocation18 + $0xa90] sm:$0xff]
    %v2742 = vld [vmem:[#allocation18 + $0xa98] sm:$0xff]
    %v2743 = vld [vmem:[#allocation18 + $0xaa0] sm:$0xff]
    %v2744 = vld [vmem:[#allocation18 + $0xaa8] sm:$0xff]
    %v2745 = vld [vmem:[#allocation18 + $0xab0] sm:$0xff]
    %v2746 = vld [vmem:[#allocation18 + $0xab8] sm:$0xff]
    %v2747 = vld [vmem:[#allocation18 + $0xac0] sm:$0xff]
    %v2748 = vld [vmem:[#allocation18 + $0xac8] sm:$0xff]
    %v2749 = vld [vmem:[#allocation18 + $0xad0] sm:$0xff]
    %v2750 = vld [vmem:[#allocation18 + $0xad8] sm:$0xff]
    %v2751 = vld [vmem:[#allocation18 + $0xae0] sm:$0xff]
    %v2752 = vld [vmem:[#allocation18 + $0xae8] sm:$0xff]
    %v2753 = vld [vmem:[#allocation18 + $0xaf0] sm:$0xff]
    %v2754 = vld [vmem:[#allocation18 + $0xaf8] sm:$0xff]
    %v2755 = vld [vmem:[#allocation18 + $0xb00] sm:$0xff]
    %v2756 = vld [vmem:[#allocation18 + $0xb08] sm:$0xff]
    %v2757 = vld [vmem:[#allocation18 + $0xb10] sm:$0xff]
    %v2758 = vld [vmem:[#allocation18 + $0xb18] sm:$0xff]
    %v2759 = vld [vmem:[#allocation18 + $0xb20] sm:$0xff]
    %v2760 = vld [vmem:[#allocation18 + $0xb28] sm:$0xff]
    %v2761 = vld [vmem:[#allocation18 + $0xb30] sm:$0xff]
    %v2762 = vld [vmem:[#allocation18 + $0xb38] sm:$0xff]
    %v2763 = vld [vmem:[#allocation18 + $0xb40] sm:$0xff]
    %v2764 = vld [vmem:[#allocation18 + $0xb48] sm:$0xff]
    %v2765 = vld [vmem:[#allocation18 + $0xb50] sm:$0xff]
    %v2766 = vld [vmem:[#allocation18 + $0xb58] sm:$0xff]
    %v2767 = vld [vmem:[#allocation18 + $0xb60] sm:$0xff]
    %v2768 = vld [vmem:[#allocation18 + $0xb68] sm:$0xff]
    %v2769 = vld [vmem:[#allocation18 + $0xb70] sm:$0xff]
    %v2770 = vld [vmem:[#allocation18 + $0xb78] sm:$0xff]
    %v2771 = vld [vmem:[#allocation18 + $0xb80] sm:$0xff]
    %v2772 = vld [vmem:[#allocation18 + $0xb88] sm:$0xff]
    %v2773 = vld [vmem:[#allocation18 + $0xb90] sm:$0xff]
    %v2774 = vld [vmem:[#allocation18 + $0xb98] sm:$0xff]
    %v2775 = vld [vmem:[#allocation18 + $0xba0] sm:$0xff]
    %v2776 = vld [vmem:[#allocation18 + $0xba8] sm:$0xff]
    %v2777 = vld [vmem:[#allocation18 + $0xbb0] sm:$0xff]
    %v2778 = vld [vmem:[#allocation18 + $0xbb8] sm:$0xff]
    %v2779 = vld [vmem:[#allocation18 + $0xbc0] sm:$0xff]
    %v2780 = vld [vmem:[#allocation18 + $0xbc8] sm:$0xff]
    %v2781 = vld [vmem:[#allocation18 + $0xbd0] sm:$0xff]
    %v2782 = vld [vmem:[#allocation18 + $0xbd8] sm:$0xff]
    %v2783 = vld [vmem:[#allocation18 + $0xbe0] sm:$0xff]
    %v2784 = vld [vmem:[#allocation18 + $0xbe8] sm:$0xff]
    %v2785 = vld [vmem:[#allocation18 + $0xbf0] sm:$0xff]
    %v2786 = vld [vmem:[#allocation18 + $0xbf8] sm:$0xff]
    %v2787 = vld [vmem:[#allocation18 + $0xc00] sm:$0xff]
    %v2788 = vld [vmem:[#allocation18 + $0xc08] sm:$0xff]
    %v2789 = vld [vmem:[#allocation18 + $0xc10] sm:$0xff]
    %v2790 = vld [vmem:[#allocation18 + $0xc18] sm:$0xff]
    %v2791 = vld [vmem:[#allocation18 + $0xc20] sm:$0xff]
    %v2792 = vld [vmem:[#allocation18 + $0xc28] sm:$0xff]
    %v2793 = vld [vmem:[#allocation18 + $0xc30] sm:$0xff]
    %v2794 = vld [vmem:[#allocation18 + $0xc38] sm:$0xff]
    %v2795 = vld [vmem:[#allocation18 + $0xc40] sm:$0xff]
    %v2796 = vld [vmem:[#allocation18 + $0xc48] sm:$0xff]
    %v2797 = vld [vmem:[#allocation18 + $0xc50] sm:$0xff]
    %v2798 = vld [vmem:[#allocation18 + $0xc58] sm:$0xff]
    %v2799 = vld [vmem:[#allocation18 + $0xc60] sm:$0xff]
    %v2800 = vld [vmem:[#allocation18 + $0xc68] sm:$0xff]
    %v2801 = vld [vmem:[#allocation18 + $0xc70] sm:$0xff]
    %v2802 = vld [vmem:[#allocation18 + $0xc78] sm:$0xff]
    %v2803 = vld [vmem:[#allocation18 + $0xc80] sm:$0xff]
    %v2804 = vld [vmem:[#allocation18 + $0xc88] sm:$0xff]
    %v2805 = vld [vmem:[#allocation18 + $0xc90] sm:$0xff]
    %v2806 = vld [vmem:[#allocation18 + $0xc98] sm:$0xff]
    %v2807 = vld [vmem:[#allocation18 + $0xca0] sm:$0xff]
    %v2808 = vld [vmem:[#allocation18 + $0xca8] sm:$0xff]
    %v2809 = vld [vmem:[#allocation18 + $0xcb0] sm:$0xff]
    %v2810 = vld [vmem:[#allocation18 + $0xcb8] sm:$0xff]
    %v2811 = vld [vmem:[#allocation18 + $0xcc0] sm:$0xff]
    %v2812 = vld [vmem:[#allocation18 + $0xcc8] sm:$0xff]
    %v2813 = vld [vmem:[#allocation18 + $0xcd0] sm:$0xff]
    %v2814 = vld [vmem:[#allocation18 + $0xcd8] sm:$0xff]
    %v2815 = vld [vmem:[#allocation18 + $0xce0] sm:$0xff]
    %v2816 = vld [vmem:[#allocation18 + $0xce8] sm:$0xff]
    %v2817 = vld [vmem:[#allocation18 + $0xcf0] sm:$0xff]
    %v2818 = vld [vmem:[#allocation18 + $0xcf8] sm:$0xff]
    %v2819 = vld [vmem:[#allocation18 + $0xd00] sm:$0xff]
    %v2820 = vld [vmem:[#allocation18 + $0xd08] sm:$0xff]
    %v2821 = vld [vmem:[#allocation18 + $0xd10] sm:$0xff]
    %v2822 = vld [vmem:[#allocation18 + $0xd18] sm:$0xff]
    %v2823 = vld [vmem:[#allocation18 + $0xd20] sm:$0xff]
    %v2824 = vld [vmem:[#allocation18 + $0xd28] sm:$0xff]
    %v2825 = vld [vmem:[#allocation18 + $0xd30] sm:$0xff]
    %v2826 = vld [vmem:[#allocation18 + $0xd38] sm:$0xff]
    %v2827 = vld [vmem:[#allocation18 + $0xd40] sm:$0xff]
    %v2828 = vld [vmem:[#allocation18 + $0xd48] sm:$0xff]
    %v2829 = vld [vmem:[#allocation18 + $0xd50] sm:$0xff]
    %v2830 = vld [vmem:[#allocation18 + $0xd58] sm:$0xff]
    %v2831 = vld [vmem:[#allocation18 + $0xd60] sm:$0xff]
    %v2832 = vld [vmem:[#allocation18 + $0xd68] sm:$0xff]
    %v2833 = vld [vmem:[#allocation18 + $0xd70] sm:$0xff]
    %v2834 = vld [vmem:[#allocation18 + $0xd78] sm:$0xff]
    %v2835 = vld [vmem:[#allocation18 + $0xd80] sm:$0xff]
    %v2836 = vld [vmem:[#allocation18 + $0xd88] sm:$0xff]
    %v2837 = vld [vmem:[#allocation18 + $0xd90] sm:$0xff]
    %v2838 = vld [vmem:[#allocation18 + $0xd98] sm:$0xff]
    %v2839 = vld [vmem:[#allocation18 + $0xda0] sm:$0xff]
    %v2840 = vld [vmem:[#allocation18 + $0xda8] sm:$0xff]
    %v2841 = vld [vmem:[#allocation18 + $0xdb0] sm:$0xff]
    %v2842 = vld [vmem:[#allocation18 + $0xdb8] sm:$0xff]
    %v2843 = vld [vmem:[#allocation18 + $0xdc0] sm:$0xff]
    %v2844 = vld [vmem:[#allocation18 + $0xdc8] sm:$0xff]
    %v2845 = vld [vmem:[#allocation18 + $0xdd0] sm:$0xff]
    %v2846 = vld [vmem:[#allocation18 + $0xdd8] sm:$0xff]
    %v2847 = vld [vmem:[#allocation18 + $0xde0] sm:$0xff]
    %v2848 = vld [vmem:[#allocation18 + $0xde8] sm:$0xff]
    %v2849 = vld [vmem:[#allocation18 + $0xdf0] sm:$0xff]
    %v2850 = vld [vmem:[#allocation18 + $0xdf8] sm:$0xff]
    %v2851 = vld [vmem:[#allocation18 + $0xe00] sm:$0xff]
    %v2852 = vld [vmem:[#allocation18 + $0xe08] sm:$0xff]
    %v2853 = vld [vmem:[#allocation18 + $0xe10] sm:$0xff]
    %v2854 = vld [vmem:[#allocation18 + $0xe18] sm:$0xff]
    %v2855 = vld [vmem:[#allocation18 + $0xe20] sm:$0xff]
    %v2856 = vld [vmem:[#allocation18 + $0xe28] sm:$0xff]
    %v2857 = vld [vmem:[#allocation18 + $0xe30] sm:$0xff]
    %v2858 = vld [vmem:[#allocation18 + $0xe38] sm:$0xff]
    %v2859 = vld [vmem:[#allocation18 + $0xe40] sm:$0xff]
    %v2860 = vld [vmem:[#allocation18 + $0xe48] sm:$0xff]
    %v2861 = vld [vmem:[#allocation18 + $0xe50] sm:$0xff]
    %v2862 = vld [vmem:[#allocation18 + $0xe58] sm:$0xff]
    %v2863 = vld [vmem:[#allocation18 + $0xe60] sm:$0xff]
    %v2864 = vld [vmem:[#allocation18 + $0xe68] sm:$0xff]
    %v2865 = vld [vmem:[#allocation18 + $0xe70] sm:$0xff]
    %v2866 = vld [vmem:[#allocation18 + $0xe78] sm:$0xff]
    %v2867 = vld [vmem:[#allocation18 + $0xe80] sm:$0xff]
    %v2868 = vld [vmem:[#allocation18 + $0xe88] sm:$0xff]
    %v2869 = vld [vmem:[#allocation18 + $0xe90] sm:$0xff]
    %v2870 = vld [vmem:[#allocation18 + $0xe98] sm:$0xff]
    %v2871 = vld [vmem:[#allocation18 + $0xea0] sm:$0xff]
    %v2872 = vld [vmem:[#allocation18 + $0xea8] sm:$0xff]
    %v2873 = vld [vmem:[#allocation18 + $0xeb0] sm:$0xff]
    %v2874 = vld [vmem:[#allocation18 + $0xeb8] sm:$0xff]
    %v2875 = vld [vmem:[#allocation18 + $0xec0] sm:$0xff]
    %v2876 = vld [vmem:[#allocation18 + $0xec8] sm:$0xff]
    %v2877 = vld [vmem:[#allocation18 + $0xed0] sm:$0xff]
    %v2878 = vld [vmem:[#allocation18 + $0xed8] sm:$0xff]
    %v2879 = vld [vmem:[#allocation18 + $0xee0] sm:$0xff]
    %v2880 = vld [vmem:[#allocation18 + $0xee8] sm:$0xff]
    %v2881 = vld [vmem:[#allocation18 + $0xef0] sm:$0xff]
    %v2882 = vld [vmem:[#allocation18 + $0xef8] sm:$0xff]
    %v2883 = vld [vmem:[#allocation18 + $0xf00] sm:$0xff]
    %v2884 = vld [vmem:[#allocation18 + $0xf08] sm:$0xff]
    %v2885 = vld [vmem:[#allocation18 + $0xf10] sm:$0xff]
    %v2886 = vld [vmem:[#allocation18 + $0xf18] sm:$0xff]
    %v2887 = vld [vmem:[#allocation18 + $0xf20] sm:$0xff]
    %v2888 = vld [vmem:[#allocation18 + $0xf28] sm:$0xff]
    %v2889 = vld [vmem:[#allocation18 + $0xf30] sm:$0xff]
    %v2890 = vld [vmem:[#allocation18 + $0xf38] sm:$0xff]
    %v2891 = vld [vmem:[#allocation18 + $0xf40] sm:$0xff]
    %v2892 = vld [vmem:[#allocation18 + $0xf48] sm:$0xff]
    %v2893 = vld [vmem:[#allocation18 + $0xf50] sm:$0xff]
    %v2894 = vld [vmem:[#allocation18 + $0xf58] sm:$0xff]
    %v2895 = vld [vmem:[#allocation18 + $0xf60] sm:$0xff]
    %v2896 = vld [vmem:[#allocation18 + $0xf68] sm:$0xff]
    %v2897 = vld [vmem:[#allocation18 + $0xf70] sm:$0xff]
    %v2898 = vld [vmem:[#allocation18 + $0xf78] sm:$0xff]
    %v2899 = vld [vmem:[#allocation18 + $0xf80] sm:$0xff]
    %v2900 = vld [vmem:[#allocation18 + $0xf88] sm:$0xff]
    %v2901 = vld [vmem:[#allocation18 + $0xf90] sm:$0xff]
    %v2902 = vld [vmem:[#allocation18 + $0xf98] sm:$0xff]
    %v2903 = vld [vmem:[#allocation18 + $0xfa0] sm:$0xff]
    %v2904 = vld [vmem:[#allocation18 + $0xfa8] sm:$0xff]
    %v2905 = vld [vmem:[#allocation18 + $0xfb0] sm:$0xff]
    %v2906 = vld [vmem:[#allocation18 + $0xfb8] sm:$0xff]
    %v2907 = vld [vmem:[#allocation18 + $0xfc0] sm:$0xff]
    %v2908 = vld [vmem:[#allocation18 + $0xfc8] sm:$0xff]
    %v2909 = vld [vmem:[#allocation18 + $0xfd0] sm:$0xff]
    %v2910 = vld [vmem:[#allocation18 + $0xfd8] sm:$0xff]
    %v2911 = vld [vmem:[#allocation18 + $0xfe0] sm:$0xff]
    %v2912 = vld [vmem:[#allocation18 + $0xfe8] sm:$0xff]
    %v2913 = vld [vmem:[#allocation18 + $0xff0] sm:$0xff]
    %v2914 = vld [vmem:[#allocation18 + $0xff8] sm:$0xff]
    %v2915 = vld [vmem:[#allocation19] sm:$0xff]
    %v2916 = vld [vmem:[#allocation19 + $0x8] sm:$0xff]
    %v2919 = vlaneseq
    %v2920 = vshrl.u32 %v2919, 7
    %v2921 = vsub.s32 0, %v2920
    %v2922 = vrot.slane %v2915, %v2921
    %v2923 = vlaneseq
    %v2924 = vshrl.u32 %v2923, 7
    %v2925 = vsub.s32 1, %v2924
    %v2926 = vrot.slane %v2915, %v2925
    %v2927 = vlaneseq
    %v2928 = vshrl.u32 %v2927, 7
    %v2929 = vsub.s32 2, %v2928
    %v2930 = vrot.slane %v2915, %v2929
    %v2931 = vlaneseq
    %v2932 = vshrl.u32 %v2931, 7
    %v2933 = vsub.s32 3, %v2932
    %v2934 = vrot.slane %v2915, %v2933
    %v2935 = vlaneseq
    %v2936 = vshrl.u32 %v2935, 7
    %v2937 = vsub.s32 4, %v2936
    %v2938 = vrot.slane %v2915, %v2937
    %v2939 = vlaneseq
    %v2940 = vshrl.u32 %v2939, 7
    %v2941 = vsub.s32 5, %v2940
    %v2942 = vrot.slane %v2915, %v2941
    %v2943 = vlaneseq
    %v2944 = vshrl.u32 %v2943, 7
    %v2945 = vsub.s32 6, %v2944
    %v2946 = vrot.slane %v2915, %v2945
    %v2947 = vlaneseq
    %v2948 = vshrl.u32 %v2947, 7
    %v2949 = vsub.s32 7, %v2948
    %v2950 = vrot.slane %v2915, %v2949
    %v2951 = vlaneseq
    %v2952 = vshrl.u32 %v2951, 7
    %v2953 = vsub.s32 0, %v2952
    %v2954 = vrot.slane %v2916, %v2953
    %v2955 = vlaneseq
    %v2956 = vshrl.u32 %v2955, 7
    %v2957 = vsub.s32 1, %v2956
    %v2958 = vrot.slane %v2916, %v2957
    %v2959 = vlaneseq
    %v2960 = vshrl.u32 %v2959, 7
    %v2961 = vsub.s32 2, %v2960
    %v2962 = vrot.slane %v2916, %v2961
    %v2963 = vlaneseq
    %v2964 = vshrl.u32 %v2963, 7
    %v2965 = vsub.s32 3, %v2964
    %v2966 = vrot.slane %v2916, %v2965
    %v2967 = vlaneseq
    %v2968 = vshrl.u32 %v2967, 7
    %v2969 = vsub.s32 4, %v2968
    %v2970 = vrot.slane %v2916, %v2969
    %v2971 = vlaneseq
    %v2972 = vshrl.u32 %v2971, 7
    %v2973 = vsub.s32 5, %v2972
    %v2974 = vrot.slane %v2916, %v2973
    %v2975 = vlaneseq
    %v2976 = vshrl.u32 %v2975, 7
    %v2977 = vsub.s32 6, %v2976
    %v2978 = vrot.slane %v2916, %v2977
    %v2979 = vlaneseq
    %v2980 = vshrl.u32 %v2979, 7
    %v2981 = vsub.s32 7, %v2980
    %v2982 = vrot.slane %v2916, %v2981
    %v3511 = vunpack.c.l.b16 %v2403
    %v3512 = vunpack.c.h.b16 %v2403
    %v3513 = vunpack.c.l.b16 %v2404
    %v3514 = vunpack.c.h.b16 %v2404
    %v3515 = vunpack.c.l.b16 %v2405
    %v3516 = vunpack.c.h.b16 %v2405
    %v3517 = vunpack.c.l.b16 %v2406
    %v3518 = vunpack.c.h.b16 %v2406
    %v3519 = vunpack.c.l.b16 %v2407
    %v3520 = vunpack.c.h.b16 %v2407
    %v3521 = vunpack.c.l.b16 %v2408
    %v3522 = vunpack.c.h.b16 %v2408
    %v3523 = vunpack.c.l.b16 %v2409
    %v3524 = vunpack.c.h.b16 %v2409
    %v3525 = vunpack.c.l.b16 %v2410
    %v3526 = vunpack.c.h.b16 %v2410
    %v3527 = vunpack.c.l.b16 %v2411
    %v3528 = vunpack.c.h.b16 %v2411
    %v3529 = vunpack.c.l.b16 %v2412
    %v3530 = vunpack.c.h.b16 %v2412
    %v3531 = vunpack.c.l.b16 %v2413
    %v3532 = vunpack.c.h.b16 %v2413
    %v3533 = vunpack.c.l.b16 %v2414
    %v3534 = vunpack.c.h.b16 %v2414
    %v3535 = vunpack.c.l.b16 %v2415
    %v3536 = vunpack.c.h.b16 %v2415
    %v3537 = vunpack.c.l.b16 %v2416
    %v3538 = vunpack.c.h.b16 %v2416
    %v3539 = vunpack.c.l.b16 %v2417
    %v3540 = vunpack.c.h.b16 %v2417
    %v3541 = vunpack.c.l.b16 %v2418
    %v3542 = vunpack.c.h.b16 %v2418
    %v3543 = vunpack.c.l.b16 %v2419
    %v3544 = vunpack.c.h.b16 %v2419
    %v3545 = vunpack.c.l.b16 %v2420
    %v3546 = vunpack.c.h.b16 %v2420
    %v3547 = vunpack.c.l.b16 %v2421
    %v3548 = vunpack.c.h.b16 %v2421
    %v3549 = vunpack.c.l.b16 %v2422
    %v3550 = vunpack.c.h.b16 %v2422
    %v3551 = vunpack.c.l.b16 %v2423
    %v3552 = vunpack.c.h.b16 %v2423
    %v3553 = vunpack.c.l.b16 %v2424
    %v3554 = vunpack.c.h.b16 %v2424
    %v3555 = vunpack.c.l.b16 %v2425
    %v3556 = vunpack.c.h.b16 %v2425
    %v3557 = vunpack.c.l.b16 %v2426
    %v3558 = vunpack.c.h.b16 %v2426
    %v3559 = vunpack.c.l.b16 %v2427
    %v3560 = vunpack.c.h.b16 %v2427
    %v3561 = vunpack.c.l.b16 %v2428
    %v3562 = vunpack.c.h.b16 %v2428
    %v3563 = vunpack.c.l.b16 %v2429
    %v3564 = vunpack.c.h.b16 %v2429
    %v3565 = vunpack.c.l.b16 %v2430
    %v3566 = vunpack.c.h.b16 %v2430
    %v3567 = vunpack.c.l.b16 %v2431
    %v3568 = vunpack.c.h.b16 %v2431
    %v3569 = vunpack.c.l.b16 %v2432
    %v3570 = vunpack.c.h.b16 %v2432
    %v3571 = vunpack.c.l.b16 %v2433
    %v3572 = vunpack.c.h.b16 %v2433
    %v3573 = vunpack.c.l.b16 %v2434
    %v3574 = vunpack.c.h.b16 %v2434
    %v3575 = vunpack.c.l.b16 %v2435
    %v3576 = vunpack.c.h.b16 %v2435
    %v3577 = vunpack.c.l.b16 %v2436
    %v3578 = vunpack.c.h.b16 %v2436
    %v3579 = vunpack.c.l.b16 %v2437
    %v3580 = vunpack.c.h.b16 %v2437
    %v3581 = vunpack.c.l.b16 %v2438
    %v3582 = vunpack.c.h.b16 %v2438
    %v3583 = vunpack.c.l.b16 %v2439
    %v3584 = vunpack.c.h.b16 %v2439
    %v3585 = vunpack.c.l.b16 %v2440
    %v3586 = vunpack.c.h.b16 %v2440
    %v3587 = vunpack.c.l.b16 %v2441
    %v3588 = vunpack.c.h.b16 %v2441
    %v3589 = vunpack.c.l.b16 %v2442
    %v3590 = vunpack.c.h.b16 %v2442
    %v3591 = vunpack.c.l.b16 %v2443
    %v3592 = vunpack.c.h.b16 %v2443
    %v3593 = vunpack.c.l.b16 %v2444
    %v3594 = vunpack.c.h.b16 %v2444
    %v3595 = vunpack.c.l.b16 %v2445
    %v3596 = vunpack.c.h.b16 %v2445
    %v3597 = vunpack.c.l.b16 %v2446
    %v3598 = vunpack.c.h.b16 %v2446
    %v3599 = vunpack.c.l.b16 %v2447
    %v3600 = vunpack.c.h.b16 %v2447
    %v3601 = vunpack.c.l.b16 %v2448
    %v3602 = vunpack.c.h.b16 %v2448
    %v3603 = vunpack.c.l.b16 %v2449
    %v3604 = vunpack.c.h.b16 %v2449
    %v3605 = vunpack.c.l.b16 %v2450
    %v3606 = vunpack.c.h.b16 %v2450
    %v3607 = vunpack.c.l.b16 %v2451
    %v3608 = vunpack.c.h.b16 %v2451
    %v3609 = vunpack.c.l.b16 %v2452
    %v3610 = vunpack.c.h.b16 %v2452
    %v3611 = vunpack.c.l.b16 %v2453
    %v3612 = vunpack.c.h.b16 %v2453
    %v3613 = vunpack.c.l.b16 %v2454
    %v3614 = vunpack.c.h.b16 %v2454
    %v3615 = vunpack.c.l.b16 %v2455
    %v3616 = vunpack.c.h.b16 %v2455
    %v3617 = vunpack.c.l.b16 %v2456
    %v3618 = vunpack.c.h.b16 %v2456
    %v3619 = vunpack.c.l.b16 %v2457
    %v3620 = vunpack.c.h.b16 %v2457
    %v3621 = vunpack.c.l.b16 %v2458
    %v3622 = vunpack.c.h.b16 %v2458
    %v3623 = vunpack.c.l.b16 %v2459
    %v3624 = vunpack.c.h.b16 %v2459
    %v3625 = vunpack.c.l.b16 %v2460
    %v3626 = vunpack.c.h.b16 %v2460
    %v3627 = vunpack.c.l.b16 %v2461
    %v3628 = vunpack.c.h.b16 %v2461
    %v3629 = vunpack.c.l.b16 %v2462
    %v3630 = vunpack.c.h.b16 %v2462
    %v3631 = vunpack.c.l.b16 %v2463
    %v3632 = vunpack.c.h.b16 %v2463
    %v3633 = vunpack.c.l.b16 %v2464
    %v3634 = vunpack.c.h.b16 %v2464
    %v3635 = vunpack.c.l.b16 %v2465
    %v3636 = vunpack.c.h.b16 %v2465
    %v3637 = vunpack.c.l.b16 %v2466
    %v3638 = vunpack.c.h.b16 %v2466
    %v3639 = vunpack.c.l.b16 %v2467
    %v3640 = vunpack.c.h.b16 %v2467
    %v3641 = vunpack.c.l.b16 %v2468
    %v3642 = vunpack.c.h.b16 %v2468
    %v3643 = vunpack.c.l.b16 %v2469
    %v3644 = vunpack.c.h.b16 %v2469
    %v3645 = vunpack.c.l.b16 %v2470
    %v3646 = vunpack.c.h.b16 %v2470
    %v3647 = vunpack.c.l.b16 %v2471
    %v3648 = vunpack.c.h.b16 %v2471
    %v3649 = vunpack.c.l.b16 %v2472
    %v3650 = vunpack.c.h.b16 %v2472
    %v3651 = vunpack.c.l.b16 %v2473
    %v3652 = vunpack.c.h.b16 %v2473
    %v3653 = vunpack.c.l.b16 %v2474
    %v3654 = vunpack.c.h.b16 %v2474
    %v3655 = vunpack.c.l.b16 %v2475
    %v3656 = vunpack.c.h.b16 %v2475
    %v3657 = vunpack.c.l.b16 %v2476
    %v3658 = vunpack.c.h.b16 %v2476
    %v3659 = vunpack.c.l.b16 %v2477
    %v3660 = vunpack.c.h.b16 %v2477
    %v3661 = vunpack.c.l.b16 %v2478
    %v3662 = vunpack.c.h.b16 %v2478
    %v3663 = vunpack.c.l.b16 %v2479
    %v3664 = vunpack.c.h.b16 %v2479
    %v3665 = vunpack.c.l.b16 %v2480
    %v3666 = vunpack.c.h.b16 %v2480
    %v3667 = vunpack.c.l.b16 %v2481
    %v3668 = vunpack.c.h.b16 %v2481
    %v3669 = vunpack.c.l.b16 %v2482
    %v3670 = vunpack.c.h.b16 %v2482
    %v3671 = vunpack.c.l.b16 %v2483
    %v3672 = vunpack.c.h.b16 %v2483
    %v3673 = vunpack.c.l.b16 %v2484
    %v3674 = vunpack.c.h.b16 %v2484
    %v3675 = vunpack.c.l.b16 %v2485
    %v3676 = vunpack.c.h.b16 %v2485
    %v3677 = vunpack.c.l.b16 %v2486
    %v3678 = vunpack.c.h.b16 %v2486
    %v3679 = vunpack.c.l.b16 %v2487
    %v3680 = vunpack.c.h.b16 %v2487
    %v3681 = vunpack.c.l.b16 %v2488
    %v3682 = vunpack.c.h.b16 %v2488
    %v3683 = vunpack.c.l.b16 %v2489
    %v3684 = vunpack.c.h.b16 %v2489
    %v3685 = vunpack.c.l.b16 %v2490
    %v3686 = vunpack.c.h.b16 %v2490
    %v3687 = vunpack.c.l.b16 %v2491
    %v3688 = vunpack.c.h.b16 %v2491
    %v3689 = vunpack.c.l.b16 %v2492
    %v3690 = vunpack.c.h.b16 %v2492
    %v3691 = vunpack.c.l.b16 %v2493
    %v3692 = vunpack.c.h.b16 %v2493
    %v3693 = vunpack.c.l.b16 %v2494
    %v3694 = vunpack.c.h.b16 %v2494
    %v3695 = vunpack.c.l.b16 %v2495
    %v3696 = vunpack.c.h.b16 %v2495
    %v3697 = vunpack.c.l.b16 %v2496
    %v3698 = vunpack.c.h.b16 %v2496
    %v3699 = vunpack.c.l.b16 %v2497
    %v3700 = vunpack.c.h.b16 %v2497
    %v3701 = vunpack.c.l.b16 %v2498
    %v3702 = vunpack.c.h.b16 %v2498
    %v3703 = vunpack.c.l.b16 %v2499
    %v3704 = vunpack.c.h.b16 %v2499
    %v3705 = vunpack.c.l.b16 %v2500
    %v3706 = vunpack.c.h.b16 %v2500
    %v3707 = vunpack.c.l.b16 %v2501
    %v3708 = vunpack.c.h.b16 %v2501
    %v3709 = vunpack.c.l.b16 %v2502
    %v3710 = vunpack.c.h.b16 %v2502
    %v3711 = vunpack.c.l.b16 %v2503
    %v3712 = vunpack.c.h.b16 %v2503
    %v3713 = vunpack.c.l.b16 %v2504
    %v3714 = vunpack.c.h.b16 %v2504
    %v3715 = vunpack.c.l.b16 %v2505
    %v3716 = vunpack.c.h.b16 %v2505
    %v3717 = vunpack.c.l.b16 %v2506
    %v3718 = vunpack.c.h.b16 %v2506
    %v3719 = vunpack.c.l.b16 %v2507
    %v3720 = vunpack.c.h.b16 %v2507
    %v3721 = vunpack.c.l.b16 %v2508
    %v3722 = vunpack.c.h.b16 %v2508
    %v3723 = vunpack.c.l.b16 %v2509
    %v3724 = vunpack.c.h.b16 %v2509
    %v3725 = vunpack.c.l.b16 %v2510
    %v3726 = vunpack.c.h.b16 %v2510
    %v3727 = vunpack.c.l.b16 %v2511
    %v3728 = vunpack.c.h.b16 %v2511
    %v3729 = vunpack.c.l.b16 %v2512
    %v3730 = vunpack.c.h.b16 %v2512
    %v3731 = vunpack.c.l.b16 %v2513
    %v3732 = vunpack.c.h.b16 %v2513
    %v3733 = vunpack.c.l.b16 %v2514
    %v3734 = vunpack.c.h.b16 %v2514
    %v3735 = vunpack.c.l.b16 %v2515
    %v3736 = vunpack.c.h.b16 %v2515
    %v3737 = vunpack.c.l.b16 %v2516
    %v3738 = vunpack.c.h.b16 %v2516
    %v3739 = vunpack.c.l.b16 %v2517
    %v3740 = vunpack.c.h.b16 %v2517
    %v3741 = vunpack.c.l.b16 %v2518
    %v3742 = vunpack.c.h.b16 %v2518
    %v3743 = vunpack.c.l.b16 %v2519
    %v3744 = vunpack.c.h.b16 %v2519
    %v3745 = vunpack.c.l.b16 %v2520
    %v3746 = vunpack.c.h.b16 %v2520
    %v3747 = vunpack.c.l.b16 %v2521
    %v3748 = vunpack.c.h.b16 %v2521
    %v3749 = vunpack.c.l.b16 %v2522
    %v3750 = vunpack.c.h.b16 %v2522
    %v3751 = vunpack.c.l.b16 %v2523
    %v3752 = vunpack.c.h.b16 %v2523
    %v3753 = vunpack.c.l.b16 %v2524
    %v3754 = vunpack.c.h.b16 %v2524
    %v3755 = vunpack.c.l.b16 %v2525
    %v3756 = vunpack.c.h.b16 %v2525
    %v3757 = vunpack.c.l.b16 %v2526
    %v3758 = vunpack.c.h.b16 %v2526
    %v3759 = vunpack.c.l.b16 %v2527
    %v3760 = vunpack.c.h.b16 %v2527
    %v3761 = vunpack.c.l.b16 %v2528
    %v3762 = vunpack.c.h.b16 %v2528
    %v3763 = vunpack.c.l.b16 %v2529
    %v3764 = vunpack.c.h.b16 %v2529
    %v3765 = vunpack.c.l.b16 %v2530
    %v3766 = vunpack.c.h.b16 %v2530
    %v3767 = vunpack.c.l.b16 %v2531
    %v3768 = vunpack.c.h.b16 %v2531
    %v3769 = vunpack.c.l.b16 %v2532
    %v3770 = vunpack.c.h.b16 %v2532
    %v3771 = vunpack.c.l.b16 %v2533
    %v3772 = vunpack.c.h.b16 %v2533
    %v3773 = vunpack.c.l.b16 %v2534
    %v3774 = vunpack.c.h.b16 %v2534
    %v3775 = vunpack.c.l.b16 %v2535
    %v3776 = vunpack.c.h.b16 %v2535
    %v3777 = vunpack.c.l.b16 %v2536
    %v3778 = vunpack.c.h.b16 %v2536
    %v3779 = vunpack.c.l.b16 %v2537
    %v3780 = vunpack.c.h.b16 %v2537
    %v3781 = vunpack.c.l.b16 %v2538
    %v3782 = vunpack.c.h.b16 %v2538
    %v3783 = vunpack.c.l.b16 %v2539
    %v3784 = vunpack.c.h.b16 %v2539
    %v3785 = vunpack.c.l.b16 %v2540
    %v3786 = vunpack.c.h.b16 %v2540
    %v3787 = vunpack.c.l.b16 %v2541
    %v3788 = vunpack.c.h.b16 %v2541
    %v3789 = vunpack.c.l.b16 %v2542
    %v3790 = vunpack.c.h.b16 %v2542
    %v3791 = vunpack.c.l.b16 %v2543
    %v3792 = vunpack.c.h.b16 %v2543
    %v3793 = vunpack.c.l.b16 %v2544
    %v3794 = vunpack.c.h.b16 %v2544
    %v3795 = vunpack.c.l.b16 %v2545
    %v3796 = vunpack.c.h.b16 %v2545
    %v3797 = vunpack.c.l.b16 %v2546
    %v3798 = vunpack.c.h.b16 %v2546
    %v3799 = vunpack.c.l.b16 %v2547
    %v3800 = vunpack.c.h.b16 %v2547
    %v3801 = vunpack.c.l.b16 %v2548
    %v3802 = vunpack.c.h.b16 %v2548
    %v3803 = vunpack.c.l.b16 %v2549
    %v3804 = vunpack.c.h.b16 %v2549
    %v3805 = vunpack.c.l.b16 %v2550
    %v3806 = vunpack.c.h.b16 %v2550
    %v3807 = vunpack.c.l.b16 %v2551
    %v3808 = vunpack.c.h.b16 %v2551
    %v3809 = vunpack.c.l.b16 %v2552
    %v3810 = vunpack.c.h.b16 %v2552
    %v3811 = vunpack.c.l.b16 %v2553
    %v3812 = vunpack.c.h.b16 %v2553
    %v3813 = vunpack.c.l.b16 %v2554
    %v3814 = vunpack.c.h.b16 %v2554
    %v3815 = vunpack.c.l.b16 %v2555
    %v3816 = vunpack.c.h.b16 %v2555
    %v3817 = vunpack.c.l.b16 %v2556
    %v3818 = vunpack.c.h.b16 %v2556
    %v3819 = vunpack.c.l.b16 %v2557
    %v3820 = vunpack.c.h.b16 %v2557
    %v3821 = vunpack.c.l.b16 %v2558
    %v3822 = vunpack.c.h.b16 %v2558
    %v3823 = vunpack.c.l.b16 %v2559
    %v3824 = vunpack.c.h.b16 %v2559
    %v3825 = vunpack.c.l.b16 %v2560
    %v3826 = vunpack.c.h.b16 %v2560
    %v3827 = vunpack.c.l.b16 %v2561
    %v3828 = vunpack.c.h.b16 %v2561
    %v3829 = vunpack.c.l.b16 %v2562
    %v3830 = vunpack.c.h.b16 %v2562
    %v3831 = vunpack.c.l.b16 %v2563
    %v3832 = vunpack.c.h.b16 %v2563
    %v3833 = vunpack.c.l.b16 %v2564
    %v3834 = vunpack.c.h.b16 %v2564
    %v3835 = vunpack.c.l.b16 %v2565
    %v3836 = vunpack.c.h.b16 %v2565
    %v3837 = vunpack.c.l.b16 %v2566
    %v3838 = vunpack.c.h.b16 %v2566
    %v3839 = vunpack.c.l.b16 %v2567
    %v3840 = vunpack.c.h.b16 %v2567
    %v3841 = vunpack.c.l.b16 %v2568
    %v3842 = vunpack.c.h.b16 %v2568
    %v3843 = vunpack.c.l.b16 %v2569
    %v3844 = vunpack.c.h.b16 %v2569
    %v3845 = vunpack.c.l.b16 %v2570
    %v3846 = vunpack.c.h.b16 %v2570
    %v3847 = vunpack.c.l.b16 %v2571
    %v3848 = vunpack.c.h.b16 %v2571
    %v3849 = vunpack.c.l.b16 %v2572
    %v3850 = vunpack.c.h.b16 %v2572
    %v3851 = vunpack.c.l.b16 %v2573
    %v3852 = vunpack.c.h.b16 %v2573
    %v3853 = vunpack.c.l.b16 %v2574
    %v3854 = vunpack.c.h.b16 %v2574
    %v3855 = vunpack.c.l.b16 %v2575
    %v3856 = vunpack.c.h.b16 %v2575
    %v3857 = vunpack.c.l.b16 %v2576
    %v3858 = vunpack.c.h.b16 %v2576
    %v3859 = vunpack.c.l.b16 %v2577
    %v3860 = vunpack.c.h.b16 %v2577
    %v3861 = vunpack.c.l.b16 %v2578
    %v3862 = vunpack.c.h.b16 %v2578
    %v3863 = vunpack.c.l.b16 %v2579
    %v3864 = vunpack.c.h.b16 %v2579
    %v3865 = vunpack.c.l.b16 %v2580
    %v3866 = vunpack.c.h.b16 %v2580
    %v3867 = vunpack.c.l.b16 %v2581
    %v3868 = vunpack.c.h.b16 %v2581
    %v3869 = vunpack.c.l.b16 %v2582
    %v3870 = vunpack.c.h.b16 %v2582
    %v3871 = vunpack.c.l.b16 %v2583
    %v3872 = vunpack.c.h.b16 %v2583
    %v3873 = vunpack.c.l.b16 %v2584
    %v3874 = vunpack.c.h.b16 %v2584
    %v3875 = vunpack.c.l.b16 %v2585
    %v3876 = vunpack.c.h.b16 %v2585
    %v3877 = vunpack.c.l.b16 %v2586
    %v3878 = vunpack.c.h.b16 %v2586
    %v3879 = vunpack.c.l.b16 %v2587
    %v3880 = vunpack.c.h.b16 %v2587
    %v3881 = vunpack.c.l.b16 %v2588
    %v3882 = vunpack.c.h.b16 %v2588
    %v3883 = vunpack.c.l.b16 %v2589
    %v3884 = vunpack.c.h.b16 %v2589
    %v3885 = vunpack.c.l.b16 %v2590
    %v3886 = vunpack.c.h.b16 %v2590
    %v3887 = vunpack.c.l.b16 %v2591
    %v3888 = vunpack.c.h.b16 %v2591
    %v3889 = vunpack.c.l.b16 %v2592
    %v3890 = vunpack.c.h.b16 %v2592
    %v3891 = vunpack.c.l.b16 %v2593
    %v3892 = vunpack.c.h.b16 %v2593
    %v3893 = vunpack.c.l.b16 %v2594
    %v3894 = vunpack.c.h.b16 %v2594
    %v3895 = vunpack.c.l.b16 %v2595
    %v3896 = vunpack.c.h.b16 %v2595
    %v3897 = vunpack.c.l.b16 %v2596
    %v3898 = vunpack.c.h.b16 %v2596
    %v3899 = vunpack.c.l.b16 %v2597
    %v3900 = vunpack.c.h.b16 %v2597
    %v3901 = vunpack.c.l.b16 %v2598
    %v3902 = vunpack.c.h.b16 %v2598
    %v3903 = vunpack.c.l.b16 %v2599
    %v3904 = vunpack.c.h.b16 %v2599
    %v3905 = vunpack.c.l.b16 %v2600
    %v3906 = vunpack.c.h.b16 %v2600
    %v3907 = vunpack.c.l.b16 %v2601
    %v3908 = vunpack.c.h.b16 %v2601
    %v3909 = vunpack.c.l.b16 %v2602
    %v3910 = vunpack.c.h.b16 %v2602
    %v3911 = vunpack.c.l.b16 %v2603
    %v3912 = vunpack.c.h.b16 %v2603
    %v3913 = vunpack.c.l.b16 %v2604
    %v3914 = vunpack.c.h.b16 %v2604
    %v3915 = vunpack.c.l.b16 %v2605
    %v3916 = vunpack.c.h.b16 %v2605
    %v3917 = vunpack.c.l.b16 %v2606
    %v3918 = vunpack.c.h.b16 %v2606
    %v3919 = vunpack.c.l.b16 %v2607
    %v3920 = vunpack.c.h.b16 %v2607
    %v3921 = vunpack.c.l.b16 %v2608
    %v3922 = vunpack.c.h.b16 %v2608
    %v3923 = vunpack.c.l.b16 %v2609
    %v3924 = vunpack.c.h.b16 %v2609
    %v3925 = vunpack.c.l.b16 %v2610
    %v3926 = vunpack.c.h.b16 %v2610
    %v3927 = vunpack.c.l.b16 %v2611
    %v3928 = vunpack.c.h.b16 %v2611
    %v3929 = vunpack.c.l.b16 %v2612
    %v3930 = vunpack.c.h.b16 %v2612
    %v3931 = vunpack.c.l.b16 %v2613
    %v3932 = vunpack.c.h.b16 %v2613
    %v3933 = vunpack.c.l.b16 %v2614
    %v3934 = vunpack.c.h.b16 %v2614
    %v3935 = vunpack.c.l.b16 %v2615
    %v3936 = vunpack.c.h.b16 %v2615
    %v3937 = vunpack.c.l.b16 %v2616
    %v3938 = vunpack.c.h.b16 %v2616
    %v3939 = vunpack.c.l.b16 %v2617
    %v3940 = vunpack.c.h.b16 %v2617
    %v3941 = vunpack.c.l.b16 %v2618
    %v3942 = vunpack.c.h.b16 %v2618
    %v3943 = vunpack.c.l.b16 %v2619
    %v3944 = vunpack.c.h.b16 %v2619
    %v3945 = vunpack.c.l.b16 %v2620
    %v3946 = vunpack.c.h.b16 %v2620
    %v3947 = vunpack.c.l.b16 %v2621
    %v3948 = vunpack.c.h.b16 %v2621
    %v3949 = vunpack.c.l.b16 %v2622
    %v3950 = vunpack.c.h.b16 %v2622
    %v3951 = vunpack.c.l.b16 %v2623
    %v3952 = vunpack.c.h.b16 %v2623
    %v3953 = vunpack.c.l.b16 %v2624
    %v3954 = vunpack.c.h.b16 %v2624
    %v3955 = vunpack.c.l.b16 %v2625
    %v3956 = vunpack.c.h.b16 %v2625
    %v3957 = vunpack.c.l.b16 %v2626
    %v3958 = vunpack.c.h.b16 %v2626
    %v3959 = vunpack.c.l.b16 %v2627
    %v3960 = vunpack.c.h.b16 %v2627
    %v3961 = vunpack.c.l.b16 %v2628
    %v3962 = vunpack.c.h.b16 %v2628
    %v3963 = vunpack.c.l.b16 %v2629
    %v3964 = vunpack.c.h.b16 %v2629
    %v3965 = vunpack.c.l.b16 %v2630
    %v3966 = vunpack.c.h.b16 %v2630
    %v3967 = vunpack.c.l.b16 %v2631
    %v3968 = vunpack.c.h.b16 %v2631
    %v3969 = vunpack.c.l.b16 %v2632
    %v3970 = vunpack.c.h.b16 %v2632
    %v3971 = vunpack.c.l.b16 %v2633
    %v3972 = vunpack.c.h.b16 %v2633
    %v3973 = vunpack.c.l.b16 %v2634
    %v3974 = vunpack.c.h.b16 %v2634
    %v3975 = vunpack.c.l.b16 %v2635
    %v3976 = vunpack.c.h.b16 %v2635
    %v3977 = vunpack.c.l.b16 %v2636
    %v3978 = vunpack.c.h.b16 %v2636
    %v3979 = vunpack.c.l.b16 %v2637
    %v3980 = vunpack.c.h.b16 %v2637
    %v3981 = vunpack.c.l.b16 %v2638
    %v3982 = vunpack.c.h.b16 %v2638
    %v3983 = vunpack.c.l.b16 %v2639
    %v3984 = vunpack.c.h.b16 %v2639
    %v3985 = vunpack.c.l.b16 %v2640
    %v3986 = vunpack.c.h.b16 %v2640
    %v3987 = vunpack.c.l.b16 %v2641
    %v3988 = vunpack.c.h.b16 %v2641
    %v3989 = vunpack.c.l.b16 %v2642
    %v3990 = vunpack.c.h.b16 %v2642
    %v3991 = vunpack.c.l.b16 %v2643
    %v3992 = vunpack.c.h.b16 %v2643
    %v3993 = vunpack.c.l.b16 %v2644
    %v3994 = vunpack.c.h.b16 %v2644
    %v3995 = vunpack.c.l.b16 %v2645
    %v3996 = vunpack.c.h.b16 %v2645
    %v3997 = vunpack.c.l.b16 %v2646
    %v3998 = vunpack.c.h.b16 %v2646
    %v3999 = vunpack.c.l.b16 %v2647
    %v4000 = vunpack.c.h.b16 %v2647
    %v4001 = vunpack.c.l.b16 %v2648
    %v4002 = vunpack.c.h.b16 %v2648
    %v4003 = vunpack.c.l.b16 %v2649
    %v4004 = vunpack.c.h.b16 %v2649
    %v4005 = vunpack.c.l.b16 %v2650
    %v4006 = vunpack.c.h.b16 %v2650
    %v4007 = vunpack.c.l.b16 %v2651
    %v4008 = vunpack.c.h.b16 %v2651
    %v4009 = vunpack.c.l.b16 %v2652
    %v4010 = vunpack.c.h.b16 %v2652
    %v4011 = vunpack.c.l.b16 %v2653
    %v4012 = vunpack.c.h.b16 %v2653
    %v4013 = vunpack.c.l.b16 %v2654
    %v4014 = vunpack.c.h.b16 %v2654
    %v4015 = vunpack.c.l.b16 %v2655
    %v4016 = vunpack.c.h.b16 %v2655
    %v4017 = vunpack.c.l.b16 %v2656
    %v4018 = vunpack.c.h.b16 %v2656
    %v4019 = vunpack.c.l.b16 %v2657
    %v4020 = vunpack.c.h.b16 %v2657
    %v4021 = vunpack.c.l.b16 %v2658
    %v4022 = vunpack.c.h.b16 %v2658
    %v4023 = vunpack.c.l.b16 %v2659
    %v4024 = vunpack.c.h.b16 %v2659
    %v4025 = vunpack.c.l.b16 %v2660
    %v4026 = vunpack.c.h.b16 %v2660
    %v4027 = vunpack.c.l.b16 %v2661
    %v4028 = vunpack.c.h.b16 %v2661
    %v4029 = vunpack.c.l.b16 %v2662
    %v4030 = vunpack.c.h.b16 %v2662
    %v4031 = vunpack.c.l.b16 %v2663
    %v4032 = vunpack.c.h.b16 %v2663
    %v4033 = vunpack.c.l.b16 %v2664
    %v4034 = vunpack.c.h.b16 %v2664
    %v4035 = vunpack.c.l.b16 %v2665
    %v4036 = vunpack.c.h.b16 %v2665
    %v4037 = vunpack.c.l.b16 %v2666
    %v4038 = vunpack.c.h.b16 %v2666
    %v4039 = vunpack.c.l.b16 %v2667
    %v4040 = vunpack.c.h.b16 %v2667
    %v4041 = vunpack.c.l.b16 %v2668
    %v4042 = vunpack.c.h.b16 %v2668
    %v4043 = vunpack.c.l.b16 %v2669
    %v4044 = vunpack.c.h.b16 %v2669
    %v4045 = vunpack.c.l.b16 %v2670
    %v4046 = vunpack.c.h.b16 %v2670
    %v4047 = vunpack.c.l.b16 %v2671
    %v4048 = vunpack.c.h.b16 %v2671
    %v4049 = vunpack.c.l.b16 %v2672
    %v4050 = vunpack.c.h.b16 %v2672
    %v4051 = vunpack.c.l.b16 %v2673
    %v4052 = vunpack.c.h.b16 %v2673
    %v4053 = vunpack.c.l.b16 %v2674
    %v4054 = vunpack.c.h.b16 %v2674
    %v4055 = vunpack.c.l.b16 %v2675
    %v4056 = vunpack.c.h.b16 %v2675
    %v4057 = vunpack.c.l.b16 %v2676
    %v4058 = vunpack.c.h.b16 %v2676
    %v4059 = vunpack.c.l.b16 %v2677
    %v4060 = vunpack.c.h.b16 %v2677
    %v4061 = vunpack.c.l.b16 %v2678
    %v4062 = vunpack.c.h.b16 %v2678
    %v4063 = vunpack.c.l.b16 %v2679
    %v4064 = vunpack.c.h.b16 %v2679
    %v4065 = vunpack.c.l.b16 %v2680
    %v4066 = vunpack.c.h.b16 %v2680
    %v4067 = vunpack.c.l.b16 %v2681
    %v4068 = vunpack.c.h.b16 %v2681
    %v4069 = vunpack.c.l.b16 %v2682
    %v4070 = vunpack.c.h.b16 %v2682
    %v4071 = vunpack.c.l.b16 %v2683
    %v4072 = vunpack.c.h.b16 %v2683
    %v4073 = vunpack.c.l.b16 %v2684
    %v4074 = vunpack.c.h.b16 %v2684
    %v4075 = vunpack.c.l.b16 %v2685
    %v4076 = vunpack.c.h.b16 %v2685
    %v4077 = vunpack.c.l.b16 %v2686
    %v4078 = vunpack.c.h.b16 %v2686
    %v4079 = vunpack.c.l.b16 %v2687
    %v4080 = vunpack.c.h.b16 %v2687
    %v4081 = vunpack.c.l.b16 %v2688
    %v4082 = vunpack.c.h.b16 %v2688
    %v4083 = vunpack.c.l.b16 %v2689
    %v4084 = vunpack.c.h.b16 %v2689
    %v4085 = vunpack.c.l.b16 %v2690
    %v4086 = vunpack.c.h.b16 %v2690
    %v4087 = vunpack.c.l.b16 %v2691
    %v4088 = vunpack.c.h.b16 %v2691
    %v4089 = vunpack.c.l.b16 %v2692
    %v4090 = vunpack.c.h.b16 %v2692
    %v4091 = vunpack.c.l.b16 %v2693
    %v4092 = vunpack.c.h.b16 %v2693
    %v4093 = vunpack.c.l.b16 %v2694
    %v4094 = vunpack.c.h.b16 %v2694
    %v4095 = vunpack.c.l.b16 %v2695
    %v4096 = vunpack.c.h.b16 %v2695
    %v4097 = vunpack.c.l.b16 %v2696
    %v4098 = vunpack.c.h.b16 %v2696
    %v4099 = vunpack.c.l.b16 %v2697
    %v4100 = vunpack.c.h.b16 %v2697
    %v4101 = vunpack.c.l.b16 %v2698
    %v4102 = vunpack.c.h.b16 %v2698
    %v4103 = vunpack.c.l.b16 %v2699
    %v4104 = vunpack.c.h.b16 %v2699
    %v4105 = vunpack.c.l.b16 %v2700
    %v4106 = vunpack.c.h.b16 %v2700
    %v4107 = vunpack.c.l.b16 %v2701
    %v4108 = vunpack.c.h.b16 %v2701
    %v4109 = vunpack.c.l.b16 %v2702
    %v4110 = vunpack.c.h.b16 %v2702
    %v4111 = vunpack.c.l.b16 %v2703
    %v4112 = vunpack.c.h.b16 %v2703
    %v4113 = vunpack.c.l.b16 %v2704
    %v4114 = vunpack.c.h.b16 %v2704
    %v4115 = vunpack.c.l.b16 %v2705
    %v4116 = vunpack.c.h.b16 %v2705
    %v4117 = vunpack.c.l.b16 %v2706
    %v4118 = vunpack.c.h.b16 %v2706
    %v4119 = vunpack.c.l.b16 %v2707
    %v4120 = vunpack.c.h.b16 %v2707
    %v4121 = vunpack.c.l.b16 %v2708
    %v4122 = vunpack.c.h.b16 %v2708
    %v4123 = vunpack.c.l.b16 %v2709
    %v4124 = vunpack.c.h.b16 %v2709
    %v4125 = vunpack.c.l.b16 %v2710
    %v4126 = vunpack.c.h.b16 %v2710
    %v4127 = vunpack.c.l.b16 %v2711
    %v4128 = vunpack.c.h.b16 %v2711
    %v4129 = vunpack.c.l.b16 %v2712
    %v4130 = vunpack.c.h.b16 %v2712
    %v4131 = vunpack.c.l.b16 %v2713
    %v4132 = vunpack.c.h.b16 %v2713
    %v4133 = vunpack.c.l.b16 %v2714
    %v4134 = vunpack.c.h.b16 %v2714
    %v4135 = vunpack.c.l.b16 %v2715
    %v4136 = vunpack.c.h.b16 %v2715
    %v4137 = vunpack.c.l.b16 %v2716
    %v4138 = vunpack.c.h.b16 %v2716
    %v4139 = vunpack.c.l.b16 %v2717
    %v4140 = vunpack.c.h.b16 %v2717
    %v4141 = vunpack.c.l.b16 %v2718
    %v4142 = vunpack.c.h.b16 %v2718
    %v4143 = vunpack.c.l.b16 %v2719
    %v4144 = vunpack.c.h.b16 %v2719
    %v4145 = vunpack.c.l.b16 %v2720
    %v4146 = vunpack.c.h.b16 %v2720
    %v4147 = vunpack.c.l.b16 %v2721
    %v4148 = vunpack.c.h.b16 %v2721
    %v4149 = vunpack.c.l.b16 %v2722
    %v4150 = vunpack.c.h.b16 %v2722
    %v4151 = vunpack.c.l.b16 %v2723
    %v4152 = vunpack.c.h.b16 %v2723
    %v4153 = vunpack.c.l.b16 %v2724
    %v4154 = vunpack.c.h.b16 %v2724
    %v4155 = vunpack.c.l.b16 %v2725
    %v4156 = vunpack.c.h.b16 %v2725
    %v4157 = vunpack.c.l.b16 %v2726
    %v4158 = vunpack.c.h.b16 %v2726
    %v4159 = vunpack.c.l.b16 %v2727
    %v4160 = vunpack.c.h.b16 %v2727
    %v4161 = vunpack.c.l.b16 %v2728
    %v4162 = vunpack.c.h.b16 %v2728
    %v4163 = vunpack.c.l.b16 %v2729
    %v4164 = vunpack.c.h.b16 %v2729
    %v4165 = vunpack.c.l.b16 %v2730
    %v4166 = vunpack.c.h.b16 %v2730
    %v4167 = vunpack.c.l.b16 %v2731
    %v4168 = vunpack.c.h.b16 %v2731
    %v4169 = vunpack.c.l.b16 %v2732
    %v4170 = vunpack.c.h.b16 %v2732
    %v4171 = vunpack.c.l.b16 %v2733
    %v4172 = vunpack.c.h.b16 %v2733
    %v4173 = vunpack.c.l.b16 %v2734
    %v4174 = vunpack.c.h.b16 %v2734
    %v4175 = vunpack.c.l.b16 %v2735
    %v4176 = vunpack.c.h.b16 %v2735
    %v4177 = vunpack.c.l.b16 %v2736
    %v4178 = vunpack.c.h.b16 %v2736
    %v4179 = vunpack.c.l.b16 %v2737
    %v4180 = vunpack.c.h.b16 %v2737
    %v4181 = vunpack.c.l.b16 %v2738
    %v4182 = vunpack.c.h.b16 %v2738
    %v4183 = vunpack.c.l.b16 %v2739
    %v4184 = vunpack.c.h.b16 %v2739
    %v4185 = vunpack.c.l.b16 %v2740
    %v4186 = vunpack.c.h.b16 %v2740
    %v4187 = vunpack.c.l.b16 %v2741
    %v4188 = vunpack.c.h.b16 %v2741
    %v4189 = vunpack.c.l.b16 %v2742
    %v4190 = vunpack.c.h.b16 %v2742
    %v4191 = vunpack.c.l.b16 %v2743
    %v4192 = vunpack.c.h.b16 %v2743
    %v4193 = vunpack.c.l.b16 %v2744
    %v4194 = vunpack.c.h.b16 %v2744
    %v4195 = vunpack.c.l.b16 %v2745
    %v4196 = vunpack.c.h.b16 %v2745
    %v4197 = vunpack.c.l.b16 %v2746
    %v4198 = vunpack.c.h.b16 %v2746
    %v4199 = vunpack.c.l.b16 %v2747
    %v4200 = vunpack.c.h.b16 %v2747
    %v4201 = vunpack.c.l.b16 %v2748
    %v4202 = vunpack.c.h.b16 %v2748
    %v4203 = vunpack.c.l.b16 %v2749
    %v4204 = vunpack.c.h.b16 %v2749
    %v4205 = vunpack.c.l.b16 %v2750
    %v4206 = vunpack.c.h.b16 %v2750
    %v4207 = vunpack.c.l.b16 %v2751
    %v4208 = vunpack.c.h.b16 %v2751
    %v4209 = vunpack.c.l.b16 %v2752
    %v4210 = vunpack.c.h.b16 %v2752
    %v4211 = vunpack.c.l.b16 %v2753
    %v4212 = vunpack.c.h.b16 %v2753
    %v4213 = vunpack.c.l.b16 %v2754
    %v4214 = vunpack.c.h.b16 %v2754
    %v4215 = vunpack.c.l.b16 %v2755
    %v4216 = vunpack.c.h.b16 %v2755
    %v4217 = vunpack.c.l.b16 %v2756
    %v4218 = vunpack.c.h.b16 %v2756
    %v4219 = vunpack.c.l.b16 %v2757
    %v4220 = vunpack.c.h.b16 %v2757
    %v4221 = vunpack.c.l.b16 %v2758
    %v4222 = vunpack.c.h.b16 %v2758
    %v4223 = vunpack.c.l.b16 %v2759
    %v4224 = vunpack.c.h.b16 %v2759
    %v4225 = vunpack.c.l.b16 %v2760
    %v4226 = vunpack.c.h.b16 %v2760
    %v4227 = vunpack.c.l.b16 %v2761
    %v4228 = vunpack.c.h.b16 %v2761
    %v4229 = vunpack.c.l.b16 %v2762
    %v4230 = vunpack.c.h.b16 %v2762
    %v4231 = vunpack.c.l.b16 %v2763
    %v4232 = vunpack.c.h.b16 %v2763
    %v4233 = vunpack.c.l.b16 %v2764
    %v4234 = vunpack.c.h.b16 %v2764
    %v4235 = vunpack.c.l.b16 %v2765
    %v4236 = vunpack.c.h.b16 %v2765
    %v4237 = vunpack.c.l.b16 %v2766
    %v4238 = vunpack.c.h.b16 %v2766
    %v4239 = vunpack.c.l.b16 %v2767
    %v4240 = vunpack.c.h.b16 %v2767
    %v4241 = vunpack.c.l.b16 %v2768
    %v4242 = vunpack.c.h.b16 %v2768
    %v4243 = vunpack.c.l.b16 %v2769
    %v4244 = vunpack.c.h.b16 %v2769
    %v4245 = vunpack.c.l.b16 %v2770
    %v4246 = vunpack.c.h.b16 %v2770
    %v4247 = vunpack.c.l.b16 %v2771
    %v4248 = vunpack.c.h.b16 %v2771
    %v4249 = vunpack.c.l.b16 %v2772
    %v4250 = vunpack.c.h.b16 %v2772
    %v4251 = vunpack.c.l.b16 %v2773
    %v4252 = vunpack.c.h.b16 %v2773
    %v4253 = vunpack.c.l.b16 %v2774
    %v4254 = vunpack.c.h.b16 %v2774
    %v4255 = vunpack.c.l.b16 %v2775
    %v4256 = vunpack.c.h.b16 %v2775
    %v4257 = vunpack.c.l.b16 %v2776
    %v4258 = vunpack.c.h.b16 %v2776
    %v4259 = vunpack.c.l.b16 %v2777
    %v4260 = vunpack.c.h.b16 %v2777
    %v4261 = vunpack.c.l.b16 %v2778
    %v4262 = vunpack.c.h.b16 %v2778
    %v4263 = vunpack.c.l.b16 %v2779
    %v4264 = vunpack.c.h.b16 %v2779
    %v4265 = vunpack.c.l.b16 %v2780
    %v4266 = vunpack.c.h.b16 %v2780
    %v4267 = vunpack.c.l.b16 %v2781
    %v4268 = vunpack.c.h.b16 %v2781
    %v4269 = vunpack.c.l.b16 %v2782
    %v4270 = vunpack.c.h.b16 %v2782
    %v4271 = vunpack.c.l.b16 %v2783
    %v4272 = vunpack.c.h.b16 %v2783
    %v4273 = vunpack.c.l.b16 %v2784
    %v4274 = vunpack.c.h.b16 %v2784
    %v4275 = vunpack.c.l.b16 %v2785
    %v4276 = vunpack.c.h.b16 %v2785
    %v4277 = vunpack.c.l.b16 %v2786
    %v4278 = vunpack.c.h.b16 %v2786
    %v4279 = vunpack.c.l.b16 %v2787
    %v4280 = vunpack.c.h.b16 %v2787
    %v4281 = vunpack.c.l.b16 %v2788
    %v4282 = vunpack.c.h.b16 %v2788
    %v4283 = vunpack.c.l.b16 %v2789
    %v4284 = vunpack.c.h.b16 %v2789
    %v4285 = vunpack.c.l.b16 %v2790
    %v4286 = vunpack.c.h.b16 %v2790
    %v4287 = vunpack.c.l.b16 %v2791
    %v4288 = vunpack.c.h.b16 %v2791
    %v4289 = vunpack.c.l.b16 %v2792
    %v4290 = vunpack.c.h.b16 %v2792
    %v4291 = vunpack.c.l.b16 %v2793
    %v4292 = vunpack.c.h.b16 %v2793
    %v4293 = vunpack.c.l.b16 %v2794
    %v4294 = vunpack.c.h.b16 %v2794
    %v4295 = vunpack.c.l.b16 %v2795
    %v4296 = vunpack.c.h.b16 %v2795
    %v4297 = vunpack.c.l.b16 %v2796
    %v4298 = vunpack.c.h.b16 %v2796
    %v4299 = vunpack.c.l.b16 %v2797
    %v4300 = vunpack.c.h.b16 %v2797
    %v4301 = vunpack.c.l.b16 %v2798
    %v4302 = vunpack.c.h.b16 %v2798
    %v4303 = vunpack.c.l.b16 %v2799
    %v4304 = vunpack.c.h.b16 %v2799
    %v4305 = vunpack.c.l.b16 %v2800
    %v4306 = vunpack.c.h.b16 %v2800
    %v4307 = vunpack.c.l.b16 %v2801
    %v4308 = vunpack.c.h.b16 %v2801
    %v4309 = vunpack.c.l.b16 %v2802
    %v4310 = vunpack.c.h.b16 %v2802
    %v4311 = vunpack.c.l.b16 %v2803
    %v4312 = vunpack.c.h.b16 %v2803
    %v4313 = vunpack.c.l.b16 %v2804
    %v4314 = vunpack.c.h.b16 %v2804
    %v4315 = vunpack.c.l.b16 %v2805
    %v4316 = vunpack.c.h.b16 %v2805
    %v4317 = vunpack.c.l.b16 %v2806
    %v4318 = vunpack.c.h.b16 %v2806
    %v4319 = vunpack.c.l.b16 %v2807
    %v4320 = vunpack.c.h.b16 %v2807
    %v4321 = vunpack.c.l.b16 %v2808
    %v4322 = vunpack.c.h.b16 %v2808
    %v4323 = vunpack.c.l.b16 %v2809
    %v4324 = vunpack.c.h.b16 %v2809
    %v4325 = vunpack.c.l.b16 %v2810
    %v4326 = vunpack.c.h.b16 %v2810
    %v4327 = vunpack.c.l.b16 %v2811
    %v4328 = vunpack.c.h.b16 %v2811
    %v4329 = vunpack.c.l.b16 %v2812
    %v4330 = vunpack.c.h.b16 %v2812
    %v4331 = vunpack.c.l.b16 %v2813
    %v4332 = vunpack.c.h.b16 %v2813
    %v4333 = vunpack.c.l.b16 %v2814
    %v4334 = vunpack.c.h.b16 %v2814
    %v4335 = vunpack.c.l.b16 %v2815
    %v4336 = vunpack.c.h.b16 %v2815
    %v4337 = vunpack.c.l.b16 %v2816
    %v4338 = vunpack.c.h.b16 %v2816
    %v4339 = vunpack.c.l.b16 %v2817
    %v4340 = vunpack.c.h.b16 %v2817
    %v4341 = vunpack.c.l.b16 %v2818
    %v4342 = vunpack.c.h.b16 %v2818
    %v4343 = vunpack.c.l.b16 %v2819
    %v4344 = vunpack.c.h.b16 %v2819
    %v4345 = vunpack.c.l.b16 %v2820
    %v4346 = vunpack.c.h.b16 %v2820
    %v4347 = vunpack.c.l.b16 %v2821
    %v4348 = vunpack.c.h.b16 %v2821
    %v4349 = vunpack.c.l.b16 %v2822
    %v4350 = vunpack.c.h.b16 %v2822
    %v4351 = vunpack.c.l.b16 %v2823
    %v4352 = vunpack.c.h.b16 %v2823
    %v4353 = vunpack.c.l.b16 %v2824
    %v4354 = vunpack.c.h.b16 %v2824
    %v4355 = vunpack.c.l.b16 %v2825
    %v4356 = vunpack.c.h.b16 %v2825
    %v4357 = vunpack.c.l.b16 %v2826
    %v4358 = vunpack.c.h.b16 %v2826
    %v4359 = vunpack.c.l.b16 %v2827
    %v4360 = vunpack.c.h.b16 %v2827
    %v4361 = vunpack.c.l.b16 %v2828
    %v4362 = vunpack.c.h.b16 %v2828
    %v4363 = vunpack.c.l.b16 %v2829
    %v4364 = vunpack.c.h.b16 %v2829
    %v4365 = vunpack.c.l.b16 %v2830
    %v4366 = vunpack.c.h.b16 %v2830
    %v4367 = vunpack.c.l.b16 %v2831
    %v4368 = vunpack.c.h.b16 %v2831
    %v4369 = vunpack.c.l.b16 %v2832
    %v4370 = vunpack.c.h.b16 %v2832
    %v4371 = vunpack.c.l.b16 %v2833
    %v4372 = vunpack.c.h.b16 %v2833
    %v4373 = vunpack.c.l.b16 %v2834
    %v4374 = vunpack.c.h.b16 %v2834
    %v4375 = vunpack.c.l.b16 %v2835
    %v4376 = vunpack.c.h.b16 %v2835
    %v4377 = vunpack.c.l.b16 %v2836
    %v4378 = vunpack.c.h.b16 %v2836
    %v4379 = vunpack.c.l.b16 %v2837
    %v4380 = vunpack.c.h.b16 %v2837
    %v4381 = vunpack.c.l.b16 %v2838
    %v4382 = vunpack.c.h.b16 %v2838
    %v4383 = vunpack.c.l.b16 %v2839
    %v4384 = vunpack.c.h.b16 %v2839
    %v4385 = vunpack.c.l.b16 %v2840
    %v4386 = vunpack.c.h.b16 %v2840
    %v4387 = vunpack.c.l.b16 %v2841
    %v4388 = vunpack.c.h.b16 %v2841
    %v4389 = vunpack.c.l.b16 %v2842
    %v4390 = vunpack.c.h.b16 %v2842
    %v4391 = vunpack.c.l.b16 %v2843
    %v4392 = vunpack.c.h.b16 %v2843
    %v4393 = vunpack.c.l.b16 %v2844
    %v4394 = vunpack.c.h.b16 %v2844
    %v4395 = vunpack.c.l.b16 %v2845
    %v4396 = vunpack.c.h.b16 %v2845
    %v4397 = vunpack.c.l.b16 %v2846
    %v4398 = vunpack.c.h.b16 %v2846
    %v4399 = vunpack.c.l.b16 %v2847
    %v4400 = vunpack.c.h.b16 %v2847
    %v4401 = vunpack.c.l.b16 %v2848
    %v4402 = vunpack.c.h.b16 %v2848
    %v4403 = vunpack.c.l.b16 %v2849
    %v4404 = vunpack.c.h.b16 %v2849
    %v4405 = vunpack.c.l.b16 %v2850
    %v4406 = vunpack.c.h.b16 %v2850
    %v4407 = vunpack.c.l.b16 %v2851
    %v4408 = vunpack.c.h.b16 %v2851
    %v4409 = vunpack.c.l.b16 %v2852
    %v4410 = vunpack.c.h.b16 %v2852
    %v4411 = vunpack.c.l.b16 %v2853
    %v4412 = vunpack.c.h.b16 %v2853
    %v4413 = vunpack.c.l.b16 %v2854
    %v4414 = vunpack.c.h.b16 %v2854
    %v4415 = vunpack.c.l.b16 %v2855
    %v4416 = vunpack.c.h.b16 %v2855
    %v4417 = vunpack.c.l.b16 %v2856
    %v4418 = vunpack.c.h.b16 %v2856
    %v4419 = vunpack.c.l.b16 %v2857
    %v4420 = vunpack.c.h.b16 %v2857
    %v4421 = vunpack.c.l.b16 %v2858
    %v4422 = vunpack.c.h.b16 %v2858
    %v4423 = vunpack.c.l.b16 %v2859
    %v4424 = vunpack.c.h.b16 %v2859
    %v4425 = vunpack.c.l.b16 %v2860
    %v4426 = vunpack.c.h.b16 %v2860
    %v4427 = vunpack.c.l.b16 %v2861
    %v4428 = vunpack.c.h.b16 %v2861
    %v4429 = vunpack.c.l.b16 %v2862
    %v4430 = vunpack.c.h.b16 %v2862
    %v4431 = vunpack.c.l.b16 %v2863
    %v4432 = vunpack.c.h.b16 %v2863
    %v4433 = vunpack.c.l.b16 %v2864
    %v4434 = vunpack.c.h.b16 %v2864
    %v4435 = vunpack.c.l.b16 %v2865
    %v4436 = vunpack.c.h.b16 %v2865
    %v4437 = vunpack.c.l.b16 %v2866
    %v4438 = vunpack.c.h.b16 %v2866
    %v4439 = vunpack.c.l.b16 %v2867
    %v4440 = vunpack.c.h.b16 %v2867
    %v4441 = vunpack.c.l.b16 %v2868
    %v4442 = vunpack.c.h.b16 %v2868
    %v4443 = vunpack.c.l.b16 %v2869
    %v4444 = vunpack.c.h.b16 %v2869
    %v4445 = vunpack.c.l.b16 %v2870
    %v4446 = vunpack.c.h.b16 %v2870
    %v4447 = vunpack.c.l.b16 %v2871
    %v4448 = vunpack.c.h.b16 %v2871
    %v4449 = vunpack.c.l.b16 %v2872
    %v4450 = vunpack.c.h.b16 %v2872
    %v4451 = vunpack.c.l.b16 %v2873
    %v4452 = vunpack.c.h.b16 %v2873
    %v4453 = vunpack.c.l.b16 %v2874
    %v4454 = vunpack.c.h.b16 %v2874
    %v4455 = vunpack.c.l.b16 %v2875
    %v4456 = vunpack.c.h.b16 %v2875
    %v4457 = vunpack.c.l.b16 %v2876
    %v4458 = vunpack.c.h.b16 %v2876
    %v4459 = vunpack.c.l.b16 %v2877
    %v4460 = vunpack.c.h.b16 %v2877
    %v4461 = vunpack.c.l.b16 %v2878
    %v4462 = vunpack.c.h.b16 %v2878
    %v4463 = vunpack.c.l.b16 %v2879
    %v4464 = vunpack.c.h.b16 %v2879
    %v4465 = vunpack.c.l.b16 %v2880
    %v4466 = vunpack.c.h.b16 %v2880
    %v4467 = vunpack.c.l.b16 %v2881
    %v4468 = vunpack.c.h.b16 %v2881
    %v4469 = vunpack.c.l.b16 %v2882
    %v4470 = vunpack.c.h.b16 %v2882
    %v4471 = vunpack.c.l.b16 %v2883
    %v4472 = vunpack.c.h.b16 %v2883
    %v4473 = vunpack.c.l.b16 %v2884
    %v4474 = vunpack.c.h.b16 %v2884
    %v4475 = vunpack.c.l.b16 %v2885
    %v4476 = vunpack.c.h.b16 %v2885
    %v4477 = vunpack.c.l.b16 %v2886
    %v4478 = vunpack.c.h.b16 %v2886
    %v4479 = vunpack.c.l.b16 %v2887
    %v4480 = vunpack.c.h.b16 %v2887
    %v4481 = vunpack.c.l.b16 %v2888
    %v4482 = vunpack.c.h.b16 %v2888
    %v4483 = vunpack.c.l.b16 %v2889
    %v4484 = vunpack.c.h.b16 %v2889
    %v4485 = vunpack.c.l.b16 %v2890
    %v4486 = vunpack.c.h.b16 %v2890
    %v4487 = vunpack.c.l.b16 %v2891
    %v4488 = vunpack.c.h.b16 %v2891
    %v4489 = vunpack.c.l.b16 %v2892
    %v4490 = vunpack.c.h.b16 %v2892
    %v4491 = vunpack.c.l.b16 %v2893
    %v4492 = vunpack.c.h.b16 %v2893
    %v4493 = vunpack.c.l.b16 %v2894
    %v4494 = vunpack.c.h.b16 %v2894
    %v4495 = vunpack.c.l.b16 %v2895
    %v4496 = vunpack.c.h.b16 %v2895
    %v4497 = vunpack.c.l.b16 %v2896
    %v4498 = vunpack.c.h.b16 %v2896
    %v4499 = vunpack.c.l.b16 %v2897
    %v4500 = vunpack.c.h.b16 %v2897
    %v4501 = vunpack.c.l.b16 %v2898
    %v4502 = vunpack.c.h.b16 %v2898
    %v4503 = vunpack.c.l.b16 %v2899
    %v4504 = vunpack.c.h.b16 %v2899
    %v4505 = vunpack.c.l.b16 %v2900
    %v4506 = vunpack.c.h.b16 %v2900
    %v4507 = vunpack.c.l.b16 %v2901
    %v4508 = vunpack.c.h.b16 %v2901
    %v4509 = vunpack.c.l.b16 %v2902
    %v4510 = vunpack.c.h.b16 %v2902
    %v4511 = vunpack.c.l.b16 %v2903
    %v4512 = vunpack.c.h.b16 %v2903
    %v4513 = vunpack.c.l.b16 %v2904
    %v4514 = vunpack.c.h.b16 %v2904
    %v4515 = vunpack.c.l.b16 %v2905
    %v4516 = vunpack.c.h.b16 %v2905
    %v4517 = vunpack.c.l.b16 %v2906
    %v4518 = vunpack.c.h.b16 %v2906
    %v4519 = vunpack.c.l.b16 %v2907
    %v4520 = vunpack.c.h.b16 %v2907
    %v4521 = vunpack.c.l.b16 %v2908
    %v4522 = vunpack.c.h.b16 %v2908
    %v4523 = vunpack.c.l.b16 %v2909
    %v4524 = vunpack.c.h.b16 %v2909
    %v4525 = vunpack.c.l.b16 %v2910
    %v4526 = vunpack.c.h.b16 %v2910
    %v4527 = vunpack.c.l.b16 %v2911
    %v4528 = vunpack.c.h.b16 %v2911
    %v4529 = vunpack.c.l.b16 %v2912
    %v4530 = vunpack.c.h.b16 %v2912
    %v4531 = vunpack.c.l.b16 %v2913
    %v4532 = vunpack.c.h.b16 %v2913
    %v4533 = vunpack.c.l.b16 %v2914
    %v4534 = vunpack.c.h.b16 %v2914
    %v4535 = vpack.c.b16 %v3527, %v3511
    %v4536 = vpack.c.b16 %v3528, %v3512
    %v4537 = vpack.c.b16 %v3529, %v3513
    %v4538 = vpack.c.b16 %v3530, %v3514
    %v4539 = vpack.c.b16 %v3531, %v3515
    %v4540 = vpack.c.b16 %v3532, %v3516
    %v4541 = vpack.c.b16 %v3533, %v3517
    %v4542 = vpack.c.b16 %v3534, %v3518
    %v4543 = vpack.c.b16 %v3535, %v3519
    %v4544 = vpack.c.b16 %v3536, %v3520
    %v4545 = vpack.c.b16 %v3537, %v3521
    %v4546 = vpack.c.b16 %v3538, %v3522
    %v4547 = vpack.c.b16 %v3539, %v3523
    %v4548 = vpack.c.b16 %v3540, %v3524
    %v4549 = vpack.c.b16 %v3541, %v3525
    %v4550 = vpack.c.b16 %v3542, %v3526
    %v4551 = vpack.c.b16 %v3559, %v3543
    %v4552 = vpack.c.b16 %v3560, %v3544
    %v4553 = vpack.c.b16 %v3561, %v3545
    %v4554 = vpack.c.b16 %v3562, %v3546
    %v4555 = vpack.c.b16 %v3563, %v3547
    %v4556 = vpack.c.b16 %v3564, %v3548
    %v4557 = vpack.c.b16 %v3565, %v3549
    %v4558 = vpack.c.b16 %v3566, %v3550
    %v4559 = vpack.c.b16 %v3567, %v3551
    %v4560 = vpack.c.b16 %v3568, %v3552
    %v4561 = vpack.c.b16 %v3569, %v3553
    %v4562 = vpack.c.b16 %v3570, %v3554
    %v4563 = vpack.c.b16 %v3571, %v3555
    %v4564 = vpack.c.b16 %v3572, %v3556
    %v4565 = vpack.c.b16 %v3573, %v3557
    %v4566 = vpack.c.b16 %v3574, %v3558
    %v4567 = vpack.c.b16 %v3591, %v3575
    %v4568 = vpack.c.b16 %v3592, %v3576
    %v4569 = vpack.c.b16 %v3593, %v3577
    %v4570 = vpack.c.b16 %v3594, %v3578
    %v4571 = vpack.c.b16 %v3595, %v3579
    %v4572 = vpack.c.b16 %v3596, %v3580
    %v4573 = vpack.c.b16 %v3597, %v3581
    %v4574 = vpack.c.b16 %v3598, %v3582
    %v4575 = vpack.c.b16 %v3599, %v3583
    %v4576 = vpack.c.b16 %v3600, %v3584
    %v4577 = vpack.c.b16 %v3601, %v3585
    %v4578 = vpack.c.b16 %v3602, %v3586
    %v4579 = vpack.c.b16 %v3603, %v3587
    %v4580 = vpack.c.b16 %v3604, %v3588
    %v4581 = vpack.c.b16 %v3605, %v3589
    %v4582 = vpack.c.b16 %v3606, %v3590
    %v4583 = vpack.c.b16 %v3623, %v3607
    %v4584 = vpack.c.b16 %v3624, %v3608
    %v4585 = vpack.c.b16 %v3625, %v3609
    %v4586 = vpack.c.b16 %v3626, %v3610
    %v4587 = vpack.c.b16 %v3627, %v3611
    %v4588 = vpack.c.b16 %v3628, %v3612
    %v4589 = vpack.c.b16 %v3629, %v3613
    %v4590 = vpack.c.b16 %v3630, %v3614
    %v4591 = vpack.c.b16 %v3631, %v3615
    %v4592 = vpack.c.b16 %v3632, %v3616
    %v4593 = vpack.c.b16 %v3633, %v3617
    %v4594 = vpack.c.b16 %v3634, %v3618
    %v4595 = vpack.c.b16 %v3635, %v3619
    %v4596 = vpack.c.b16 %v3636, %v3620
    %v4597 = vpack.c.b16 %v3637, %v3621
    %v4598 = vpack.c.b16 %v3638, %v3622
    %v4599 = vpack.c.b16 %v3655, %v3639
    %v4600 = vpack.c.b16 %v3656, %v3640
    %v4601 = vpack.c.b16 %v3657, %v3641
    %v4602 = vpack.c.b16 %v3658, %v3642
    %v4603 = vpack.c.b16 %v3659, %v3643
    %v4604 = vpack.c.b16 %v3660, %v3644
    %v4605 = vpack.c.b16 %v3661, %v3645
    %v4606 = vpack.c.b16 %v3662, %v3646
    %v4607 = vpack.c.b16 %v3663, %v3647
    %v4608 = vpack.c.b16 %v3664, %v3648
    %v4609 = vpack.c.b16 %v3665, %v3649
    %v4610 = vpack.c.b16 %v3666, %v3650
    %v4611 = vpack.c.b16 %v3667, %v3651
    %v4612 = vpack.c.b16 %v3668, %v3652
    %v4613 = vpack.c.b16 %v3669, %v3653
    %v4614 = vpack.c.b16 %v3670, %v3654
    %v4615 = vpack.c.b16 %v3687, %v3671
    %v4616 = vpack.c.b16 %v3688, %v3672
    %v4617 = vpack.c.b16 %v3689, %v3673
    %v4618 = vpack.c.b16 %v3690, %v3674
    %v4619 = vpack.c.b16 %v3691, %v3675
    %v4620 = vpack.c.b16 %v3692, %v3676
    %v4621 = vpack.c.b16 %v3693, %v3677
    %v4622 = vpack.c.b16 %v3694, %v3678
    %v4623 = vpack.c.b16 %v3695, %v3679
    %v4624 = vpack.c.b16 %v3696, %v3680
    %v4625 = vpack.c.b16 %v3697, %v3681
    %v4626 = vpack.c.b16 %v3698, %v3682
    %v4627 = vpack.c.b16 %v3699, %v3683
    %v4628 = vpack.c.b16 %v3700, %v3684
    %v4629 = vpack.c.b16 %v3701, %v3685
    %v4630 = vpack.c.b16 %v3702, %v3686
    %v4631 = vpack.c.b16 %v3719, %v3703
    %v4632 = vpack.c.b16 %v3720, %v3704
    %v4633 = vpack.c.b16 %v3721, %v3705
    %v4634 = vpack.c.b16 %v3722, %v3706
    %v4635 = vpack.c.b16 %v3723, %v3707
    %v4636 = vpack.c.b16 %v3724, %v3708
    %v4637 = vpack.c.b16 %v3725, %v3709
    %v4638 = vpack.c.b16 %v3726, %v3710
    %v4639 = vpack.c.b16 %v3727, %v3711
    %v4640 = vpack.c.b16 %v3728, %v3712
    %v4641 = vpack.c.b16 %v3729, %v3713
    %v4642 = vpack.c.b16 %v3730, %v3714
    %v4643 = vpack.c.b16 %v3731, %v3715
    %v4644 = vpack.c.b16 %v3732, %v3716
    %v4645 = vpack.c.b16 %v3733, %v3717
    %v4646 = vpack.c.b16 %v3734, %v3718
    %v4647 = vpack.c.b16 %v3751, %v3735
    %v4648 = vpack.c.b16 %v3752, %v3736
    %v4649 = vpack.c.b16 %v3753, %v3737
    %v4650 = vpack.c.b16 %v3754, %v3738
    %v4651 = vpack.c.b16 %v3755, %v3739
    %v4652 = vpack.c.b16 %v3756, %v3740
    %v4653 = vpack.c.b16 %v3757, %v3741
    %v4654 = vpack.c.b16 %v3758, %v3742
    %v4655 = vpack.c.b16 %v3759, %v3743
    %v4656 = vpack.c.b16 %v3760, %v3744
    %v4657 = vpack.c.b16 %v3761, %v3745
    %v4658 = vpack.c.b16 %v3762, %v3746
    %v4659 = vpack.c.b16 %v3763, %v3747
    %v4660 = vpack.c.b16 %v3764, %v3748
    %v4661 = vpack.c.b16 %v3765, %v3749
    %v4662 = vpack.c.b16 %v3766, %v3750
    %v4663 = vpack.c.b16 %v3783, %v3767
    %v4664 = vpack.c.b16 %v3784, %v3768
    %v4665 = vpack.c.b16 %v3785, %v3769
    %v4666 = vpack.c.b16 %v3786, %v3770
    %v4667 = vpack.c.b16 %v3787, %v3771
    %v4668 = vpack.c.b16 %v3788, %v3772
    %v4669 = vpack.c.b16 %v3789, %v3773
    %v4670 = vpack.c.b16 %v3790, %v3774
    %v4671 = vpack.c.b16 %v3791, %v3775
    %v4672 = vpack.c.b16 %v3792, %v3776
    %v4673 = vpack.c.b16 %v3793, %v3777
    %v4674 = vpack.c.b16 %v3794, %v3778
    %v4675 = vpack.c.b16 %v3795, %v3779
    %v4676 = vpack.c.b16 %v3796, %v3780
    %v4677 = vpack.c.b16 %v3797, %v3781
    %v4678 = vpack.c.b16 %v3798, %v3782
    %v4679 = vpack.c.b16 %v3815, %v3799
    %v4680 = vpack.c.b16 %v3816, %v3800
    %v4681 = vpack.c.b16 %v3817, %v3801
    %v4682 = vpack.c.b16 %v3818, %v3802
    %v4683 = vpack.c.b16 %v3819, %v3803
    %v4684 = vpack.c.b16 %v3820, %v3804
    %v4685 = vpack.c.b16 %v3821, %v3805
    %v4686 = vpack.c.b16 %v3822, %v3806
    %v4687 = vpack.c.b16 %v3823, %v3807
    %v4688 = vpack.c.b16 %v3824, %v3808
    %v4689 = vpack.c.b16 %v3825, %v3809
    %v4690 = vpack.c.b16 %v3826, %v3810
    %v4691 = vpack.c.b16 %v3827, %v3811
    %v4692 = vpack.c.b16 %v3828, %v3812
    %v4693 = vpack.c.b16 %v3829, %v3813
    %v4694 = vpack.c.b16 %v3830, %v3814
    %v4695 = vpack.c.b16 %v3847, %v3831
    %v4696 = vpack.c.b16 %v3848, %v3832
    %v4697 = vpack.c.b16 %v3849, %v3833
    %v4698 = vpack.c.b16 %v3850, %v3834
    %v4699 = vpack.c.b16 %v3851, %v3835
    %v4700 = vpack.c.b16 %v3852, %v3836
    %v4701 = vpack.c.b16 %v3853, %v3837
    %v4702 = vpack.c.b16 %v3854, %v3838
    %v4703 = vpack.c.b16 %v3855, %v3839
    %v4704 = vpack.c.b16 %v3856, %v3840
    %v4705 = vpack.c.b16 %v3857, %v3841
    %v4706 = vpack.c.b16 %v3858, %v3842
    %v4707 = vpack.c.b16 %v3859, %v3843
    %v4708 = vpack.c.b16 %v3860, %v3844
    %v4709 = vpack.c.b16 %v3861, %v3845
    %v4710 = vpack.c.b16 %v3862, %v3846
    %v4711 = vpack.c.b16 %v3879, %v3863
    %v4712 = vpack.c.b16 %v3880, %v3864
    %v4713 = vpack.c.b16 %v3881, %v3865
    %v4714 = vpack.c.b16 %v3882, %v3866
    %v4715 = vpack.c.b16 %v3883, %v3867
    %v4716 = vpack.c.b16 %v3884, %v3868
    %v4717 = vpack.c.b16 %v3885, %v3869
    %v4718 = vpack.c.b16 %v3886, %v3870
    %v4719 = vpack.c.b16 %v3887, %v3871
    %v4720 = vpack.c.b16 %v3888, %v3872
    %v4721 = vpack.c.b16 %v3889, %v3873
    %v4722 = vpack.c.b16 %v3890, %v3874
    %v4723 = vpack.c.b16 %v3891, %v3875
    %v4724 = vpack.c.b16 %v3892, %v3876
    %v4725 = vpack.c.b16 %v3893, %v3877
    %v4726 = vpack.c.b16 %v3894, %v3878
    %v4727 = vpack.c.b16 %v3911, %v3895
    %v4728 = vpack.c.b16 %v3912, %v3896
    %v4729 = vpack.c.b16 %v3913, %v3897
    %v4730 = vpack.c.b16 %v3914, %v3898
    %v4731 = vpack.c.b16 %v3915, %v3899
    %v4732 = vpack.c.b16 %v3916, %v3900
    %v4733 = vpack.c.b16 %v3917, %v3901
    %v4734 = vpack.c.b16 %v3918, %v3902
    %v4735 = vpack.c.b16 %v3919, %v3903
    %v4736 = vpack.c.b16 %v3920, %v3904
    %v4737 = vpack.c.b16 %v3921, %v3905
    %v4738 = vpack.c.b16 %v3922, %v3906
    %v4739 = vpack.c.b16 %v3923, %v3907
    %v4740 = vpack.c.b16 %v3924, %v3908
    %v4741 = vpack.c.b16 %v3925, %v3909
    %v4742 = vpack.c.b16 %v3926, %v3910
    %v4743 = vpack.c.b16 %v3943, %v3927
    %v4744 = vpack.c.b16 %v3944, %v3928
    %v4745 = vpack.c.b16 %v3945, %v3929
    %v4746 = vpack.c.b16 %v3946, %v3930
    %v4747 = vpack.c.b16 %v3947, %v3931
    %v4748 = vpack.c.b16 %v3948, %v3932
    %v4749 = vpack.c.b16 %v3949, %v3933
    %v4750 = vpack.c.b16 %v3950, %v3934
    %v4751 = vpack.c.b16 %v3951, %v3935
    %v4752 = vpack.c.b16 %v3952, %v3936
    %v4753 = vpack.c.b16 %v3953, %v3937
    %v4754 = vpack.c.b16 %v3954, %v3938
    %v4755 = vpack.c.b16 %v3955, %v3939
    %v4756 = vpack.c.b16 %v3956, %v3940
    %v4757 = vpack.c.b16 %v3957, %v3941
    %v4758 = vpack.c.b16 %v3958, %v3942
    %v4759 = vpack.c.b16 %v3975, %v3959
    %v4760 = vpack.c.b16 %v3976, %v3960
    %v4761 = vpack.c.b16 %v3977, %v3961
    %v4762 = vpack.c.b16 %v3978, %v3962
    %v4763 = vpack.c.b16 %v3979, %v3963
    %v4764 = vpack.c.b16 %v3980, %v3964
    %v4765 = vpack.c.b16 %v3981, %v3965
    %v4766 = vpack.c.b16 %v3982, %v3966
    %v4767 = vpack.c.b16 %v3983, %v3967
    %v4768 = vpack.c.b16 %v3984, %v3968
    %v4769 = vpack.c.b16 %v3985, %v3969
    %v4770 = vpack.c.b16 %v3986, %v3970
    %v4771 = vpack.c.b16 %v3987, %v3971
    %v4772 = vpack.c.b16 %v3988, %v3972
    %v4773 = vpack.c.b16 %v3989, %v3973
    %v4774 = vpack.c.b16 %v3990, %v3974
    %v4775 = vpack.c.b16 %v4007, %v3991
    %v4776 = vpack.c.b16 %v4008, %v3992
    %v4777 = vpack.c.b16 %v4009, %v3993
    %v4778 = vpack.c.b16 %v4010, %v3994
    %v4779 = vpack.c.b16 %v4011, %v3995
    %v4780 = vpack.c.b16 %v4012, %v3996
    %v4781 = vpack.c.b16 %v4013, %v3997
    %v4782 = vpack.c.b16 %v4014, %v3998
    %v4783 = vpack.c.b16 %v4015, %v3999
    %v4784 = vpack.c.b16 %v4016, %v4000
    %v4785 = vpack.c.b16 %v4017, %v4001
    %v4786 = vpack.c.b16 %v4018, %v4002
    %v4787 = vpack.c.b16 %v4019, %v4003
    %v4788 = vpack.c.b16 %v4020, %v4004
    %v4789 = vpack.c.b16 %v4021, %v4005
    %v4790 = vpack.c.b16 %v4022, %v4006
    %v4791 = vpack.c.b16 %v4039, %v4023
    %v4792 = vpack.c.b16 %v4040, %v4024
    %v4793 = vpack.c.b16 %v4041, %v4025
    %v4794 = vpack.c.b16 %v4042, %v4026
    %v4795 = vpack.c.b16 %v4043, %v4027
    %v4796 = vpack.c.b16 %v4044, %v4028
    %v4797 = vpack.c.b16 %v4045, %v4029
    %v4798 = vpack.c.b16 %v4046, %v4030
    %v4799 = vpack.c.b16 %v4047, %v4031
    %v4800 = vpack.c.b16 %v4048, %v4032
    %v4801 = vpack.c.b16 %v4049, %v4033
    %v4802 = vpack.c.b16 %v4050, %v4034
    %v4803 = vpack.c.b16 %v4051, %v4035
    %v4804 = vpack.c.b16 %v4052, %v4036
    %v4805 = vpack.c.b16 %v4053, %v4037
    %v4806 = vpack.c.b16 %v4054, %v4038
    %v4807 = vpack.c.b16 %v4071, %v4055
    %v4808 = vpack.c.b16 %v4072, %v4056
    %v4809 = vpack.c.b16 %v4073, %v4057
    %v4810 = vpack.c.b16 %v4074, %v4058
    %v4811 = vpack.c.b16 %v4075, %v4059
    %v4812 = vpack.c.b16 %v4076, %v4060
    %v4813 = vpack.c.b16 %v4077, %v4061
    %v4814 = vpack.c.b16 %v4078, %v4062
    %v4815 = vpack.c.b16 %v4079, %v4063
    %v4816 = vpack.c.b16 %v4080, %v4064
    %v4817 = vpack.c.b16 %v4081, %v4065
    %v4818 = vpack.c.b16 %v4082, %v4066
    %v4819 = vpack.c.b16 %v4083, %v4067
    %v4820 = vpack.c.b16 %v4084, %v4068
    %v4821 = vpack.c.b16 %v4085, %v4069
    %v4822 = vpack.c.b16 %v4086, %v4070
    %v4823 = vpack.c.b16 %v4103, %v4087
    %v4824 = vpack.c.b16 %v4104, %v4088
    %v4825 = vpack.c.b16 %v4105, %v4089
    %v4826 = vpack.c.b16 %v4106, %v4090
    %v4827 = vpack.c.b16 %v4107, %v4091
    %v4828 = vpack.c.b16 %v4108, %v4092
    %v4829 = vpack.c.b16 %v4109, %v4093
    %v4830 = vpack.c.b16 %v4110, %v4094
    %v4831 = vpack.c.b16 %v4111, %v4095
    %v4832 = vpack.c.b16 %v4112, %v4096
    %v4833 = vpack.c.b16 %v4113, %v4097
    %v4834 = vpack.c.b16 %v4114, %v4098
    %v4835 = vpack.c.b16 %v4115, %v4099
    %v4836 = vpack.c.b16 %v4116, %v4100
    %v4837 = vpack.c.b16 %v4117, %v4101
    %v4838 = vpack.c.b16 %v4118, %v4102
    %v4839 = vpack.c.b16 %v4135, %v4119
    %v4840 = vpack.c.b16 %v4136, %v4120
    %v4841 = vpack.c.b16 %v4137, %v4121
    %v4842 = vpack.c.b16 %v4138, %v4122
    %v4843 = vpack.c.b16 %v4139, %v4123
    %v4844 = vpack.c.b16 %v4140, %v4124
    %v4845 = vpack.c.b16 %v4141, %v4125
    %v4846 = vpack.c.b16 %v4142, %v4126
    %v4847 = vpack.c.b16 %v4143, %v4127
    %v4848 = vpack.c.b16 %v4144, %v4128
    %v4849 = vpack.c.b16 %v4145, %v4129
    %v4850 = vpack.c.b16 %v4146, %v4130
    %v4851 = vpack.c.b16 %v4147, %v4131
    %v4852 = vpack.c.b16 %v4148, %v4132
    %v4853 = vpack.c.b16 %v4149, %v4133
    %v4854 = vpack.c.b16 %v4150, %v4134
    %v4855 = vpack.c.b16 %v4167, %v4151
    %v4856 = vpack.c.b16 %v4168, %v4152
    %v4857 = vpack.c.b16 %v4169, %v4153
    %v4858 = vpack.c.b16 %v4170, %v4154
    %v4859 = vpack.c.b16 %v4171, %v4155
    %v4860 = vpack.c.b16 %v4172, %v4156
    %v4861 = vpack.c.b16 %v4173, %v4157
    %v4862 = vpack.c.b16 %v4174, %v4158
    %v4863 = vpack.c.b16 %v4175, %v4159
    %v4864 = vpack.c.b16 %v4176, %v4160
    %v4865 = vpack.c.b16 %v4177, %v4161
    %v4866 = vpack.c.b16 %v4178, %v4162
    %v4867 = vpack.c.b16 %v4179, %v4163
    %v4868 = vpack.c.b16 %v4180, %v4164
    %v4869 = vpack.c.b16 %v4181, %v4165
    %v4870 = vpack.c.b16 %v4182, %v4166
    %v4871 = vpack.c.b16 %v4199, %v4183
    %v4872 = vpack.c.b16 %v4200, %v4184
    %v4873 = vpack.c.b16 %v4201, %v4185
    %v4874 = vpack.c.b16 %v4202, %v4186
    %v4875 = vpack.c.b16 %v4203, %v4187
    %v4876 = vpack.c.b16 %v4204, %v4188
    %v4877 = vpack.c.b16 %v4205, %v4189
    %v4878 = vpack.c.b16 %v4206, %v4190
    %v4879 = vpack.c.b16 %v4207, %v4191
    %v4880 = vpack.c.b16 %v4208, %v4192
    %v4881 = vpack.c.b16 %v4209, %v4193
    %v4882 = vpack.c.b16 %v4210, %v4194
    %v4883 = vpack.c.b16 %v4211, %v4195
    %v4884 = vpack.c.b16 %v4212, %v4196
    %v4885 = vpack.c.b16 %v4213, %v4197
    %v4886 = vpack.c.b16 %v4214, %v4198
    %v4887 = vpack.c.b16 %v4231, %v4215
    %v4888 = vpack.c.b16 %v4232, %v4216
    %v4889 = vpack.c.b16 %v4233, %v4217
    %v4890 = vpack.c.b16 %v4234, %v4218
    %v4891 = vpack.c.b16 %v4235, %v4219
    %v4892 = vpack.c.b16 %v4236, %v4220
    %v4893 = vpack.c.b16 %v4237, %v4221
    %v4894 = vpack.c.b16 %v4238, %v4222
    %v4895 = vpack.c.b16 %v4239, %v4223
    %v4896 = vpack.c.b16 %v4240, %v4224
    %v4897 = vpack.c.b16 %v4241, %v4225
    %v4898 = vpack.c.b16 %v4242, %v4226
    %v4899 = vpack.c.b16 %v4243, %v4227
    %v4900 = vpack.c.b16 %v4244, %v4228
    %v4901 = vpack.c.b16 %v4245, %v4229
    %v4902 = vpack.c.b16 %v4246, %v4230
    %v4903 = vpack.c.b16 %v4263, %v4247
    %v4904 = vpack.c.b16 %v4264, %v4248
    %v4905 = vpack.c.b16 %v4265, %v4249
    %v4906 = vpack.c.b16 %v4266, %v4250
    %v4907 = vpack.c.b16 %v4267, %v4251
    %v4908 = vpack.c.b16 %v4268, %v4252
    %v4909 = vpack.c.b16 %v4269, %v4253
    %v4910 = vpack.c.b16 %v4270, %v4254
    %v4911 = vpack.c.b16 %v4271, %v4255
    %v4912 = vpack.c.b16 %v4272, %v4256
    %v4913 = vpack.c.b16 %v4273, %v4257
    %v4914 = vpack.c.b16 %v4274, %v4258
    %v4915 = vpack.c.b16 %v4275, %v4259
    %v4916 = vpack.c.b16 %v4276, %v4260
    %v4917 = vpack.c.b16 %v4277, %v4261
    %v4918 = vpack.c.b16 %v4278, %v4262
    %v4919 = vpack.c.b16 %v4295, %v4279
    %v4920 = vpack.c.b16 %v4296, %v4280
    %v4921 = vpack.c.b16 %v4297, %v4281
    %v4922 = vpack.c.b16 %v4298, %v4282
    %v4923 = vpack.c.b16 %v4299, %v4283
    %v4924 = vpack.c.b16 %v4300, %v4284
    %v4925 = vpack.c.b16 %v4301, %v4285
    %v4926 = vpack.c.b16 %v4302, %v4286
    %v4927 = vpack.c.b16 %v4303, %v4287
    %v4928 = vpack.c.b16 %v4304, %v4288
    %v4929 = vpack.c.b16 %v4305, %v4289
    %v4930 = vpack.c.b16 %v4306, %v4290
    %v4931 = vpack.c.b16 %v4307, %v4291
    %v4932 = vpack.c.b16 %v4308, %v4292
    %v4933 = vpack.c.b16 %v4309, %v4293
    %v4934 = vpack.c.b16 %v4310, %v4294
    %v4935 = vpack.c.b16 %v4327, %v4311
    %v4936 = vpack.c.b16 %v4328, %v4312
    %v4937 = vpack.c.b16 %v4329, %v4313
    %v4938 = vpack.c.b16 %v4330, %v4314
    %v4939 = vpack.c.b16 %v4331, %v4315
    %v4940 = vpack.c.b16 %v4332, %v4316
    %v4941 = vpack.c.b16 %v4333, %v4317
    %v4942 = vpack.c.b16 %v4334, %v4318
    %v4943 = vpack.c.b16 %v4335, %v4319
    %v4944 = vpack.c.b16 %v4336, %v4320
    %v4945 = vpack.c.b16 %v4337, %v4321
    %v4946 = vpack.c.b16 %v4338, %v4322
    %v4947 = vpack.c.b16 %v4339, %v4323
    %v4948 = vpack.c.b16 %v4340, %v4324
    %v4949 = vpack.c.b16 %v4341, %v4325
    %v4950 = vpack.c.b16 %v4342, %v4326
    %v4951 = vpack.c.b16 %v4359, %v4343
    %v4952 = vpack.c.b16 %v4360, %v4344
    %v4953 = vpack.c.b16 %v4361, %v4345
    %v4954 = vpack.c.b16 %v4362, %v4346
    %v4955 = vpack.c.b16 %v4363, %v4347
    %v4956 = vpack.c.b16 %v4364, %v4348
    %v4957 = vpack.c.b16 %v4365, %v4349
    %v4958 = vpack.c.b16 %v4366, %v4350
    %v4959 = vpack.c.b16 %v4367, %v4351
    %v4960 = vpack.c.b16 %v4368, %v4352
    %v4961 = vpack.c.b16 %v4369, %v4353
    %v4962 = vpack.c.b16 %v4370, %v4354
    %v4963 = vpack.c.b16 %v4371, %v4355
    %v4964 = vpack.c.b16 %v4372, %v4356
    %v4965 = vpack.c.b16 %v4373, %v4357
    %v4966 = vpack.c.b16 %v4374, %v4358
    %v4967 = vpack.c.b16 %v4391, %v4375
    %v4968 = vpack.c.b16 %v4392, %v4376
    %v4969 = vpack.c.b16 %v4393, %v4377
    %v4970 = vpack.c.b16 %v4394, %v4378
    %v4971 = vpack.c.b16 %v4395, %v4379
    %v4972 = vpack.c.b16 %v4396, %v4380
    %v4973 = vpack.c.b16 %v4397, %v4381
    %v4974 = vpack.c.b16 %v4398, %v4382
    %v4975 = vpack.c.b16 %v4399, %v4383
    %v4976 = vpack.c.b16 %v4400, %v4384
    %v4977 = vpack.c.b16 %v4401, %v4385
    %v4978 = vpack.c.b16 %v4402, %v4386
    %v4979 = vpack.c.b16 %v4403, %v4387
    %v4980 = vpack.c.b16 %v4404, %v4388
    %v4981 = vpack.c.b16 %v4405, %v4389
    %v4982 = vpack.c.b16 %v4406, %v4390
    %v4983 = vpack.c.b16 %v4423, %v4407
    %v4984 = vpack.c.b16 %v4424, %v4408
    %v4985 = vpack.c.b16 %v4425, %v4409
    %v4986 = vpack.c.b16 %v4426, %v4410
    %v4987 = vpack.c.b16 %v4427, %v4411
    %v4988 = vpack.c.b16 %v4428, %v4412
    %v4989 = vpack.c.b16 %v4429, %v4413
    %v4990 = vpack.c.b16 %v4430, %v4414
    %v4991 = vpack.c.b16 %v4431, %v4415
    %v4992 = vpack.c.b16 %v4432, %v4416
    %v4993 = vpack.c.b16 %v4433, %v4417
    %v4994 = vpack.c.b16 %v4434, %v4418
    %v4995 = vpack.c.b16 %v4435, %v4419
    %v4996 = vpack.c.b16 %v4436, %v4420
    %v4997 = vpack.c.b16 %v4437, %v4421
    %v4998 = vpack.c.b16 %v4438, %v4422
    %v4999 = vpack.c.b16 %v4455, %v4439
    %v5000 = vpack.c.b16 %v4456, %v4440
    %v5001 = vpack.c.b16 %v4457, %v4441
    %v5002 = vpack.c.b16 %v4458, %v4442
    %v5003 = vpack.c.b16 %v4459, %v4443
    %v5004 = vpack.c.b16 %v4460, %v4444
    %v5005 = vpack.c.b16 %v4461, %v4445
    %v5006 = vpack.c.b16 %v4462, %v4446
    %v5007 = vpack.c.b16 %v4463, %v4447
    %v5008 = vpack.c.b16 %v4464, %v4448
    %v5009 = vpack.c.b16 %v4465, %v4449
    %v5010 = vpack.c.b16 %v4466, %v4450
    %v5011 = vpack.c.b16 %v4467, %v4451
    %v5012 = vpack.c.b16 %v4468, %v4452
    %v5013 = vpack.c.b16 %v4469, %v4453
    %v5014 = vpack.c.b16 %v4470, %v4454
    %v5015 = vpack.c.b16 %v4487, %v4471
    %v5016 = vpack.c.b16 %v4488, %v4472
    %v5017 = vpack.c.b16 %v4489, %v4473
    %v5018 = vpack.c.b16 %v4490, %v4474
    %v5019 = vpack.c.b16 %v4491, %v4475
    %v5020 = vpack.c.b16 %v4492, %v4476
    %v5021 = vpack.c.b16 %v4493, %v4477
    %v5022 = vpack.c.b16 %v4494, %v4478
    %v5023 = vpack.c.b16 %v4495, %v4479
    %v5024 = vpack.c.b16 %v4496, %v4480
    %v5025 = vpack.c.b16 %v4497, %v4481
    %v5026 = vpack.c.b16 %v4498, %v4482
    %v5027 = vpack.c.b16 %v4499, %v4483
    %v5028 = vpack.c.b16 %v4500, %v4484
    %v5029 = vpack.c.b16 %v4501, %v4485
    %v5030 = vpack.c.b16 %v4502, %v4486
    %v5031 = vpack.c.b16 %v4519, %v4503
    %v5032 = vpack.c.b16 %v4520, %v4504
    %v5033 = vpack.c.b16 %v4521, %v4505
    %v5034 = vpack.c.b16 %v4522, %v4506
    %v5035 = vpack.c.b16 %v4523, %v4507
    %v5036 = vpack.c.b16 %v4524, %v4508
    %v5037 = vpack.c.b16 %v4525, %v4509
    %v5038 = vpack.c.b16 %v4526, %v4510
    %v5039 = vpack.c.b16 %v4527, %v4511
    %v5040 = vpack.c.b16 %v4528, %v4512
    %v5041 = vpack.c.b16 %v4529, %v4513
    %v5042 = vpack.c.b16 %v4530, %v4514
    %v5043 = vpack.c.b16 %v4531, %v4515
    %v5044 = vpack.c.b16 %v4532, %v4516
    %v5045 = vpack.c.b16 %v4533, %v4517
    %v5046 = vpack.c.b16 %v4534, %v4518
    %5559 = vmatprep.subr.bf16.mxu0 %v4536
    %5560 = vmatpush1.bf16.msra.mxu0 %v4535
    %5561 = vmatprep.subr.bf16.mxu0 %v4552
    %5562 = vmatpush1.bf16.msra.mxu0 %v4551
    %5563 = vmatprep.subr.bf16.mxu0 %v4568
    %5564 = vmatpush1.bf16.msra.mxu0 %v4567
    %5565 = vmatprep.subr.bf16.mxu0 %v4584
    %5566 = vmatpush1.bf16.msra.mxu0 %v4583
    %5567 = vmatprep.subr.bf16.mxu0 %v4600
    %5568 = vmatpush1.bf16.msra.mxu0 %v4599
    %5569 = vmatprep.subr.bf16.mxu0 %v4616
    %5570 = vmatpush1.bf16.msra.mxu0 %v4615
    %5571 = vmatprep.subr.bf16.mxu0 %v4632
    %5572 = vmatpush1.bf16.msra.mxu0 %v4631
    %5573 = vmatprep.subr.bf16.mxu0 %v4648
    %5574 = vmatpush1.bf16.msra.mxu0 %v4647
    %5575 = vmatprep.subr.bf16.mxu0 %v4664
    %5576 = vmatpush1.bf16.msra.mxu0 %v4663
    %5577 = vmatprep.subr.bf16.mxu0 %v4680
    %5578 = vmatpush1.bf16.msra.mxu0 %v4679
    %5579 = vmatprep.subr.bf16.mxu0 %v4696
    %5580 = vmatpush1.bf16.msra.mxu0 %v4695
    %5581 = vmatprep.subr.bf16.mxu0 %v4712
    %5582 = vmatpush1.bf16.msra.mxu0 %v4711
    %5583 = vmatprep.subr.bf16.mxu0 %v4728
    %5584 = vmatpush1.bf16.msra.mxu0 %v4727
    %5585 = vmatprep.subr.bf16.mxu0 %v4744
    %5586 = vmatpush1.bf16.msra.mxu0 %v4743
    %5587 = vmatprep.subr.bf16.mxu0 %v4760
    %5588 = vmatpush1.bf16.msra.mxu0 %v4759
    %5589 = vmatprep.subr.bf16.mxu0 %v4776
    %5590 = vmatpush1.bf16.msra.mxu0 %v4775
    %5591 = vmatprep.mubr.bf16.mxu0 %v2400
    %5592 = vmatmul.mubr.bf16.gmra.mrb[0].mxu0 %v2399
    %v5593 = vpop.f32.mrb[0].mxu0
    %v5594 = vadd.f32 %v2922, %v5593
    %v5595 = vpop.f32.mrb[0].mxu0
    %v5596 = vadd.f32 %v2926, %v5595
    %v5597 = vpop.f32.mrb[0].mxu0
    %v5598 = vpop.f32.mrb[0].mxu0
    %5599 = vdwg.mxu0
    %5600 = vmatprep.subr.bf16.mxu0 %v4792
    %5601 = vmatpush1.bf16.msra.mxu0 %v4791
    %5602 = vmatprep.subr.bf16.mxu0 %v4808
    %5603 = vmatpush1.bf16.msra.mxu0 %v4807
    %5604 = vmatprep.subr.bf16.mxu0 %v4824
    %5605 = vmatpush1.bf16.msra.mxu0 %v4823
    %5606 = vmatprep.subr.bf16.mxu0 %v4840
    %5607 = vmatpush1.bf16.msra.mxu0 %v4839
    %5608 = vmatprep.subr.bf16.mxu0 %v4856
    %5609 = vmatpush1.bf16.msra.mxu0 %v4855
    %5610 = vmatprep.subr.bf16.mxu0 %v4872
    %5611 = vmatpush1.bf16.msra.mxu0 %v4871
    %5612 = vmatprep.subr.bf16.mxu0 %v4888
    %5613 = vmatpush1.bf16.msra.mxu0 %v4887
    %5614 = vmatprep.subr.bf16.mxu0 %v4904
    %5615 = vmatpush1.bf16.msra.mxu0 %v4903
    %5616 = vmatprep.subr.bf16.mxu0 %v4920
    %5617 = vmatpush1.bf16.msra.mxu0 %v4919
    %5618 = vmatprep.subr.bf16.mxu0 %v4936
    %5619 = vmatpush1.bf16.msra.mxu0 %v4935
    %5620 = vmatprep.subr.bf16.mxu0 %v4952
    %5621 = vmatpush1.bf16.msra.mxu0 %v4951
    %5622 = vmatprep.subr.bf16.mxu0 %v4968
    %5623 = vmatpush1.bf16.msra.mxu0 %v4967
    %5624 = vmatprep.subr.bf16.mxu0 %v4984
    %5625 = vmatpush1.bf16.msra.mxu0 %v4983
    %5626 = vmatprep.subr.bf16.mxu0 %v5000
    %5627 = vmatpush1.bf16.msra.mxu0 %v4999
    %5628 = vmatprep.subr.bf16.mxu0 %v5016
    %5629 = vmatpush1.bf16.msra.mxu0 %v5015
    %5630 = vmatprep.subr.bf16.mxu0 %v5032
    %5631 = vmatpush1.bf16.msra.mxu0 %v5031
    %5632 = vmatprep.mubr.bf16.mxu0 %v2402
    %5633 = vmatmul.mubr.bf16.gmra.mrb[0].mxu0 %v2401
    %v5634 = vpop.f32.mrb[0].mxu0
    %v5635 = vadd.f32 %v5594, %v5634
    %v5636 = vpop.f32.mrb[0].mxu0
    %v5637 = vadd.f32 %v5596, %v5636
    %v5638 = vpop.f32.mrb[0].mxu0
    %v5639 = vpop.f32.mrb[0].mxu0
    %5640 = vdwg.mxu0
    %5641 = vmatprep.subr.bf16.mxu0 %v4538
    %5642 = vmatpush1.bf16.msra.mxu0 %v4537
    %5643 = vmatprep.subr.bf16.mxu0 %v4554
    %5644 = vmatpush1.bf16.msra.mxu0 %v4553
    %5645 = vmatprep.subr.bf16.mxu0 %v4570
    %5646 = vmatpush1.bf16.msra.mxu0 %v4569
    %5647 = vmatprep.subr.bf16.mxu0 %v4586
    %5648 = vmatpush1.bf16.msra.mxu0 %v4585
    %5649 = vmatprep.subr.bf16.mxu0 %v4602
    %5650 = vmatpush1.bf16.msra.mxu0 %v4601
    %5651 = vmatprep.subr.bf16.mxu0 %v4618
    %5652 = vmatpush1.bf16.msra.mxu0 %v4617
    %5653 = vmatprep.subr.bf16.mxu0 %v4634
    %5654 = vmatpush1.bf16.msra.mxu0 %v4633
    %5655 = vmatprep.subr.bf16.mxu0 %v4650
    %5656 = vmatpush1.bf16.msra.mxu0 %v4649
    %5657 = vmatprep.subr.bf16.mxu0 %v4666
    %5658 = vmatpush1.bf16.msra.mxu0 %v4665
    %5659 = vmatprep.subr.bf16.mxu0 %v4682
    %5660 = vmatpush1.bf16.msra.mxu0 %v4681
    %5661 = vmatprep.subr.bf16.mxu0 %v4698
    %5662 = vmatpush1.bf16.msra.mxu0 %v4697
    %5663 = vmatprep.subr.bf16.mxu0 %v4714
    %5664 = vmatpush1.bf16.msra.mxu0 %v4713
    %5665 = vmatprep.subr.bf16.mxu0 %v4730
    %5666 = vmatpush1.bf16.msra.mxu0 %v4729
    %5667 = vmatprep.subr.bf16.mxu0 %v4746
    %5668 = vmatpush1.bf16.msra.mxu0 %v4745
    %5669 = vmatprep.subr.bf16.mxu0 %v4762
    %5670 = vmatpush1.bf16.msra.mxu0 %v4761
    %5671 = vmatprep.subr.bf16.mxu0 %v4778
    %5672 = vmatpush1.bf16.msra.mxu0 %v4777
    %5673 = vmatprep.mubr.bf16.mxu0 %v2400
    %5674 = vmatmul.mubr.bf16.gmra.mrb[0].mxu0 %v2399
    %v5675 = vpop.f32.mrb[0].mxu0
    %v5676 = vadd.f32 %v2930, %v5675
    %v5677 = vpop.f32.mrb[0].mxu0
    %v5678 = vadd.f32 %v2934, %v5677
    %v5679 = vpop.f32.mrb[0].mxu0
    %v5680 = vpop.f32.mrb[0].mxu0
    %5681 = vdwg.mxu0
    %5682 = vmatprep.subr.bf16.mxu0 %v4794
    %5683 = vmatpush1.bf16.msra.mxu0 %v4793
    %5684 = vmatprep.subr.bf16.mxu0 %v4810
    %5685 = vmatpush1.bf16.msra.mxu0 %v4809
    %5686 = vmatprep.subr.bf16.mxu0 %v4826
    %5687 = vmatpush1.bf16.msra.mxu0 %v4825
    %5688 = vmatprep.subr.bf16.mxu0 %v4842
    %5689 = vmatpush1.bf16.msra.mxu0 %v4841
    %5690 = vmatprep.subr.bf16.mxu0 %v4858
    %5691 = vmatpush1.bf16.msra.mxu0 %v4857
    %5692 = vmatprep.subr.bf16.mxu0 %v4874
    %5693 = vmatpush1.bf16.msra.mxu0 %v4873
    %5694 = vmatprep.subr.bf16.mxu0 %v4890
    %5695 = vmatpush1.bf16.msra.mxu0 %v4889
    %5696 = vmatprep.subr.bf16.mxu0 %v4906
    %5697 = vmatpush1.bf16.msra.mxu0 %v4905
    %5698 = vmatprep.subr.bf16.mxu0 %v4922
    %5699 = vmatpush1.bf16.msra.mxu0 %v4921
    %5700 = vmatprep.subr.bf16.mxu0 %v4938
    %5701 = vmatpush1.bf16.msra.mxu0 %v4937
    %5702 = vmatprep.subr.bf16.mxu0 %v4954
    %5703 = vmatpush1.bf16.msra.mxu0 %v4953
    %5704 = vmatprep.subr.bf16.mxu0 %v4970
    %5705 = vmatpush1.bf16.msra.mxu0 %v4969
    %5706 = vmatprep.subr.bf16.mxu0 %v4986
    %5707 = vmatpush1.bf16.msra.mxu0 %v4985
    %5708 = vmatprep.subr.bf16.mxu0 %v5002
    %5709 = vmatpush1.bf16.msra.mxu0 %v5001
    %5710 = vmatprep.subr.bf16.mxu0 %v5018
    %5711 = vmatpush1.bf16.msra.mxu0 %v5017
    %5712 = vmatprep.subr.bf16.mxu0 %v5034
    %5713 = vmatpush1.bf16.msra.mxu0 %v5033
    %5714 = vmatprep.mubr.bf16.mxu0 %v2402
    %5715 = vmatmul.mubr.bf16.gmra.mrb[0].mxu0 %v2401
    %v5716 = vpop.f32.mrb[0].mxu0
    %v5717 = vadd.f32 %v5676, %v5716
    %v5718 = vpop.f32.mrb[0].mxu0
    %v5719 = vadd.f32 %v5678, %v5718
    %v5720 = vpop.f32.mrb[0].mxu0
    %v5721 = vpop.f32.mrb[0].mxu0
    %5722 = vdwg.mxu0
    %5723 = vmatprep.subr.bf16.mxu0 %v4540
    %5724 = vmatpush1.bf16.msra.mxu0 %v4539
    %5725 = vmatprep.subr.bf16.mxu0 %v4556
    %5726 = vmatpush1.bf16.msra.mxu0 %v4555
    %5727 = vmatprep.subr.bf16.mxu0 %v4572
    %5728 = vmatpush1.bf16.msra.mxu0 %v4571
    %5729 = vmatprep.subr.bf16.mxu0 %v4588
    %5730 = vmatpush1.bf16.msra.mxu0 %v4587
    %5731 = vmatprep.subr.bf16.mxu0 %v4604
    %5732 = vmatpush1.bf16.msra.mxu0 %v4603
    %5733 = vmatprep.subr.bf16.mxu0 %v4620
    %5734 = vmatpush1.bf16.msra.mxu0 %v4619
    %5735 = vmatprep.subr.bf16.mxu0 %v4636
    %5736 = vmatpush1.bf16.msra.mxu0 %v4635
    %5737 = vmatprep.subr.bf16.mxu0 %v4652
    %5738 = vmatpush1.bf16.msra.mxu0 %v4651
    %5739 = vmatprep.subr.bf16.mxu0 %v4668
    %5740 = vmatpush1.bf16.msra.mxu0 %v4667
    %5741 = vmatprep.subr.bf16.mxu0 %v4684
    %5742 = vmatpush1.bf16.msra.mxu0 %v4683
    %5743 = vmatprep.subr.bf16.mxu0 %v4700
    %5744 = vmatpush1.bf16.msra.mxu0 %v4699
    %5745 = vmatprep.subr.bf16.mxu0 %v4716
    %5746 = vmatpush1.bf16.msra.mxu0 %v4715
    %5747 = vmatprep.subr.bf16.mxu0 %v4732
    %5748 = vmatpush1.bf16.msra.mxu0 %v4731
    %5749 = vmatprep.subr.bf16.mxu0 %v4748
    %5750 = vmatpush1.bf16.msra.mxu0 %v4747
    %5751 = vmatprep.subr.bf16.mxu0 %v4764
    %5752 = vmatpush1.bf16.msra.mxu0 %v4763
    %5753 = vmatprep.subr.bf16.mxu0 %v4780
    %5754 = vmatpush1.bf16.msra.mxu0 %v4779
    %5755 = vmatprep.mubr.bf16.mxu0 %v2400
    %5756 = vmatmul.mubr.bf16.gmra.mrb[0].mxu0 %v2399
    %v5757 = vpop.f32.mrb[0].mxu0
    %v5758 = vadd.f32 %v2938, %v5757
    %v5759 = vpop.f32.mrb[0].mxu0
    %v5760 = vadd.f32 %v2942, %v5759
    %v5761 = vpop.f32.mrb[0].mxu0
    %v5762 = vpop.f32.mrb[0].mxu0
    %5763 = vdwg.mxu0
    %5764 = vmatprep.subr.bf16.mxu0 %v4796
    %5765 = vmatpush1.bf16.msra.mxu0 %v4795
    %5766 = vmatprep.subr.bf16.mxu0 %v4812
    %5767 = vmatpush1.bf16.msra.mxu0 %v4811
    %5768 = vmatprep.subr.bf16.mxu0 %v4828
    %5769 = vmatpush1.bf16.msra.mxu0 %v4827
    %5770 = vmatprep.subr.bf16.mxu0 %v4844
    %5771 = vmatpush1.bf16.msra.mxu0 %v4843
    %5772 = vmatprep.subr.bf16.mxu0 %v4860
    %5773 = vmatpush1.bf16.msra.mxu0 %v4859
    %5774 = vmatprep.subr.bf16.mxu0 %v4876
    %5775 = vmatpush1.bf16.msra.mxu0 %v4875
    %5776 = vmatprep.subr.bf16.mxu0 %v4892
    %5777 = vmatpush1.bf16.msra.mxu0 %v4891
    %5778 = vmatprep.subr.bf16.mxu0 %v4908
    %5779 = vmatpush1.bf16.msra.mxu0 %v4907
    %5780 = vmatprep.subr.bf16.mxu0 %v4924
    %5781 = vmatpush1.bf16.msra.mxu0 %v4923
    %5782 = vmatprep.subr.bf16.mxu0 %v4940
    %5783 = vmatpush1.bf16.msra.mxu0 %v4939
    %5784 = vmatprep.subr.bf16.mxu0 %v4956
    %5785 = vmatpush1.bf16.msra.mxu0 %v4955
    %5786 = vmatprep.subr.bf16.mxu0 %v4972
    %5787 = vmatpush1.bf16.msra.mxu0 %v4971
    %5788 = vmatprep.subr.bf16.mxu0 %v4988
    %5789 = vmatpush1.bf16.msra.mxu0 %v4987
    %5790 = vmatprep.subr.bf16.mxu0 %v5004
    %5791 = vmatpush1.bf16.msra.mxu0 %v5003
    %5792 = vmatprep.subr.bf16.mxu0 %v5020
    %5793 = vmatpush1.bf16.msra.mxu0 %v5019
    %5794 = vmatprep.subr.bf16.mxu0 %v5036
    %5795 = vmatpush1.bf16.msra.mxu0 %v5035
    %5796 = vmatprep.mubr.bf16.mxu0 %v2402
    %5797 = vmatmul.mubr.bf16.gmra.mrb[0].mxu0 %v2401
    %v5798 = vpop.f32.mrb[0].mxu0
    %v5799 = vadd.f32 %v5758, %v5798
    %v5800 = vpop.f32.mrb[0].mxu0
    %v5801 = vadd.f32 %v5760, %v5800
    %v5802 = vpop.f32.mrb[0].mxu0
    %v5803 = vpop.f32.mrb[0].mxu0
    %5804 = vdwg.mxu0
    %5805 = vmatprep.subr.bf16.mxu0 %v4542
    %5806 = vmatpush1.bf16.msra.mxu0 %v4541
    %5807 = vmatprep.subr.bf16.mxu0 %v4558
    %5808 = vmatpush1.bf16.msra.mxu0 %v4557
    %5809 = vmatprep.subr.bf16.mxu0 %v4574
    %5810 = vmatpush1.bf16.msra.mxu0 %v4573
    %5811 = vmatprep.subr.bf16.mxu0 %v4590
    %5812 = vmatpush1.bf16.msra.mxu0 %v4589
    %5813 = vmatprep.subr.bf16.mxu0 %v4606
    %5814 = vmatpush1.bf16.msra.mxu0 %v4605
    %5815 = vmatprep.subr.bf16.mxu0 %v4622
    %5816 = vmatpush1.bf16.msra.mxu0 %v4621
    %5817 = vmatprep.subr.bf16.mxu0 %v4638
    %5818 = vmatpush1.bf16.msra.mxu0 %v4637
    %5819 = vmatprep.subr.bf16.mxu0 %v4654
    %5820 = vmatpush1.bf16.msra.mxu0 %v4653
    %5821 = vmatprep.subr.bf16.mxu0 %v4670
    %5822 = vmatpush1.bf16.msra.mxu0 %v4669
    %5823 = vmatprep.subr.bf16.mxu0 %v4686
    %5824 = vmatpush1.bf16.msra.mxu0 %v4685
    %5825 = vmatprep.subr.bf16.mxu0 %v4702
    %5826 = vmatpush1.bf16.msra.mxu0 %v4701
    %5827 = vmatprep.subr.bf16.mxu0 %v4718
    %5828 = vmatpush1.bf16.msra.mxu0 %v4717
    %5829 = vmatprep.subr.bf16.mxu0 %v4734
    %5830 = vmatpush1.bf16.msra.mxu0 %v4733
    %5831 = vmatprep.subr.bf16.mxu0 %v4750
    %5832 = vmatpush1.bf16.msra.mxu0 %v4749
    %5833 = vmatprep.subr.bf16.mxu0 %v4766
    %5834 = vmatpush1.bf16.msra.mxu0 %v4765
    %5835 = vmatprep.subr.bf16.mxu0 %v4782
    %5836 = vmatpush1.bf16.msra.mxu0 %v4781
    %5837 = vmatprep.mubr.bf16.mxu0 %v2400
    %5838 = vmatmul.mubr.bf16.gmra.mrb[0].mxu0 %v2399
    %v5839 = vpop.f32.mrb[0].mxu0
    %v5840 = vadd.f32 %v2946, %v5839
    %v5841 = vpop.f32.mrb[0].mxu0
    %v5842 = vadd.f32 %v2950, %v5841
    %v5843 = vpop.f32.mrb[0].mxu0
    %v5844 = vpop.f32.mrb[0].mxu0
    %5845 = vdwg.mxu0
    %5846 = vmatprep.subr.bf16.mxu0 %v4798
    %5847 = vmatpush1.bf16.msra.mxu0 %v4797
    %5848 = vmatprep.subr.bf16.mxu0 %v4814
    %5849 = vmatpush1.bf16.msra.mxu0 %v4813
    %5850 = vmatprep.subr.bf16.mxu0 %v4830
    %5851 = vmatpush1.bf16.msra.mxu0 %v4829
    %5852 = vmatprep.subr.bf16.mxu0 %v4846
    %5853 = vmatpush1.bf16.msra.mxu0 %v4845
    %5854 = vmatprep.subr.bf16.mxu0 %v4862
    %5855 = vmatpush1.bf16.msra.mxu0 %v4861
    %5856 = vmatprep.subr.bf16.mxu0 %v4878
    %5857 = vmatpush1.bf16.msra.mxu0 %v4877
    %5858 = vmatprep.subr.bf16.mxu0 %v4894
    %5859 = vmatpush1.bf16.msra.mxu0 %v4893
    %5860 = vmatprep.subr.bf16.mxu0 %v4910
    %5861 = vmatpush1.bf16.msra.mxu0 %v4909
    %5862 = vmatprep.subr.bf16.mxu0 %v4926
    %5863 = vmatpush1.bf16.msra.mxu0 %v4925
    %5864 = vmatprep.subr.bf16.mxu0 %v4942
    %5865 = vmatpush1.bf16.msra.mxu0 %v4941
    %5866 = vmatprep.subr.bf16.mxu0 %v4958
    %5867 = vmatpush1.bf16.msra.mxu0 %v4957
    %5868 = vmatprep.subr.bf16.mxu0 %v4974
    %5869 = vmatpush1.bf16.msra.mxu0 %v4973
    %5870 = vmatprep.subr.bf16.mxu0 %v4990
    %5871 = vmatpush1.bf16.msra.mxu0 %v4989
    %5872 = vmatprep.subr.bf16.mxu0 %v5006
    %5873 = vmatpush1.bf16.msra.mxu0 %v5005
    %5874 = vmatprep.subr.bf16.mxu0 %v5022
    %5875 = vmatpush1.bf16.msra.mxu0 %v5021
    %5876 = vmatprep.subr.bf16.mxu0 %v5038
    %5877 = vmatpush1.bf16.msra.mxu0 %v5037
    %5878 = vmatprep.mubr.bf16.mxu0 %v2402
    %5879 = vmatmul.mubr.bf16.gmra.mrb[0].mxu0 %v2401
    %v5880 = vpop.f32.mrb[0].mxu0
    %v5881 = vadd.f32 %v5840, %v5880
    %v5882 = vpop.f32.mrb[0].mxu0
    %v5883 = vadd.f32 %v5842, %v5882
    %v5884 = vpop.f32.mrb[0].mxu0
    %v5885 = vpop.f32.mrb[0].mxu0
    %5886 = vdwg.mxu0
    %5887 = vmatprep.subr.bf16.mxu0 %v4544
    %5888 = vmatpush1.bf16.msra.mxu0 %v4543
    %5889 = vmatprep.subr.bf16.mxu0 %v4560
    %5890 = vmatpush1.bf16.msra.mxu0 %v4559
    %5891 = vmatprep.subr.bf16.mxu0 %v4576
    %5892 = vmatpush1.bf16.msra.mxu0 %v4575
    %5893 = vmatprep.subr.bf16.mxu0 %v4592
    %5894 = vmatpush1.bf16.msra.mxu0 %v4591
    %5895 = vmatprep.subr.bf16.mxu0 %v4608
    %5896 = vmatpush1.bf16.msra.mxu0 %v4607
    %5897 = vmatprep.subr.bf16.mxu0 %v4624
    %5898 = vmatpush1.bf16.msra.mxu0 %v4623
    %5899 = vmatprep.subr.bf16.mxu0 %v4640
    %5900 = vmatpush1.bf16.msra.mxu0 %v4639
    %5901 = vmatprep.subr.bf16.mxu0 %v4656
    %5902 = vmatpush1.bf16.msra.mxu0 %v4655
    %5903 = vmatprep.subr.bf16.mxu0 %v4672
    %5904 = vmatpush1.bf16.msra.mxu0 %v4671
    %5905 = vmatprep.subr.bf16.mxu0 %v4688
    %5906 = vmatpush1.bf16.msra.mxu0 %v4687
    %5907 = vmatprep.subr.bf16.mxu0 %v4704
    %5908 = vmatpush1.bf16.msra.mxu0 %v4703
    %5909 = vmatprep.subr.bf16.mxu0 %v4720
    %5910 = vmatpush1.bf16.msra.mxu0 %v4719
    %5911 = vmatprep.subr.bf16.mxu0 %v4736
    %5912 = vmatpush1.bf16.msra.mxu0 %v4735
    %5913 = vmatprep.subr.bf16.mxu0 %v4752
    %5914 = vmatpush1.bf16.msra.mxu0 %v4751
    %5915 = vmatprep.subr.bf16.mxu0 %v4768
    %5916 = vmatpush1.bf16.msra.mxu0 %v4767
    %5917 = vmatprep.subr.bf16.mxu0 %v4784
    %5918 = vmatpush1.bf16.msra.mxu0 %v4783
    %5919 = vmatprep.mubr.bf16.mxu0 %v2400
    %5920 = vmatmul.mubr.bf16.gmra.mrb[0].mxu0 %v2399
    %v5921 = vpop.f32.mrb[0].mxu0
    %v5922 = vadd.f32 %v2954, %v5921
    %v5923 = vpop.f32.mrb[0].mxu0
    %v5924 = vadd.f32 %v2958, %v5923
    %v5925 = vpop.f32.mrb[0].mxu0
    %v5926 = vpop.f32.mrb[0].mxu0
    %5927 = vdwg.mxu0
    %5928 = vmatprep.subr.bf16.mxu0 %v4800
    %5929 = vmatpush1.bf16.msra.mxu0 %v4799
    %5930 = vmatprep.subr.bf16.mxu0 %v4816
    %5931 = vmatpush1.bf16.msra.mxu0 %v4815
    %5932 = vmatprep.subr.bf16.mxu0 %v4832
    %5933 = vmatpush1.bf16.msra.mxu0 %v4831
    %5934 = vmatprep.subr.bf16.mxu0 %v4848
    %5935 = vmatpush1.bf16.msra.mxu0 %v4847
    %5936 = vmatprep.subr.bf16.mxu0 %v4864
    %5937 = vmatpush1.bf16.msra.mxu0 %v4863
    %5938 = vmatprep.subr.bf16.mxu0 %v4880
    %5939 = vmatpush1.bf16.msra.mxu0 %v4879
    %5940 = vmatprep.subr.bf16.mxu0 %v4896
    %5941 = vmatpush1.bf16.msra.mxu0 %v4895
    %5942 = vmatprep.subr.bf16.mxu0 %v4912
    %5943 = vmatpush1.bf16.msra.mxu0 %v4911
    %5944 = vmatprep.subr.bf16.mxu0 %v4928
    %5945 = vmatpush1.bf16.msra.mxu0 %v4927
    %5946 = vmatprep.subr.bf16.mxu0 %v4944
    %5947 = vmatpush1.bf16.msra.mxu0 %v4943
    %5948 = vmatprep.subr.bf16.mxu0 %v4960
    %5949 = vmatpush1.bf16.msra.mxu0 %v4959
    %5950 = vmatprep.subr.bf16.mxu0 %v4976
    %5951 = vmatpush1.bf16.msra.mxu0 %v4975
    %5952 = vmatprep.subr.bf16.mxu0 %v4992
    %5953 = vmatpush1.bf16.msra.mxu0 %v4991
    %5954 = vmatprep.subr.bf16.mxu0 %v5008
    %5955 = vmatpush1.bf16.msra.mxu0 %v5007
    %5956 = vmatprep.subr.bf16.mxu0 %v5024
    %5957 = vmatpush1.bf16.msra.mxu0 %v5023
    %5958 = vmatprep.subr.bf16.mxu0 %v5040
    %5959 = vmatpush1.bf16.msra.mxu0 %v5039
    %5960 = vmatprep.mubr.bf16.mxu0 %v2402
    %5961 = vmatmul.mubr.bf16.gmra.mrb[0].mxu0 %v2401
    %v5962 = vpop.f32.mrb[0].mxu0
    %v5963 = vadd.f32 %v5922, %v5962
    %v5964 = vpop.f32.mrb[0].mxu0
    %v5965 = vadd.f32 %v5924, %v5964
    %v5966 = vpop.f32.mrb[0].mxu0
    %v5967 = vpop.f32.mrb[0].mxu0
    %5968 = vdwg.mxu0
    %5969 = vmatprep.subr.bf16.mxu0 %v4546
    %5970 = vmatpush1.bf16.msra.mxu0 %v4545
    %5971 = vmatprep.subr.bf16.mxu0 %v4562
    %5972 = vmatpush1.bf16.msra.mxu0 %v4561
    %5973 = vmatprep.subr.bf16.mxu0 %v4578
    %5974 = vmatpush1.bf16.msra.mxu0 %v4577
    %5975 = vmatprep.subr.bf16.mxu0 %v4594
    %5976 = vmatpush1.bf16.msra.mxu0 %v4593
    %5977 = vmatprep.subr.bf16.mxu0 %v4610
    %5978 = vmatpush1.bf16.msra.mxu0 %v4609
    %5979 = vmatprep.subr.bf16.mxu0 %v4626
    %5980 = vmatpush1.bf16.msra.mxu0 %v4625
    %5981 = vmatprep.subr.bf16.mxu0 %v4642
    %5982 = vmatpush1.bf16.msra.mxu0 %v4641
    %5983 = vmatprep.subr.bf16.mxu0 %v4658
    %5984 = vmatpush1.bf16.msra.mxu0 %v4657
    %5985 = vmatprep.subr.bf16.mxu0 %v4674
    %5986 = vmatpush1.bf16.msra.mxu0 %v4673
    %5987 = vmatprep.subr.bf16.mxu0 %v4690
    %5988 = vmatpush1.bf16.msra.mxu0 %v4689
    %5989 = vmatprep.subr.bf16.mxu0 %v4706
    %5990 = vmatpush1.bf16.msra.mxu0 %v4705
    %5991 = vmatprep.subr.bf16.mxu0 %v4722
    %5992 = vmatpush1.bf16.msra.mxu0 %v4721
    %5993 = vmatprep.subr.bf16.mxu0 %v4738
    %5994 = vmatpush1.bf16.msra.mxu0 %v4737
    %5995 = vmatprep.subr.bf16.mxu0 %v4754
    %5996 = vmatpush1.bf16.msra.mxu0 %v4753
    %5997 = vmatprep.subr.bf16.mxu0 %v4770
    %5998 = vmatpush1.bf16.msra.mxu0 %v4769
    %5999 = vmatprep.subr.bf16.mxu0 %v4786
    %6000 = vmatpush1.bf16.msra.mxu0 %v4785
    %6001 = vmatprep.mubr.bf16.mxu0 %v2400
    %6002 = vmatmul.mubr.bf16.gmra.mrb[0].mxu0 %v2399
    %v6003 = vpop.f32.mrb[0].mxu0
    %v6004 = vadd.f32 %v2962, %v6003
    %v6005 = vpop.f32.mrb[0].mxu0
    %v6006 = vadd.f32 %v2966, %v6005
    %v6007 = vpop.f32.mrb[0].mxu0
    %v6008 = vpop.f32.mrb[0].mxu0
    %6009 = vdwg.mxu0
    %6010 = vmatprep.subr.bf16.mxu0 %v4802
    %6011 = vmatpush1.bf16.msra.mxu0 %v4801
    %6012 = vmatprep.subr.bf16.mxu0 %v4818
    %6013 = vmatpush1.bf16.msra.mxu0 %v4817
    %6014 = vmatprep.subr.bf16.mxu0 %v4834
    %6015 = vmatpush1.bf16.msra.mxu0 %v4833
    %6016 = vmatprep.subr.bf16.mxu0 %v4850
    %6017 = vmatpush1.bf16.msra.mxu0 %v4849
    %6018 = vmatprep.subr.bf16.mxu0 %v4866
    %6019 = vmatpush1.bf16.msra.mxu0 %v4865
    %6020 = vmatprep.subr.bf16.mxu0 %v4882
    %6021 = vmatpush1.bf16.msra.mxu0 %v4881
    %6022 = vmatprep.subr.bf16.mxu0 %v4898
    %6023 = vmatpush1.bf16.msra.mxu0 %v4897
    %6024 = vmatprep.subr.bf16.mxu0 %v4914
    %6025 = vmatpush1.bf16.msra.mxu0 %v4913
    %6026 = vmatprep.subr.bf16.mxu0 %v4930
    %6027 = vmatpush1.bf16.msra.mxu0 %v4929
    %6028 = vmatprep.subr.bf16.mxu0 %v4946
    %6029 = vmatpush1.bf16.msra.mxu0 %v4945
    %6030 = vmatprep.subr.bf16.mxu0 %v4962
    %6031 = vmatpush1.bf16.msra.mxu0 %v4961
    %6032 = vmatprep.subr.bf16.mxu0 %v4978
    %6033 = vmatpush1.bf16.msra.mxu0 %v4977
    %6034 = vmatprep.subr.bf16.mxu0 %v4994
    %6035 = vmatpush1.bf16.msra.mxu0 %v4993
    %6036 = vmatprep.subr.bf16.mxu0 %v5010
    %6037 = vmatpush1.bf16.msra.mxu0 %v5009
    %6038 = vmatprep.subr.bf16.mxu0 %v5026
    %6039 = vmatpush1.bf16.msra.mxu0 %v5025
    %6040 = vmatprep.subr.bf16.mxu0 %v5042
    %6041 = vmatpush1.bf16.msra.mxu0 %v5041
    %6042 = vmatprep.mubr.bf16.mxu0 %v2402
    %6043 = vmatmul.mubr.bf16.gmra.mrb[0].mxu0 %v2401
    %v6044 = vpop.f32.mrb[0].mxu0
    %v6045 = vadd.f32 %v6004, %v6044
    %v6046 = vpop.f32.mrb[0].mxu0
    %v6047 = vadd.f32 %v6006, %v6046
    %v6048 = vpop.f32.mrb[0].mxu0
    %v6049 = vpop.f32.mrb[0].mxu0
    %6050 = vdwg.mxu0
    %6051 = vmatprep.subr.bf16.mxu0 %v4548
    %6052 = vmatpush1.bf16.msra.mxu0 %v4547
    %6053 = vmatprep.subr.bf16.mxu0 %v4564
    %6054 = vmatpush1.bf16.msra.mxu0 %v4563
    %6055 = vmatprep.subr.bf16.mxu0 %v4580
    %6056 = vmatpush1.bf16.msra.mxu0 %v4579
    %6057 = vmatprep.subr.bf16.mxu0 %v4596
    %6058 = vmatpush1.bf16.msra.mxu0 %v4595
    %6059 = vmatprep.subr.bf16.mxu0 %v4612
    %6060 = vmatpush1.bf16.msra.mxu0 %v4611
    %6061 = vmatprep.subr.bf16.mxu0 %v4628
    %6062 = vmatpush1.bf16.msra.mxu0 %v4627
    %6063 = vmatprep.subr.bf16.mxu0 %v4644
    %6064 = vmatpush1.bf16.msra.mxu0 %v4643
    %6065 = vmatprep.subr.bf16.mxu0 %v4660
    %6066 = vmatpush1.bf16.msra.mxu0 %v4659
    %6067 = vmatprep.subr.bf16.mxu0 %v4676
    %6068 = vmatpush1.bf16.msra.mxu0 %v4675
    %6069 = vmatprep.subr.bf16.mxu0 %v4692
    %6070 = vmatpush1.bf16.msra.mxu0 %v4691
    %6071 = vmatprep.subr.bf16.mxu0 %v4708
    %6072 = vmatpush1.bf16.msra.mxu0 %v4707
    %6073 = vmatprep.subr.bf16.mxu0 %v4724
    %6074 = vmatpush1.bf16.msra.mxu0 %v4723
    %6075 = vmatprep.subr.bf16.mxu0 %v4740
    %6076 = vmatpush1.bf16.msra.mxu0 %v4739
    %6077 = vmatprep.subr.bf16.mxu0 %v4756
    %6078 = vmatpush1.bf16.msra.mxu0 %v4755
    %6079 = vmatprep.subr.bf16.mxu0 %v4772
    %6080 = vmatpush1.bf16.msra.mxu0 %v4771
    %6081 = vmatprep.subr.bf16.mxu0 %v4788
    %6082 = vmatpush1.bf16.msra.mxu0 %v4787
    %6083 = vmatprep.mubr.bf16.mxu0 %v2400
    %6084 = vmatmul.mubr.bf16.gmra.mrb[0].mxu0 %v2399
    %v6085 = vpop.f32.mrb[0].mxu0
    %v6086 = vadd.f32 %v2970, %v6085
    %v6087 = vpop.f32.mrb[0].mxu0
    %v6088 = vadd.f32 %v2974, %v6087
    %v6089 = vpop.f32.mrb[0].mxu0
    %v6090 = vpop.f32.mrb[0].mxu0
    %6091 = vdwg.mxu0
    %6092 = vmatprep.subr.bf16.mxu0 %v4804
    %6093 = vmatpush1.bf16.msra.mxu0 %v4803
    %6094 = vmatprep.subr.bf16.mxu0 %v4820
    %6095 = vmatpush1.bf16.msra.mxu0 %v4819
    %6096 = vmatprep.subr.bf16.mxu0 %v4836
    %6097 = vmatpush1.bf16.msra.mxu0 %v4835
    %6098 = vmatprep.subr.bf16.mxu0 %v4852
    %6099 = vmatpush1.bf16.msra.mxu0 %v4851
    %6100 = vmatprep.subr.bf16.mxu0 %v4868
    %6101 = vmatpush1.bf16.msra.mxu0 %v4867
    %6102 = vmatprep.subr.bf16.mxu0 %v4884
    %6103 = vmatpush1.bf16.msra.mxu0 %v4883
    %6104 = vmatprep.subr.bf16.mxu0 %v4900
    %6105 = vmatpush1.bf16.msra.mxu0 %v4899
    %6106 = vmatprep.subr.bf16.mxu0 %v4916
    %6107 = vmatpush1.bf16.msra.mxu0 %v4915
    %6108 = vmatprep.subr.bf16.mxu0 %v4932
    %6109 = vmatpush1.bf16.msra.mxu0 %v4931
    %6110 = vmatprep.subr.bf16.mxu0 %v4948
    %6111 = vmatpush1.bf16.msra.mxu0 %v4947
    %6112 = vmatprep.subr.bf16.mxu0 %v4964
    %6113 = vmatpush1.bf16.msra.mxu0 %v4963
    %6114 = vmatprep.subr.bf16.mxu0 %v4980
    %6115 = vmatpush1.bf16.msra.mxu0 %v4979
    %6116 = vmatprep.subr.bf16.mxu0 %v4996
    %6117 = vmatpush1.bf16.msra.mxu0 %v4995
    %6118 = vmatprep.subr.bf16.mxu0 %v5012
    %6119 = vmatpush1.bf16.msra.mxu0 %v5011
    %6120 = vmatprep.subr.bf16.mxu0 %v5028
    %6121 = vmatpush1.bf16.msra.mxu0 %v5027
    %6122 = vmatprep.subr.bf16.mxu0 %v5044
    %6123 = vmatpush1.bf16.msra.mxu0 %v5043
    %6124 = vmatprep.mubr.bf16.mxu0 %v2402
    %6125 = vmatmul.mubr.bf16.gmra.mrb[0].mxu0 %v2401
    %v6126 = vpop.f32.mrb[0].mxu0
    %v6127 = vadd.f32 %v6086, %v6126
    %v6128 = vpop.f32.mrb[0].mxu0
    %v6129 = vadd.f32 %v6088, %v6128
    %v6130 = vpop.f32.mrb[0].mxu0
    %v6131 = vpop.f32.mrb[0].mxu0
    %6132 = vdwg.mxu0
    %6133 = vmatprep.subr.bf16.mxu0 %v4550
    %6134 = vmatpush1.bf16.msra.mxu0 %v4549
    %6135 = vmatprep.subr.bf16.mxu0 %v4566
    %6136 = vmatpush1.bf16.msra.mxu0 %v4565
    %6137 = vmatprep.subr.bf16.mxu0 %v4582
    %6138 = vmatpush1.bf16.msra.mxu0 %v4581
    %6139 = vmatprep.subr.bf16.mxu0 %v4598
    %6140 = vmatpush1.bf16.msra.mxu0 %v4597
    %6141 = vmatprep.subr.bf16.mxu0 %v4614
    %6142 = vmatpush1.bf16.msra.mxu0 %v4613
    %6143 = vmatprep.subr.bf16.mxu0 %v4630
    %6144 = vmatpush1.bf16.msra.mxu0 %v4629
    %6145 = vmatprep.subr.bf16.mxu0 %v4646
    %6146 = vmatpush1.bf16.msra.mxu0 %v4645
    %6147 = vmatprep.subr.bf16.mxu0 %v4662
    %6148 = vmatpush1.bf16.msra.mxu0 %v4661
    %6149 = vmatprep.subr.bf16.mxu0 %v4678
    %6150 = vmatpush1.bf16.msra.mxu0 %v4677
    %6151 = vmatprep.subr.bf16.mxu0 %v4694
    %6152 = vmatpush1.bf16.msra.mxu0 %v4693
    %6153 = vmatprep.subr.bf16.mxu0 %v4710
    %6154 = vmatpush1.bf16.msra.mxu0 %v4709
    %6155 = vmatprep.subr.bf16.mxu0 %v4726
    %6156 = vmatpush1.bf16.msra.mxu0 %v4725
    %6157 = vmatprep.subr.bf16.mxu0 %v4742
    %6158 = vmatpush1.bf16.msra.mxu0 %v4741
    %6159 = vmatprep.subr.bf16.mxu0 %v4758
    %6160 = vmatpush1.bf16.msra.mxu0 %v4757
    %6161 = vmatprep.subr.bf16.mxu0 %v4774
    %6162 = vmatpush1.bf16.msra.mxu0 %v4773
    %6163 = vmatprep.subr.bf16.mxu0 %v4790
    %6164 = vmatpush1.bf16.msra.mxu0 %v4789
    %6165 = vmatprep.mubr.bf16.mxu0 %v2400
    %6166 = vmatmul.mubr.bf16.gmra.mrb[0].mxu0 %v2399
    %v6167 = vpop.f32.mrb[0].mxu0
    %v6168 = vadd.f32 %v2978, %v6167
    %v6169 = vpop.f32.mrb[0].mxu0
    %v6170 = vadd.f32 %v2982, %v6169
    %v6171 = vpop.f32.mrb[0].mxu0
    %v6172 = vpop.f32.mrb[0].mxu0
    %6173 = vdwg.mxu0
    %6174 = vmatprep.subr.bf16.mxu0 %v4806
    %6175 = vmatpush1.bf16.msra.mxu0 %v4805
    %6176 = vmatprep.subr.bf16.mxu0 %v4822
    %6177 = vmatpush1.bf16.msra.mxu0 %v4821
    %6178 = vmatprep.subr.bf16.mxu0 %v4838
    %6179 = vmatpush1.bf16.msra.mxu0 %v4837
    %6180 = vmatprep.subr.bf16.mxu0 %v4854
    %6181 = vmatpush1.bf16.msra.mxu0 %v4853
    %6182 = vmatprep.subr.bf16.mxu0 %v4870
    %6183 = vmatpush1.bf16.msra.mxu0 %v4869
    %6184 = vmatprep.subr.bf16.mxu0 %v4886
    %6185 = vmatpush1.bf16.msra.mxu0 %v4885
    %6186 = vmatprep.subr.bf16.mxu0 %v4902
    %6187 = vmatpush1.bf16.msra.mxu0 %v4901
    %6188 = vmatprep.subr.bf16.mxu0 %v4918
    %6189 = vmatpush1.bf16.msra.mxu0 %v4917
    %6190 = vmatprep.subr.bf16.mxu0 %v4934
    %6191 = vmatpush1.bf16.msra.mxu0 %v4933
    %6192 = vmatprep.subr.bf16.mxu0 %v4950
    %6193 = vmatpush1.bf16.msra.mxu0 %v4949
    %6194 = vmatprep.subr.bf16.mxu0 %v4966
    %6195 = vmatpush1.bf16.msra.mxu0 %v4965
    %6196 = vmatprep.subr.bf16.mxu0 %v4982
    %6197 = vmatpush1.bf16.msra.mxu0 %v4981
    %6198 = vmatprep.subr.bf16.mxu0 %v4998
    %6199 = vmatpush1.bf16.msra.mxu0 %v4997
    %6200 = vmatprep.subr.bf16.mxu0 %v5014
    %6201 = vmatpush1.bf16.msra.mxu0 %v5013
    %6202 = vmatprep.subr.bf16.mxu0 %v5030
    %6203 = vmatpush1.bf16.msra.mxu0 %v5029
    %6204 = vmatprep.subr.bf16.mxu0 %v5046
    %6205 = vmatpush1.bf16.msra.mxu0 %v5045
    %6206 = vmatprep.mubr.bf16.mxu0 %v2402
    %6207 = vmatmul.mubr.bf16.gmra.mrb[0].mxu0 %v2401
    %v6208 = vpop.f32.mrb[0].mxu0
    %v6209 = vadd.f32 %v6168, %v6208
    %v6210 = vpop.f32.mrb[0].mxu0
    %v6211 = vadd.f32 %v6170, %v6210
    %v6212 = vpop.f32.mrb[0].mxu0
    %v6213 = vpop.f32.mrb[0].mxu0
    %6214 = vdwg.mxu0
    %v6215 = vmax.f32 %v5635, 0.0
    %v6216 = vmax.f32 %v5637, 0.0
    %v6217 = vmax.f32 %v5717, 0.0
    %v6218 = vmax.f32 %v5719, 0.0
    %v6219 = vmax.f32 %v5799, 0.0
    %v6220 = vmax.f32 %v5801, 0.0
    %v6221 = vmax.f32 %v5881, 0.0
    %v6222 = vmax.f32 %v5883, 0.0
    %v6223 = vmax.f32 %v5963, 0.0
    %v6224 = vmax.f32 %v5965, 0.0
    %v6225 = vmax.f32 %v6045, 0.0
    %v6226 = vmax.f32 %v6047, 0.0
    %v6227 = vmax.f32 %v6127, 0.0
    %v6228 = vmax.f32 %v6129, 0.0
    %v6229 = vmax.f32 %v6209, 0.0
    %v6230 = vmax.f32 %v6211, 0.0
    %v6231 = vpack.c.bf16 %v6215, %v6215
    %v6232 = vpack.c.bf16 %v6216, %v6216
    %v6233 = vpack.c.bf16 %v6217, %v6217
    %v6234 = vpack.c.bf16 %v6218, %v6218
    %v6235 = vpack.c.bf16 %v6219, %v6219
    %v6236 = vpack.c.bf16 %v6220, %v6220
    %v6237 = vpack.c.bf16 %v6221, %v6221
    %v6238 = vpack.c.bf16 %v6222, %v6222
    %v6239 = vpack.c.bf16 %v6223, %v6223
    %v6240 = vpack.c.bf16 %v6224, %v6224
    %v6241 = vpack.c.bf16 %v6225, %v6225
    %v6242 = vpack.c.bf16 %v6226, %v6226
    %v6243 = vpack.c.bf16 %v6227, %v6227
    %v6244 = vpack.c.bf16 %v6228, %v6228
    %v6245 = vpack.c.bf16 %v6229, %v6229
    %v6246 = vpack.c.bf16 %v6230, %v6230
    %v6247 = vld [vmem:[#allocation21] sm:$0xf]
    %v6248 = vld [vmem:[#allocation21 + $0x4] sm:$0xf]
    %v6249 = vld [vmem:[#allocation21 + $0x8] sm:$0xf]
    %v6250 = vld [vmem:[#allocation21 + $0xc] sm:$0xf]
    %v6251 = vld [vmem:[#allocation21 + $0x10] sm:$0xf]
    %v6252 = vld [vmem:[#allocation21 + $0x14] sm:$0xf]
    %v6253 = vld [vmem:[#allocation21 + $0x18] sm:$0xf]
    %v6254 = vld [vmem:[#allocation21 + $0x1c] sm:$0xf]
    %v6255 = vld [vmem:[#allocation21 + $0x20] sm:$0xf]
    %v6256 = vld [vmem:[#allocation21 + $0x24] sm:$0xf]
    %v6257 = vld [vmem:[#allocation21 + $0x28] sm:$0xf]
    %v6258 = vld [vmem:[#allocation21 + $0x2c] sm:$0xf]
    %v6259 = vld [vmem:[#allocation21 + $0x30] sm:$0xf]
    %v6260 = vld [vmem:[#allocation21 + $0x34] sm:$0xf]
    %v6261 = vld [vmem:[#allocation21 + $0x38] sm:$0xf]
    %v6262 = vld [vmem:[#allocation21 + $0x3c] sm:$0xf]
    %v6263 = vld [vmem:[#allocation21 + $0x40] sm:$0xf]
    %v6264 = vld [vmem:[#allocation21 + $0x44] sm:$0xf]
    %v6265 = vld [vmem:[#allocation21 + $0x48] sm:$0xf]
    %v6266 = vld [vmem:[#allocation21 + $0x4c] sm:$0xf]
    %v6267 = vld [vmem:[#allocation21 + $0x50] sm:$0xf]
    %v6268 = vld [vmem:[#allocation21 + $0x54] sm:$0xf]
    %v6269 = vld [vmem:[#allocation21 + $0x58] sm:$0xf]
    %v6270 = vld [vmem:[#allocation21 + $0x5c] sm:$0xf]
    %v6271 = vld [vmem:[#allocation21 + $0x60] sm:$0xf]
    %v6272 = vld [vmem:[#allocation21 + $0x64] sm:$0xf]
    %v6273 = vld [vmem:[#allocation21 + $0x68] sm:$0xf]
    %v6274 = vld [vmem:[#allocation21 + $0x6c] sm:$0xf]
    %v6275 = vld [vmem:[#allocation21 + $0x70] sm:$0xf]
    %v6276 = vld [vmem:[#allocation21 + $0x74] sm:$0xf]
    %v6277 = vld [vmem:[#allocation21 + $0x78] sm:$0xf]
    %v6278 = vld [vmem:[#allocation21 + $0x7c] sm:$0xf]
    %v6279 = vld [vmem:[#allocation21 + $0x80] sm:$0xf]
    %v6280 = vld [vmem:[#allocation21 + $0x84] sm:$0xf]
    %v6281 = vld [vmem:[#allocation21 + $0x88] sm:$0xf]
    %v6282 = vld [vmem:[#allocation21 + $0x8c] sm:$0xf]
    %v6283 = vld [vmem:[#allocation21 + $0x90] sm:$0xf]
    %v6284 = vld [vmem:[#allocation21 + $0x94] sm:$0xf]
    %v6285 = vld [vmem:[#allocation21 + $0x98] sm:$0xf]
    %v6286 = vld [vmem:[#allocation21 + $0x9c] sm:$0xf]
    %v6287 = vld [vmem:[#allocation21 + $0xa0] sm:$0xf]
    %v6288 = vld [vmem:[#allocation21 + $0xa4] sm:$0xf]
    %v6289 = vld [vmem:[#allocation21 + $0xa8] sm:$0xf]
    %v6290 = vld [vmem:[#allocation21 + $0xac] sm:$0xf]
    %v6291 = vld [vmem:[#allocation21 + $0xb0] sm:$0xf]
    %v6292 = vld [vmem:[#allocation21 + $0xb4] sm:$0xf]
    %v6293 = vld [vmem:[#allocation21 + $0xb8] sm:$0xf]
    %v6294 = vld [vmem:[#allocation21 + $0xbc] sm:$0xf]
    %v6295 = vld [vmem:[#allocation21 + $0xc0] sm:$0xf]
    %v6296 = vld [vmem:[#allocation21 + $0xc4] sm:$0xf]
    %v6297 = vld [vmem:[#allocation21 + $0xc8] sm:$0xf]
    %v6298 = vld [vmem:[#allocation21 + $0xcc] sm:$0xf]
    %v6299 = vld [vmem:[#allocation21 + $0xd0] sm:$0xf]
    %v6300 = vld [vmem:[#allocation21 + $0xd4] sm:$0xf]
    %v6301 = vld [vmem:[#allocation21 + $0xd8] sm:$0xf]
    %v6302 = vld [vmem:[#allocation21 + $0xdc] sm:$0xf]
    %v6303 = vld [vmem:[#allocation21 + $0xe0] sm:$0xf]
    %v6304 = vld [vmem:[#allocation21 + $0xe4] sm:$0xf]
    %v6305 = vld [vmem:[#allocation21 + $0xe8] sm:$0xf]
    %v6306 = vld [vmem:[#allocation21 + $0xec] sm:$0xf]
    %v6307 = vld [vmem:[#allocation21 + $0xf0] sm:$0xf]
    %v6308 = vld [vmem:[#allocation21 + $0xf4] sm:$0xf]
    %v6309 = vld [vmem:[#allocation21 + $0xf8] sm:$0xf]
    %v6310 = vld [vmem:[#allocation21 + $0xfc] sm:$0xf]
    %v6311 = vld [vmem:[#allocation21 + $0x100] sm:$0xf]
    %v6312 = vld [vmem:[#allocation21 + $0x104] sm:$0xf]
    %v6313 = vld [vmem:[#allocation21 + $0x108] sm:$0xf]
    %v6314 = vld [vmem:[#allocation21 + $0x10c] sm:$0xf]
    %v6315 = vld [vmem:[#allocation21 + $0x110] sm:$0xf]
    %v6316 = vld [vmem:[#allocation21 + $0x114] sm:$0xf]
    %v6317 = vld [vmem:[#allocation21 + $0x118] sm:$0xf]
    %v6318 = vld [vmem:[#allocation21 + $0x11c] sm:$0xf]
    %v6319 = vld [vmem:[#allocation21 + $0x120] sm:$0xf]
    %v6320 = vld [vmem:[#allocation21 + $0x124] sm:$0xf]
    %v6321 = vld [vmem:[#allocation21 + $0x128] sm:$0xf]
    %v6322 = vld [vmem:[#allocation21 + $0x12c] sm:$0xf]
    %v6323 = vld [vmem:[#allocation21 + $0x130] sm:$0xf]
    %v6324 = vld [vmem:[#allocation21 + $0x134] sm:$0xf]
    %v6325 = vld [vmem:[#allocation21 + $0x138] sm:$0xf]
    %v6326 = vld [vmem:[#allocation21 + $0x13c] sm:$0xf]
    %v6327 = vld [vmem:[#allocation21 + $0x140] sm:$0xf]
    %v6328 = vld [vmem:[#allocation21 + $0x144] sm:$0xf]
    %v6329 = vld [vmem:[#allocation21 + $0x148] sm:$0xf]
    %v6330 = vld [vmem:[#allocation21 + $0x14c] sm:$0xf]
    %v6331 = vld [vmem:[#allocation21 + $0x150] sm:$0xf]
    %v6332 = vld [vmem:[#allocation21 + $0x154] sm:$0xf]
    %v6333 = vld [vmem:[#allocation21 + $0x158] sm:$0xf]
    %v6334 = vld [vmem:[#allocation21 + $0x15c] sm:$0xf]
    %v6335 = vld [vmem:[#allocation21 + $0x160] sm:$0xf]
    %v6336 = vld [vmem:[#allocation21 + $0x164] sm:$0xf]
    %v6337 = vld [vmem:[#allocation21 + $0x168] sm:$0xf]
    %v6338 = vld [vmem:[#allocation21 + $0x16c] sm:$0xf]
    %v6339 = vld [vmem:[#allocation21 + $0x170] sm:$0xf]
    %v6340 = vld [vmem:[#allocation21 + $0x174] sm:$0xf]
    %v6341 = vld [vmem:[#allocation21 + $0x178] sm:$0xf]
    %v6342 = vld [vmem:[#allocation21 + $0x17c] sm:$0xf]
    %v6343 = vld [vmem:[#allocation21 + $0x180] sm:$0xf]
    %v6344 = vld [vmem:[#allocation21 + $0x184] sm:$0xf]
    %v6345 = vld [vmem:[#allocation21 + $0x188] sm:$0xf]
    %v6346 = vld [vmem:[#allocation21 + $0x18c] sm:$0xf]
    %v6347 = vld [vmem:[#allocation21 + $0x190] sm:$0xf]
    %v6348 = vld [vmem:[#allocation21 + $0x194] sm:$0xf]
    %v6349 = vld [vmem:[#allocation21 + $0x198] sm:$0xf]
    %v6350 = vld [vmem:[#allocation21 + $0x19c] sm:$0xf]
    %v6351 = vld [vmem:[#allocation21 + $0x1a0] sm:$0xf]
    %v6352 = vld [vmem:[#allocation21 + $0x1a4] sm:$0xf]
    %v6353 = vld [vmem:[#allocation21 + $0x1a8] sm:$0xf]
    %v6354 = vld [vmem:[#allocation21 + $0x1ac] sm:$0xf]
    %v6355 = vld [vmem:[#allocation21 + $0x1b0] sm:$0xf]
    %v6356 = vld [vmem:[#allocation21 + $0x1b4] sm:$0xf]
    %v6357 = vld [vmem:[#allocation21 + $0x1b8] sm:$0xf]
    %v6358 = vld [vmem:[#allocation21 + $0x1bc] sm:$0xf]
    %v6359 = vld [vmem:[#allocation21 + $0x1c0] sm:$0xf]
    %v6360 = vld [vmem:[#allocation21 + $0x1c4] sm:$0xf]
    %v6361 = vld [vmem:[#allocation21 + $0x1c8] sm:$0xf]
    %v6362 = vld [vmem:[#allocation21 + $0x1cc] sm:$0xf]
    %v6363 = vld [vmem:[#allocation21 + $0x1d0] sm:$0xf]
    %v6364 = vld [vmem:[#allocation21 + $0x1d4] sm:$0xf]
    %v6365 = vld [vmem:[#allocation21 + $0x1d8] sm:$0xf]
    %v6366 = vld [vmem:[#allocation21 + $0x1dc] sm:$0xf]
    %v6367 = vld [vmem:[#allocation21 + $0x1e0] sm:$0xf]
    %v6368 = vld [vmem:[#allocation21 + $0x1e4] sm:$0xf]
    %v6369 = vld [vmem:[#allocation21 + $0x1e8] sm:$0xf]
    %v6370 = vld [vmem:[#allocation21 + $0x1ec] sm:$0xf]
    %v6371 = vld [vmem:[#allocation21 + $0x1f0] sm:$0xf]
    %v6372 = vld [vmem:[#allocation21 + $0x1f4] sm:$0xf]
    %v6373 = vld [vmem:[#allocation21 + $0x1f8] sm:$0xf]
    %v6374 = vld [vmem:[#allocation21 + $0x1fc] sm:$0xf]
    %v6375 = vld [vmem:[#allocation21 + $0x200] sm:$0xf]
    %v6376 = vld [vmem:[#allocation21 + $0x204] sm:$0xf]
    %v6377 = vld [vmem:[#allocation21 + $0x208] sm:$0xf]
    %v6378 = vld [vmem:[#allocation21 + $0x20c] sm:$0xf]
    %v6379 = vld [vmem:[#allocation21 + $0x210] sm:$0xf]
    %v6380 = vld [vmem:[#allocation21 + $0x214] sm:$0xf]
    %v6381 = vld [vmem:[#allocation21 + $0x218] sm:$0xf]
    %v6382 = vld [vmem:[#allocation21 + $0x21c] sm:$0xf]
    %v6383 = vld [vmem:[#allocation21 + $0x220] sm:$0xf]
    %v6384 = vld [vmem:[#allocation21 + $0x224] sm:$0xf]
    %v6385 = vld [vmem:[#allocation21 + $0x228] sm:$0xf]
    %v6386 = vld [vmem:[#allocation21 + $0x22c] sm:$0xf]
    %v6387 = vld [vmem:[#allocation21 + $0x230] sm:$0xf]
    %v6388 = vld [vmem:[#allocation21 + $0x234] sm:$0xf]
    %v6389 = vld [vmem:[#allocation21 + $0x238] sm:$0xf]
    %v6390 = vld [vmem:[#allocation21 + $0x23c] sm:$0xf]
    %v6391 = vld [vmem:[#allocation21 + $0x240] sm:$0xf]
    %v6392 = vld [vmem:[#allocation21 + $0x244] sm:$0xf]
    %v6393 = vld [vmem:[#allocation21 + $0x248] sm:$0xf]
    %v6394 = vld [vmem:[#allocation21 + $0x24c] sm:$0xf]
    %v6395 = vld [vmem:[#allocation21 + $0x250] sm:$0xf]
    %v6396 = vld [vmem:[#allocation21 + $0x254] sm:$0xf]
    %v6397 = vld [vmem:[#allocation21 + $0x258] sm:$0xf]
    %v6398 = vld [vmem:[#allocation21 + $0x25c] sm:$0xf]
    %v6399 = vld [vmem:[#allocation21 + $0x260] sm:$0xf]
    %v6400 = vld [vmem:[#allocation21 + $0x264] sm:$0xf]
    %v6401 = vld [vmem:[#allocation21 + $0x268] sm:$0xf]
    %v6402 = vld [vmem:[#allocation21 + $0x26c] sm:$0xf]
    %v6403 = vld [vmem:[#allocation21 + $0x270] sm:$0xf]
    %v6404 = vld [vmem:[#allocation21 + $0x274] sm:$0xf]
    %v6405 = vld [vmem:[#allocation21 + $0x278] sm:$0xf]
    %v6406 = vld [vmem:[#allocation21 + $0x27c] sm:$0xf]
    %v6407 = vld [vmem:[#allocation21 + $0x280] sm:$0xf]
    %v6408 = vld [vmem:[#allocation21 + $0x284] sm:$0xf]
    %v6409 = vld [vmem:[#allocation21 + $0x288] sm:$0xf]
    %v6410 = vld [vmem:[#allocation21 + $0x28c] sm:$0xf]
    %v6411 = vld [vmem:[#allocation21 + $0x290] sm:$0xf]
    %v6412 = vld [vmem:[#allocation21 + $0x294] sm:$0xf]
    %v6413 = vld [vmem:[#allocation21 + $0x298] sm:$0xf]
    %v6414 = vld [vmem:[#allocation21 + $0x29c] sm:$0xf]
    %v6415 = vld [vmem:[#allocation21 + $0x2a0] sm:$0xf]
    %v6416 = vld [vmem:[#allocation21 + $0x2a4] sm:$0xf]
    %v6417 = vld [vmem:[#allocation21 + $0x2a8] sm:$0xf]
    %v6418 = vld [vmem:[#allocation21 + $0x2ac] sm:$0xf]
    %v6419 = vld [vmem:[#allocation21 + $0x2b0] sm:$0xf]
    %v6420 = vld [vmem:[#allocation21 + $0x2b4] sm:$0xf]
    %v6421 = vld [vmem:[#allocation21 + $0x2b8] sm:$0xf]
    %v6422 = vld [vmem:[#allocation21 + $0x2bc] sm:$0xf]
    %v6423 = vld [vmem:[#allocation21 + $0x2c0] sm:$0xf]
    %v6424 = vld [vmem:[#allocation21 + $0x2c4] sm:$0xf]
    %v6425 = vld [vmem:[#allocation21 + $0x2c8] sm:$0xf]
    %v6426 = vld [vmem:[#allocation21 + $0x2cc] sm:$0xf]
    %v6427 = vld [vmem:[#allocation21 + $0x2d0] sm:$0xf]
    %v6428 = vld [vmem:[#allocation21 + $0x2d4] sm:$0xf]
    %v6429 = vld [vmem:[#allocation21 + $0x2d8] sm:$0xf]
    %v6430 = vld [vmem:[#allocation21 + $0x2dc] sm:$0xf]
    %v6431 = vld [vmem:[#allocation21 + $0x2e0] sm:$0xf]
    %v6432 = vld [vmem:[#allocation21 + $0x2e4] sm:$0xf]
    %v6433 = vld [vmem:[#allocation21 + $0x2e8] sm:$0xf]
    %v6434 = vld [vmem:[#allocation21 + $0x2ec] sm:$0xf]
    %v6435 = vld [vmem:[#allocation21 + $0x2f0] sm:$0xf]
    %v6436 = vld [vmem:[#allocation21 + $0x2f4] sm:$0xf]
    %v6437 = vld [vmem:[#allocation21 + $0x2f8] sm:$0xf]
    %v6438 = vld [vmem:[#allocation21 + $0x2fc] sm:$0xf]
    %v6439 = vld [vmem:[#allocation21 + $0x300] sm:$0xf]
    %v6440 = vld [vmem:[#allocation21 + $0x304] sm:$0xf]
    %v6441 = vld [vmem:[#allocation21 + $0x308] sm:$0xf]
    %v6442 = vld [vmem:[#allocation21 + $0x30c] sm:$0xf]
    %v6443 = vld [vmem:[#allocation21 + $0x310] sm:$0xf]
    %v6444 = vld [vmem:[#allocation21 + $0x314] sm:$0xf]
    %v6445 = vld [vmem:[#allocation21 + $0x318] sm:$0xf]
    %v6446 = vld [vmem:[#allocation21 + $0x31c] sm:$0xf]
    %v6447 = vld [vmem:[#allocation21 + $0x320] sm:$0xf]
    %v6448 = vld [vmem:[#allocation21 + $0x324] sm:$0xf]
    %v6449 = vld [vmem:[#allocation21 + $0x328] sm:$0xf]
    %v6450 = vld [vmem:[#allocation21 + $0x32c] sm:$0xf]
    %v6451 = vld [vmem:[#allocation21 + $0x330] sm:$0xf]
    %v6452 = vld [vmem:[#allocation21 + $0x334] sm:$0xf]
    %v6453 = vld [vmem:[#allocation21 + $0x338] sm:$0xf]
    %v6454 = vld [vmem:[#allocation21 + $0x33c] sm:$0xf]
    %v6455 = vld [vmem:[#allocation21 + $0x340] sm:$0xf]
    %v6456 = vld [vmem:[#allocation21 + $0x344] sm:$0xf]
    %v6457 = vld [vmem:[#allocation21 + $0x348] sm:$0xf]
    %v6458 = vld [vmem:[#allocation21 + $0x34c] sm:$0xf]
    %v6459 = vld [vmem:[#allocation21 + $0x350] sm:$0xf]
    %v6460 = vld [vmem:[#allocation21 + $0x354] sm:$0xf]
    %v6461 = vld [vmem:[#allocation21 + $0x358] sm:$0xf]
    %v6462 = vld [vmem:[#allocation21 + $0x35c] sm:$0xf]
    %v6463 = vld [vmem:[#allocation21 + $0x360] sm:$0xf]
    %v6464 = vld [vmem:[#allocation21 + $0x364] sm:$0xf]
    %v6465 = vld [vmem:[#allocation21 + $0x368] sm:$0xf]
    %v6466 = vld [vmem:[#allocation21 + $0x36c] sm:$0xf]
    %v6467 = vld [vmem:[#allocation21 + $0x370] sm:$0xf]
    %v6468 = vld [vmem:[#allocation21 + $0x374] sm:$0xf]
    %v6469 = vld [vmem:[#allocation21 + $0x378] sm:$0xf]
    %v6470 = vld [vmem:[#allocation21 + $0x37c] sm:$0xf]
    %v6471 = vld [vmem:[#allocation21 + $0x380] sm:$0xf]
    %v6472 = vld [vmem:[#allocation21 + $0x384] sm:$0xf]
    %v6473 = vld [vmem:[#allocation21 + $0x388] sm:$0xf]
    %v6474 = vld [vmem:[#allocation21 + $0x38c] sm:$0xf]
    %v6475 = vld [vmem:[#allocation21 + $0x390] sm:$0xf]
    %v6476 = vld [vmem:[#allocation21 + $0x394] sm:$0xf]
    %v6477 = vld [vmem:[#allocation21 + $0x398] sm:$0xf]
    %v6478 = vld [vmem:[#allocation21 + $0x39c] sm:$0xf]
    %v6479 = vld [vmem:[#allocation21 + $0x3a0] sm:$0xf]
    %v6480 = vld [vmem:[#allocation21 + $0x3a4] sm:$0xf]
    %v6481 = vld [vmem:[#allocation21 + $0x3a8] sm:$0xf]
    %v6482 = vld [vmem:[#allocation21 + $0x3ac] sm:$0xf]
    %v6483 = vld [vmem:[#allocation21 + $0x3b0] sm:$0xf]
    %v6484 = vld [vmem:[#allocation21 + $0x3b4] sm:$0xf]
    %v6485 = vld [vmem:[#allocation21 + $0x3b8] sm:$0xf]
    %v6486 = vld [vmem:[#allocation21 + $0x3bc] sm:$0xf]
    %v6487 = vld [vmem:[#allocation21 + $0x3c0] sm:$0xf]
    %v6488 = vld [vmem:[#allocation21 + $0x3c4] sm:$0xf]
    %v6489 = vld [vmem:[#allocation21 + $0x3c8] sm:$0xf]
    %v6490 = vld [vmem:[#allocation21 + $0x3cc] sm:$0xf]
    %v6491 = vld [vmem:[#allocation21 + $0x3d0] sm:$0xf]
    %v6492 = vld [vmem:[#allocation21 + $0x3d4] sm:$0xf]
    %v6493 = vld [vmem:[#allocation21 + $0x3d8] sm:$0xf]
    %v6494 = vld [vmem:[#allocation21 + $0x3dc] sm:$0xf]
    %v6495 = vld [vmem:[#allocation21 + $0x3e0] sm:$0xf]
    %v6496 = vld [vmem:[#allocation21 + $0x3e4] sm:$0xf]
    %v6497 = vld [vmem:[#allocation21 + $0x3e8] sm:$0xf]
    %v6498 = vld [vmem:[#allocation21 + $0x3ec] sm:$0xf]
    %v6499 = vld [vmem:[#allocation21 + $0x3f0] sm:$0xf]
    %v6500 = vld [vmem:[#allocation21 + $0x3f4] sm:$0xf]
    %v6501 = vld [vmem:[#allocation21 + $0x3f8] sm:$0xf]
    %v6502 = vld [vmem:[#allocation21 + $0x3fc] sm:$0xf]
    %v6503 = vld [vmem:[#allocation22] sm:$0x1]
    %v6505 = vlaneseq
    %v6506 = vshrl.u32 %v6505, 7
    %v6507 = vsub.s32 0, %v6506
    %v6508 = vrot.slane %v6503, %v6507
    %v6766 = vunpack.c.l.b16 %v6247
    %v6767 = vunpack.c.l.b16 %v6248
    %v6768 = vunpack.c.l.b16 %v6249
    %v6769 = vunpack.c.l.b16 %v6250
    %v6770 = vunpack.c.l.b16 %v6251
    %v6771 = vunpack.c.l.b16 %v6252
    %v6772 = vunpack.c.l.b16 %v6253
    %v6773 = vunpack.c.l.b16 %v6254
    %v6774 = vunpack.c.l.b16 %v6255
    %v6775 = vunpack.c.l.b16 %v6256
    %v6776 = vunpack.c.l.b16 %v6257
    %v6777 = vunpack.c.l.b16 %v6258
    %v6778 = vunpack.c.l.b16 %v6259
    %v6779 = vunpack.c.l.b16 %v6260
    %v6780 = vunpack.c.l.b16 %v6261
    %v6781 = vunpack.c.l.b16 %v6262
    %v6782 = vunpack.c.l.b16 %v6263
    %v6783 = vunpack.c.l.b16 %v6264
    %v6784 = vunpack.c.l.b16 %v6265
    %v6785 = vunpack.c.l.b16 %v6266
    %v6786 = vunpack.c.l.b16 %v6267
    %v6787 = vunpack.c.l.b16 %v6268
    %v6788 = vunpack.c.l.b16 %v6269
    %v6789 = vunpack.c.l.b16 %v6270
    %v6790 = vunpack.c.l.b16 %v6271
    %v6791 = vunpack.c.l.b16 %v6272
    %v6792 = vunpack.c.l.b16 %v6273
    %v6793 = vunpack.c.l.b16 %v6274
    %v6794 = vunpack.c.l.b16 %v6275
    %v6795 = vunpack.c.l.b16 %v6276
    %v6796 = vunpack.c.l.b16 %v6277
    %v6797 = vunpack.c.l.b16 %v6278
    %v6798 = vunpack.c.l.b16 %v6279
    %v6799 = vunpack.c.l.b16 %v6280
    %v6800 = vunpack.c.l.b16 %v6281
    %v6801 = vunpack.c.l.b16 %v6282
    %v6802 = vunpack.c.l.b16 %v6283
    %v6803 = vunpack.c.l.b16 %v6284
    %v6804 = vunpack.c.l.b16 %v6285
    %v6805 = vunpack.c.l.b16 %v6286
    %v6806 = vunpack.c.l.b16 %v6287
    %v6807 = vunpack.c.l.b16 %v6288
    %v6808 = vunpack.c.l.b16 %v6289
    %v6809 = vunpack.c.l.b16 %v6290
    %v6810 = vunpack.c.l.b16 %v6291
    %v6811 = vunpack.c.l.b16 %v6292
    %v6812 = vunpack.c.l.b16 %v6293
    %v6813 = vunpack.c.l.b16 %v6294
    %v6814 = vunpack.c.l.b16 %v6295
    %v6815 = vunpack.c.l.b16 %v6296
    %v6816 = vunpack.c.l.b16 %v6297
    %v6817 = vunpack.c.l.b16 %v6298
    %v6818 = vunpack.c.l.b16 %v6299
    %v6819 = vunpack.c.l.b16 %v6300
    %v6820 = vunpack.c.l.b16 %v6301
    %v6821 = vunpack.c.l.b16 %v6302
    %v6822 = vunpack.c.l.b16 %v6303
    %v6823 = vunpack.c.l.b16 %v6304
    %v6824 = vunpack.c.l.b16 %v6305
    %v6825 = vunpack.c.l.b16 %v6306
    %v6826 = vunpack.c.l.b16 %v6307
    %v6827 = vunpack.c.l.b16 %v6308
    %v6828 = vunpack.c.l.b16 %v6309
    %v6829 = vunpack.c.l.b16 %v6310
    %v6830 = vunpack.c.l.b16 %v6311
    %v6831 = vunpack.c.l.b16 %v6312
    %v6832 = vunpack.c.l.b16 %v6313
    %v6833 = vunpack.c.l.b16 %v6314
    %v6834 = vunpack.c.l.b16 %v6315
    %v6835 = vunpack.c.l.b16 %v6316
    %v6836 = vunpack.c.l.b16 %v6317
    %v6837 = vunpack.c.l.b16 %v6318
    %v6838 = vunpack.c.l.b16 %v6319
    %v6839 = vunpack.c.l.b16 %v6320
    %v6840 = vunpack.c.l.b16 %v6321
    %v6841 = vunpack.c.l.b16 %v6322
    %v6842 = vunpack.c.l.b16 %v6323
    %v6843 = vunpack.c.l.b16 %v6324
    %v6844 = vunpack.c.l.b16 %v6325
    %v6845 = vunpack.c.l.b16 %v6326
    %v6846 = vunpack.c.l.b16 %v6327
    %v6847 = vunpack.c.l.b16 %v6328
    %v6848 = vunpack.c.l.b16 %v6329
    %v6849 = vunpack.c.l.b16 %v6330
    %v6850 = vunpack.c.l.b16 %v6331
    %v6851 = vunpack.c.l.b16 %v6332
    %v6852 = vunpack.c.l.b16 %v6333
    %v6853 = vunpack.c.l.b16 %v6334
    %v6854 = vunpack.c.l.b16 %v6335
    %v6855 = vunpack.c.l.b16 %v6336
    %v6856 = vunpack.c.l.b16 %v6337
    %v6857 = vunpack.c.l.b16 %v6338
    %v6858 = vunpack.c.l.b16 %v6339
    %v6859 = vunpack.c.l.b16 %v6340
    %v6860 = vunpack.c.l.b16 %v6341
    %v6861 = vunpack.c.l.b16 %v6342
    %v6862 = vunpack.c.l.b16 %v6343
    %v6863 = vunpack.c.l.b16 %v6344
    %v6864 = vunpack.c.l.b16 %v6345
    %v6865 = vunpack.c.l.b16 %v6346
    %v6866 = vunpack.c.l.b16 %v6347
    %v6867 = vunpack.c.l.b16 %v6348
    %v6868 = vunpack.c.l.b16 %v6349
    %v6869 = vunpack.c.l.b16 %v6350
    %v6870 = vunpack.c.l.b16 %v6351
    %v6871 = vunpack.c.l.b16 %v6352
    %v6872 = vunpack.c.l.b16 %v6353
    %v6873 = vunpack.c.l.b16 %v6354
    %v6874 = vunpack.c.l.b16 %v6355
    %v6875 = vunpack.c.l.b16 %v6356
    %v6876 = vunpack.c.l.b16 %v6357
    %v6877 = vunpack.c.l.b16 %v6358
    %v6878 = vunpack.c.l.b16 %v6359
    %v6879 = vunpack.c.l.b16 %v6360
    %v6880 = vunpack.c.l.b16 %v6361
    %v6881 = vunpack.c.l.b16 %v6362
    %v6882 = vunpack.c.l.b16 %v6363
    %v6883 = vunpack.c.l.b16 %v6364
    %v6884 = vunpack.c.l.b16 %v6365
    %v6885 = vunpack.c.l.b16 %v6366
    %v6886 = vunpack.c.l.b16 %v6367
    %v6887 = vunpack.c.l.b16 %v6368
    %v6888 = vunpack.c.l.b16 %v6369
    %v6889 = vunpack.c.l.b16 %v6370
    %v6890 = vunpack.c.l.b16 %v6371
    %v6891 = vunpack.c.l.b16 %v6372
    %v6892 = vunpack.c.l.b16 %v6373
    %v6893 = vunpack.c.l.b16 %v6374
    %v6894 = vunpack.c.l.b16 %v6375
    %v6895 = vunpack.c.l.b16 %v6376
    %v6896 = vunpack.c.l.b16 %v6377
    %v6897 = vunpack.c.l.b16 %v6378
    %v6898 = vunpack.c.l.b16 %v6379
    %v6899 = vunpack.c.l.b16 %v6380
    %v6900 = vunpack.c.l.b16 %v6381
    %v6901 = vunpack.c.l.b16 %v6382
    %v6902 = vunpack.c.l.b16 %v6383
    %v6903 = vunpack.c.l.b16 %v6384
    %v6904 = vunpack.c.l.b16 %v6385
    %v6905 = vunpack.c.l.b16 %v6386
    %v6906 = vunpack.c.l.b16 %v6387
    %v6907 = vunpack.c.l.b16 %v6388
    %v6908 = vunpack.c.l.b16 %v6389
    %v6909 = vunpack.c.l.b16 %v6390
    %v6910 = vunpack.c.l.b16 %v6391
    %v6911 = vunpack.c.l.b16 %v6392
    %v6912 = vunpack.c.l.b16 %v6393
    %v6913 = vunpack.c.l.b16 %v6394
    %v6914 = vunpack.c.l.b16 %v6395
    %v6915 = vunpack.c.l.b16 %v6396
    %v6916 = vunpack.c.l.b16 %v6397
    %v6917 = vunpack.c.l.b16 %v6398
    %v6918 = vunpack.c.l.b16 %v6399
    %v6919 = vunpack.c.l.b16 %v6400
    %v6920 = vunpack.c.l.b16 %v6401
    %v6921 = vunpack.c.l.b16 %v6402
    %v6922 = vunpack.c.l.b16 %v6403
    %v6923 = vunpack.c.l.b16 %v6404
    %v6924 = vunpack.c.l.b16 %v6405
    %v6925 = vunpack.c.l.b16 %v6406
    %v6926 = vunpack.c.l.b16 %v6407
    %v6927 = vunpack.c.l.b16 %v6408
    %v6928 = vunpack.c.l.b16 %v6409
    %v6929 = vunpack.c.l.b16 %v6410
    %v6930 = vunpack.c.l.b16 %v6411
    %v6931 = vunpack.c.l.b16 %v6412
    %v6932 = vunpack.c.l.b16 %v6413
    %v6933 = vunpack.c.l.b16 %v6414
    %v6934 = vunpack.c.l.b16 %v6415
    %v6935 = vunpack.c.l.b16 %v6416
    %v6936 = vunpack.c.l.b16 %v6417
    %v6937 = vunpack.c.l.b16 %v6418
    %v6938 = vunpack.c.l.b16 %v6419
    %v6939 = vunpack.c.l.b16 %v6420
    %v6940 = vunpack.c.l.b16 %v6421
    %v6941 = vunpack.c.l.b16 %v6422
    %v6942 = vunpack.c.l.b16 %v6423
    %v6943 = vunpack.c.l.b16 %v6424
    %v6944 = vunpack.c.l.b16 %v6425
    %v6945 = vunpack.c.l.b16 %v6426
    %v6946 = vunpack.c.l.b16 %v6427
    %v6947 = vunpack.c.l.b16 %v6428
    %v6948 = vunpack.c.l.b16 %v6429
    %v6949 = vunpack.c.l.b16 %v6430
    %v6950 = vunpack.c.l.b16 %v6431
    %v6951 = vunpack.c.l.b16 %v6432
    %v6952 = vunpack.c.l.b16 %v6433
    %v6953 = vunpack.c.l.b16 %v6434
    %v6954 = vunpack.c.l.b16 %v6435
    %v6955 = vunpack.c.l.b16 %v6436
    %v6956 = vunpack.c.l.b16 %v6437
    %v6957 = vunpack.c.l.b16 %v6438
    %v6958 = vunpack.c.l.b16 %v6439
    %v6959 = vunpack.c.l.b16 %v6440
    %v6960 = vunpack.c.l.b16 %v6441
    %v6961 = vunpack.c.l.b16 %v6442
    %v6962 = vunpack.c.l.b16 %v6443
    %v6963 = vunpack.c.l.b16 %v6444
    %v6964 = vunpack.c.l.b16 %v6445
    %v6965 = vunpack.c.l.b16 %v6446
    %v6966 = vunpack.c.l.b16 %v6447
    %v6967 = vunpack.c.l.b16 %v6448
    %v6968 = vunpack.c.l.b16 %v6449
    %v6969 = vunpack.c.l.b16 %v6450
    %v6970 = vunpack.c.l.b16 %v6451
    %v6971 = vunpack.c.l.b16 %v6452
    %v6972 = vunpack.c.l.b16 %v6453
    %v6973 = vunpack.c.l.b16 %v6454
    %v6974 = vunpack.c.l.b16 %v6455
    %v6975 = vunpack.c.l.b16 %v6456
    %v6976 = vunpack.c.l.b16 %v6457
    %v6977 = vunpack.c.l.b16 %v6458
    %v6978 = vunpack.c.l.b16 %v6459
    %v6979 = vunpack.c.l.b16 %v6460
    %v6980 = vunpack.c.l.b16 %v6461
    %v6981 = vunpack.c.l.b16 %v6462
    %v6982 = vunpack.c.l.b16 %v6463
    %v6983 = vunpack.c.l.b16 %v6464
    %v6984 = vunpack.c.l.b16 %v6465
    %v6985 = vunpack.c.l.b16 %v6466
    %v6986 = vunpack.c.l.b16 %v6467
    %v6987 = vunpack.c.l.b16 %v6468
    %v6988 = vunpack.c.l.b16 %v6469
    %v6989 = vunpack.c.l.b16 %v6470
    %v6990 = vunpack.c.l.b16 %v6471
    %v6991 = vunpack.c.l.b16 %v6472
    %v6992 = vunpack.c.l.b16 %v6473
    %v6993 = vunpack.c.l.b16 %v6474
    %v6994 = vunpack.c.l.b16 %v6475
    %v6995 = vunpack.c.l.b16 %v6476
    %v6996 = vunpack.c.l.b16 %v6477
    %v6997 = vunpack.c.l.b16 %v6478
    %v6998 = vunpack.c.l.b16 %v6479
    %v6999 = vunpack.c.l.b16 %v6480
    %v7000 = vunpack.c.l.b16 %v6481
    %v7001 = vunpack.c.l.b16 %v6482
    %v7002 = vunpack.c.l.b16 %v6483
    %v7003 = vunpack.c.l.b16 %v6484
    %v7004 = vunpack.c.l.b16 %v6485
    %v7005 = vunpack.c.l.b16 %v6486
    %v7006 = vunpack.c.l.b16 %v6487
    %v7007 = vunpack.c.l.b16 %v6488
    %v7008 = vunpack.c.l.b16 %v6489
    %v7009 = vunpack.c.l.b16 %v6490
    %v7010 = vunpack.c.l.b16 %v6491
    %v7011 = vunpack.c.l.b16 %v6492
    %v7012 = vunpack.c.l.b16 %v6493
    %v7013 = vunpack.c.l.b16 %v6494
    %v7014 = vunpack.c.l.b16 %v6495
    %v7015 = vunpack.c.l.b16 %v6496
    %v7016 = vunpack.c.l.b16 %v6497
    %v7017 = vunpack.c.l.b16 %v6498
    %v7018 = vunpack.c.l.b16 %v6499
    %v7019 = vunpack.c.l.b16 %v6500
    %v7020 = vunpack.c.l.b16 %v6501
    %v7021 = vunpack.c.l.b16 %v6502
    %v7022 = vpack.c.b16 %v6767, %v6766
    %v7023 = vpack.c.b16 %v6769, %v6768
    %v7024 = vpack.c.b16 %v6771, %v6770
    %v7025 = vpack.c.b16 %v6773, %v6772
    %v7026 = vpack.c.b16 %v6775, %v6774
    %v7027 = vpack.c.b16 %v6777, %v6776
    %v7028 = vpack.c.b16 %v6779, %v6778
    %v7029 = vpack.c.b16 %v6781, %v6780
    %v7030 = vpack.c.b16 %v6783, %v6782
    %v7031 = vpack.c.b16 %v6785, %v6784
    %v7032 = vpack.c.b16 %v6787, %v6786
    %v7033 = vpack.c.b16 %v6789, %v6788
    %v7034 = vpack.c.b16 %v6791, %v6790
    %v7035 = vpack.c.b16 %v6793, %v6792
    %v7036 = vpack.c.b16 %v6795, %v6794
    %v7037 = vpack.c.b16 %v6797, %v6796
    %v7038 = vpack.c.b16 %v6799, %v6798
    %v7039 = vpack.c.b16 %v6801, %v6800
    %v7040 = vpack.c.b16 %v6803, %v6802
    %v7041 = vpack.c.b16 %v6805, %v6804
    %v7042 = vpack.c.b16 %v6807, %v6806
    %v7043 = vpack.c.b16 %v6809, %v6808
    %v7044 = vpack.c.b16 %v6811, %v6810
    %v7045 = vpack.c.b16 %v6813, %v6812
    %v7046 = vpack.c.b16 %v6815, %v6814
    %v7047 = vpack.c.b16 %v6817, %v6816
    %v7048 = vpack.c.b16 %v6819, %v6818
    %v7049 = vpack.c.b16 %v6821, %v6820
    %v7050 = vpack.c.b16 %v6823, %v6822
    %v7051 = vpack.c.b16 %v6825, %v6824
    %v7052 = vpack.c.b16 %v6827, %v6826
    %v7053 = vpack.c.b16 %v6829, %v6828
    %v7054 = vpack.c.b16 %v6831, %v6830
    %v7055 = vpack.c.b16 %v6833, %v6832
    %v7056 = vpack.c.b16 %v6835, %v6834
    %v7057 = vpack.c.b16 %v6837, %v6836
    %v7058 = vpack.c.b16 %v6839, %v6838
    %v7059 = vpack.c.b16 %v6841, %v6840
    %v7060 = vpack.c.b16 %v6843, %v6842
    %v7061 = vpack.c.b16 %v6845, %v6844
    %v7062 = vpack.c.b16 %v6847, %v6846
    %v7063 = vpack.c.b16 %v6849, %v6848
    %v7064 = vpack.c.b16 %v6851, %v6850
    %v7065 = vpack.c.b16 %v6853, %v6852
    %v7066 = vpack.c.b16 %v6855, %v6854
    %v7067 = vpack.c.b16 %v6857, %v6856
    %v7068 = vpack.c.b16 %v6859, %v6858
    %v7069 = vpack.c.b16 %v6861, %v6860
    %v7070 = vpack.c.b16 %v6863, %v6862
    %v7071 = vpack.c.b16 %v6865, %v6864
    %v7072 = vpack.c.b16 %v6867, %v6866
    %v7073 = vpack.c.b16 %v6869, %v6868
    %v7074 = vpack.c.b16 %v6871, %v6870
    %v7075 = vpack.c.b16 %v6873, %v6872
    %v7076 = vpack.c.b16 %v6875, %v6874
    %v7077 = vpack.c.b16 %v6877, %v6876
    %v7078 = vpack.c.b16 %v6879, %v6878
    %v7079 = vpack.c.b16 %v6881, %v6880
    %v7080 = vpack.c.b16 %v6883, %v6882
    %v7081 = vpack.c.b16 %v6885, %v6884
    %v7082 = vpack.c.b16 %v6887, %v6886
    %v7083 = vpack.c.b16 %v6889, %v6888
    %v7084 = vpack.c.b16 %v6891, %v6890
    %v7085 = vpack.c.b16 %v6893, %v6892
    %v7086 = vpack.c.b16 %v6895, %v6894
    %v7087 = vpack.c.b16 %v6897, %v6896
    %v7088 = vpack.c.b16 %v6899, %v6898
    %v7089 = vpack.c.b16 %v6901, %v6900
    %v7090 = vpack.c.b16 %v6903, %v6902
    %v7091 = vpack.c.b16 %v6905, %v6904
    %v7092 = vpack.c.b16 %v6907, %v6906
    %v7093 = vpack.c.b16 %v6909, %v6908
    %v7094 = vpack.c.b16 %v6911, %v6910
    %v7095 = vpack.c.b16 %v6913, %v6912
    %v7096 = vpack.c.b16 %v6915, %v6914
    %v7097 = vpack.c.b16 %v6917, %v6916
    %v7098 = vpack.c.b16 %v6919, %v6918
    %v7099 = vpack.c.b16 %v6921, %v6920
    %v7100 = vpack.c.b16 %v6923, %v6922
    %v7101 = vpack.c.b16 %v6925, %v6924
    %v7102 = vpack.c.b16 %v6927, %v6926
    %v7103 = vpack.c.b16 %v6929, %v6928
    %v7104 = vpack.c.b16 %v6931, %v6930
    %v7105 = vpack.c.b16 %v6933, %v6932
    %v7106 = vpack.c.b16 %v6935, %v6934
    %v7107 = vpack.c.b16 %v6937, %v6936
    %v7108 = vpack.c.b16 %v6939, %v6938
    %v7109 = vpack.c.b16 %v6941, %v6940
    %v7110 = vpack.c.b16 %v6943, %v6942
    %v7111 = vpack.c.b16 %v6945, %v6944
    %v7112 = vpack.c.b16 %v6947, %v6946
    %v7113 = vpack.c.b16 %v6949, %v6948
    %v7114 = vpack.c.b16 %v6951, %v6950
    %v7115 = vpack.c.b16 %v6953, %v6952
    %v7116 = vpack.c.b16 %v6955, %v6954
    %v7117 = vpack.c.b16 %v6957, %v6956
    %v7118 = vpack.c.b16 %v6959, %v6958
    %v7119 = vpack.c.b16 %v6961, %v6960
    %v7120 = vpack.c.b16 %v6963, %v6962
    %v7121 = vpack.c.b16 %v6965, %v6964
    %v7122 = vpack.c.b16 %v6967, %v6966
    %v7123 = vpack.c.b16 %v6969, %v6968
    %v7124 = vpack.c.b16 %v6971, %v6970
    %v7125 = vpack.c.b16 %v6973, %v6972
    %v7126 = vpack.c.b16 %v6975, %v6974
    %v7127 = vpack.c.b16 %v6977, %v6976
    %v7128 = vpack.c.b16 %v6979, %v6978
    %v7129 = vpack.c.b16 %v6981, %v6980
    %v7130 = vpack.c.b16 %v6983, %v6982
    %v7131 = vpack.c.b16 %v6985, %v6984
    %v7132 = vpack.c.b16 %v6987, %v6986
    %v7133 = vpack.c.b16 %v6989, %v6988
    %v7134 = vpack.c.b16 %v6991, %v6990
    %v7135 = vpack.c.b16 %v6993, %v6992
    %v7136 = vpack.c.b16 %v6995, %v6994
    %v7137 = vpack.c.b16 %v6997, %v6996
    %v7138 = vpack.c.b16 %v6999, %v6998
    %v7139 = vpack.c.b16 %v7001, %v7000
    %v7140 = vpack.c.b16 %v7003, %v7002
    %v7141 = vpack.c.b16 %v7005, %v7004
    %v7142 = vpack.c.b16 %v7007, %v7006
    %v7143 = vpack.c.b16 %v7009, %v7008
    %v7144 = vpack.c.b16 %v7011, %v7010
    %v7145 = vpack.c.b16 %v7013, %v7012
    %v7146 = vpack.c.b16 %v7015, %v7014
    %v7147 = vpack.c.b16 %v7017, %v7016
    %v7148 = vpack.c.b16 %v7019, %v7018
    %v7149 = vpack.c.b16 %v7021, %v7020
    %7278 = vmatprep.subr.bf16.mxu0 0
    %7279 = vmatpush1.bf16.msra.mxu0 %v7022
    %7280 = vmatprep.subr.bf16.mxu0 0
    %7281 = vmatpush1.bf16.msra.mxu0 %v7023
    %7282 = vmatprep.subr.bf16.mxu0 0
    %7283 = vmatpush1.bf16.msra.mxu0 %v7024
    %7284 = vmatprep.subr.bf16.mxu0 0
    %7285 = vmatpush1.bf16.msra.mxu0 %v7025
    %7286 = vmatprep.subr.bf16.mxu0 0
    %7287 = vmatpush1.bf16.msra.mxu0 %v7026
    %7288 = vmatprep.subr.bf16.mxu0 0
    %7289 = vmatpush1.bf16.msra.mxu0 %v7027
    %7290 = vmatprep.subr.bf16.mxu0 0
    %7291 = vmatpush1.bf16.msra.mxu0 %v7028
    %7292 = vmatprep.subr.bf16.mxu0 0
    %7293 = vmatpush1.bf16.msra.mxu0 %v7029
    %7294 = vmatprep.subr.bf16.mxu0 0
    %7295 = vmatpush1.bf16.msra.mxu0 %v7030
    %7296 = vmatprep.subr.bf16.mxu0 0
    %7297 = vmatpush1.bf16.msra.mxu0 %v7031
    %7298 = vmatprep.subr.bf16.mxu0 0
    %7299 = vmatpush1.bf16.msra.mxu0 %v7032
    %7300 = vmatprep.subr.bf16.mxu0 0
    %7301 = vmatpush1.bf16.msra.mxu0 %v7033
    %7302 = vmatprep.subr.bf16.mxu0 0
    %7303 = vmatpush1.bf16.msra.mxu0 %v7034
    %7304 = vmatprep.subr.bf16.mxu0 0
    %7305 = vmatpush1.bf16.msra.mxu0 %v7035
    %7306 = vmatprep.subr.bf16.mxu0 0
    %7307 = vmatpush1.bf16.msra.mxu0 %v7036
    %7308 = vmatprep.subr.bf16.mxu0 0
    %7309 = vmatpush1.bf16.msra.mxu0 %v7037
    %7310 = vmatprep.mubr.bf16.mxu0 %v6232
    %7311 = vmatmul.mubr.bf16.gmra.mrb[0].mxu0 %v6231
    %v7312 = vpop.f32.mrb[0].mxu0
    %v7313 = vadd.f32 %v6508, %v7312
    %v7314 = vpop.f32.mrb[0].mxu0
    %v7315 = vpop.f32.mrb[0].mxu0
    %v7316 = vpop.f32.mrb[0].mxu0
    %7317 = vdwg.mxu0
    %7318 = vmatprep.subr.bf16.mxu0 0
    %7319 = vmatpush1.bf16.msra.mxu0 %v7038
    %7320 = vmatprep.subr.bf16.mxu0 0
    %7321 = vmatpush1.bf16.msra.mxu0 %v7039
    %7322 = vmatprep.subr.bf16.mxu0 0
    %7323 = vmatpush1.bf16.msra.mxu0 %v7040
    %7324 = vmatprep.subr.bf16.mxu0 0
    %7325 = vmatpush1.bf16.msra.mxu0 %v7041
    %7326 = vmatprep.subr.bf16.mxu0 0
    %7327 = vmatpush1.bf16.msra.mxu0 %v7042
    %7328 = vmatprep.subr.bf16.mxu0 0
    %7329 = vmatpush1.bf16.msra.mxu0 %v7043
    %7330 = vmatprep.subr.bf16.mxu0 0
    %7331 = vmatpush1.bf16.msra.mxu0 %v7044
    %7332 = vmatprep.subr.bf16.mxu0 0
    %7333 = vmatpush1.bf16.msra.mxu0 %v7045
    %7334 = vmatprep.subr.bf16.mxu0 0
    %7335 = vmatpush1.bf16.msra.mxu0 %v7046
    %7336 = vmatprep.subr.bf16.mxu0 0
    %7337 = vmatpush1.bf16.msra.mxu0 %v7047
    %7338 = vmatprep.subr.bf16.mxu0 0
    %7339 = vmatpush1.bf16.msra.mxu0 %v7048
    %7340 = vmatprep.subr.bf16.mxu0 0
    %7341 = vmatpush1.bf16.msra.mxu0 %v7049
    %7342 = vmatprep.subr.bf16.mxu0 0
    %7343 = vmatpush1.bf16.msra.mxu0 %v7050
    %7344 = vmatprep.subr.bf16.mxu0 0
    %7345 = vmatpush1.bf16.msra.mxu0 %v7051
    %7346 = vmatprep.subr.bf16.mxu0 0
    %7347 = vmatpush1.bf16.msra.mxu0 %v7052
    %7348 = vmatprep.subr.bf16.mxu0 0
    %7349 = vmatpush1.bf16.msra.mxu0 %v7053
    %7350 = vmatprep.mubr.bf16.mxu0 %v6234
    %7351 = vmatmul.mubr.bf16.gmra.mrb[0].mxu0 %v6233
    %v7352 = vpop.f32.mrb[0].mxu0
    %v7353 = vadd.f32 %v7313, %v7352
    %v7354 = vpop.f32.mrb[0].mxu0
    %v7355 = vpop.f32.mrb[0].mxu0
    %v7356 = vpop.f32.mrb[0].mxu0
    %7357 = vdwg.mxu0
    %7358 = vmatprep.subr.bf16.mxu0 0
    %7359 = vmatpush1.bf16.msra.mxu0 %v7054
    %7360 = vmatprep.subr.bf16.mxu0 0
    %7361 = vmatpush1.bf16.msra.mxu0 %v7055
    %7362 = vmatprep.subr.bf16.mxu0 0
    %7363 = vmatpush1.bf16.msra.mxu0 %v7056
    %7364 = vmatprep.subr.bf16.mxu0 0
    %7365 = vmatpush1.bf16.msra.mxu0 %v7057
    %7366 = vmatprep.subr.bf16.mxu0 0
    %7367 = vmatpush1.bf16.msra.mxu0 %v7058
    %7368 = vmatprep.subr.bf16.mxu0 0
    %7369 = vmatpush1.bf16.msra.mxu0 %v7059
    %7370 = vmatprep.subr.bf16.mxu0 0
    %7371 = vmatpush1.bf16.msra.mxu0 %v7060
    %7372 = vmatprep.subr.bf16.mxu0 0
    %7373 = vmatpush1.bf16.msra.mxu0 %v7061
    %7374 = vmatprep.subr.bf16.mxu0 0
    %7375 = vmatpush1.bf16.msra.mxu0 %v7062
    %7376 = vmatprep.subr.bf16.mxu0 0
    %7377 = vmatpush1.bf16.msra.mxu0 %v7063
    %7378 = vmatprep.subr.bf16.mxu0 0
    %7379 = vmatpush1.bf16.msra.mxu0 %v7064
    %7380 = vmatprep.subr.bf16.mxu0 0
    %7381 = vmatpush1.bf16.msra.mxu0 %v7065
    %7382 = vmatprep.subr.bf16.mxu0 0
    %7383 = vmatpush1.bf16.msra.mxu0 %v7066
    %7384 = vmatprep.subr.bf16.mxu0 0
    %7385 = vmatpush1.bf16.msra.mxu0 %v7067
    %7386 = vmatprep.subr.bf16.mxu0 0
    %7387 = vmatpush1.bf16.msra.mxu0 %v7068
    %7388 = vmatprep.subr.bf16.mxu0 0
    %7389 = vmatpush1.bf16.msra.mxu0 %v7069
    %7390 = vmatprep.mubr.bf16.mxu0 %v6236
    %7391 = vmatmul.mubr.bf16.gmra.mrb[0].mxu0 %v6235
    %v7392 = vpop.f32.mrb[0].mxu0
    %v7393 = vadd.f32 %v7353, %v7392
    %v7394 = vpop.f32.mrb[0].mxu0
    %v7395 = vpop.f32.mrb[0].mxu0
    %v7396 = vpop.f32.mrb[0].mxu0
    %7397 = vdwg.mxu0
    %7398 = vmatprep.subr.bf16.mxu0 0
    %7399 = vmatpush1.bf16.msra.mxu0 %v7070
    %7400 = vmatprep.subr.bf16.mxu0 0
    %7401 = vmatpush1.bf16.msra.mxu0 %v7071
    %7402 = vmatprep.subr.bf16.mxu0 0
    %7403 = vmatpush1.bf16.msra.mxu0 %v7072
    %7404 = vmatprep.subr.bf16.mxu0 0
    %7405 = vmatpush1.bf16.msra.mxu0 %v7073
    %7406 = vmatprep.subr.bf16.mxu0 0
    %7407 = vmatpush1.bf16.msra.mxu0 %v7074
    %7408 = vmatprep.subr.bf16.mxu0 0
    %7409 = vmatpush1.bf16.msra.mxu0 %v7075
    %7410 = vmatprep.subr.bf16.mxu0 0
    %7411 = vmatpush1.bf16.msra.mxu0 %v7076
    %7412 = vmatprep.subr.bf16.mxu0 0
    %7413 = vmatpush1.bf16.msra.mxu0 %v7077
    %7414 = vmatprep.subr.bf16.mxu0 0
    %7415 = vmatpush1.bf16.msra.mxu0 %v7078
    %7416 = vmatprep.subr.bf16.mxu0 0
    %7417 = vmatpush1.bf16.msra.mxu0 %v7079
    %7418 = vmatprep.subr.bf16.mxu0 0
    %7419 = vmatpush1.bf16.msra.mxu0 %v7080
    %7420 = vmatprep.subr.bf16.mxu0 0
    %7421 = vmatpush1.bf16.msra.mxu0 %v7081
    %7422 = vmatprep.subr.bf16.mxu0 0
    %7423 = vmatpush1.bf16.msra.mxu0 %v7082
    %7424 = vmatprep.subr.bf16.mxu0 0
    %7425 = vmatpush1.bf16.msra.mxu0 %v7083
    %7426 = vmatprep.subr.bf16.mxu0 0
    %7427 = vmatpush1.bf16.msra.mxu0 %v7084
    %7428 = vmatprep.subr.bf16.mxu0 0
    %7429 = vmatpush1.bf16.msra.mxu0 %v7085
    %7430 = vmatprep.mubr.bf16.mxu0 %v6238
    %7431 = vmatmul.mubr.bf16.gmra.mrb[0].mxu0 %v6237
    %v7432 = vpop.f32.mrb[0].mxu0
    %v7433 = vadd.f32 %v7393, %v7432
    %v7434 = vpop.f32.mrb[0].mxu0
    %v7435 = vpop.f32.mrb[0].mxu0
    %v7436 = vpop.f32.mrb[0].mxu0
    %7437 = vdwg.mxu0
    %7438 = vmatprep.subr.bf16.mxu0 0
    %7439 = vmatpush1.bf16.msra.mxu0 %v7086
    %7440 = vmatprep.subr.bf16.mxu0 0
    %7441 = vmatpush1.bf16.msra.mxu0 %v7087
    %7442 = vmatprep.subr.bf16.mxu0 0
    %7443 = vmatpush1.bf16.msra.mxu0 %v7088
    %7444 = vmatprep.subr.bf16.mxu0 0
    %7445 = vmatpush1.bf16.msra.mxu0 %v7089
    %7446 = vmatprep.subr.bf16.mxu0 0
    %7447 = vmatpush1.bf16.msra.mxu0 %v7090
    %7448 = vmatprep.subr.bf16.mxu0 0
    %7449 = vmatpush1.bf16.msra.mxu0 %v7091
    %7450 = vmatprep.subr.bf16.mxu0 0
    %7451 = vmatpush1.bf16.msra.mxu0 %v7092
    %7452 = vmatprep.subr.bf16.mxu0 0
    %7453 = vmatpush1.bf16.msra.mxu0 %v7093
    %7454 = vmatprep.subr.bf16.mxu0 0
    %7455 = vmatpush1.bf16.msra.mxu0 %v7094
    %7456 = vmatprep.subr.bf16.mxu0 0
    %7457 = vmatpush1.bf16.msra.mxu0 %v7095
    %7458 = vmatprep.subr.bf16.mxu0 0
    %7459 = vmatpush1.bf16.msra.mxu0 %v7096
    %7460 = vmatprep.subr.bf16.mxu0 0
    %7461 = vmatpush1.bf16.msra.mxu0 %v7097
    %7462 = vmatprep.subr.bf16.mxu0 0
    %7463 = vmatpush1.bf16.msra.mxu0 %v7098
    %7464 = vmatprep.subr.bf16.mxu0 0
    %7465 = vmatpush1.bf16.msra.mxu0 %v7099
    %7466 = vmatprep.subr.bf16.mxu0 0
    %7467 = vmatpush1.bf16.msra.mxu0 %v7100
    %7468 = vmatprep.subr.bf16.mxu0 0
    %7469 = vmatpush1.bf16.msra.mxu0 %v7101
    %7470 = vmatprep.mubr.bf16.mxu0 %v6240
    %7471 = vmatmul.mubr.bf16.gmra.mrb[0].mxu0 %v6239
    %v7472 = vpop.f32.mrb[0].mxu0
    %v7473 = vadd.f32 %v7433, %v7472
    %v7474 = vpop.f32.mrb[0].mxu0
    %v7475 = vpop.f32.mrb[0].mxu0
    %v7476 = vpop.f32.mrb[0].mxu0
    %7477 = vdwg.mxu0
    %7478 = vmatprep.subr.bf16.mxu0 0
    %7479 = vmatpush1.bf16.msra.mxu0 %v7102
    %7480 = vmatprep.subr.bf16.mxu0 0
    %7481 = vmatpush1.bf16.msra.mxu0 %v7103
    %7482 = vmatprep.subr.bf16.mxu0 0
    %7483 = vmatpush1.bf16.msra.mxu0 %v7104
    %7484 = vmatprep.subr.bf16.mxu0 0
    %7485 = vmatpush1.bf16.msra.mxu0 %v7105
    %7486 = vmatprep.subr.bf16.mxu0 0
    %7487 = vmatpush1.bf16.msra.mxu0 %v7106
    %7488 = vmatprep.subr.bf16.mxu0 0
    %7489 = vmatpush1.bf16.msra.mxu0 %v7107
    %7490 = vmatprep.subr.bf16.mxu0 0
    %7491 = vmatpush1.bf16.msra.mxu0 %v7108
    %7492 = vmatprep.subr.bf16.mxu0 0
    %7493 = vmatpush1.bf16.msra.mxu0 %v7109
    %7494 = vmatprep.subr.bf16.mxu0 0
    %7495 = vmatpush1.bf16.msra.mxu0 %v7110
    %7496 = vmatprep.subr.bf16.mxu0 0
    %7497 = vmatpush1.bf16.msra.mxu0 %v7111
    %7498 = vmatprep.subr.bf16.mxu0 0
    %7499 = vmatpush1.bf16.msra.mxu0 %v7112
    %7500 = vmatprep.subr.bf16.mxu0 0
    %7501 = vmatpush1.bf16.msra.mxu0 %v7113
    %7502 = vmatprep.subr.bf16.mxu0 0
    %7503 = vmatpush1.bf16.msra.mxu0 %v7114
    %7504 = vmatprep.subr.bf16.mxu0 0
    %7505 = vmatpush1.bf16.msra.mxu0 %v7115
    %7506 = vmatprep.subr.bf16.mxu0 0
    %7507 = vmatpush1.bf16.msra.mxu0 %v7116
    %7508 = vmatprep.subr.bf16.mxu0 0
    %7509 = vmatpush1.bf16.msra.mxu0 %v7117
    %7510 = vmatprep.mubr.bf16.mxu0 %v6242
    %7511 = vmatmul.mubr.bf16.gmra.mrb[0].mxu0 %v6241
    %v7512 = vpop.f32.mrb[0].mxu0
    %v7513 = vadd.f32 %v7473, %v7512
    %v7514 = vpop.f32.mrb[0].mxu0
    %v7515 = vpop.f32.mrb[0].mxu0
    %v7516 = vpop.f32.mrb[0].mxu0
    %7517 = vdwg.mxu0
    %7518 = vmatprep.subr.bf16.mxu0 0
    %7519 = vmatpush1.bf16.msra.mxu0 %v7118
    %7520 = vmatprep.subr.bf16.mxu0 0
    %7521 = vmatpush1.bf16.msra.mxu0 %v7119
    %7522 = vmatprep.subr.bf16.mxu0 0
    %7523 = vmatpush1.bf16.msra.mxu0 %v7120
    %7524 = vmatprep.subr.bf16.mxu0 0
    %7525 = vmatpush1.bf16.msra.mxu0 %v7121
    %7526 = vmatprep.subr.bf16.mxu0 0
    %7527 = vmatpush1.bf16.msra.mxu0 %v7122
    %7528 = vmatprep.subr.bf16.mxu0 0
    %7529 = vmatpush1.bf16.msra.mxu0 %v7123
    %7530 = vmatprep.subr.bf16.mxu0 0
    %7531 = vmatpush1.bf16.msra.mxu0 %v7124
    %7532 = vmatprep.subr.bf16.mxu0 0
    %7533 = vmatpush1.bf16.msra.mxu0 %v7125
    %7534 = vmatprep.subr.bf16.mxu0 0
    %7535 = vmatpush1.bf16.msra.mxu0 %v7126
    %7536 = vmatprep.subr.bf16.mxu0 0
    %7537 = vmatpush1.bf16.msra.mxu0 %v7127
    %7538 = vmatprep.subr.bf16.mxu0 0
    %7539 = vmatpush1.bf16.msra.mxu0 %v7128
    %7540 = vmatprep.subr.bf16.mxu0 0
    %7541 = vmatpush1.bf16.msra.mxu0 %v7129
    %7542 = vmatprep.subr.bf16.mxu0 0
    %7543 = vmatpush1.bf16.msra.mxu0 %v7130
    %7544 = vmatprep.subr.bf16.mxu0 0
    %7545 = vmatpush1.bf16.msra.mxu0 %v7131
    %7546 = vmatprep.subr.bf16.mxu0 0
    %7547 = vmatpush1.bf16.msra.mxu0 %v7132
    %7548 = vmatprep.subr.bf16.mxu0 0
    %7549 = vmatpush1.bf16.msra.mxu0 %v7133
    %7550 = vmatprep.mubr.bf16.mxu0 %v6244
    %7551 = vmatmul.mubr.bf16.gmra.mrb[0].mxu0 %v6243
    %v7552 = vpop.f32.mrb[0].mxu0
    %v7553 = vadd.f32 %v7513, %v7552
    %v7554 = vpop.f32.mrb[0].mxu0
    %v7555 = vpop.f32.mrb[0].mxu0
    %v7556 = vpop.f32.mrb[0].mxu0
    %7557 = vdwg.mxu0
    %7558 = vmatprep.subr.bf16.mxu0 0
    %7559 = vmatpush1.bf16.msra.mxu0 %v7134
    %7560 = vmatprep.subr.bf16.mxu0 0
    %7561 = vmatpush1.bf16.msra.mxu0 %v7135
    %7562 = vmatprep.subr.bf16.mxu0 0
    %7563 = vmatpush1.bf16.msra.mxu0 %v7136
    %7564 = vmatprep.subr.bf16.mxu0 0
    %7565 = vmatpush1.bf16.msra.mxu0 %v7137
    %7566 = vmatprep.subr.bf16.mxu0 0
    %7567 = vmatpush1.bf16.msra.mxu0 %v7138
    %7568 = vmatprep.subr.bf16.mxu0 0
    %7569 = vmatpush1.bf16.msra.mxu0 %v7139
    %7570 = vmatprep.subr.bf16.mxu0 0
    %7571 = vmatpush1.bf16.msra.mxu0 %v7140
    %7572 = vmatprep.subr.bf16.mxu0 0
    %7573 = vmatpush1.bf16.msra.mxu0 %v7141
    %7574 = vmatprep.subr.bf16.mxu0 0
    %7575 = vmatpush1.bf16.msra.mxu0 %v7142
    %7576 = vmatprep.subr.bf16.mxu0 0
    %7577 = vmatpush1.bf16.msra.mxu0 %v7143
    %7578 = vmatprep.subr.bf16.mxu0 0
    %7579 = vmatpush1.bf16.msra.mxu0 %v7144
    %7580 = vmatprep.subr.bf16.mxu0 0
    %7581 = vmatpush1.bf16.msra.mxu0 %v7145
    %7582 = vmatprep.subr.bf16.mxu0 0
    %7583 = vmatpush1.bf16.msra.mxu0 %v7146
    %7584 = vmatprep.subr.bf16.mxu0 0
    %7585 = vmatpush1.bf16.msra.mxu0 %v7147
    %7586 = vmatprep.subr.bf16.mxu0 0
    %7587 = vmatpush1.bf16.msra.mxu0 %v7148
    %7588 = vmatprep.subr.bf16.mxu0 0
    %7589 = vmatpush1.bf16.msra.mxu0 %v7149
    %7590 = vmatprep.mubr.bf16.mxu0 %v6246
    %7591 = vmatmul.mubr.bf16.gmra.mrb[0].mxu0 %v6245
    %v7592 = vpop.f32.mrb[0].mxu0
    %v7593 = vadd.f32 %v7553, %v7592
    %v7594 = vpop.f32.mrb[0].mxu0
    %v7595 = vpop.f32.mrb[0].mxu0
    %v7596 = vpop.f32.mrb[0].mxu0
    %7597 = vdwg.mxu0
    %v7598 = vlaneseq
    %v7599 = vand.u32 %v7598, 127
    %vm7600 = vcmp.lt.s32.totalorder %v7599, 4
    %v7601 = vsel %vm7600, %v7593, -1e+30
    %7602 = vmax.xlane.f32.xlu0 %v7601
    %v7603 = vpop.xlane.xlu0 %7602
    %v7604 = vsub.f32 %v7601, %v7603
    %v7605 = vmul.f32 %v7604, 1.442695
    %v7606 = vpow.pop %v7605
    %7607 = vadd.xlane.f32.xlu0 %v7606
    %v7608 = vpop.xlane.xlu0 %7607
    %v7609 = vrcp.pop %v7608
    %v7610 = vmul.f32 %v7606, %v7609
    %7611 = vst [vmem:[%s26] sm:$0xff] %v7610
    %v7612 = vpack.c.bf16 %v7610, %v7610
    %v7613 = vld [vmem:[#allocation24] sm:$0xff]
    %v7614 = vld [vmem:[#allocation24 + $0x8] sm:$0xff]
    %v7615 = vld [vmem:[#allocation24 + $0x10] sm:$0xff]
    %v7616 = vld [vmem:[#allocation24 + $0x18] sm:$0xff]
    %v7617 = vld [vmem:[#allocation24 + $0x20] sm:$0xff]
    %v7618 = vld [vmem:[#allocation24 + $0x28] sm:$0xff]
    %v7619 = vld [vmem:[#allocation24 + $0x30] sm:$0xff]
    %v7620 = vld [vmem:[#allocation24 + $0x38] sm:$0xff]
    %v7621 = vld [vmem:[#allocation24 + $0x40] sm:$0xff]
    %v7622 = vld [vmem:[#allocation24 + $0x48] sm:$0xff]
    %v7623 = vld [vmem:[#allocation24 + $0x50] sm:$0xff]
    %v7624 = vld [vmem:[#allocation24 + $0x58] sm:$0xff]
    %v7625 = vld [vmem:[#allocation24 + $0x60] sm:$0xff]
    %v7626 = vld [vmem:[#allocation24 + $0x68] sm:$0xff]
    %v7627 = vld [vmem:[#allocation24 + $0x70] sm:$0xff]
    %v7628 = vld [vmem:[#allocation24 + $0x78] sm:$0xff]
    %v7629 = vld [vmem:[#allocation24 + $0x80] sm:$0xff]
    %v7630 = vld [vmem:[#allocation24 + $0x88] sm:$0xff]
    %v7631 = vld [vmem:[#allocation24 + $0x90] sm:$0xff]
    %v7632 = vld [vmem:[#allocation24 + $0x98] sm:$0xff]
    %v7633 = vld [vmem:[#allocation24 + $0xa0] sm:$0xff]
    %v7634 = vld [vmem:[#allocation24 + $0xa8] sm:$0xff]
    %v7635 = vld [vmem:[#allocation24 + $0xb0] sm:$0xff]
    %v7636 = vld [vmem:[#allocation24 + $0xb8] sm:$0xff]
    %v7637 = vld [vmem:[#allocation24 + $0xc0] sm:$0xff]
    %v7638 = vld [vmem:[#allocation24 + $0xc8] sm:$0xff]
    %v7639 = vld [vmem:[#allocation24 + $0xd0] sm:$0xff]
    %v7640 = vld [vmem:[#allocation24 + $0xd8] sm:$0xff]
    %v7641 = vld [vmem:[#allocation24 + $0xe0] sm:$0xff]
    %v7642 = vld [vmem:[#allocation24 + $0xe8] sm:$0xff]
    %v7643 = vld [vmem:[#allocation24 + $0xf0] sm:$0xff]
    %v7644 = vld [vmem:[#allocation24 + $0xf8] sm:$0xff]
    %v7645 = vld [vmem:[#allocation24 + $0x100] sm:$0xff]
    %v7646 = vld [vmem:[#allocation24 + $0x108] sm:$0xff]
    %v7647 = vld [vmem:[#allocation24 + $0x110] sm:$0xff]
    %v7648 = vld [vmem:[#allocation24 + $0x118] sm:$0xff]
    %v7649 = vld [vmem:[#allocation24 + $0x120] sm:$0xff]
    %v7650 = vld [vmem:[#allocation24 + $0x128] sm:$0xff]
    %v7651 = vld [vmem:[#allocation24 + $0x130] sm:$0xff]
    %v7652 = vld [vmem:[#allocation24 + $0x138] sm:$0xff]
    %v7653 = vld [vmem:[#allocation24 + $0x140] sm:$0xff]
    %v7654 = vld [vmem:[#allocation24 + $0x148] sm:$0xff]
    %v7655 = vld [vmem:[#allocation24 + $0x150] sm:$0xff]
    %v7656 = vld [vmem:[#allocation24 + $0x158] sm:$0xff]
    %v7657 = vld [vmem:[#allocation24 + $0x160] sm:$0xff]
    %v7658 = vld [vmem:[#allocation24 + $0x168] sm:$0xff]
    %v7659 = vld [vmem:[#allocation24 + $0x170] sm:$0xff]
    %v7660 = vld [vmem:[#allocation24 + $0x178] sm:$0xff]
    %v7661 = vld [vmem:[#allocation24 + $0x180] sm:$0xff]
    %v7662 = vld [vmem:[#allocation24 + $0x188] sm:$0xff]
    %v7663 = vld [vmem:[#allocation24 + $0x190] sm:$0xff]
    %v7664 = vld [vmem:[#allocation24 + $0x198] sm:$0xff]
    %v7665 = vld [vmem:[#allocation24 + $0x1a0] sm:$0xff]
    %v7666 = vld [vmem:[#allocation24 + $0x1a8] sm:$0xff]
    %v7667 = vld [vmem:[#allocation24 + $0x1b0] sm:$0xff]
    %v7668 = vld [vmem:[#allocation24 + $0x1b8] sm:$0xff]
    %v7669 = vld [vmem:[#allocation24 + $0x1c0] sm:$0xff]
    %v7670 = vld [vmem:[#allocation24 + $0x1c8] sm:$0xff]
    %v7671 = vld [vmem:[#allocation24 + $0x1d0] sm:$0xff]
    %v7672 = vld [vmem:[#allocation24 + $0x1d8] sm:$0xff]
    %v7673 = vld [vmem:[#allocation24 + $0x1e0] sm:$0xff]
    %v7674 = vld [vmem:[#allocation24 + $0x1e8] sm:$0xff]
    %v7675 = vld [vmem:[#allocation24 + $0x1f0] sm:$0xff]
    %v7676 = vld [vmem:[#allocation24 + $0x1f8] sm:$0xff]
    %v7677 = vld [vmem:[#allocation24 + $0x200] sm:$0xff]
    %v7678 = vld [vmem:[#allocation24 + $0x208] sm:$0xff]
    %v7679 = vld [vmem:[#allocation24 + $0x210] sm:$0xff]
    %v7680 = vld [vmem:[#allocation24 + $0x218] sm:$0xff]
    %v7681 = vld [vmem:[#allocation24 + $0x220] sm:$0xff]
    %v7682 = vld [vmem:[#allocation24 + $0x228] sm:$0xff]
    %v7683 = vld [vmem:[#allocation24 + $0x230] sm:$0xff]
    %v7684 = vld [vmem:[#allocation24 + $0x238] sm:$0xff]
    %v7685 = vld [vmem:[#allocation24 + $0x240] sm:$0xff]
    %v7686 = vld [vmem:[#allocation24 + $0x248] sm:$0xff]
    %v7687 = vld [vmem:[#allocation24 + $0x250] sm:$0xff]
    %v7688 = vld [vmem:[#allocation24 + $0x258] sm:$0xff]
    %v7689 = vld [vmem:[#allocation24 + $0x260] sm:$0xff]
    %v7690 = vld [vmem:[#allocation24 + $0x268] sm:$0xff]
    %v7691 = vld [vmem:[#allocation24 + $0x270] sm:$0xff]
    %v7692 = vld [vmem:[#allocation24 + $0x278] sm:$0xff]
    %v7693 = vld [vmem:[#allocation24 + $0x280] sm:$0xff]
    %v7694 = vld [vmem:[#allocation24 + $0x288] sm:$0xff]
    %v7695 = vld [vmem:[#allocation24 + $0x290] sm:$0xff]
    %v7696 = vld [vmem:[#allocation24 + $0x298] sm:$0xff]
    %v7697 = vld [vmem:[#allocation24 + $0x2a0] sm:$0xff]
    %v7698 = vld [vmem:[#allocation24 + $0x2a8] sm:$0xff]
    %v7699 = vld [vmem:[#allocation24 + $0x2b0] sm:$0xff]
    %v7700 = vld [vmem:[#allocation24 + $0x2b8] sm:$0xff]
    %v7701 = vld [vmem:[#allocation24 + $0x2c0] sm:$0xff]
    %v7702 = vld [vmem:[#allocation24 + $0x2c8] sm:$0xff]
    %v7703 = vld [vmem:[#allocation24 + $0x2d0] sm:$0xff]
    %v7704 = vld [vmem:[#allocation24 + $0x2d8] sm:$0xff]
    %v7705 = vld [vmem:[#allocation24 + $0x2e0] sm:$0xff]
    %v7706 = vld [vmem:[#allocation24 + $0x2e8] sm:$0xff]
    %v7707 = vld [vmem:[#allocation24 + $0x2f0] sm:$0xff]
    %v7708 = vld [vmem:[#allocation24 + $0x2f8] sm:$0xff]
    %v7709 = vld [vmem:[#allocation24 + $0x300] sm:$0xff]
    %v7710 = vld [vmem:[#allocation24 + $0x308] sm:$0xff]
    %v7711 = vld [vmem:[#allocation24 + $0x310] sm:$0xff]
    %v7712 = vld [vmem:[#allocation24 + $0x318] sm:$0xff]
    %v7713 = vld [vmem:[#allocation24 + $0x320] sm:$0xff]
    %v7714 = vld [vmem:[#allocation24 + $0x328] sm:$0xff]
    %v7715 = vld [vmem:[#allocation24 + $0x330] sm:$0xff]
    %v7716 = vld [vmem:[#allocation24 + $0x338] sm:$0xff]
    %v7717 = vld [vmem:[#allocation24 + $0x340] sm:$0xff]
    %v7718 = vld [vmem:[#allocation24 + $0x348] sm:$0xff]
    %v7719 = vld [vmem:[#allocation24 + $0x350] sm:$0xff]
    %v7720 = vld [vmem:[#allocation24 + $0x358] sm:$0xff]
    %v7721 = vld [vmem:[#allocation24 + $0x360] sm:$0xff]
    %v7722 = vld [vmem:[#allocation24 + $0x368] sm:$0xff]
    %v7723 = vld [vmem:[#allocation24 + $0x370] sm:$0xff]
    %v7724 = vld [vmem:[#allocation24 + $0x378] sm:$0xff]
    %v7725 = vld [vmem:[#allocation24 + $0x380] sm:$0xff]
    %v7726 = vld [vmem:[#allocation24 + $0x388] sm:$0xff]
    %v7727 = vld [vmem:[#allocation24 + $0x390] sm:$0xff]
    %v7728 = vld [vmem:[#allocation24 + $0x398] sm:$0xff]
    %v7729 = vld [vmem:[#allocation24 + $0x3a0] sm:$0xff]
    %v7730 = vld [vmem:[#allocation24 + $0x3a8] sm:$0xff]
    %v7731 = vld [vmem:[#allocation24 + $0x3b0] sm:$0xff]
    %v7732 = vld [vmem:[#allocation24 + $0x3b8] sm:$0xff]
    %v7733 = vld [vmem:[#allocation24 + $0x3c0] sm:$0xff]
    %v7734 = vld [vmem:[#allocation24 + $0x3c8] sm:$0xff]
    %v7735 = vld [vmem:[#allocation24 + $0x3d0] sm:$0xff]
    %v7736 = vld [vmem:[#allocation24 + $0x3d8] sm:$0xff]
    %v7737 = vld [vmem:[#allocation24 + $0x3e0] sm:$0xff]
    %v7738 = vld [vmem:[#allocation24 + $0x3e8] sm:$0xff]
    %v7739 = vld [vmem:[#allocation24 + $0x3f0] sm:$0xff]
    %v7740 = vld [vmem:[#allocation24 + $0x3f8] sm:$0xff]
    %v7741 = vld [vmem:[#allocation25] sm:$0xff]
    %v7742 = vld [vmem:[#allocation25 + $0x8] sm:$0xff]
    %v7745 = vlaneseq
    %v7746 = vshrl.u32 %v7745, 7
    %v7747 = vsub.s32 0, %v7746
    %v7748 = vrot.slane %v7741, %v7747
    %v7749 = vlaneseq
    %v7750 = vshrl.u32 %v7749, 7
    %v7751 = vsub.s32 1, %v7750
    %v7752 = vrot.slane %v7741, %v7751
    %v7753 = vlaneseq
    %v7754 = vshrl.u32 %v7753, 7
    %v7755 = vsub.s32 2, %v7754
    %v7756 = vrot.slane %v7741, %v7755
    %v7757 = vlaneseq
    %v7758 = vshrl.u32 %v7757, 7
    %v7759 = vsub.s32 3, %v7758
    %v7760 = vrot.slane %v7741, %v7759
    %v7761 = vlaneseq
    %v7762 = vshrl.u32 %v7761, 7
    %v7763 = vsub.s32 4, %v7762
    %v7764 = vrot.slane %v7741, %v7763
    %v7765 = vlaneseq
    %v7766 = vshrl.u32 %v7765, 7
    %v7767 = vsub.s32 5, %v7766
    %v7768 = vrot.slane %v7741, %v7767
    %v7769 = vlaneseq
    %v7770 = vshrl.u32 %v7769, 7
    %v7771 = vsub.s32 6, %v7770
    %v7772 = vrot.slane %v7741, %v7771
    %v7773 = vlaneseq
    %v7774 = vshrl.u32 %v7773, 7
    %v7775 = vsub.s32 7, %v7774
    %v7776 = vrot.slane %v7741, %v7775
    %v7777 = vlaneseq
    %v7778 = vshrl.u32 %v7777, 7
    %v7779 = vsub.s32 0, %v7778
    %v7780 = vrot.slane %v7742, %v7779
    %v7781 = vlaneseq
    %v7782 = vshrl.u32 %v7781, 7
    %v7783 = vsub.s32 1, %v7782
    %v7784 = vrot.slane %v7742, %v7783
    %v7785 = vlaneseq
    %v7786 = vshrl.u32 %v7785, 7
    %v7787 = vsub.s32 2, %v7786
    %v7788 = vrot.slane %v7742, %v7787
    %v7789 = vlaneseq
    %v7790 = vshrl.u32 %v7789, 7
    %v7791 = vsub.s32 3, %v7790
    %v7792 = vrot.slane %v7742, %v7791
    %v7793 = vlaneseq
    %v7794 = vshrl.u32 %v7793, 7
    %v7795 = vsub.s32 4, %v7794
    %v7796 = vrot.slane %v7742, %v7795
    %v7797 = vlaneseq
    %v7798 = vshrl.u32 %v7797, 7
    %v7799 = vsub.s32 5, %v7798
    %v7800 = vrot.slane %v7742, %v7799
    %v7801 = vlaneseq
    %v7802 = vshrl.u32 %v7801, 7
    %v7803 = vsub.s32 6, %v7802
    %v7804 = vrot.slane %v7742, %v7803
    %v7805 = vlaneseq
    %v7806 = vshrl.u32 %v7805, 7
    %v7807 = vsub.s32 7, %v7806
    %v7808 = vrot.slane %v7742, %v7807
    %v7953 = vunpack.c.l.b16 %v7613
    %v7954 = vunpack.c.h.b16 %v7613
    %v7955 = vunpack.c.l.b16 %v7614
    %v7956 = vunpack.c.h.b16 %v7614
    %v7957 = vunpack.c.l.b16 %v7615
    %v7958 = vunpack.c.h.b16 %v7615
    %v7959 = vunpack.c.l.b16 %v7616
    %v7960 = vunpack.c.h.b16 %v7616
    %v7961 = vunpack.c.l.b16 %v7617
    %v7962 = vunpack.c.h.b16 %v7617
    %v7963 = vunpack.c.l.b16 %v7618
    %v7964 = vunpack.c.h.b16 %v7618
    %v7965 = vunpack.c.l.b16 %v7619
    %v7966 = vunpack.c.h.b16 %v7619
    %v7967 = vunpack.c.l.b16 %v7620
    %v7968 = vunpack.c.h.b16 %v7620
    %v7969 = vunpack.c.l.b16 %v7621
    %v7970 = vunpack.c.h.b16 %v7621
    %v7971 = vunpack.c.l.b16 %v7622
    %v7972 = vunpack.c.h.b16 %v7622
    %v7973 = vunpack.c.l.b16 %v7623
    %v7974 = vunpack.c.h.b16 %v7623
    %v7975 = vunpack.c.l.b16 %v7624
    %v7976 = vunpack.c.h.b16 %v7624
    %v7977 = vunpack.c.l.b16 %v7625
    %v7978 = vunpack.c.h.b16 %v7625
    %v7979 = vunpack.c.l.b16 %v7626
    %v7980 = vunpack.c.h.b16 %v7626
    %v7981 = vunpack.c.l.b16 %v7627
    %v7982 = vunpack.c.h.b16 %v7627
    %v7983 = vunpack.c.l.b16 %v7628
    %v7984 = vunpack.c.h.b16 %v7628
    %v7985 = vunpack.c.l.b16 %v7629
    %v7986 = vunpack.c.h.b16 %v7629
    %v7987 = vunpack.c.l.b16 %v7630
    %v7988 = vunpack.c.h.b16 %v7630
    %v7989 = vunpack.c.l.b16 %v7631
    %v7990 = vunpack.c.h.b16 %v7631
    %v7991 = vunpack.c.l.b16 %v7632
    %v7992 = vunpack.c.h.b16 %v7632
    %v7993 = vunpack.c.l.b16 %v7633
    %v7994 = vunpack.c.h.b16 %v7633
    %v7995 = vunpack.c.l.b16 %v7634
    %v7996 = vunpack.c.h.b16 %v7634
    %v7997 = vunpack.c.l.b16 %v7635
    %v7998 = vunpack.c.h.b16 %v7635
    %v7999 = vunpack.c.l.b16 %v7636
    %v8000 = vunpack.c.h.b16 %v7636
    %v8001 = vunpack.c.l.b16 %v7637
    %v8002 = vunpack.c.h.b16 %v7637
    %v8003 = vunpack.c.l.b16 %v7638
    %v8004 = vunpack.c.h.b16 %v7638
    %v8005 = vunpack.c.l.b16 %v7639
    %v8006 = vunpack.c.h.b16 %v7639
    %v8007 = vunpack.c.l.b16 %v7640
    %v8008 = vunpack.c.h.b16 %v7640
    %v8009 = vunpack.c.l.b16 %v7641
    %v8010 = vunpack.c.h.b16 %v7641
    %v8011 = vunpack.c.l.b16 %v7642
    %v8012 = vunpack.c.h.b16 %v7642
    %v8013 = vunpack.c.l.b16 %v7643
    %v8014 = vunpack.c.h.b16 %v7643
    %v8015 = vunpack.c.l.b16 %v7644
    %v8016 = vunpack.c.h.b16 %v7644
    %v8017 = vunpack.c.l.b16 %v7645
    %v8018 = vunpack.c.h.b16 %v7645
    %v8019 = vunpack.c.l.b16 %v7646
    %v8020 = vunpack.c.h.b16 %v7646
    %v8021 = vunpack.c.l.b16 %v7647
    %v8022 = vunpack.c.h.b16 %v7647
    %v8023 = vunpack.c.l.b16 %v7648
    %v8024 = vunpack.c.h.b16 %v7648
    %v8025 = vunpack.c.l.b16 %v7649
    %v8026 = vunpack.c.h.b16 %v7649
    %v8027 = vunpack.c.l.b16 %v7650
    %v8028 = vunpack.c.h.b16 %v7650
    %v8029 = vunpack.c.l.b16 %v7651
    %v8030 = vunpack.c.h.b16 %v7651
    %v8031 = vunpack.c.l.b16 %v7652
    %v8032 = vunpack.c.h.b16 %v7652
    %v8033 = vunpack.c.l.b16 %v7653
    %v8034 = vunpack.c.h.b16 %v7653
    %v8035 = vunpack.c.l.b16 %v7654
    %v8036 = vunpack.c.h.b16 %v7654
    %v8037 = vunpack.c.l.b16 %v7655
    %v8038 = vunpack.c.h.b16 %v7655
    %v8039 = vunpack.c.l.b16 %v7656
    %v8040 = vunpack.c.h.b16 %v7656
    %v8041 = vunpack.c.l.b16 %v7657
    %v8042 = vunpack.c.h.b16 %v7657
    %v8043 = vunpack.c.l.b16 %v7658
    %v8044 = vunpack.c.h.b16 %v7658
    %v8045 = vunpack.c.l.b16 %v7659
    %v8046 = vunpack.c.h.b16 %v7659
    %v8047 = vunpack.c.l.b16 %v7660
    %v8048 = vunpack.c.h.b16 %v7660
    %v8049 = vunpack.c.l.b16 %v7661
    %v8050 = vunpack.c.h.b16 %v7661
    %v8051 = vunpack.c.l.b16 %v7662
    %v8052 = vunpack.c.h.b16 %v7662
    %v8053 = vunpack.c.l.b16 %v7663
    %v8054 = vunpack.c.h.b16 %v7663
    %v8055 = vunpack.c.l.b16 %v7664
    %v8056 = vunpack.c.h.b16 %v7664
    %v8057 = vunpack.c.l.b16 %v7665
    %v8058 = vunpack.c.h.b16 %v7665
    %v8059 = vunpack.c.l.b16 %v7666
    %v8060 = vunpack.c.h.b16 %v7666
    %v8061 = vunpack.c.l.b16 %v7667
    %v8062 = vunpack.c.h.b16 %v7667
    %v8063 = vunpack.c.l.b16 %v7668
    %v8064 = vunpack.c.h.b16 %v7668
    %v8065 = vunpack.c.l.b16 %v7669
    %v8066 = vunpack.c.h.b16 %v7669
    %v8067 = vunpack.c.l.b16 %v7670
    %v8068 = vunpack.c.h.b16 %v7670
    %v8069 = vunpack.c.l.b16 %v7671
    %v8070 = vunpack.c.h.b16 %v7671
    %v8071 = vunpack.c.l.b16 %v7672
    %v8072 = vunpack.c.h.b16 %v7672
    %v8073 = vunpack.c.l.b16 %v7673
    %v8074 = vunpack.c.h.b16 %v7673
    %v8075 = vunpack.c.l.b16 %v7674
    %v8076 = vunpack.c.h.b16 %v7674
    %v8077 = vunpack.c.l.b16 %v7675
    %v8078 = vunpack.c.h.b16 %v7675
    %v8079 = vunpack.c.l.b16 %v7676
    %v8080 = vunpack.c.h.b16 %v7676
    %v8081 = vunpack.c.l.b16 %v7677
    %v8082 = vunpack.c.h.b16 %v7677
    %v8083 = vunpack.c.l.b16 %v7678
    %v8084 = vunpack.c.h.b16 %v7678
    %v8085 = vunpack.c.l.b16 %v7679
    %v8086 = vunpack.c.h.b16 %v7679
    %v8087 = vunpack.c.l.b16 %v7680
    %v8088 = vunpack.c.h.b16 %v7680
    %v8089 = vunpack.c.l.b16 %v7681
    %v8090 = vunpack.c.h.b16 %v7681
    %v8091 = vunpack.c.l.b16 %v7682
    %v8092 = vunpack.c.h.b16 %v7682
    %v8093 = vunpack.c.l.b16 %v7683
    %v8094 = vunpack.c.h.b16 %v7683
    %v8095 = vunpack.c.l.b16 %v7684
    %v8096 = vunpack.c.h.b16 %v7684
    %v8097 = vunpack.c.l.b16 %v7685
    %v8098 = vunpack.c.h.b16 %v7685
    %v8099 = vunpack.c.l.b16 %v7686
    %v8100 = vunpack.c.h.b16 %v7686
    %v8101 = vunpack.c.l.b16 %v7687
    %v8102 = vunpack.c.h.b16 %v7687
    %v8103 = vunpack.c.l.b16 %v7688
    %v8104 = vunpack.c.h.b16 %v7688
    %v8105 = vunpack.c.l.b16 %v7689
    %v8106 = vunpack.c.h.b16 %v7689
    %v8107 = vunpack.c.l.b16 %v7690
    %v8108 = vunpack.c.h.b16 %v7690
    %v8109 = vunpack.c.l.b16 %v7691
    %v8110 = vunpack.c.h.b16 %v7691
    %v8111 = vunpack.c.l.b16 %v7692
    %v8112 = vunpack.c.h.b16 %v7692
    %v8113 = vunpack.c.l.b16 %v7693
    %v8114 = vunpack.c.h.b16 %v7693
    %v8115 = vunpack.c.l.b16 %v7694
    %v8116 = vunpack.c.h.b16 %v7694
    %v8117 = vunpack.c.l.b16 %v7695
    %v8118 = vunpack.c.h.b16 %v7695
    %v8119 = vunpack.c.l.b16 %v7696
    %v8120 = vunpack.c.h.b16 %v7696
    %v8121 = vunpack.c.l.b16 %v7697
    %v8122 = vunpack.c.h.b16 %v7697
    %v8123 = vunpack.c.l.b16 %v7698
    %v8124 = vunpack.c.h.b16 %v7698
    %v8125 = vunpack.c.l.b16 %v7699
    %v8126 = vunpack.c.h.b16 %v7699
    %v8127 = vunpack.c.l.b16 %v7700
    %v8128 = vunpack.c.h.b16 %v7700
    %v8129 = vunpack.c.l.b16 %v7701
    %v8130 = vunpack.c.h.b16 %v7701
    %v8131 = vunpack.c.l.b16 %v7702
    %v8132 = vunpack.c.h.b16 %v7702
    %v8133 = vunpack.c.l.b16 %v7703
    %v8134 = vunpack.c.h.b16 %v7703
    %v8135 = vunpack.c.l.b16 %v7704
    %v8136 = vunpack.c.h.b16 %v7704
    %v8137 = vunpack.c.l.b16 %v7705
    %v8138 = vunpack.c.h.b16 %v7705
    %v8139 = vunpack.c.l.b16 %v7706
    %v8140 = vunpack.c.h.b16 %v7706
    %v8141 = vunpack.c.l.b16 %v7707
    %v8142 = vunpack.c.h.b16 %v7707
    %v8143 = vunpack.c.l.b16 %v7708
    %v8144 = vunpack.c.h.b16 %v7708
    %v8145 = vunpack.c.l.b16 %v7709
    %v8146 = vunpack.c.h.b16 %v7709
    %v8147 = vunpack.c.l.b16 %v7710
    %v8148 = vunpack.c.h.b16 %v7710
    %v8149 = vunpack.c.l.b16 %v7711
    %v8150 = vunpack.c.h.b16 %v7711
    %v8151 = vunpack.c.l.b16 %v7712
    %v8152 = vunpack.c.h.b16 %v7712
    %v8153 = vunpack.c.l.b16 %v7713
    %v8154 = vunpack.c.h.b16 %v7713
    %v8155 = vunpack.c.l.b16 %v7714
    %v8156 = vunpack.c.h.b16 %v7714
    %v8157 = vunpack.c.l.b16 %v7715
    %v8158 = vunpack.c.h.b16 %v7715
    %v8159 = vunpack.c.l.b16 %v7716
    %v8160 = vunpack.c.h.b16 %v7716
    %v8161 = vunpack.c.l.b16 %v7717
    %v8162 = vunpack.c.h.b16 %v7717
    %v8163 = vunpack.c.l.b16 %v7718
    %v8164 = vunpack.c.h.b16 %v7718
    %v8165 = vunpack.c.l.b16 %v7719
    %v8166 = vunpack.c.h.b16 %v7719
    %v8167 = vunpack.c.l.b16 %v7720
    %v8168 = vunpack.c.h.b16 %v7720
    %v8169 = vunpack.c.l.b16 %v7721
    %v8170 = vunpack.c.h.b16 %v7721
    %v8171 = vunpack.c.l.b16 %v7722
    %v8172 = vunpack.c.h.b16 %v7722
    %v8173 = vunpack.c.l.b16 %v7723
    %v8174 = vunpack.c.h.b16 %v7723
    %v8175 = vunpack.c.l.b16 %v7724
    %v8176 = vunpack.c.h.b16 %v7724
    %v8177 = vunpack.c.l.b16 %v7725
    %v8178 = vunpack.c.h.b16 %v7725
    %v8179 = vunpack.c.l.b16 %v7726
    %v8180 = vunpack.c.h.b16 %v7726
    %v8181 = vunpack.c.l.b16 %v7727
    %v8182 = vunpack.c.h.b16 %v7727
    %v8183 = vunpack.c.l.b16 %v7728
    %v8184 = vunpack.c.h.b16 %v7728
    %v8185 = vunpack.c.l.b16 %v7729
    %v8186 = vunpack.c.h.b16 %v7729
    %v8187 = vunpack.c.l.b16 %v7730
    %v8188 = vunpack.c.h.b16 %v7730
    %v8189 = vunpack.c.l.b16 %v7731
    %v8190 = vunpack.c.h.b16 %v7731
    %v8191 = vunpack.c.l.b16 %v7732
    %v8192 = vunpack.c.h.b16 %v7732
    %v8193 = vunpack.c.l.b16 %v7733
    %v8194 = vunpack.c.h.b16 %v7733
    %v8195 = vunpack.c.l.b16 %v7734
    %v8196 = vunpack.c.h.b16 %v7734
    %v8197 = vunpack.c.l.b16 %v7735
    %v8198 = vunpack.c.h.b16 %v7735
    %v8199 = vunpack.c.l.b16 %v7736
    %v8200 = vunpack.c.h.b16 %v7736
    %v8201 = vunpack.c.l.b16 %v7737
    %v8202 = vunpack.c.h.b16 %v7737
    %v8203 = vunpack.c.l.b16 %v7738
    %v8204 = vunpack.c.h.b16 %v7738
    %v8205 = vunpack.c.l.b16 %v7739
    %v8206 = vunpack.c.h.b16 %v7739
    %v8207 = vunpack.c.l.b16 %v7740
    %v8208 = vunpack.c.h.b16 %v7740
    %v8209 = vpack.c.b16 %v7969, %v7953
    %v8210 = vpack.c.b16 %v7970, %v7954
    %v8211 = vpack.c.b16 %v7971, %v7955
    %v8212 = vpack.c.b16 %v7972, %v7956
    %v8213 = vpack.c.b16 %v7973, %v7957
    %v8214 = vpack.c.b16 %v7974, %v7958
    %v8215 = vpack.c.b16 %v7975, %v7959
    %v8216 = vpack.c.b16 %v7976, %v7960
    %v8217 = vpack.c.b16 %v7977, %v7961
    %v8218 = vpack.c.b16 %v7978, %v7962
    %v8219 = vpack.c.b16 %v7979, %v7963
    %v8220 = vpack.c.b16 %v7980, %v7964
    %v8221 = vpack.c.b16 %v7981, %v7965
    %v8222 = vpack.c.b16 %v7982, %v7966
    %v8223 = vpack.c.b16 %v7983, %v7967
    %v8224 = vpack.c.b16 %v7984, %v7968
    %v8225 = vpack.c.b16 %v8001, %v7985
    %v8226 = vpack.c.b16 %v8002, %v7986
    %v8227 = vpack.c.b16 %v8003, %v7987
    %v8228 = vpack.c.b16 %v8004, %v7988
    %v8229 = vpack.c.b16 %v8005, %v7989
    %v8230 = vpack.c.b16 %v8006, %v7990
    %v8231 = vpack.c.b16 %v8007, %v7991
    %v8232 = vpack.c.b16 %v8008, %v7992
    %v8233 = vpack.c.b16 %v8009, %v7993
    %v8234 = vpack.c.b16 %v8010, %v7994
    %v8235 = vpack.c.b16 %v8011, %v7995
    %v8236 = vpack.c.b16 %v8012, %v7996
    %v8237 = vpack.c.b16 %v8013, %v7997
    %v8238 = vpack.c.b16 %v8014, %v7998
    %v8239 = vpack.c.b16 %v8015, %v7999
    %v8240 = vpack.c.b16 %v8016, %v8000
    %v8241 = vpack.c.b16 %v8033, %v8017
    %v8242 = vpack.c.b16 %v8034, %v8018
    %v8243 = vpack.c.b16 %v8035, %v8019
    %v8244 = vpack.c.b16 %v8036, %v8020
    %v8245 = vpack.c.b16 %v8037, %v8021
    %v8246 = vpack.c.b16 %v8038, %v8022
    %v8247 = vpack.c.b16 %v8039, %v8023
    %v8248 = vpack.c.b16 %v8040, %v8024
    %v8249 = vpack.c.b16 %v8041, %v8025
    %v8250 = vpack.c.b16 %v8042, %v8026
    %v8251 = vpack.c.b16 %v8043, %v8027
    %v8252 = vpack.c.b16 %v8044, %v8028
    %v8253 = vpack.c.b16 %v8045, %v8029
    %v8254 = vpack.c.b16 %v8046, %v8030
    %v8255 = vpack.c.b16 %v8047, %v8031
    %v8256 = vpack.c.b16 %v8048, %v8032
    %v8257 = vpack.c.b16 %v8065, %v8049
    %v8258 = vpack.c.b16 %v8066, %v8050
    %v8259 = vpack.c.b16 %v8067, %v8051
    %v8260 = vpack.c.b16 %v8068, %v8052
    %v8261 = vpack.c.b16 %v8069, %v8053
    %v8262 = vpack.c.b16 %v8070, %v8054
    %v8263 = vpack.c.b16 %v8071, %v8055
    %v8264 = vpack.c.b16 %v8072, %v8056
    %v8265 = vpack.c.b16 %v8073, %v8057
    %v8266 = vpack.c.b16 %v8074, %v8058
    %v8267 = vpack.c.b16 %v8075, %v8059
    %v8268 = vpack.c.b16 %v8076, %v8060
    %v8269 = vpack.c.b16 %v8077, %v8061
    %v8270 = vpack.c.b16 %v8078, %v8062
    %v8271 = vpack.c.b16 %v8079, %v8063
    %v8272 = vpack.c.b16 %v8080, %v8064
    %v8273 = vpack.c.b16 %v8097, %v8081
    %v8274 = vpack.c.b16 %v8098, %v8082
    %v8275 = vpack.c.b16 %v8099, %v8083
    %v8276 = vpack.c.b16 %v8100, %v8084
    %v8277 = vpack.c.b16 %v8101, %v8085
    %v8278 = vpack.c.b16 %v8102, %v8086
    %v8279 = vpack.c.b16 %v8103, %v8087
    %v8280 = vpack.c.b16 %v8104, %v8088
    %v8281 = vpack.c.b16 %v8105, %v8089
    %v8282 = vpack.c.b16 %v8106, %v8090
    %v8283 = vpack.c.b16 %v8107, %v8091
    %v8284 = vpack.c.b16 %v8108, %v8092
    %v8285 = vpack.c.b16 %v8109, %v8093
    %v8286 = vpack.c.b16 %v8110, %v8094
    %v8287 = vpack.c.b16 %v8111, %v8095
    %v8288 = vpack.c.b16 %v8112, %v8096
    %v8289 = vpack.c.b16 %v8129, %v8113
    %v8290 = vpack.c.b16 %v8130, %v8114
    %v8291 = vpack.c.b16 %v8131, %v8115
    %v8292 = vpack.c.b16 %v8132, %v8116
    %v8293 = vpack.c.b16 %v8133, %v8117
    %v8294 = vpack.c.b16 %v8134, %v8118
    %v8295 = vpack.c.b16 %v8135, %v8119
    %v8296 = vpack.c.b16 %v8136, %v8120
    %v8297 = vpack.c.b16 %v8137, %v8121
    %v8298 = vpack.c.b16 %v8138, %v8122
    %v8299 = vpack.c.b16 %v8139, %v8123
    %v8300 = vpack.c.b16 %v8140, %v8124
    %v8301 = vpack.c.b16 %v8141, %v8125
    %v8302 = vpack.c.b16 %v8142, %v8126
    %v8303 = vpack.c.b16 %v8143, %v8127
    %v8304 = vpack.c.b16 %v8144, %v8128
    %v8305 = vpack.c.b16 %v8161, %v8145
    %v8306 = vpack.c.b16 %v8162, %v8146
    %v8307 = vpack.c.b16 %v8163, %v8147
    %v8308 = vpack.c.b16 %v8164, %v8148
    %v8309 = vpack.c.b16 %v8165, %v8149
    %v8310 = vpack.c.b16 %v8166, %v8150
    %v8311 = vpack.c.b16 %v8167, %v8151
    %v8312 = vpack.c.b16 %v8168, %v8152
    %v8313 = vpack.c.b16 %v8169, %v8153
    %v8314 = vpack.c.b16 %v8170, %v8154
    %v8315 = vpack.c.b16 %v8171, %v8155
    %v8316 = vpack.c.b16 %v8172, %v8156
    %v8317 = vpack.c.b16 %v8173, %v8157
    %v8318 = vpack.c.b16 %v8174, %v8158
    %v8319 = vpack.c.b16 %v8175, %v8159
    %v8320 = vpack.c.b16 %v8176, %v8160
    %v8321 = vpack.c.b16 %v8193, %v8177
    %v8322 = vpack.c.b16 %v8194, %v8178
    %v8323 = vpack.c.b16 %v8195, %v8179
    %v8324 = vpack.c.b16 %v8196, %v8180
    %v8325 = vpack.c.b16 %v8197, %v8181
    %v8326 = vpack.c.b16 %v8198, %v8182
    %v8327 = vpack.c.b16 %v8199, %v8183
    %v8328 = vpack.c.b16 %v8200, %v8184
    %v8329 = vpack.c.b16 %v8201, %v8185
    %v8330 = vpack.c.b16 %v8202, %v8186
    %v8331 = vpack.c.b16 %v8203, %v8187
    %v8332 = vpack.c.b16 %v8204, %v8188
    %v8333 = vpack.c.b16 %v8205, %v8189
    %v8334 = vpack.c.b16 %v8206, %v8190
    %v8335 = vpack.c.b16 %v8207, %v8191
    %v8336 = vpack.c.b16 %v8208, %v8192
    %8465 = vmatprep.subr.bf16.mxu0 %v8210
    %8466 = vmatpush1.bf16.msra.mxu0 %v8209
    %8467 = vmatprep.subr.bf16.mxu0 %v8226
    %8468 = vmatpush1.bf16.msra.mxu0 %v8225
    %8469 = vmatprep.subr.bf16.mxu0 %v8242
    %8470 = vmatpush1.bf16.msra.mxu0 %v8241
    %8471 = vmatprep.subr.bf16.mxu0 %v8258
    %8472 = vmatpush1.bf16.msra.mxu0 %v8257
    %8473 = vmatprep.subr.bf16.mxu0 %v8274
    %8474 = vmatpush1.bf16.msra.mxu0 %v8273
    %8475 = vmatprep.subr.bf16.mxu0 %v8290
    %8476 = vmatpush1.bf16.msra.mxu0 %v8289
    %8477 = vmatprep.subr.bf16.mxu0 %v8306
    %8478 = vmatpush1.bf16.msra.mxu0 %v8305
    %8479 = vmatprep.subr.bf16.mxu0 %v8322
    %8480 = vmatpush1.bf16.msra.mxu0 %v8321
    %8481 = vmatprep.subr.bf16.mxu0 0
    %8482 = vmatpush1.bf16.msra.mxu0 0
    %8483 = vmatprep.subr.bf16.mxu0 0
    %8484 = vmatpush1.bf16.msra.mxu0 0
    %8485 = vmatprep.subr.bf16.mxu0 0
    %8486 = vmatpush1.bf16.msra.mxu0 0
    %8487 = vmatprep.subr.bf16.mxu0 0
    %8488 = vmatpush1.bf16.msra.mxu0 0
    %8489 = vmatprep.subr.bf16.mxu0 0
    %8490 = vmatpush1.bf16.msra.mxu0 0
    %8491 = vmatprep.subr.bf16.mxu0 0
    %8492 = vmatpush1.bf16.msra.mxu0 0
    %8493 = vmatprep.subr.bf16.mxu0 0
    %8494 = vmatpush1.bf16.msra.mxu0 0
    %8495 = vmatprep.subr.bf16.mxu0 0
    %8496 = vmatpush1.bf16.msra.mxu0 0
    %8497 = vmatprep.mubr.bf16.mxu0 0
    %8498 = vmatmul.mubr.bf16.gmra.mrb[0].mxu0 %v7612
    %v8499 = vpop.f32.mrb[0].mxu0
    %v8500 = vadd.f32 %v7748, %v8499
    %v8501 = vpop.f32.mrb[0].mxu0
    %v8502 = vadd.f32 %v7752, %v8501
    %v8503 = vpop.f32.mrb[0].mxu0
    %v8504 = vpop.f32.mrb[0].mxu0
    %8505 = vdwg.mxu0
    %8506 = vmatprep.subr.bf16.mxu0 %v8212
    %8507 = vmatpush1.bf16.msra.mxu0 %v8211
    %8508 = vmatprep.subr.bf16.mxu0 %v8228
    %8509 = vmatpush1.bf16.msra.mxu0 %v8227
    %8510 = vmatprep.subr.bf16.mxu0 %v8244
    %8511 = vmatpush1.bf16.msra.mxu0 %v8243
    %8512 = vmatprep.subr.bf16.mxu0 %v8260
    %8513 = vmatpush1.bf16.msra.mxu0 %v8259
    %8514 = vmatprep.subr.bf16.mxu0 %v8276
    %8515 = vmatpush1.bf16.msra.mxu0 %v8275
    %8516 = vmatprep.subr.bf16.mxu0 %v8292
    %8517 = vmatpush1.bf16.msra.mxu0 %v8291
    %8518 = vmatprep.subr.bf16.mxu0 %v8308
    %8519 = vmatpush1.bf16.msra.mxu0 %v8307
    %8520 = vmatprep.subr.bf16.mxu0 %v8324
    %8521 = vmatpush1.bf16.msra.mxu0 %v8323
    %8522 = vmatprep.subr.bf16.mxu0 0
    %8523 = vmatpush1.bf16.msra.mxu0 0
    %8524 = vmatprep.subr.bf16.mxu0 0
    %8525 = vmatpush1.bf16.msra.mxu0 0
    %8526 = vmatprep.subr.bf16.mxu0 0
    %8527 = vmatpush1.bf16.msra.mxu0 0
    %8528 = vmatprep.subr.bf16.mxu0 0
    %8529 = vmatpush1.bf16.msra.mxu0 0
    %8530 = vmatprep.subr.bf16.mxu0 0
    %8531 = vmatpush1.bf16.msra.mxu0 0
    %8532 = vmatprep.subr.bf16.mxu0 0
    %8533 = vmatpush1.bf16.msra.mxu0 0
    %8534 = vmatprep.subr.bf16.mxu0 0
    %8535 = vmatpush1.bf16.msra.mxu0 0
    %8536 = vmatprep.subr.bf16.mxu0 0
    %8537 = vmatpush1.bf16.msra.mxu0 0
    %8538 = vmatprep.mubr.bf16.mxu0 0
    %8539 = vmatmul.mubr.bf16.gmra.mrb[0].mxu0 %v7612
    %v8540 = vpop.f32.mrb[0].mxu0
    %v8541 = vadd.f32 %v7756, %v8540
    %v8542 = vpop.f32.mrb[0].mxu0
    %v8543 = vadd.f32 %v7760, %v8542
    %v8544 = vpop.f32.mrb[0].mxu0
    %v8545 = vpop.f32.mrb[0].mxu0
    %8546 = vdwg.mxu0
    %8547 = vmatprep.subr.bf16.mxu0 %v8214
    %8548 = vmatpush1.bf16.msra.mxu0 %v8213
    %8549 = vmatprep.subr.bf16.mxu0 %v8230
    %8550 = vmatpush1.bf16.msra.mxu0 %v8229
    %8551 = vmatprep.subr.bf16.mxu0 %v8246
    %8552 = vmatpush1.bf16.msra.mxu0 %v8245
    %8553 = vmatprep.subr.bf16.mxu0 %v8262
    %8554 = vmatpush1.bf16.msra.mxu0 %v8261
    %8555 = vmatprep.subr.bf16.mxu0 %v8278
    %8556 = vmatpush1.bf16.msra.mxu0 %v8277
    %8557 = vmatprep.subr.bf16.mxu0 %v8294
    %8558 = vmatpush1.bf16.msra.mxu0 %v8293
    %8559 = vmatprep.subr.bf16.mxu0 %v8310
    %8560 = vmatpush1.bf16.msra.mxu0 %v8309
    %8561 = vmatprep.subr.bf16.mxu0 %v8326
    %8562 = vmatpush1.bf16.msra.mxu0 %v8325
    %8563 = vmatprep.subr.bf16.mxu0 0
    %8564 = vmatpush1.bf16.msra.mxu0 0
    %8565 = vmatprep.subr.bf16.mxu0 0
    %8566 = vmatpush1.bf16.msra.mxu0 0
    %8567 = vmatprep.subr.bf16.mxu0 0
    %8568 = vmatpush1.bf16.msra.mxu0 0
    %8569 = vmatprep.subr.bf16.mxu0 0
    %8570 = vmatpush1.bf16.msra.mxu0 0
    %8571 = vmatprep.subr.bf16.mxu0 0
    %8572 = vmatpush1.bf16.msra.mxu0 0
    %8573 = vmatprep.subr.bf16.mxu0 0
    %8574 = vmatpush1.bf16.msra.mxu0 0
    %8575 = vmatprep.subr.bf16.mxu0 0
    %8576 = vmatpush1.bf16.msra.mxu0 0
    %8577 = vmatprep.subr.bf16.mxu0 0
    %8578 = vmatpush1.bf16.msra.mxu0 0
    %8579 = vmatprep.mubr.bf16.mxu0 0
    %8580 = vmatmul.mubr.bf16.gmra.mrb[0].mxu0 %v7612
    %v8581 = vpop.f32.mrb[0].mxu0
    %v8582 = vadd.f32 %v7764, %v8581
    %v8583 = vpop.f32.mrb[0].mxu0
    %v8584 = vadd.f32 %v7768, %v8583
    %v8585 = vpop.f32.mrb[0].mxu0
    %v8586 = vpop.f32.mrb[0].mxu0
    %8587 = vdwg.mxu0
    %8588 = vmatprep.subr.bf16.mxu0 %v8216
    %8589 = vmatpush1.bf16.msra.mxu0 %v8215
    %8590 = vmatprep.subr.bf16.mxu0 %v8232
    %8591 = vmatpush1.bf16.msra.mxu0 %v8231
    %8592 = vmatprep.subr.bf16.mxu0 %v8248
    %8593 = vmatpush1.bf16.msra.mxu0 %v8247
    %8594 = vmatprep.subr.bf16.mxu0 %v8264
    %8595 = vmatpush1.bf16.msra.mxu0 %v8263
    %8596 = vmatprep.subr.bf16.mxu0 %v8280
    %8597 = vmatpush1.bf16.msra.mxu0 %v8279
    %8598 = vmatprep.subr.bf16.mxu0 %v8296
    %8599 = vmatpush1.bf16.msra.mxu0 %v8295
    %8600 = vmatprep.subr.bf16.mxu0 %v8312
    %8601 = vmatpush1.bf16.msra.mxu0 %v8311
    %8602 = vmatprep.subr.bf16.mxu0 %v8328
    %8603 = vmatpush1.bf16.msra.mxu0 %v8327
    %8604 = vmatprep.subr.bf16.mxu0 0
    %8605 = vmatpush1.bf16.msra.mxu0 0
    %8606 = vmatprep.subr.bf16.mxu0 0
    %8607 = vmatpush1.bf16.msra.mxu0 0
    %8608 = vmatprep.subr.bf16.mxu0 0
    %8609 = vmatpush1.bf16.msra.mxu0 0
    %8610 = vmatprep.subr.bf16.mxu0 0
    %8611 = vmatpush1.bf16.msra.mxu0 0
    %8612 = vmatprep.subr.bf16.mxu0 0
    %8613 = vmatpush1.bf16.msra.mxu0 0
    %8614 = vmatprep.subr.bf16.mxu0 0
    %8615 = vmatpush1.bf16.msra.mxu0 0
    %8616 = vmatprep.subr.bf16.mxu0 0
    %8617 = vmatpush1.bf16.msra.mxu0 0
    %8618 = vmatprep.subr.bf16.mxu0 0
    %8619 = vmatpush1.bf16.msra.mxu0 0
    %8620 = vmatprep.mubr.bf16.mxu0 0
    %8621 = vmatmul.mubr.bf16.gmra.mrb[0].mxu0 %v7612
    %v8622 = vpop.f32.mrb[0].mxu0
    %v8623 = vadd.f32 %v7772, %v8622
    %v8624 = vpop.f32.mrb[0].mxu0
    %v8625 = vadd.f32 %v7776, %v8624
    %v8626 = vpop.f32.mrb[0].mxu0
    %v8627 = vpop.f32.mrb[0].mxu0
    %8628 = vdwg.mxu0
    %8629 = vmatprep.subr.bf16.mxu0 %v8218
    %8630 = vmatpush1.bf16.msra.mxu0 %v8217
    %8631 = vmatprep.subr.bf16.mxu0 %v8234
    %8632 = vmatpush1.bf16.msra.mxu0 %v8233
    %8633 = vmatprep.subr.bf16.mxu0 %v8250
    %8634 = vmatpush1.bf16.msra.mxu0 %v8249
    %8635 = vmatprep.subr.bf16.mxu0 %v8266
    %8636 = vmatpush1.bf16.msra.mxu0 %v8265
    %8637 = vmatprep.subr.bf16.mxu0 %v8282
    %8638 = vmatpush1.bf16.msra.mxu0 %v8281
    %8639 = vmatprep.subr.bf16.mxu0 %v8298
    %8640 = vmatpush1.bf16.msra.mxu0 %v8297
    %8641 = vmatprep.subr.bf16.mxu0 %v8314
    %8642 = vmatpush1.bf16.msra.mxu0 %v8313
    %8643 = vmatprep.subr.bf16.mxu0 %v8330
    %8644 = vmatpush1.bf16.msra.mxu0 %v8329
    %8645 = vmatprep.subr.bf16.mxu0 0
    %8646 = vmatpush1.bf16.msra.mxu0 0
    %8647 = vmatprep.subr.bf16.mxu0 0
    %8648 = vmatpush1.bf16.msra.mxu0 0
    %8649 = vmatprep.subr.bf16.mxu0 0
    %8650 = vmatpush1.bf16.msra.mxu0 0
    %8651 = vmatprep.subr.bf16.mxu0 0
    %8652 = vmatpush1.bf16.msra.mxu0 0
    %8653 = vmatprep.subr.bf16.mxu0 0
    %8654 = vmatpush1.bf16.msra.mxu0 0
    %8655 = vmatprep.subr.bf16.mxu0 0
    %8656 = vmatpush1.bf16.msra.mxu0 0
    %8657 = vmatprep.subr.bf16.mxu0 0
    %8658 = vmatpush1.bf16.msra.mxu0 0
    %8659 = vmatprep.subr.bf16.mxu0 0
    %8660 = vmatpush1.bf16.msra.mxu0 0
    %8661 = vmatprep.mubr.bf16.mxu0 0
    %8662 = vmatmul.mubr.bf16.gmra.mrb[0].mxu0 %v7612
    %v8663 = vpop.f32.mrb[0].mxu0
    %v8664 = vadd.f32 %v7780, %v8663
    %v8665 = vpop.f32.mrb[0].mxu0
    %v8666 = vadd.f32 %v7784, %v8665
    %v8667 = vpop.f32.mrb[0].mxu0
    %v8668 = vpop.f32.mrb[0].mxu0
    %8669 = vdwg.mxu0
    %8670 = vmatprep.subr.bf16.mxu0 %v8220
    %8671 = vmatpush1.bf16.msra.mxu0 %v8219
    %8672 = vmatprep.subr.bf16.mxu0 %v8236
    %8673 = vmatpush1.bf16.msra.mxu0 %v8235
    %8674 = vmatprep.subr.bf16.mxu0 %v8252
    %8675 = vmatpush1.bf16.msra.mxu0 %v8251
    %8676 = vmatprep.subr.bf16.mxu0 %v8268
    %8677 = vmatpush1.bf16.msra.mxu0 %v8267
    %8678 = vmatprep.subr.bf16.mxu0 %v8284
    %8679 = vmatpush1.bf16.msra.mxu0 %v8283
    %8680 = vmatprep.subr.bf16.mxu0 %v8300
    %8681 = vmatpush1.bf16.msra.mxu0 %v8299
    %8682 = vmatprep.subr.bf16.mxu0 %v8316
    %8683 = vmatpush1.bf16.msra.mxu0 %v8315
    %8684 = vmatprep.subr.bf16.mxu0 %v8332
    %8685 = vmatpush1.bf16.msra.mxu0 %v8331
    %8686 = vmatprep.subr.bf16.mxu0 0
    %8687 = vmatpush1.bf16.msra.mxu0 0
    %8688 = vmatprep.subr.bf16.mxu0 0
    %8689 = vmatpush1.bf16.msra.mxu0 0
    %8690 = vmatprep.subr.bf16.mxu0 0
    %8691 = vmatpush1.bf16.msra.mxu0 0
    %8692 = vmatprep.subr.bf16.mxu0 0
    %8693 = vmatpush1.bf16.msra.mxu0 0
    %8694 = vmatprep.subr.bf16.mxu0 0
    %8695 = vmatpush1.bf16.msra.mxu0 0
    %8696 = vmatprep.subr.bf16.mxu0 0
    %8697 = vmatpush1.bf16.msra.mxu0 0
    %8698 = vmatprep.subr.bf16.mxu0 0
    %8699 = vmatpush1.bf16.msra.mxu0 0
    %8700 = vmatprep.subr.bf16.mxu0 0
    %8701 = vmatpush1.bf16.msra.mxu0 0
    %8702 = vmatprep.mubr.bf16.mxu0 0
    %8703 = vmatmul.mubr.bf16.gmra.mrb[0].mxu0 %v7612
    %v8704 = vpop.f32.mrb[0].mxu0
    %v8705 = vadd.f32 %v7788, %v8704
    %v8706 = vpop.f32.mrb[0].mxu0
    %v8707 = vadd.f32 %v7792, %v8706
    %v8708 = vpop.f32.mrb[0].mxu0
    %v8709 = vpop.f32.mrb[0].mxu0
    %8710 = vdwg.mxu0
    %8711 = vmatprep.subr.bf16.mxu0 %v8222
    %8712 = vmatpush1.bf16.msra.mxu0 %v8221
    %8713 = vmatprep.subr.bf16.mxu0 %v8238
    %8714 = vmatpush1.bf16.msra.mxu0 %v8237
    %8715 = vmatprep.subr.bf16.mxu0 %v8254
    %8716 = vmatpush1.bf16.msra.mxu0 %v8253
    %8717 = vmatprep.subr.bf16.mxu0 %v8270
    %8718 = vmatpush1.bf16.msra.mxu0 %v8269
    %8719 = vmatprep.subr.bf16.mxu0 %v8286
    %8720 = vmatpush1.bf16.msra.mxu0 %v8285
    %8721 = vmatprep.subr.bf16.mxu0 %v8302
    %8722 = vmatpush1.bf16.msra.mxu0 %v8301
    %8723 = vmatprep.subr.bf16.mxu0 %v8318
    %8724 = vmatpush1.bf16.msra.mxu0 %v8317
    %8725 = vmatprep.subr.bf16.mxu0 %v8334
    %8726 = vmatpush1.bf16.msra.mxu0 %v8333
    %8727 = vmatprep.subr.bf16.mxu0 0
    %8728 = vmatpush1.bf16.msra.mxu0 0
    %8729 = vmatprep.subr.bf16.mxu0 0
    %8730 = vmatpush1.bf16.msra.mxu0 0
    %8731 = vmatprep.subr.bf16.mxu0 0
    %8732 = vmatpush1.bf16.msra.mxu0 0
    %8733 = vmatprep.subr.bf16.mxu0 0
    %8734 = vmatpush1.bf16.msra.mxu0 0
    %8735 = vmatprep.subr.bf16.mxu0 0
    %8736 = vmatpush1.bf16.msra.mxu0 0
    %8737 = vmatprep.subr.bf16.mxu0 0
    %8738 = vmatpush1.bf16.msra.mxu0 0
    %8739 = vmatprep.subr.bf16.mxu0 0
    %8740 = vmatpush1.bf16.msra.mxu0 0
    %8741 = vmatprep.subr.bf16.mxu0 0
    %8742 = vmatpush1.bf16.msra.mxu0 0
    %8743 = vmatprep.mubr.bf16.mxu0 0
    %8744 = vmatmul.mubr.bf16.gmra.mrb[0].mxu0 %v7612
    %v8745 = vpop.f32.mrb[0].mxu0
    %v8746 = vadd.f32 %v7796, %v8745
    %v8747 = vpop.f32.mrb[0].mxu0
    %v8748 = vadd.f32 %v7800, %v8747
    %v8749 = vpop.f32.mrb[0].mxu0
    %v8750 = vpop.f32.mrb[0].mxu0
    %8751 = vdwg.mxu0
    %8752 = vmatprep.subr.bf16.mxu0 %v8224
    %8753 = vmatpush1.bf16.msra.mxu0 %v8223
    %8754 = vmatprep.subr.bf16.mxu0 %v8240
    %8755 = vmatpush1.bf16.msra.mxu0 %v8239
    %8756 = vmatprep.subr.bf16.mxu0 %v8256
    %8757 = vmatpush1.bf16.msra.mxu0 %v8255
    %8758 = vmatprep.subr.bf16.mxu0 %v8272
    %8759 = vmatpush1.bf16.msra.mxu0 %v8271
    %8760 = vmatprep.subr.bf16.mxu0 %v8288
    %8761 = vmatpush1.bf16.msra.mxu0 %v8287
    %8762 = vmatprep.subr.bf16.mxu0 %v8304
    %8763 = vmatpush1.bf16.msra.mxu0 %v8303
    %8764 = vmatprep.subr.bf16.mxu0 %v8320
    %8765 = vmatpush1.bf16.msra.mxu0 %v8319
    %8766 = vmatprep.subr.bf16.mxu0 %v8336
    %8767 = vmatpush1.bf16.msra.mxu0 %v8335
    %8768 = vmatprep.subr.bf16.mxu0 0
    %8769 = vmatpush1.bf16.msra.mxu0 0
    %8770 = vmatprep.subr.bf16.mxu0 0
    %8771 = vmatpush1.bf16.msra.mxu0 0
    %8772 = vmatprep.subr.bf16.mxu0 0
    %8773 = vmatpush1.bf16.msra.mxu0 0
    %8774 = vmatprep.subr.bf16.mxu0 0
    %8775 = vmatpush1.bf16.msra.mxu0 0
    %8776 = vmatprep.subr.bf16.mxu0 0
    %8777 = vmatpush1.bf16.msra.mxu0 0
    %8778 = vmatprep.subr.bf16.mxu0 0
    %8779 = vmatpush1.bf16.msra.mxu0 0
    %8780 = vmatprep.subr.bf16.mxu0 0
    %8781 = vmatpush1.bf16.msra.mxu0 0
    %8782 = vmatprep.subr.bf16.mxu0 0
    %8783 = vmatpush1.bf16.msra.mxu0 0
    %8784 = vmatprep.mubr.bf16.mxu0 0
    %8785 = vmatmul.mubr.bf16.gmra.mrb[0].mxu0 %v7612
    %v8786 = vpop.f32.mrb[0].mxu0
    %v8787 = vadd.f32 %v7804, %v8786
    %v8788 = vpop.f32.mrb[0].mxu0
    %v8789 = vadd.f32 %v7808, %v8788
    %v8790 = vpop.f32.mrb[0].mxu0
    %v8791 = vpop.f32.mrb[0].mxu0
    %8792 = vdwg.mxu0
    %v8793 = vmax.f32 %v8500, 0.0
    %v8794 = vmax.f32 %v8502, 0.0
    %v8795 = vmax.f32 %v8541, 0.0
    %v8796 = vmax.f32 %v8543, 0.0
    %v8797 = vmax.f32 %v8582, 0.0
    %v8798 = vmax.f32 %v8584, 0.0
    %v8799 = vmax.f32 %v8623, 0.0
    %v8800 = vmax.f32 %v8625, 0.0
    %v8801 = vmax.f32 %v8664, 0.0
    %v8802 = vmax.f32 %v8666, 0.0
    %v8803 = vmax.f32 %v8705, 0.0
    %v8804 = vmax.f32 %v8707, 0.0
    %v8805 = vmax.f32 %v8746, 0.0
    %v8806 = vmax.f32 %v8748, 0.0
    %v8807 = vmax.f32 %v8787, 0.0
    %v8808 = vmax.f32 %v8789, 0.0
    %v8809 = vpack.c.bf16 %v8793, %v8793
    %v8810 = vpack.c.bf16 %v8794, %v8794
    %v8811 = vpack.c.bf16 %v8795, %v8795
    %v8812 = vpack.c.bf16 %v8796, %v8796
    %v8813 = vpack.c.bf16 %v8797, %v8797
    %v8814 = vpack.c.bf16 %v8798, %v8798
    %v8815 = vpack.c.bf16 %v8799, %v8799
    %v8816 = vpack.c.bf16 %v8800, %v8800
    %v8817 = vpack.c.bf16 %v8801, %v8801
    %v8818 = vpack.c.bf16 %v8802, %v8802
    %v8819 = vpack.c.bf16 %v8803, %v8803
    %v8820 = vpack.c.bf16 %v8804, %v8804
    %v8821 = vpack.c.bf16 %v8805, %v8805
    %v8822 = vpack.c.bf16 %v8806, %v8806
    %v8823 = vpack.c.bf16 %v8807, %v8807
    %v8824 = vpack.c.bf16 %v8808, %v8808
    %v8825 = vld [vmem:[#allocation27] sm:$0xff]
    %v8826 = vld [vmem:[#allocation27 + $0x8] sm:$0xff]
    %v8827 = vld [vmem:[#allocation27 + $0x10] sm:$0xff]
    %v8828 = vld [vmem:[#allocation27 + $0x18] sm:$0xff]
    %v8829 = vld [vmem:[#allocation27 + $0x20] sm:$0xff]
    %v8830 = vld [vmem:[#allocation27 + $0x28] sm:$0xff]
    %v8831 = vld [vmem:[#allocation27 + $0x30] sm:$0xff]
    %v8832 = vld [vmem:[#allocation27 + $0x38] sm:$0xff]
    %v8833 = vld [vmem:[#allocation27 + $0x40] sm:$0xff]
    %v8834 = vld [vmem:[#allocation27 + $0x48] sm:$0xff]
    %v8835 = vld [vmem:[#allocation27 + $0x50] sm:$0xff]
    %v8836 = vld [vmem:[#allocation27 + $0x58] sm:$0xff]
    %v8837 = vld [vmem:[#allocation27 + $0x60] sm:$0xff]
    %v8838 = vld [vmem:[#allocation27 + $0x68] sm:$0xff]
    %v8839 = vld [vmem:[#allocation27 + $0x70] sm:$0xff]
    %v8840 = vld [vmem:[#allocation27 + $0x78] sm:$0xff]
    %v8841 = vld [vmem:[#allocation27 + $0x80] sm:$0xff]
    %v8842 = vld [vmem:[#allocation27 + $0x88] sm:$0xff]
    %v8843 = vld [vmem:[#allocation27 + $0x90] sm:$0xff]
    %v8844 = vld [vmem:[#allocation27 + $0x98] sm:$0xff]
    %v8845 = vld [vmem:[#allocation27 + $0xa0] sm:$0xff]
    %v8846 = vld [vmem:[#allocation27 + $0xa8] sm:$0xff]
    %v8847 = vld [vmem:[#allocation27 + $0xb0] sm:$0xff]
    %v8848 = vld [vmem:[#allocation27 + $0xb8] sm:$0xff]
    %v8849 = vld [vmem:[#allocation27 + $0xc0] sm:$0xff]
    %v8850 = vld [vmem:[#allocation27 + $0xc8] sm:$0xff]
    %v8851 = vld [vmem:[#allocation27 + $0xd0] sm:$0xff]
    %v8852 = vld [vmem:[#allocation27 + $0xd8] sm:$0xff]
    %v8853 = vld [vmem:[#allocation27 + $0xe0] sm:$0xff]
    %v8854 = vld [vmem:[#allocation27 + $0xe8] sm:$0xff]
    %v8855 = vld [vmem:[#allocation27 + $0xf0] sm:$0xff]
    %v8856 = vld [vmem:[#allocation27 + $0xf8] sm:$0xff]
    %v8857 = vld [vmem:[#allocation27 + $0x100] sm:$0xff]
    %v8858 = vld [vmem:[#allocation27 + $0x108] sm:$0xff]
    %v8859 = vld [vmem:[#allocation27 + $0x110] sm:$0xff]
    %v8860 = vld [vmem:[#allocation27 + $0x118] sm:$0xff]
    %v8861 = vld [vmem:[#allocation27 + $0x120] sm:$0xff]
    %v8862 = vld [vmem:[#allocation27 + $0x128] sm:$0xff]
    %v8863 = vld [vmem:[#allocation27 + $0x130] sm:$0xff]
    %v8864 = vld [vmem:[#allocation27 + $0x138] sm:$0xff]
    %v8865 = vld [vmem:[#allocation27 + $0x140] sm:$0xff]
    %v8866 = vld [vmem:[#allocation27 + $0x148] sm:$0xff]
    %v8867 = vld [vmem:[#allocation27 + $0x150] sm:$0xff]
    %v8868 = vld [vmem:[#allocation27 + $0x158] sm:$0xff]
    %v8869 = vld [vmem:[#allocation27 + $0x160] sm:$0xff]
    %v8870 = vld [vmem:[#allocation27 + $0x168] sm:$0xff]
    %v8871 = vld [vmem:[#allocation27 + $0x170] sm:$0xff]
    %v8872 = vld [vmem:[#allocation27 + $0x178] sm:$0xff]
    %v8873 = vld [vmem:[#allocation27 + $0x180] sm:$0xff]
    %v8874 = vld [vmem:[#allocation27 + $0x188] sm:$0xff]
    %v8875 = vld [vmem:[#allocation27 + $0x190] sm:$0xff]
    %v8876 = vld [vmem:[#allocation27 + $0x198] sm:$0xff]
    %v8877 = vld [vmem:[#allocation27 + $0x1a0] sm:$0xff]
    %v8878 = vld [vmem:[#allocation27 + $0x1a8] sm:$0xff]
    %v8879 = vld [vmem:[#allocation27 + $0x1b0] sm:$0xff]
    %v8880 = vld [vmem:[#allocation27 + $0x1b8] sm:$0xff]
    %v8881 = vld [vmem:[#allocation27 + $0x1c0] sm:$0xff]
    %v8882 = vld [vmem:[#allocation27 + $0x1c8] sm:$0xff]
    %v8883 = vld [vmem:[#allocation27 + $0x1d0] sm:$0xff]
    %v8884 = vld [vmem:[#allocation27 + $0x1d8] sm:$0xff]
    %v8885 = vld [vmem:[#allocation27 + $0x1e0] sm:$0xff]
    %v8886 = vld [vmem:[#allocation27 + $0x1e8] sm:$0xff]
    %v8887 = vld [vmem:[#allocation27 + $0x1f0] sm:$0xff]
    %v8888 = vld [vmem:[#allocation27 + $0x1f8] sm:$0xff]
    %v8889 = vld [vmem:[#allocation27 + $0x200] sm:$0xff]
    %v8890 = vld [vmem:[#allocation27 + $0x208] sm:$0xff]
    %v8891 = vld [vmem:[#allocation27 + $0x210] sm:$0xff]
    %v8892 = vld [vmem:[#allocation27 + $0x218] sm:$0xff]
    %v8893 = vld [vmem:[#allocation27 + $0x220] sm:$0xff]
    %v8894 = vld [vmem:[#allocation27 + $0x228] sm:$0xff]
    %v8895 = vld [vmem:[#allocation27 + $0x230] sm:$0xff]
    %v8896 = vld [vmem:[#allocation27 + $0x238] sm:$0xff]
    %v8897 = vld [vmem:[#allocation27 + $0x240] sm:$0xff]
    %v8898 = vld [vmem:[#allocation27 + $0x248] sm:$0xff]
    %v8899 = vld [vmem:[#allocation27 + $0x250] sm:$0xff]
    %v8900 = vld [vmem:[#allocation27 + $0x258] sm:$0xff]
    %v8901 = vld [vmem:[#allocation27 + $0x260] sm:$0xff]
    %v8902 = vld [vmem:[#allocation27 + $0x268] sm:$0xff]
    %v8903 = vld [vmem:[#allocation27 + $0x270] sm:$0xff]
    %v8904 = vld [vmem:[#allocation27 + $0x278] sm:$0xff]
    %v8905 = vld [vmem:[#allocation27 + $0x280] sm:$0xff]
    %v8906 = vld [vmem:[#allocation27 + $0x288] sm:$0xff]
    %v8907 = vld [vmem:[#allocation27 + $0x290] sm:$0xff]
    %v8908 = vld [vmem:[#allocation27 + $0x298] sm:$0xff]
    %v8909 = vld [vmem:[#allocation27 + $0x2a0] sm:$0xff]
    %v8910 = vld [vmem:[#allocation27 + $0x2a8] sm:$0xff]
    %v8911 = vld [vmem:[#allocation27 + $0x2b0] sm:$0xff]
    %v8912 = vld [vmem:[#allocation27 + $0x2b8] sm:$0xff]
    %v8913 = vld [vmem:[#allocation27 + $0x2c0] sm:$0xff]
    %v8914 = vld [vmem:[#allocation27 + $0x2c8] sm:$0xff]
    %v8915 = vld [vmem:[#allocation27 + $0x2d0] sm:$0xff]
    %v8916 = vld [vmem:[#allocation27 + $0x2d8] sm:$0xff]
    %v8917 = vld [vmem:[#allocation27 + $0x2e0] sm:$0xff]
    %v8918 = vld [vmem:[#allocation27 + $0x2e8] sm:$0xff]
    %v8919 = vld [vmem:[#allocation27 + $0x2f0] sm:$0xff]
    %v8920 = vld [vmem:[#allocation27 + $0x2f8] sm:$0xff]
    %v8921 = vld [vmem:[#allocation27 + $0x300] sm:$0xff]
    %v8922 = vld [vmem:[#allocation27 + $0x308] sm:$0xff]
    %v8923 = vld [vmem:[#allocation27 + $0x310] sm:$0xff]
    %v8924 = vld [vmem:[#allocation27 + $0x318] sm:$0xff]
    %v8925 = vld [vmem:[#allocation27 + $0x320] sm:$0xff]
    %v8926 = vld [vmem:[#allocation27 + $0x328] sm:$0xff]
    %v8927 = vld [vmem:[#allocation27 + $0x330] sm:$0xff]
    %v8928 = vld [vmem:[#allocation27 + $0x338] sm:$0xff]
    %v8929 = vld [vmem:[#allocation27 + $0x340] sm:$0xff]
    %v8930 = vld [vmem:[#allocation27 + $0x348] sm:$0xff]
    %v8931 = vld [vmem:[#allocation27 + $0x350] sm:$0xff]
    %v8932 = vld [vmem:[#allocation27 + $0x358] sm:$0xff]
    %v8933 = vld [vmem:[#allocation27 + $0x360] sm:$0xff]
    %v8934 = vld [vmem:[#allocation27 + $0x368] sm:$0xff]
    %v8935 = vld [vmem:[#allocation27 + $0x370] sm:$0xff]
    %v8936 = vld [vmem:[#allocation27 + $0x378] sm:$0xff]
    %v8937 = vld [vmem:[#allocation27 + $0x380] sm:$0xff]
    %v8938 = vld [vmem:[#allocation27 + $0x388] sm:$0xff]
    %v8939 = vld [vmem:[#allocation27 + $0x390] sm:$0xff]
    %v8940 = vld [vmem:[#allocation27 + $0x398] sm:$0xff]
    %v8941 = vld [vmem:[#allocation27 + $0x3a0] sm:$0xff]
    %v8942 = vld [vmem:[#allocation27 + $0x3a8] sm:$0xff]
    %v8943 = vld [vmem:[#allocation27 + $0x3b0] sm:$0xff]
    %v8944 = vld [vmem:[#allocation27 + $0x3b8] sm:$0xff]
    %v8945 = vld [vmem:[#allocation27 + $0x3c0] sm:$0xff]
    %v8946 = vld [vmem:[#allocation27 + $0x3c8] sm:$0xff]
    %v8947 = vld [vmem:[#allocation27 + $0x3d0] sm:$0xff]
    %v8948 = vld [vmem:[#allocation27 + $0x3d8] sm:$0xff]
    %v8949 = vld [vmem:[#allocation27 + $0x3e0] sm:$0xff]
    %v8950 = vld [vmem:[#allocation27 + $0x3e8] sm:$0xff]
    %v8951 = vld [vmem:[#allocation27 + $0x3f0] sm:$0xff]
    %v8952 = vld [vmem:[#allocation27 + $0x3f8] sm:$0xff]
    %v8953 = vld [vmem:[#allocation27 + $0x400] sm:$0xff]
    %v8954 = vld [vmem:[#allocation27 + $0x408] sm:$0xff]
    %v8955 = vld [vmem:[#allocation27 + $0x410] sm:$0xff]
    %v8956 = vld [vmem:[#allocation27 + $0x418] sm:$0xff]
    %v8957 = vld [vmem:[#allocation27 + $0x420] sm:$0xff]
    %v8958 = vld [vmem:[#allocation27 + $0x428] sm:$0xff]
    %v8959 = vld [vmem:[#allocation27 + $0x430] sm:$0xff]
    %v8960 = vld [vmem:[#allocation27 + $0x438] sm:$0xff]
    %v8961 = vld [vmem:[#allocation27 + $0x440] sm:$0xff]
    %v8962 = vld [vmem:[#allocation27 + $0x448] sm:$0xff]
    %v8963 = vld [vmem:[#allocation27 + $0x450] sm:$0xff]
    %v8964 = vld [vmem:[#allocation27 + $0x458] sm:$0xff]
    %v8965 = vld [vmem:[#allocation27 + $0x460] sm:$0xff]
    %v8966 = vld [vmem:[#allocation27 + $0x468] sm:$0xff]
    %v8967 = vld [vmem:[#allocation27 + $0x470] sm:$0xff]
    %v8968 = vld [vmem:[#allocation27 + $0x478] sm:$0xff]
    %v8969 = vld [vmem:[#allocation27 + $0x480] sm:$0xff]
    %v8970 = vld [vmem:[#allocation27 + $0x488] sm:$0xff]
    %v8971 = vld [vmem:[#allocation27 + $0x490] sm:$0xff]
    %v8972 = vld [vmem:[#allocation27 + $0x498] sm:$0xff]
    %v8973 = vld [vmem:[#allocation27 + $0x4a0] sm:$0xff]
    %v8974 = vld [vmem:[#allocation27 + $0x4a8] sm:$0xff]
    %v8975 = vld [vmem:[#allocation27 + $0x4b0] sm:$0xff]
    %v8976 = vld [vmem:[#allocation27 + $0x4b8] sm:$0xff]
    %v8977 = vld [vmem:[#allocation27 + $0x4c0] sm:$0xff]
    %v8978 = vld [vmem:[#allocation27 + $0x4c8] sm:$0xff]
    %v8979 = vld [vmem:[#allocation27 + $0x4d0] sm:$0xff]
    %v8980 = vld [vmem:[#allocation27 + $0x4d8] sm:$0xff]
    %v8981 = vld [vmem:[#allocation27 + $0x4e0] sm:$0xff]
    %v8982 = vld [vmem:[#allocation27 + $0x4e8] sm:$0xff]
    %v8983 = vld [vmem:[#allocation27 + $0x4f0] sm:$0xff]
    %v8984 = vld [vmem:[#allocation27 + $0x4f8] sm:$0xff]
    %v8985 = vld [vmem:[#allocation27 + $0x500] sm:$0xff]
    %v8986 = vld [vmem:[#allocation27 + $0x508] sm:$0xff]
    %v8987 = vld [vmem:[#allocation27 + $0x510] sm:$0xff]
    %v8988 = vld [vmem:[#allocation27 + $0x518] sm:$0xff]
    %v8989 = vld [vmem:[#allocation27 + $0x520] sm:$0xff]
    %v8990 = vld [vmem:[#allocation27 + $0x528] sm:$0xff]
    %v8991 = vld [vmem:[#allocation27 + $0x530] sm:$0xff]
    %v8992 = vld [vmem:[#allocation27 + $0x538] sm:$0xff]
    %v8993 = vld [vmem:[#allocation27 + $0x540] sm:$0xff]
    %v8994 = vld [vmem:[#allocation27 + $0x548] sm:$0xff]
    %v8995 = vld [vmem:[#allocation27 + $0x550] sm:$0xff]
    %v8996 = vld [vmem:[#allocation27 + $0x558] sm:$0xff]
    %v8997 = vld [vmem:[#allocation27 + $0x560] sm:$0xff]
    %v8998 = vld [vmem:[#allocation27 + $0x568] sm:$0xff]
    %v8999 = vld [vmem:[#allocation27 + $0x570] sm:$0xff]
    %v9000 = vld [vmem:[#allocation27 + $0x578] sm:$0xff]
    %v9001 = vld [vmem:[#allocation27 + $0x580] sm:$0xff]
    %v9002 = vld [vmem:[#allocation27 + $0x588] sm:$0xff]
    %v9003 = vld [vmem:[#allocation27 + $0x590] sm:$0xff]
    %v9004 = vld [vmem:[#allocation27 + $0x598] sm:$0xff]
    %v9005 = vld [vmem:[#allocation27 + $0x5a0] sm:$0xff]
    %v9006 = vld [vmem:[#allocation27 + $0x5a8] sm:$0xff]
    %v9007 = vld [vmem:[#allocation27 + $0x5b0] sm:$0xff]
    %v9008 = vld [vmem:[#allocation27 + $0x5b8] sm:$0xff]
    %v9009 = vld [vmem:[#allocation27 + $0x5c0] sm:$0xff]
    %v9010 = vld [vmem:[#allocation27 + $0x5c8] sm:$0xff]
    %v9011 = vld [vmem:[#allocation27 + $0x5d0] sm:$0xff]
    %v9012 = vld [vmem:[#allocation27 + $0x5d8] sm:$0xff]
    %v9013 = vld [vmem:[#allocation27 + $0x5e0] sm:$0xff]
    %v9014 = vld [vmem:[#allocation27 + $0x5e8] sm:$0xff]
    %v9015 = vld [vmem:[#allocation27 + $0x5f0] sm:$0xff]
    %v9016 = vld [vmem:[#allocation27 + $0x5f8] sm:$0xff]
    %v9017 = vld [vmem:[#allocation27 + $0x600] sm:$0xff]
    %v9018 = vld [vmem:[#allocation27 + $0x608] sm:$0xff]
    %v9019 = vld [vmem:[#allocation27 + $0x610] sm:$0xff]
    %v9020 = vld [vmem:[#allocation27 + $0x618] sm:$0xff]
    %v9021 = vld [vmem:[#allocation27 + $0x620] sm:$0xff]
    %v9022 = vld [vmem:[#allocation27 + $0x628] sm:$0xff]
    %v9023 = vld [vmem:[#allocation27 + $0x630] sm:$0xff]
    %v9024 = vld [vmem:[#allocation27 + $0x638] sm:$0xff]
    %v9025 = vld [vmem:[#allocation27 + $0x640] sm:$0xff]
    %v9026 = vld [vmem:[#allocation27 + $0x648] sm:$0xff]
    %v9027 = vld [vmem:[#allocation27 + $0x650] sm:$0xff]
    %v9028 = vld [vmem:[#allocation27 + $0x658] sm:$0xff]
    %v9029 = vld [vmem:[#allocation27 + $0x660] sm:$0xff]
    %v9030 = vld [vmem:[#allocation27 + $0x668] sm:$0xff]
    %v9031 = vld [vmem:[#allocation27 + $0x670] sm:$0xff]
    %v9032 = vld [vmem:[#allocation27 + $0x678] sm:$0xff]
    %v9033 = vld [vmem:[#allocation27 + $0x680] sm:$0xff]
    %v9034 = vld [vmem:[#allocation27 + $0x688] sm:$0xff]
    %v9035 = vld [vmem:[#allocation27 + $0x690] sm:$0xff]
    %v9036 = vld [vmem:[#allocation27 + $0x698] sm:$0xff]
    %v9037 = vld [vmem:[#allocation27 + $0x6a0] sm:$0xff]
    %v9038 = vld [vmem:[#allocation27 + $0x6a8] sm:$0xff]
    %v9039 = vld [vmem:[#allocation27 + $0x6b0] sm:$0xff]
    %v9040 = vld [vmem:[#allocation27 + $0x6b8] sm:$0xff]
    %v9041 = vld [vmem:[#allocation27 + $0x6c0] sm:$0xff]
    %v9042 = vld [vmem:[#allocation27 + $0x6c8] sm:$0xff]
    %v9043 = vld [vmem:[#allocation27 + $0x6d0] sm:$0xff]
    %v9044 = vld [vmem:[#allocation27 + $0x6d8] sm:$0xff]
    %v9045 = vld [vmem:[#allocation27 + $0x6e0] sm:$0xff]
    %v9046 = vld [vmem:[#allocation27 + $0x6e8] sm:$0xff]
    %v9047 = vld [vmem:[#allocation27 + $0x6f0] sm:$0xff]
    %v9048 = vld [vmem:[#allocation27 + $0x6f8] sm:$0xff]
    %v9049 = vld [vmem:[#allocation27 + $0x700] sm:$0xff]
    %v9050 = vld [vmem:[#allocation27 + $0x708] sm:$0xff]
    %v9051 = vld [vmem:[#allocation27 + $0x710] sm:$0xff]
    %v9052 = vld [vmem:[#allocation27 + $0x718] sm:$0xff]
    %v9053 = vld [vmem:[#allocation27 + $0x720] sm:$0xff]
    %v9054 = vld [vmem:[#allocation27 + $0x728] sm:$0xff]
    %v9055 = vld [vmem:[#allocation27 + $0x730] sm:$0xff]
    %v9056 = vld [vmem:[#allocation27 + $0x738] sm:$0xff]
    %v9057 = vld [vmem:[#allocation27 + $0x740] sm:$0xff]
    %v9058 = vld [vmem:[#allocation27 + $0x748] sm:$0xff]
    %v9059 = vld [vmem:[#allocation27 + $0x750] sm:$0xff]
    %v9060 = vld [vmem:[#allocation27 + $0x758] sm:$0xff]
    %v9061 = vld [vmem:[#allocation27 + $0x760] sm:$0xff]
    %v9062 = vld [vmem:[#allocation27 + $0x768] sm:$0xff]
    %v9063 = vld [vmem:[#allocation27 + $0x770] sm:$0xff]
    %v9064 = vld [vmem:[#allocation27 + $0x778] sm:$0xff]
    %v9065 = vld [vmem:[#allocation27 + $0x780] sm:$0xff]
    %v9066 = vld [vmem:[#allocation27 + $0x788] sm:$0xff]
    %v9067 = vld [vmem:[#allocation27 + $0x790] sm:$0xff]
    %v9068 = vld [vmem:[#allocation27 + $0x798] sm:$0xff]
    %v9069 = vld [vmem:[#allocation27 + $0x7a0] sm:$0xff]
    %v9070 = vld [vmem:[#allocation27 + $0x7a8] sm:$0xff]
    %v9071 = vld [vmem:[#allocation27 + $0x7b0] sm:$0xff]
    %v9072 = vld [vmem:[#allocation27 + $0x7b8] sm:$0xff]
    %v9073 = vld [vmem:[#allocation27 + $0x7c0] sm:$0xff]
    %v9074 = vld [vmem:[#allocation27 + $0x7c8] sm:$0xff]
    %v9075 = vld [vmem:[#allocation27 + $0x7d0] sm:$0xff]
    %v9076 = vld [vmem:[#allocation27 + $0x7d8] sm:$0xff]
    %v9077 = vld [vmem:[#allocation27 + $0x7e0] sm:$0xff]
    %v9078 = vld [vmem:[#allocation27 + $0x7e8] sm:$0xff]
    %v9079 = vld [vmem:[#allocation27 + $0x7f0] sm:$0xff]
    %v9080 = vld [vmem:[#allocation27 + $0x7f8] sm:$0xff]
    %v9081 = vld [vmem:[#allocation27 + $0x800] sm:$0xff]
    %v9082 = vld [vmem:[#allocation27 + $0x808] sm:$0xff]
    %v9083 = vld [vmem:[#allocation27 + $0x810] sm:$0xff]
    %v9084 = vld [vmem:[#allocation27 + $0x818] sm:$0xff]
    %v9085 = vld [vmem:[#allocation27 + $0x820] sm:$0xff]
    %v9086 = vld [vmem:[#allocation27 + $0x828] sm:$0xff]
    %v9087 = vld [vmem:[#allocation27 + $0x830] sm:$0xff]
    %v9088 = vld [vmem:[#allocation27 + $0x838] sm:$0xff]
    %v9089 = vld [vmem:[#allocation27 + $0x840] sm:$0xff]
    %v9090 = vld [vmem:[#allocation27 + $0x848] sm:$0xff]
    %v9091 = vld [vmem:[#allocation27 + $0x850] sm:$0xff]
    %v9092 = vld [vmem:[#allocation27 + $0x858] sm:$0xff]
    %v9093 = vld [vmem:[#allocation27 + $0x860] sm:$0xff]
    %v9094 = vld [vmem:[#allocation27 + $0x868] sm:$0xff]
    %v9095 = vld [vmem:[#allocation27 + $0x870] sm:$0xff]
    %v9096 = vld [vmem:[#allocation27 + $0x878] sm:$0xff]
    %v9097 = vld [vmem:[#allocation27 + $0x880] sm:$0xff]
    %v9098 = vld [vmem:[#allocation27 + $0x888] sm:$0xff]
    %v9099 = vld [vmem:[#allocation27 + $0x890] sm:$0xff]
    %v9100 = vld [vmem:[#allocation27 + $0x898] sm:$0xff]
    %v9101 = vld [vmem:[#allocation27 + $0x8a0] sm:$0xff]
    %v9102 = vld [vmem:[#allocation27 + $0x8a8] sm:$0xff]
    %v9103 = vld [vmem:[#allocation27 + $0x8b0] sm:$0xff]
    %v9104 = vld [vmem:[#allocation27 + $0x8b8] sm:$0xff]
    %v9105 = vld [vmem:[#allocation27 + $0x8c0] sm:$0xff]
    %v9106 = vld [vmem:[#allocation27 + $0x8c8] sm:$0xff]
    %v9107 = vld [vmem:[#allocation27 + $0x8d0] sm:$0xff]
    %v9108 = vld [vmem:[#allocation27 + $0x8d8] sm:$0xff]
    %v9109 = vld [vmem:[#allocation27 + $0x8e0] sm:$0xff]
    %v9110 = vld [vmem:[#allocation27 + $0x8e8] sm:$0xff]
    %v9111 = vld [vmem:[#allocation27 + $0x8f0] sm:$0xff]
    %v9112 = vld [vmem:[#allocation27 + $0x8f8] sm:$0xff]
    %v9113 = vld [vmem:[#allocation27 + $0x900] sm:$0xff]
    %v9114 = vld [vmem:[#allocation27 + $0x908] sm:$0xff]
    %v9115 = vld [vmem:[#allocation27 + $0x910] sm:$0xff]
    %v9116 = vld [vmem:[#allocation27 + $0x918] sm:$0xff]
    %v9117 = vld [vmem:[#allocation27 + $0x920] sm:$0xff]
    %v9118 = vld [vmem:[#allocation27 + $0x928] sm:$0xff]
    %v9119 = vld [vmem:[#allocation27 + $0x930] sm:$0xff]
    %v9120 = vld [vmem:[#allocation27 + $0x938] sm:$0xff]
    %v9121 = vld [vmem:[#allocation27 + $0x940] sm:$0xff]
    %v9122 = vld [vmem:[#allocation27 + $0x948] sm:$0xff]
    %v9123 = vld [vmem:[#allocation27 + $0x950] sm:$0xff]
    %v9124 = vld [vmem:[#allocation27 + $0x958] sm:$0xff]
    %v9125 = vld [vmem:[#allocation27 + $0x960] sm:$0xff]
    %v9126 = vld [vmem:[#allocation27 + $0x968] sm:$0xff]
    %v9127 = vld [vmem:[#allocation27 + $0x970] sm:$0xff]
    %v9128 = vld [vmem:[#allocation27 + $0x978] sm:$0xff]
    %v9129 = vld [vmem:[#allocation27 + $0x980] sm:$0xff]
    %v9130 = vld [vmem:[#allocation27 + $0x988] sm:$0xff]
    %v9131 = vld [vmem:[#allocation27 + $0x990] sm:$0xff]
    %v9132 = vld [vmem:[#allocation27 + $0x998] sm:$0xff]
    %v9133 = vld [vmem:[#allocation27 + $0x9a0] sm:$0xff]
    %v9134 = vld [vmem:[#allocation27 + $0x9a8] sm:$0xff]
    %v9135 = vld [vmem:[#allocation27 + $0x9b0] sm:$0xff]
    %v9136 = vld [vmem:[#allocation27 + $0x9b8] sm:$0xff]
    %v9137 = vld [vmem:[#allocation27 + $0x9c0] sm:$0xff]
    %v9138 = vld [vmem:[#allocation27 + $0x9c8] sm:$0xff]
    %v9139 = vld [vmem:[#allocation27 + $0x9d0] sm:$0xff]
    %v9140 = vld [vmem:[#allocation27 + $0x9d8] sm:$0xff]
    %v9141 = vld [vmem:[#allocation27 + $0x9e0] sm:$0xff]
    %v9142 = vld [vmem:[#allocation27 + $0x9e8] sm:$0xff]
    %v9143 = vld [vmem:[#allocation27 + $0x9f0] sm:$0xff]
    %v9144 = vld [vmem:[#allocation27 + $0x9f8] sm:$0xff]
    %v9145 = vld [vmem:[#allocation27 + $0xa00] sm:$0xff]
    %v9146 = vld [vmem:[#allocation27 + $0xa08] sm:$0xff]
    %v9147 = vld [vmem:[#allocation27 + $0xa10] sm:$0xff]
    %v9148 = vld [vmem:[#allocation27 + $0xa18] sm:$0xff]
    %v9149 = vld [vmem:[#allocation27 + $0xa20] sm:$0xff]
    %v9150 = vld [vmem:[#allocation27 + $0xa28] sm:$0xff]
    %v9151 = vld [vmem:[#allocation27 + $0xa30] sm:$0xff]
    %v9152 = vld [vmem:[#allocation27 + $0xa38] sm:$0xff]
    %v9153 = vld [vmem:[#allocation27 + $0xa40] sm:$0xff]
    %v9154 = vld [vmem:[#allocation27 + $0xa48] sm:$0xff]
    %v9155 = vld [vmem:[#allocation27 + $0xa50] sm:$0xff]
    %v9156 = vld [vmem:[#allocation27 + $0xa58] sm:$0xff]
    %v9157 = vld [vmem:[#allocation27 + $0xa60] sm:$0xff]
    %v9158 = vld [vmem:[#allocation27 + $0xa68] sm:$0xff]
    %v9159 = vld [vmem:[#allocation27 + $0xa70] sm:$0xff]
    %v9160 = vld [vmem:[#allocation27 + $0xa78] sm:$0xff]
    %v9161 = vld [vmem:[#allocation27 + $0xa80] sm:$0xff]
    %v9162 = vld [vmem:[#allocation27 + $0xa88] sm:$0xff]
    %v9163 = vld [vmem:[#allocation27 + $0xa90] sm:$0xff]
    %v9164 = vld [vmem:[#allocation27 + $0xa98] sm:$0xff]
    %v9165 = vld [vmem:[#allocation27 + $0xaa0] sm:$0xff]
    %v9166 = vld [vmem:[#allocation27 + $0xaa8] sm:$0xff]
    %v9167 = vld [vmem:[#allocation27 + $0xab0] sm:$0xff]
    %v9168 = vld [vmem:[#allocation27 + $0xab8] sm:$0xff]
    %v9169 = vld [vmem:[#allocation27 + $0xac0] sm:$0xff]
    %v9170 = vld [vmem:[#allocation27 + $0xac8] sm:$0xff]
    %v9171 = vld [vmem:[#allocation27 + $0xad0] sm:$0xff]
    %v9172 = vld [vmem:[#allocation27 + $0xad8] sm:$0xff]
    %v9173 = vld [vmem:[#allocation27 + $0xae0] sm:$0xff]
    %v9174 = vld [vmem:[#allocation27 + $0xae8] sm:$0xff]
    %v9175 = vld [vmem:[#allocation27 + $0xaf0] sm:$0xff]
    %v9176 = vld [vmem:[#allocation27 + $0xaf8] sm:$0xff]
    %v9177 = vld [vmem:[#allocation27 + $0xb00] sm:$0xff]
    %v9178 = vld [vmem:[#allocation27 + $0xb08] sm:$0xff]
    %v9179 = vld [vmem:[#allocation27 + $0xb10] sm:$0xff]
    %v9180 = vld [vmem:[#allocation27 + $0xb18] sm:$0xff]
    %v9181 = vld [vmem:[#allocation27 + $0xb20] sm:$0xff]
    %v9182 = vld [vmem:[#allocation27 + $0xb28] sm:$0xff]
    %v9183 = vld [vmem:[#allocation27 + $0xb30] sm:$0xff]
    %v9184 = vld [vmem:[#allocation27 + $0xb38] sm:$0xff]
    %v9185 = vld [vmem:[#allocation27 + $0xb40] sm:$0xff]
    %v9186 = vld [vmem:[#allocation27 + $0xb48] sm:$0xff]
    %v9187 = vld [vmem:[#allocation27 + $0xb50] sm:$0xff]
    %v9188 = vld [vmem:[#allocation27 + $0xb58] sm:$0xff]
    %v9189 = vld [vmem:[#allocation27 + $0xb60] sm:$0xff]
    %v9190 = vld [vmem:[#allocation27 + $0xb68] sm:$0xff]
    %v9191 = vld [vmem:[#allocation27 + $0xb70] sm:$0xff]
    %v9192 = vld [vmem:[#allocation27 + $0xb78] sm:$0xff]
    %v9193 = vld [vmem:[#allocation27 + $0xb80] sm:$0xff]
    %v9194 = vld [vmem:[#allocation27 + $0xb88] sm:$0xff]
    %v9195 = vld [vmem:[#allocation27 + $0xb90] sm:$0xff]
    %v9196 = vld [vmem:[#allocation27 + $0xb98] sm:$0xff]
    %v9197 = vld [vmem:[#allocation27 + $0xba0] sm:$0xff]
    %v9198 = vld [vmem:[#allocation27 + $0xba8] sm:$0xff]
    %v9199 = vld [vmem:[#allocation27 + $0xbb0] sm:$0xff]
    %v9200 = vld [vmem:[#allocation27 + $0xbb8] sm:$0xff]
    %v9201 = vld [vmem:[#allocation27 + $0xbc0] sm:$0xff]
    %v9202 = vld [vmem:[#allocation27 + $0xbc8] sm:$0xff]
    %v9203 = vld [vmem:[#allocation27 + $0xbd0] sm:$0xff]
    %v9204 = vld [vmem:[#allocation27 + $0xbd8] sm:$0xff]
    %v9205 = vld [vmem:[#allocation27 + $0xbe0] sm:$0xff]
    %v9206 = vld [vmem:[#allocation27 + $0xbe8] sm:$0xff]
    %v9207 = vld [vmem:[#allocation27 + $0xbf0] sm:$0xff]
    %v9208 = vld [vmem:[#allocation27 + $0xbf8] sm:$0xff]
    %v9209 = vld [vmem:[#allocation27 + $0xc00] sm:$0xff]
    %v9210 = vld [vmem:[#allocation27 + $0xc08] sm:$0xff]
    %v9211 = vld [vmem:[#allocation27 + $0xc10] sm:$0xff]
    %v9212 = vld [vmem:[#allocation27 + $0xc18] sm:$0xff]
    %v9213 = vld [vmem:[#allocation27 + $0xc20] sm:$0xff]
    %v9214 = vld [vmem:[#allocation27 + $0xc28] sm:$0xff]
    %v9215 = vld [vmem:[#allocation27 + $0xc30] sm:$0xff]
    %v9216 = vld [vmem:[#allocation27 + $0xc38] sm:$0xff]
    %v9217 = vld [vmem:[#allocation27 + $0xc40] sm:$0xff]
    %v9218 = vld [vmem:[#allocation27 + $0xc48] sm:$0xff]
    %v9219 = vld [vmem:[#allocation27 + $0xc50] sm:$0xff]
    %v9220 = vld [vmem:[#allocation27 + $0xc58] sm:$0xff]
    %v9221 = vld [vmem:[#allocation27 + $0xc60] sm:$0xff]
    %v9222 = vld [vmem:[#allocation27 + $0xc68] sm:$0xff]
    %v9223 = vld [vmem:[#allocation27 + $0xc70] sm:$0xff]
    %v9224 = vld [vmem:[#allocation27 + $0xc78] sm:$0xff]
    %v9225 = vld [vmem:[#allocation27 + $0xc80] sm:$0xff]
    %v9226 = vld [vmem:[#allocation27 + $0xc88] sm:$0xff]
    %v9227 = vld [vmem:[#allocation27 + $0xc90] sm:$0xff]
    %v9228 = vld [vmem:[#allocation27 + $0xc98] sm:$0xff]
    %v9229 = vld [vmem:[#allocation27 + $0xca0] sm:$0xff]
    %v9230 = vld [vmem:[#allocation27 + $0xca8] sm:$0xff]
    %v9231 = vld [vmem:[#allocation27 + $0xcb0] sm:$0xff]
    %v9232 = vld [vmem:[#allocation27 + $0xcb8] sm:$0xff]
    %v9233 = vld [vmem:[#allocation27 + $0xcc0] sm:$0xff]
    %v9234 = vld [vmem:[#allocation27 + $0xcc8] sm:$0xff]
    %v9235 = vld [vmem:[#allocation27 + $0xcd0] sm:$0xff]
    %v9236 = vld [vmem:[#allocation27 + $0xcd8] sm:$0xff]
    %v9237 = vld [vmem:[#allocation27 + $0xce0] sm:$0xff]
    %v9238 = vld [vmem:[#allocation27 + $0xce8] sm:$0xff]
    %v9239 = vld [vmem:[#allocation27 + $0xcf0] sm:$0xff]
    %v9240 = vld [vmem:[#allocation27 + $0xcf8] sm:$0xff]
    %v9241 = vld [vmem:[#allocation27 + $0xd00] sm:$0xff]
    %v9242 = vld [vmem:[#allocation27 + $0xd08] sm:$0xff]
    %v9243 = vld [vmem:[#allocation27 + $0xd10] sm:$0xff]
    %v9244 = vld [vmem:[#allocation27 + $0xd18] sm:$0xff]
    %v9245 = vld [vmem:[#allocation27 + $0xd20] sm:$0xff]
    %v9246 = vld [vmem:[#allocation27 + $0xd28] sm:$0xff]
    %v9247 = vld [vmem:[#allocation27 + $0xd30] sm:$0xff]
    %v9248 = vld [vmem:[#allocation27 + $0xd38] sm:$0xff]
    %v9249 = vld [vmem:[#allocation27 + $0xd40] sm:$0xff]
    %v9250 = vld [vmem:[#allocation27 + $0xd48] sm:$0xff]
    %v9251 = vld [vmem:[#allocation27 + $0xd50] sm:$0xff]
    %v9252 = vld [vmem:[#allocation27 + $0xd58] sm:$0xff]
    %v9253 = vld [vmem:[#allocation27 + $0xd60] sm:$0xff]
    %v9254 = vld [vmem:[#allocation27 + $0xd68] sm:$0xff]
    %v9255 = vld [vmem:[#allocation27 + $0xd70] sm:$0xff]
    %v9256 = vld [vmem:[#allocation27 + $0xd78] sm:$0xff]
    %v9257 = vld [vmem:[#allocation27 + $0xd80] sm:$0xff]
    %v9258 = vld [vmem:[#allocation27 + $0xd88] sm:$0xff]
    %v9259 = vld [vmem:[#allocation27 + $0xd90] sm:$0xff]
    %v9260 = vld [vmem:[#allocation27 + $0xd98] sm:$0xff]
    %v9261 = vld [vmem:[#allocation27 + $0xda0] sm:$0xff]
    %v9262 = vld [vmem:[#allocation27 + $0xda8] sm:$0xff]
    %v9263 = vld [vmem:[#allocation27 + $0xdb0] sm:$0xff]
    %v9264 = vld [vmem:[#allocation27 + $0xdb8] sm:$0xff]
    %v9265 = vld [vmem:[#allocation27 + $0xdc0] sm:$0xff]
    %v9266 = vld [vmem:[#allocation27 + $0xdc8] sm:$0xff]
    %v9267 = vld [vmem:[#allocation27 + $0xdd0] sm:$0xff]
    %v9268 = vld [vmem:[#allocation27 + $0xdd8] sm:$0xff]
    %v9269 = vld [vmem:[#allocation27 + $0xde0] sm:$0xff]
    %v9270 = vld [vmem:[#allocation27 + $0xde8] sm:$0xff]
    %v9271 = vld [vmem:[#allocation27 + $0xdf0] sm:$0xff]
    %v9272 = vld [vmem:[#allocation27 + $0xdf8] sm:$0xff]
    %v9273 = vld [vmem:[#allocation27 + $0xe00] sm:$0xff]
    %v9274 = vld [vmem:[#allocation27 + $0xe08] sm:$0xff]
    %v9275 = vld [vmem:[#allocation27 + $0xe10] sm:$0xff]
    %v9276 = vld [vmem:[#allocation27 + $0xe18] sm:$0xff]
    %v9277 = vld [vmem:[#allocation27 + $0xe20] sm:$0xff]
    %v9278 = vld [vmem:[#allocation27 + $0xe28] sm:$0xff]
    %v9279 = vld [vmem:[#allocation27 + $0xe30] sm:$0xff]
    %v9280 = vld [vmem:[#allocation27 + $0xe38] sm:$0xff]
    %v9281 = vld [vmem:[#allocation27 + $0xe40] sm:$0xff]
    %v9282 = vld [vmem:[#allocation27 + $0xe48] sm:$0xff]
    %v9283 = vld [vmem:[#allocation27 + $0xe50] sm:$0xff]
    %v9284 = vld [vmem:[#allocation27 + $0xe58] sm:$0xff]
    %v9285 = vld [vmem:[#allocation27 + $0xe60] sm:$0xff]
    %v9286 = vld [vmem:[#allocation27 + $0xe68] sm:$0xff]
    %v9287 = vld [vmem:[#allocation27 + $0xe70] sm:$0xff]
    %v9288 = vld [vmem:[#allocation27 + $0xe78] sm:$0xff]
    %v9289 = vld [vmem:[#allocation27 + $0xe80] sm:$0xff]
    %v9290 = vld [vmem:[#allocation27 + $0xe88] sm:$0xff]
    %v9291 = vld [vmem:[#allocation27 + $0xe90] sm:$0xff]
    %v9292 = vld [vmem:[#allocation27 + $0xe98] sm:$0xff]
    %v9293 = vld [vmem:[#allocation27 + $0xea0] sm:$0xff]
    %v9294 = vld [vmem:[#allocation27 + $0xea8] sm:$0xff]
    %v9295 = vld [vmem:[#allocation27 + $0xeb0] sm:$0xff]
    %v9296 = vld [vmem:[#allocation27 + $0xeb8] sm:$0xff]
    %v9297 = vld [vmem:[#allocation27 + $0xec0] sm:$0xff]
    %v9298 = vld [vmem:[#allocation27 + $0xec8] sm:$0xff]
    %v9299 = vld [vmem:[#allocation27 + $0xed0] sm:$0xff]
    %v9300 = vld [vmem:[#allocation27 + $0xed8] sm:$0xff]
    %v9301 = vld [vmem:[#allocation27 + $0xee0] sm:$0xff]
    %v9302 = vld [vmem:[#allocation27 + $0xee8] sm:$0xff]
    %v9303 = vld [vmem:[#allocation27 + $0xef0] sm:$0xff]
    %v9304 = vld [vmem:[#allocation27 + $0xef8] sm:$0xff]
    %v9305 = vld [vmem:[#allocation27 + $0xf00] sm:$0xff]
    %v9306 = vld [vmem:[#allocation27 + $0xf08] sm:$0xff]
    %v9307 = vld [vmem:[#allocation27 + $0xf10] sm:$0xff]
    %v9308 = vld [vmem:[#allocation27 + $0xf18] sm:$0xff]
    %v9309 = vld [vmem:[#allocation27 + $0xf20] sm:$0xff]
    %v9310 = vld [vmem:[#allocation27 + $0xf28] sm:$0xff]
    %v9311 = vld [vmem:[#allocation27 + $0xf30] sm:$0xff]
    %v9312 = vld [vmem:[#allocation27 + $0xf38] sm:$0xff]
    %v9313 = vld [vmem:[#allocation27 + $0xf40] sm:$0xff]
    %v9314 = vld [vmem:[#allocation27 + $0xf48] sm:$0xff]
    %v9315 = vld [vmem:[#allocation27 + $0xf50] sm:$0xff]
    %v9316 = vld [vmem:[#allocation27 + $0xf58] sm:$0xff]
    %v9317 = vld [vmem:[#allocation27 + $0xf60] sm:$0xff]
    %v9318 = vld [vmem:[#allocation27 + $0xf68] sm:$0xff]
    %v9319 = vld [vmem:[#allocation27 + $0xf70] sm:$0xff]
    %v9320 = vld [vmem:[#allocation27 + $0xf78] sm:$0xff]
    %v9321 = vld [vmem:[#allocation27 + $0xf80] sm:$0xff]
    %v9322 = vld [vmem:[#allocation27 + $0xf88] sm:$0xff]
    %v9323 = vld [vmem:[#allocation27 + $0xf90] sm:$0xff]
    %v9324 = vld [vmem:[#allocation27 + $0xf98] sm:$0xff]
    %v9325 = vld [vmem:[#allocation27 + $0xfa0] sm:$0xff]
    %v9326 = vld [vmem:[#allocation27 + $0xfa8] sm:$0xff]
    %v9327 = vld [vmem:[#allocation27 + $0xfb0] sm:$0xff]
    %v9328 = vld [vmem:[#allocation27 + $0xfb8] sm:$0xff]
    %v9329 = vld [vmem:[#allocation27 + $0xfc0] sm:$0xff]
    %v9330 = vld [vmem:[#allocation27 + $0xfc8] sm:$0xff]
    %v9331 = vld [vmem:[#allocation27 + $0xfd0] sm:$0xff]
    %v9332 = vld [vmem:[#allocation27 + $0xfd8] sm:$0xff]
    %v9333 = vld [vmem:[#allocation27 + $0xfe0] sm:$0xff]
    %v9334 = vld [vmem:[#allocation27 + $0xfe8] sm:$0xff]
    %v9335 = vld [vmem:[#allocation27 + $0xff0] sm:$0xff]
    %v9336 = vld [vmem:[#allocation27 + $0xff8] sm:$0xff]
    %v9337 = vld [vmem:[#allocation28] sm:$0xf]
    %v9339 = vlaneseq
    %v9340 = vshrl.u32 %v9339, 7
    %v9341 = vsub.s32 0, %v9340
    %v9342 = vrot.slane %v9337, %v9341
    %v9343 = vlaneseq
    %v9344 = vshrl.u32 %v9343, 7
    %v9345 = vsub.s32 1, %v9344
    %v9346 = vrot.slane %v9337, %v9345
    %v9347 = vlaneseq
    %v9348 = vshrl.u32 %v9347, 7
    %v9349 = vsub.s32 2, %v9348
    %v9350 = vrot.slane %v9337, %v9349
    %v9351 = vlaneseq
    %v9352 = vshrl.u32 %v9351, 7
    %v9353 = vsub.s32 3, %v9352
    %v9354 = vrot.slane %v9337, %v9353
    %v9871 = vunpack.c.l.b16 %v8825
    %v9872 = vunpack.c.h.b16 %v8825
    %v9873 = vunpack.c.l.b16 %v8826
    %v9874 = vunpack.c.h.b16 %v8826
    %v9875 = vunpack.c.l.b16 %v8827
    %v9876 = vunpack.c.h.b16 %v8827
    %v9877 = vunpack.c.l.b16 %v8828
    %v9878 = vunpack.c.h.b16 %v8828
    %v9879 = vunpack.c.l.b16 %v8829
    %v9880 = vunpack.c.h.b16 %v8829
    %v9881 = vunpack.c.l.b16 %v8830
    %v9882 = vunpack.c.h.b16 %v8830
    %v9883 = vunpack.c.l.b16 %v8831
    %v9884 = vunpack.c.h.b16 %v8831
    %v9885 = vunpack.c.l.b16 %v8832
    %v9886 = vunpack.c.h.b16 %v8832
    %v9887 = vunpack.c.l.b16 %v8833
    %v9888 = vunpack.c.h.b16 %v8833
    %v9889 = vunpack.c.l.b16 %v8834
    %v9890 = vunpack.c.h.b16 %v8834
    %v9891 = vunpack.c.l.b16 %v8835
    %v9892 = vunpack.c.h.b16 %v8835
    %v9893 = vunpack.c.l.b16 %v8836
    %v9894 = vunpack.c.h.b16 %v8836
    %v9895 = vunpack.c.l.b16 %v8837
    %v9896 = vunpack.c.h.b16 %v8837
    %v9897 = vunpack.c.l.b16 %v8838
    %v9898 = vunpack.c.h.b16 %v8838
    %v9899 = vunpack.c.l.b16 %v8839
    %v9900 = vunpack.c.h.b16 %v8839
    %v9901 = vunpack.c.l.b16 %v8840
    %v9902 = vunpack.c.h.b16 %v8840
    %v9903 = vunpack.c.l.b16 %v8841
    %v9904 = vunpack.c.h.b16 %v8841
    %v9905 = vunpack.c.l.b16 %v8842
    %v9906 = vunpack.c.h.b16 %v8842
    %v9907 = vunpack.c.l.b16 %v8843
    %v9908 = vunpack.c.h.b16 %v8843
    %v9909 = vunpack.c.l.b16 %v8844
    %v9910 = vunpack.c.h.b16 %v8844
    %v9911 = vunpack.c.l.b16 %v8845
    %v9912 = vunpack.c.h.b16 %v8845
    %v9913 = vunpack.c.l.b16 %v8846
    %v9914 = vunpack.c.h.b16 %v8846
    %v9915 = vunpack.c.l.b16 %v8847
    %v9916 = vunpack.c.h.b16 %v8847
    %v9917 = vunpack.c.l.b16 %v8848
    %v9918 = vunpack.c.h.b16 %v8848
    %v9919 = vunpack.c.l.b16 %v8849
    %v9920 = vunpack.c.h.b16 %v8849
    %v9921 = vunpack.c.l.b16 %v8850
    %v9922 = vunpack.c.h.b16 %v8850
    %v9923 = vunpack.c.l.b16 %v8851
    %v9924 = vunpack.c.h.b16 %v8851
    %v9925 = vunpack.c.l.b16 %v8852
    %v9926 = vunpack.c.h.b16 %v8852
    %v9927 = vunpack.c.l.b16 %v8853
    %v9928 = vunpack.c.h.b16 %v8853
    %v9929 = vunpack.c.l.b16 %v8854
    %v9930 = vunpack.c.h.b16 %v8854
    %v9931 = vunpack.c.l.b16 %v8855
    %v9932 = vunpack.c.h.b16 %v8855
    %v9933 = vunpack.c.l.b16 %v8856
    %v9934 = vunpack.c.h.b16 %v8856
    %v9935 = vunpack.c.l.b16 %v8857
    %v9936 = vunpack.c.h.b16 %v8857
    %v9937 = vunpack.c.l.b16 %v8858
    %v9938 = vunpack.c.h.b16 %v8858
    %v9939 = vunpack.c.l.b16 %v8859
    %v9940 = vunpack.c.h.b16 %v8859
    %v9941 = vunpack.c.l.b16 %v8860
    %v9942 = vunpack.c.h.b16 %v8860
    %v9943 = vunpack.c.l.b16 %v8861
    %v9944 = vunpack.c.h.b16 %v8861
    %v9945 = vunpack.c.l.b16 %v8862
    %v9946 = vunpack.c.h.b16 %v8862
    %v9947 = vunpack.c.l.b16 %v8863
    %v9948 = vunpack.c.h.b16 %v8863
    %v9949 = vunpack.c.l.b16 %v8864
    %v9950 = vunpack.c.h.b16 %v8864
    %v9951 = vunpack.c.l.b16 %v8865
    %v9952 = vunpack.c.h.b16 %v8865
    %v9953 = vunpack.c.l.b16 %v8866
    %v9954 = vunpack.c.h.b16 %v8866
    %v9955 = vunpack.c.l.b16 %v8867
    %v9956 = vunpack.c.h.b16 %v8867
    %v9957 = vunpack.c.l.b16 %v8868
    %v9958 = vunpack.c.h.b16 %v8868
    %v9959 = vunpack.c.l.b16 %v8869
    %v9960 = vunpack.c.h.b16 %v8869
    %v9961 = vunpack.c.l.b16 %v8870
    %v9962 = vunpack.c.h.b16 %v8870
    %v9963 = vunpack.c.l.b16 %v8871
    %v9964 = vunpack.c.h.b16 %v8871
    %v9965 = vunpack.c.l.b16 %v8872
    %v9966 = vunpack.c.h.b16 %v8872
    %v9967 = vunpack.c.l.b16 %v8873
    %v9968 = vunpack.c.h.b16 %v8873
    %v9969 = vunpack.c.l.b16 %v8874
    %v9970 = vunpack.c.h.b16 %v8874
    %v9971 = vunpack.c.l.b16 %v8875
    %v9972 = vunpack.c.h.b16 %v8875
    %v9973 = vunpack.c.l.b16 %v8876
    %v9974 = vunpack.c.h.b16 %v8876
    %v9975 = vunpack.c.l.b16 %v8877
    %v9976 = vunpack.c.h.b16 %v8877
    %v9977 = vunpack.c.l.b16 %v8878
    %v9978 = vunpack.c.h.b16 %v8878
    %v9979 = vunpack.c.l.b16 %v8879
    %v9980 = vunpack.c.h.b16 %v8879
    %v9981 = vunpack.c.l.b16 %v8880
    %v9982 = vunpack.c.h.b16 %v8880
    %v9983 = vunpack.c.l.b16 %v8881
    %v9984 = vunpack.c.h.b16 %v8881
    %v9985 = vunpack.c.l.b16 %v8882
    %v9986 = vunpack.c.h.b16 %v8882
    %v9987 = vunpack.c.l.b16 %v8883
    %v9988 = vunpack.c.h.b16 %v8883
    %v9989 = vunpack.c.l.b16 %v8884
    %v9990 = vunpack.c.h.b16 %v8884
    %v9991 = vunpack.c.l.b16 %v8885
    %v9992 = vunpack.c.h.b16 %v8885
    %v9993 = vunpack.c.l.b16 %v8886
    %v9994 = vunpack.c.h.b16 %v8886
    %v9995 = vunpack.c.l.b16 %v8887
    %v9996 = vunpack.c.h.b16 %v8887
    %v9997 = vunpack.c.l.b16 %v8888
    %v9998 = vunpack.c.h.b16 %v8888
    %v9999 = vunpack.c.l.b16 %v8889
    %v10000 = vunpack.c.h.b16 %v8889
    %v10001 = vunpack.c.l.b16 %v8890
    %v10002 = vunpack.c.h.b16 %v8890
    %v10003 = vunpack.c.l.b16 %v8891
    %v10004 = vunpack.c.h.b16 %v8891
    %v10005 = vunpack.c.l.b16 %v8892
    %v10006 = vunpack.c.h.b16 %v8892
    %v10007 = vunpack.c.l.b16 %v8893
    %v10008 = vunpack.c.h.b16 %v8893
    %v10009 = vunpack.c.l.b16 %v8894
    %v10010 = vunpack.c.h.b16 %v8894
    %v10011 = vunpack.c.l.b16 %v8895
    %v10012 = vunpack.c.h.b16 %v8895
    %v10013 = vunpack.c.l.b16 %v8896
    %v10014 = vunpack.c.h.b16 %v8896
    %v10015 = vunpack.c.l.b16 %v8897
    %v10016 = vunpack.c.h.b16 %v8897
    %v10017 = vunpack.c.l.b16 %v8898
    %v10018 = vunpack.c.h.b16 %v8898
    %v10019 = vunpack.c.l.b16 %v8899
    %v10020 = vunpack.c.h.b16 %v8899
    %v10021 = vunpack.c.l.b16 %v8900
    %v10022 = vunpack.c.h.b16 %v8900
    %v10023 = vunpack.c.l.b16 %v8901
    %v10024 = vunpack.c.h.b16 %v8901
    %v10025 = vunpack.c.l.b16 %v8902
    %v10026 = vunpack.c.h.b16 %v8902
    %v10027 = vunpack.c.l.b16 %v8903
    %v10028 = vunpack.c.h.b16 %v8903
    %v10029 = vunpack.c.l.b16 %v8904
    %v10030 = vunpack.c.h.b16 %v8904
    %v10031 = vunpack.c.l.b16 %v8905
    %v10032 = vunpack.c.h.b16 %v8905
    %v10033 = vunpack.c.l.b16 %v8906
    %v10034 = vunpack.c.h.b16 %v8906
    %v10035 = vunpack.c.l.b16 %v8907
    %v10036 = vunpack.c.h.b16 %v8907
    %v10037 = vunpack.c.l.b16 %v8908
    %v10038 = vunpack.c.h.b16 %v8908
    %v10039 = vunpack.c.l.b16 %v8909
    %v10040 = vunpack.c.h.b16 %v8909
    %v10041 = vunpack.c.l.b16 %v8910
    %v10042 = vunpack.c.h.b16 %v8910
    %v10043 = vunpack.c.l.b16 %v8911
    %v10044 = vunpack.c.h.b16 %v8911
    %v10045 = vunpack.c.l.b16 %v8912
    %v10046 = vunpack.c.h.b16 %v8912
    %v10047 = vunpack.c.l.b16 %v8913
    %v10048 = vunpack.c.h.b16 %v8913
    %v10049 = vunpack.c.l.b16 %v8914
    %v10050 = vunpack.c.h.b16 %v8914
    %v10051 = vunpack.c.l.b16 %v8915
    %v10052 = vunpack.c.h.b16 %v8915
    %v10053 = vunpack.c.l.b16 %v8916
    %v10054 = vunpack.c.h.b16 %v8916
    %v10055 = vunpack.c.l.b16 %v8917
    %v10056 = vunpack.c.h.b16 %v8917
    %v10057 = vunpack.c.l.b16 %v8918
    %v10058 = vunpack.c.h.b16 %v8918
    %v10059 = vunpack.c.l.b16 %v8919
    %v10060 = vunpack.c.h.b16 %v8919
    %v10061 = vunpack.c.l.b16 %v8920
    %v10062 = vunpack.c.h.b16 %v8920
    %v10063 = vunpack.c.l.b16 %v8921
    %v10064 = vunpack.c.h.b16 %v8921
    %v10065 = vunpack.c.l.b16 %v8922
    %v10066 = vunpack.c.h.b16 %v8922
    %v10067 = vunpack.c.l.b16 %v8923
    %v10068 = vunpack.c.h.b16 %v8923
    %v10069 = vunpack.c.l.b16 %v8924
    %v10070 = vunpack.c.h.b16 %v8924
    %v10071 = vunpack.c.l.b16 %v8925
    %v10072 = vunpack.c.h.b16 %v8925
    %v10073 = vunpack.c.l.b16 %v8926
    %v10074 = vunpack.c.h.b16 %v8926
    %v10075 = vunpack.c.l.b16 %v8927
    %v10076 = vunpack.c.h.b16 %v8927
    %v10077 = vunpack.c.l.b16 %v8928
    %v10078 = vunpack.c.h.b16 %v8928
    %v10079 = vunpack.c.l.b16 %v8929
    %v10080 = vunpack.c.h.b16 %v8929
    %v10081 = vunpack.c.l.b16 %v8930
    %v10082 = vunpack.c.h.b16 %v8930
    %v10083 = vunpack.c.l.b16 %v8931
    %v10084 = vunpack.c.h.b16 %v8931
    %v10085 = vunpack.c.l.b16 %v8932
    %v10086 = vunpack.c.h.b16 %v8932
    %v10087 = vunpack.c.l.b16 %v8933
    %v10088 = vunpack.c.h.b16 %v8933
    %v10089 = vunpack.c.l.b16 %v8934
    %v10090 = vunpack.c.h.b16 %v8934
    %v10091 = vunpack.c.l.b16 %v8935
    %v10092 = vunpack.c.h.b16 %v8935
    %v10093 = vunpack.c.l.b16 %v8936
    %v10094 = vunpack.c.h.b16 %v8936
    %v10095 = vunpack.c.l.b16 %v8937
    %v10096 = vunpack.c.h.b16 %v8937
    %v10097 = vunpack.c.l.b16 %v8938
    %v10098 = vunpack.c.h.b16 %v8938
    %v10099 = vunpack.c.l.b16 %v8939
    %v10100 = vunpack.c.h.b16 %v8939
    %v10101 = vunpack.c.l.b16 %v8940
    %v10102 = vunpack.c.h.b16 %v8940
    %v10103 = vunpack.c.l.b16 %v8941
    %v10104 = vunpack.c.h.b16 %v8941
    %v10105 = vunpack.c.l.b16 %v8942
    %v10106 = vunpack.c.h.b16 %v8942
    %v10107 = vunpack.c.l.b16 %v8943
    %v10108 = vunpack.c.h.b16 %v8943
    %v10109 = vunpack.c.l.b16 %v8944
    %v10110 = vunpack.c.h.b16 %v8944
    %v10111 = vunpack.c.l.b16 %v8945
    %v10112 = vunpack.c.h.b16 %v8945
    %v10113 = vunpack.c.l.b16 %v8946
    %v10114 = vunpack.c.h.b16 %v8946
    %v10115 = vunpack.c.l.b16 %v8947
    %v10116 = vunpack.c.h.b16 %v8947
    %v10117 = vunpack.c.l.b16 %v8948
    %v10118 = vunpack.c.h.b16 %v8948
    %v10119 = vunpack.c.l.b16 %v8949
    %v10120 = vunpack.c.h.b16 %v8949
    %v10121 = vunpack.c.l.b16 %v8950
    %v10122 = vunpack.c.h.b16 %v8950
    %v10123 = vunpack.c.l.b16 %v8951
    %v10124 = vunpack.c.h.b16 %v8951
    %v10125 = vunpack.c.l.b16 %v8952
    %v10126 = vunpack.c.h.b16 %v8952
    %v10127 = vunpack.c.l.b16 %v8953
    %v10128 = vunpack.c.h.b16 %v8953
    %v10129 = vunpack.c.l.b16 %v8954
    %v10130 = vunpack.c.h.b16 %v8954
    %v10131 = vunpack.c.l.b16 %v8955
    %v10132 = vunpack.c.h.b16 %v8955
    %v10133 = vunpack.c.l.b16 %v8956
    %v10134 = vunpack.c.h.b16 %v8956
    %v10135 = vunpack.c.l.b16 %v8957
    %v10136 = vunpack.c.h.b16 %v8957
    %v10137 = vunpack.c.l.b16 %v8958
    %v10138 = vunpack.c.h.b16 %v8958
    %v10139 = vunpack.c.l.b16 %v8959
    %v10140 = vunpack.c.h.b16 %v8959
    %v10141 = vunpack.c.l.b16 %v8960
    %v10142 = vunpack.c.h.b16 %v8960
    %v10143 = vunpack.c.l.b16 %v8961
    %v10144 = vunpack.c.h.b16 %v8961
    %v10145 = vunpack.c.l.b16 %v8962
    %v10146 = vunpack.c.h.b16 %v8962
    %v10147 = vunpack.c.l.b16 %v8963
    %v10148 = vunpack.c.h.b16 %v8963
    %v10149 = vunpack.c.l.b16 %v8964
    %v10150 = vunpack.c.h.b16 %v8964
    %v10151 = vunpack.c.l.b16 %v8965
    %v10152 = vunpack.c.h.b16 %v8965
    %v10153 = vunpack.c.l.b16 %v8966
    %v10154 = vunpack.c.h.b16 %v8966
    %v10155 = vunpack.c.l.b16 %v8967
    %v10156 = vunpack.c.h.b16 %v8967
    %v10157 = vunpack.c.l.b16 %v8968
    %v10158 = vunpack.c.h.b16 %v8968
    %v10159 = vunpack.c.l.b16 %v8969
    %v10160 = vunpack.c.h.b16 %v8969
    %v10161 = vunpack.c.l.b16 %v8970
    %v10162 = vunpack.c.h.b16 %v8970
    %v10163 = vunpack.c.l.b16 %v8971
    %v10164 = vunpack.c.h.b16 %v8971
    %v10165 = vunpack.c.l.b16 %v8972
    %v10166 = vunpack.c.h.b16 %v8972
    %v10167 = vunpack.c.l.b16 %v8973
    %v10168 = vunpack.c.h.b16 %v8973
    %v10169 = vunpack.c.l.b16 %v8974
    %v10170 = vunpack.c.h.b16 %v8974
    %v10171 = vunpack.c.l.b16 %v8975
    %v10172 = vunpack.c.h.b16 %v8975
    %v10173 = vunpack.c.l.b16 %v8976
    %v10174 = vunpack.c.h.b16 %v8976
    %v10175 = vunpack.c.l.b16 %v8977
    %v10176 = vunpack.c.h.b16 %v8977
    %v10177 = vunpack.c.l.b16 %v8978
    %v10178 = vunpack.c.h.b16 %v8978
    %v10179 = vunpack.c.l.b16 %v8979
    %v10180 = vunpack.c.h.b16 %v8979
    %v10181 = vunpack.c.l.b16 %v8980
    %v10182 = vunpack.c.h.b16 %v8980
    %v10183 = vunpack.c.l.b16 %v8981
    %v10184 = vunpack.c.h.b16 %v8981
    %v10185 = vunpack.c.l.b16 %v8982
    %v10186 = vunpack.c.h.b16 %v8982
    %v10187 = vunpack.c.l.b16 %v8983
    %v10188 = vunpack.c.h.b16 %v8983
    %v10189 = vunpack.c.l.b16 %v8984
    %v10190 = vunpack.c.h.b16 %v8984
    %v10191 = vunpack.c.l.b16 %v8985
    %v10192 = vunpack.c.h.b16 %v8985
    %v10193 = vunpack.c.l.b16 %v8986
    %v10194 = vunpack.c.h.b16 %v8986
    %v10195 = vunpack.c.l.b16 %v8987
    %v10196 = vunpack.c.h.b16 %v8987
    %v10197 = vunpack.c.l.b16 %v8988
    %v10198 = vunpack.c.h.b16 %v8988
    %v10199 = vunpack.c.l.b16 %v8989
    %v10200 = vunpack.c.h.b16 %v8989
    %v10201 = vunpack.c.l.b16 %v8990
    %v10202 = vunpack.c.h.b16 %v8990
    %v10203 = vunpack.c.l.b16 %v8991
    %v10204 = vunpack.c.h.b16 %v8991
    %v10205 = vunpack.c.l.b16 %v8992
    %v10206 = vunpack.c.h.b16 %v8992
    %v10207 = vunpack.c.l.b16 %v8993
    %v10208 = vunpack.c.h.b16 %v8993
    %v10209 = vunpack.c.l.b16 %v8994
    %v10210 = vunpack.c.h.b16 %v8994
    %v10211 = vunpack.c.l.b16 %v8995
    %v10212 = vunpack.c.h.b16 %v8995
    %v10213 = vunpack.c.l.b16 %v8996
    %v10214 = vunpack.c.h.b16 %v8996
    %v10215 = vunpack.c.l.b16 %v8997
    %v10216 = vunpack.c.h.b16 %v8997
    %v10217 = vunpack.c.l.b16 %v8998
    %v10218 = vunpack.c.h.b16 %v8998
    %v10219 = vunpack.c.l.b16 %v8999
    %v10220 = vunpack.c.h.b16 %v8999
    %v10221 = vunpack.c.l.b16 %v9000
    %v10222 = vunpack.c.h.b16 %v9000
    %v10223 = vunpack.c.l.b16 %v9001
    %v10224 = vunpack.c.h.b16 %v9001
    %v10225 = vunpack.c.l.b16 %v9002
    %v10226 = vunpack.c.h.b16 %v9002
    %v10227 = vunpack.c.l.b16 %v9003
    %v10228 = vunpack.c.h.b16 %v9003
    %v10229 = vunpack.c.l.b16 %v9004
    %v10230 = vunpack.c.h.b16 %v9004
    %v10231 = vunpack.c.l.b16 %v9005
    %v10232 = vunpack.c.h.b16 %v9005
    %v10233 = vunpack.c.l.b16 %v9006
    %v10234 = vunpack.c.h.b16 %v9006
    %v10235 = vunpack.c.l.b16 %v9007
    %v10236 = vunpack.c.h.b16 %v9007
    %v10237 = vunpack.c.l.b16 %v9008
    %v10238 = vunpack.c.h.b16 %v9008
    %v10239 = vunpack.c.l.b16 %v9009
    %v10240 = vunpack.c.h.b16 %v9009
    %v10241 = vunpack.c.l.b16 %v9010
    %v10242 = vunpack.c.h.b16 %v9010
    %v10243 = vunpack.c.l.b16 %v9011
    %v10244 = vunpack.c.h.b16 %v9011
    %v10245 = vunpack.c.l.b16 %v9012
    %v10246 = vunpack.c.h.b16 %v9012
    %v10247 = vunpack.c.l.b16 %v9013
    %v10248 = vunpack.c.h.b16 %v9013
    %v10249 = vunpack.c.l.b16 %v9014
    %v10250 = vunpack.c.h.b16 %v9014
    %v10251 = vunpack.c.l.b16 %v9015
    %v10252 = vunpack.c.h.b16 %v9015
    %v10253 = vunpack.c.l.b16 %v9016
    %v10254 = vunpack.c.h.b16 %v9016
    %v10255 = vunpack.c.l.b16 %v9017
    %v10256 = vunpack.c.h.b16 %v9017
    %v10257 = vunpack.c.l.b16 %v9018
    %v10258 = vunpack.c.h.b16 %v9018
    %v10259 = vunpack.c.l.b16 %v9019
    %v10260 = vunpack.c.h.b16 %v9019
    %v10261 = vunpack.c.l.b16 %v9020
    %v10262 = vunpack.c.h.b16 %v9020
    %v10263 = vunpack.c.l.b16 %v9021
    %v10264 = vunpack.c.h.b16 %v9021
    %v10265 = vunpack.c.l.b16 %v9022
    %v10266 = vunpack.c.h.b16 %v9022
    %v10267 = vunpack.c.l.b16 %v9023
    %v10268 = vunpack.c.h.b16 %v9023
    %v10269 = vunpack.c.l.b16 %v9024
    %v10270 = vunpack.c.h.b16 %v9024
    %v10271 = vunpack.c.l.b16 %v9025
    %v10272 = vunpack.c.h.b16 %v9025
    %v10273 = vunpack.c.l.b16 %v9026
    %v10274 = vunpack.c.h.b16 %v9026
    %v10275 = vunpack.c.l.b16 %v9027
    %v10276 = vunpack.c.h.b16 %v9027
    %v10277 = vunpack.c.l.b16 %v9028
    %v10278 = vunpack.c.h.b16 %v9028
    %v10279 = vunpack.c.l.b16 %v9029
    %v10280 = vunpack.c.h.b16 %v9029
    %v10281 = vunpack.c.l.b16 %v9030
    %v10282 = vunpack.c.h.b16 %v9030
    %v10283 = vunpack.c.l.b16 %v9031
    %v10284 = vunpack.c.h.b16 %v9031
    %v10285 = vunpack.c.l.b16 %v9032
    %v10286 = vunpack.c.h.b16 %v9032
    %v10287 = vunpack.c.l.b16 %v9033
    %v10288 = vunpack.c.h.b16 %v9033
    %v10289 = vunpack.c.l.b16 %v9034
    %v10290 = vunpack.c.h.b16 %v9034
    %v10291 = vunpack.c.l.b16 %v9035
    %v10292 = vunpack.c.h.b16 %v9035
    %v10293 = vunpack.c.l.b16 %v9036
    %v10294 = vunpack.c.h.b16 %v9036
    %v10295 = vunpack.c.l.b16 %v9037
    %v10296 = vunpack.c.h.b16 %v9037
    %v10297 = vunpack.c.l.b16 %v9038
    %v10298 = vunpack.c.h.b16 %v9038
    %v10299 = vunpack.c.l.b16 %v9039
    %v10300 = vunpack.c.h.b16 %v9039
    %v10301 = vunpack.c.l.b16 %v9040
    %v10302 = vunpack.c.h.b16 %v9040
    %v10303 = vunpack.c.l.b16 %v9041
    %v10304 = vunpack.c.h.b16 %v9041
    %v10305 = vunpack.c.l.b16 %v9042
    %v10306 = vunpack.c.h.b16 %v9042
    %v10307 = vunpack.c.l.b16 %v9043
    %v10308 = vunpack.c.h.b16 %v9043
    %v10309 = vunpack.c.l.b16 %v9044
    %v10310 = vunpack.c.h.b16 %v9044
    %v10311 = vunpack.c.l.b16 %v9045
    %v10312 = vunpack.c.h.b16 %v9045
    %v10313 = vunpack.c.l.b16 %v9046
    %v10314 = vunpack.c.h.b16 %v9046
    %v10315 = vunpack.c.l.b16 %v9047
    %v10316 = vunpack.c.h.b16 %v9047
    %v10317 = vunpack.c.l.b16 %v9048
    %v10318 = vunpack.c.h.b16 %v9048
    %v10319 = vunpack.c.l.b16 %v9049
    %v10320 = vunpack.c.h.b16 %v9049
    %v10321 = vunpack.c.l.b16 %v9050
    %v10322 = vunpack.c.h.b16 %v9050
    %v10323 = vunpack.c.l.b16 %v9051
    %v10324 = vunpack.c.h.b16 %v9051
    %v10325 = vunpack.c.l.b16 %v9052
    %v10326 = vunpack.c.h.b16 %v9052
    %v10327 = vunpack.c.l.b16 %v9053
    %v10328 = vunpack.c.h.b16 %v9053
    %v10329 = vunpack.c.l.b16 %v9054
    %v10330 = vunpack.c.h.b16 %v9054
    %v10331 = vunpack.c.l.b16 %v9055
    %v10332 = vunpack.c.h.b16 %v9055
    %v10333 = vunpack.c.l.b16 %v9056
    %v10334 = vunpack.c.h.b16 %v9056
    %v10335 = vunpack.c.l.b16 %v9057
    %v10336 = vunpack.c.h.b16 %v9057
    %v10337 = vunpack.c.l.b16 %v9058
    %v10338 = vunpack.c.h.b16 %v9058
    %v10339 = vunpack.c.l.b16 %v9059
    %v10340 = vunpack.c.h.b16 %v9059
    %v10341 = vunpack.c.l.b16 %v9060
    %v10342 = vunpack.c.h.b16 %v9060
    %v10343 = vunpack.c.l.b16 %v9061
    %v10344 = vunpack.c.h.b16 %v9061
    %v10345 = vunpack.c.l.b16 %v9062
    %v10346 = vunpack.c.h.b16 %v9062
    %v10347 = vunpack.c.l.b16 %v9063
    %v10348 = vunpack.c.h.b16 %v9063
    %v10349 = vunpack.c.l.b16 %v9064
    %v10350 = vunpack.c.h.b16 %v9064
    %v10351 = vunpack.c.l.b16 %v9065
    %v10352 = vunpack.c.h.b16 %v9065
    %v10353 = vunpack.c.l.b16 %v9066
    %v10354 = vunpack.c.h.b16 %v9066
    %v10355 = vunpack.c.l.b16 %v9067
    %v10356 = vunpack.c.h.b16 %v9067
    %v10357 = vunpack.c.l.b16 %v9068
    %v10358 = vunpack.c.h.b16 %v9068
    %v10359 = vunpack.c.l.b16 %v9069
    %v10360 = vunpack.c.h.b16 %v9069
    %v10361 = vunpack.c.l.b16 %v9070
    %v10362 = vunpack.c.h.b16 %v9070
    %v10363 = vunpack.c.l.b16 %v9071
    %v10364 = vunpack.c.h.b16 %v9071
    %v10365 = vunpack.c.l.b16 %v9072
    %v10366 = vunpack.c.h.b16 %v9072
    %v10367 = vunpack.c.l.b16 %v9073
    %v10368 = vunpack.c.h.b16 %v9073
    %v10369 = vunpack.c.l.b16 %v9074
    %v10370 = vunpack.c.h.b16 %v9074
    %v10371 = vunpack.c.l.b16 %v9075
    %v10372 = vunpack.c.h.b16 %v9075
    %v10373 = vunpack.c.l.b16 %v9076
    %v10374 = vunpack.c.h.b16 %v9076
    %v10375 = vunpack.c.l.b16 %v9077
    %v10376 = vunpack.c.h.b16 %v9077
    %v10377 = vunpack.c.l.b16 %v9078
    %v10378 = vunpack.c.h.b16 %v9078
    %v10379 = vunpack.c.l.b16 %v9079
    %v10380 = vunpack.c.h.b16 %v9079
    %v10381 = vunpack.c.l.b16 %v9080
    %v10382 = vunpack.c.h.b16 %v9080
    %v10383 = vunpack.c.l.b16 %v9081
    %v10384 = vunpack.c.h.b16 %v9081
    %v10385 = vunpack.c.l.b16 %v9082
    %v10386 = vunpack.c.h.b16 %v9082
    %v10387 = vunpack.c.l.b16 %v9083
    %v10388 = vunpack.c.h.b16 %v9083
    %v10389 = vunpack.c.l.b16 %v9084
    %v10390 = vunpack.c.h.b16 %v9084
    %v10391 = vunpack.c.l.b16 %v9085
    %v10392 = vunpack.c.h.b16 %v9085
    %v10393 = vunpack.c.l.b16 %v9086
    %v10394 = vunpack.c.h.b16 %v9086
    %v10395 = vunpack.c.l.b16 %v9087
    %v10396 = vunpack.c.h.b16 %v9087
    %v10397 = vunpack.c.l.b16 %v9088
    %v10398 = vunpack.c.h.b16 %v9088
    %v10399 = vunpack.c.l.b16 %v9089
    %v10400 = vunpack.c.h.b16 %v9089
    %v10401 = vunpack.c.l.b16 %v9090
    %v10402 = vunpack.c.h.b16 %v9090
    %v10403 = vunpack.c.l.b16 %v9091
    %v10404 = vunpack.c.h.b16 %v9091
    %v10405 = vunpack.c.l.b16 %v9092
    %v10406 = vunpack.c.h.b16 %v9092
    %v10407 = vunpack.c.l.b16 %v9093
    %v10408 = vunpack.c.h.b16 %v9093
    %v10409 = vunpack.c.l.b16 %v9094
    %v10410 = vunpack.c.h.b16 %v9094
    %v10411 = vunpack.c.l.b16 %v9095
    %v10412 = vunpack.c.h.b16 %v9095
    %v10413 = vunpack.c.l.b16 %v9096
    %v10414 = vunpack.c.h.b16 %v9096
    %v10415 = vunpack.c.l.b16 %v9097
    %v10416 = vunpack.c.h.b16 %v9097
    %v10417 = vunpack.c.l.b16 %v9098
    %v10418 = vunpack.c.h.b16 %v9098
    %v10419 = vunpack.c.l.b16 %v9099
    %v10420 = vunpack.c.h.b16 %v9099
    %v10421 = vunpack.c.l.b16 %v9100
    %v10422 = vunpack.c.h.b16 %v9100
    %v10423 = vunpack.c.l.b16 %v9101
    %v10424 = vunpack.c.h.b16 %v9101
    %v10425 = vunpack.c.l.b16 %v9102
    %v10426 = vunpack.c.h.b16 %v9102
    %v10427 = vunpack.c.l.b16 %v9103
    %v10428 = vunpack.c.h.b16 %v9103
    %v10429 = vunpack.c.l.b16 %v9104
    %v10430 = vunpack.c.h.b16 %v9104
    %v10431 = vunpack.c.l.b16 %v9105
    %v10432 = vunpack.c.h.b16 %v9105
    %v10433 = vunpack.c.l.b16 %v9106
    %v10434 = vunpack.c.h.b16 %v9106
    %v10435 = vunpack.c.l.b16 %v9107
    %v10436 = vunpack.c.h.b16 %v9107
    %v10437 = vunpack.c.l.b16 %v9108
    %v10438 = vunpack.c.h.b16 %v9108
    %v10439 = vunpack.c.l.b16 %v9109
    %v10440 = vunpack.c.h.b16 %v9109
    %v10441 = vunpack.c.l.b16 %v9110
    %v10442 = vunpack.c.h.b16 %v9110
    %v10443 = vunpack.c.l.b16 %v9111
    %v10444 = vunpack.c.h.b16 %v9111
    %v10445 = vunpack.c.l.b16 %v9112
    %v10446 = vunpack.c.h.b16 %v9112
    %v10447 = vunpack.c.l.b16 %v9113
    %v10448 = vunpack.c.h.b16 %v9113
    %v10449 = vunpack.c.l.b16 %v9114
    %v10450 = vunpack.c.h.b16 %v9114
    %v10451 = vunpack.c.l.b16 %v9115
    %v10452 = vunpack.c.h.b16 %v9115
    %v10453 = vunpack.c.l.b16 %v9116
    %v10454 = vunpack.c.h.b16 %v9116
    %v10455 = vunpack.c.l.b16 %v9117
    %v10456 = vunpack.c.h.b16 %v9117
    %v10457 = vunpack.c.l.b16 %v9118
    %v10458 = vunpack.c.h.b16 %v9118
    %v10459 = vunpack.c.l.b16 %v9119
    %v10460 = vunpack.c.h.b16 %v9119
    %v10461 = vunpack.c.l.b16 %v9120
    %v10462 = vunpack.c.h.b16 %v9120
    %v10463 = vunpack.c.l.b16 %v9121
    %v10464 = vunpack.c.h.b16 %v9121
    %v10465 = vunpack.c.l.b16 %v9122
    %v10466 = vunpack.c.h.b16 %v9122
    %v10467 = vunpack.c.l.b16 %v9123
    %v10468 = vunpack.c.h.b16 %v9123
    %v10469 = vunpack.c.l.b16 %v9124
    %v10470 = vunpack.c.h.b16 %v9124
    %v10471 = vunpack.c.l.b16 %v9125
    %v10472 = vunpack.c.h.b16 %v9125
    %v10473 = vunpack.c.l.b16 %v9126
    %v10474 = vunpack.c.h.b16 %v9126
    %v10475 = vunpack.c.l.b16 %v9127
    %v10476 = vunpack.c.h.b16 %v9127
    %v10477 = vunpack.c.l.b16 %v9128
    %v10478 = vunpack.c.h.b16 %v9128
    %v10479 = vunpack.c.l.b16 %v9129
    %v10480 = vunpack.c.h.b16 %v9129
    %v10481 = vunpack.c.l.b16 %v9130
    %v10482 = vunpack.c.h.b16 %v9130
    %v10483 = vunpack.c.l.b16 %v9131
    %v10484 = vunpack.c.h.b16 %v9131
    %v10485 = vunpack.c.l.b16 %v9132
    %v10486 = vunpack.c.h.b16 %v9132
    %v10487 = vunpack.c.l.b16 %v9133
    %v10488 = vunpack.c.h.b16 %v9133
    %v10489 = vunpack.c.l.b16 %v9134
    %v10490 = vunpack.c.h.b16 %v9134
    %v10491 = vunpack.c.l.b16 %v9135
    %v10492 = vunpack.c.h.b16 %v9135
    %v10493 = vunpack.c.l.b16 %v9136
    %v10494 = vunpack.c.h.b16 %v9136
    %v10495 = vunpack.c.l.b16 %v9137
    %v10496 = vunpack.c.h.b16 %v9137
    %v10497 = vunpack.c.l.b16 %v9138
    %v10498 = vunpack.c.h.b16 %v9138
    %v10499 = vunpack.c.l.b16 %v9139
    %v10500 = vunpack.c.h.b16 %v9139
    %v10501 = vunpack.c.l.b16 %v9140
    %v10502 = vunpack.c.h.b16 %v9140
    %v10503 = vunpack.c.l.b16 %v9141
    %v10504 = vunpack.c.h.b16 %v9141
    %v10505 = vunpack.c.l.b16 %v9142
    %v10506 = vunpack.c.h.b16 %v9142
    %v10507 = vunpack.c.l.b16 %v9143
    %v10508 = vunpack.c.h.b16 %v9143
    %v10509 = vunpack.c.l.b16 %v9144
    %v10510 = vunpack.c.h.b16 %v9144
    %v10511 = vunpack.c.l.b16 %v9145
    %v10512 = vunpack.c.h.b16 %v9145
    %v10513 = vunpack.c.l.b16 %v9146
    %v10514 = vunpack.c.h.b16 %v9146
    %v10515 = vunpack.c.l.b16 %v9147
    %v10516 = vunpack.c.h.b16 %v9147
    %v10517 = vunpack.c.l.b16 %v9148
    %v10518 = vunpack.c.h.b16 %v9148
    %v10519 = vunpack.c.l.b16 %v9149
    %v10520 = vunpack.c.h.b16 %v9149
    %v10521 = vunpack.c.l.b16 %v9150
    %v10522 = vunpack.c.h.b16 %v9150
    %v10523 = vunpack.c.l.b16 %v9151
    %v10524 = vunpack.c.h.b16 %v9151
    %v10525 = vunpack.c.l.b16 %v9152
    %v10526 = vunpack.c.h.b16 %v9152
    %v10527 = vunpack.c.l.b16 %v9153
    %v10528 = vunpack.c.h.b16 %v9153
    %v10529 = vunpack.c.l.b16 %v9154
    %v10530 = vunpack.c.h.b16 %v9154
    %v10531 = vunpack.c.l.b16 %v9155
    %v10532 = vunpack.c.h.b16 %v9155
    %v10533 = vunpack.c.l.b16 %v9156
    %v10534 = vunpack.c.h.b16 %v9156
    %v10535 = vunpack.c.l.b16 %v9157
    %v10536 = vunpack.c.h.b16 %v9157
    %v10537 = vunpack.c.l.b16 %v9158
    %v10538 = vunpack.c.h.b16 %v9158
    %v10539 = vunpack.c.l.b16 %v9159
    %v10540 = vunpack.c.h.b16 %v9159
    %v10541 = vunpack.c.l.b16 %v9160
    %v10542 = vunpack.c.h.b16 %v9160
    %v10543 = vunpack.c.l.b16 %v9161
    %v10544 = vunpack.c.h.b16 %v9161
    %v10545 = vunpack.c.l.b16 %v9162
    %v10546 = vunpack.c.h.b16 %v9162
    %v10547 = vunpack.c.l.b16 %v9163
    %v10548 = vunpack.c.h.b16 %v9163
    %v10549 = vunpack.c.l.b16 %v9164
    %v10550 = vunpack.c.h.b16 %v9164
    %v10551 = vunpack.c.l.b16 %v9165
    %v10552 = vunpack.c.h.b16 %v9165
    %v10553 = vunpack.c.l.b16 %v9166
    %v10554 = vunpack.c.h.b16 %v9166
    %v10555 = vunpack.c.l.b16 %v9167
    %v10556 = vunpack.c.h.b16 %v9167
    %v10557 = vunpack.c.l.b16 %v9168
    %v10558 = vunpack.c.h.b16 %v9168
    %v10559 = vunpack.c.l.b16 %v9169
    %v10560 = vunpack.c.h.b16 %v9169
    %v10561 = vunpack.c.l.b16 %v9170
    %v10562 = vunpack.c.h.b16 %v9170
    %v10563 = vunpack.c.l.b16 %v9171
    %v10564 = vunpack.c.h.b16 %v9171
    %v10565 = vunpack.c.l.b16 %v9172
    %v10566 = vunpack.c.h.b16 %v9172
    %v10567 = vunpack.c.l.b16 %v9173
    %v10568 = vunpack.c.h.b16 %v9173
    %v10569 = vunpack.c.l.b16 %v9174
    %v10570 = vunpack.c.h.b16 %v9174
    %v10571 = vunpack.c.l.b16 %v9175
    %v10572 = vunpack.c.h.b16 %v9175
    %v10573 = vunpack.c.l.b16 %v9176
    %v10574 = vunpack.c.h.b16 %v9176
    %v10575 = vunpack.c.l.b16 %v9177
    %v10576 = vunpack.c.h.b16 %v9177
    %v10577 = vunpack.c.l.b16 %v9178
    %v10578 = vunpack.c.h.b16 %v9178
    %v10579 = vunpack.c.l.b16 %v9179
    %v10580 = vunpack.c.h.b16 %v9179
    %v10581 = vunpack.c.l.b16 %v9180
    %v10582 = vunpack.c.h.b16 %v9180
    %v10583 = vunpack.c.l.b16 %v9181
    %v10584 = vunpack.c.h.b16 %v9181
    %v10585 = vunpack.c.l.b16 %v9182
    %v10586 = vunpack.c.h.b16 %v9182
    %v10587 = vunpack.c.l.b16 %v9183
    %v10588 = vunpack.c.h.b16 %v9183
    %v10589 = vunpack.c.l.b16 %v9184
    %v10590 = vunpack.c.h.b16 %v9184
    %v10591 = vunpack.c.l.b16 %v9185
    %v10592 = vunpack.c.h.b16 %v9185
    %v10593 = vunpack.c.l.b16 %v9186
    %v10594 = vunpack.c.h.b16 %v9186
    %v10595 = vunpack.c.l.b16 %v9187
    %v10596 = vunpack.c.h.b16 %v9187
    %v10597 = vunpack.c.l.b16 %v9188
    %v10598 = vunpack.c.h.b16 %v9188
    %v10599 = vunpack.c.l.b16 %v9189
    %v10600 = vunpack.c.h.b16 %v9189
    %v10601 = vunpack.c.l.b16 %v9190
    %v10602 = vunpack.c.h.b16 %v9190
    %v10603 = vunpack.c.l.b16 %v9191
    %v10604 = vunpack.c.h.b16 %v9191
    %v10605 = vunpack.c.l.b16 %v9192
    %v10606 = vunpack.c.h.b16 %v9192
    %v10607 = vunpack.c.l.b16 %v9193
    %v10608 = vunpack.c.h.b16 %v9193
    %v10609 = vunpack.c.l.b16 %v9194
    %v10610 = vunpack.c.h.b16 %v9194
    %v10611 = vunpack.c.l.b16 %v9195
    %v10612 = vunpack.c.h.b16 %v9195
    %v10613 = vunpack.c.l.b16 %v9196
    %v10614 = vunpack.c.h.b16 %v9196
    %v10615 = vunpack.c.l.b16 %v9197
    %v10616 = vunpack.c.h.b16 %v9197
    %v10617 = vunpack.c.l.b16 %v9198
    %v10618 = vunpack.c.h.b16 %v9198
    %v10619 = vunpack.c.l.b16 %v9199
    %v10620 = vunpack.c.h.b16 %v9199
    %v10621 = vunpack.c.l.b16 %v9200
    %v10622 = vunpack.c.h.b16 %v9200
    %v10623 = vunpack.c.l.b16 %v9201
    %v10624 = vunpack.c.h.b16 %v9201
    %v10625 = vunpack.c.l.b16 %v9202
    %v10626 = vunpack.c.h.b16 %v9202
    %v10627 = vunpack.c.l.b16 %v9203
    %v10628 = vunpack.c.h.b16 %v9203
    %v10629 = vunpack.c.l.b16 %v9204
    %v10630 = vunpack.c.h.b16 %v9204
    %v10631 = vunpack.c.l.b16 %v9205
    %v10632 = vunpack.c.h.b16 %v9205
    %v10633 = vunpack.c.l.b16 %v9206
    %v10634 = vunpack.c.h.b16 %v9206
    %v10635 = vunpack.c.l.b16 %v9207
    %v10636 = vunpack.c.h.b16 %v9207
    %v10637 = vunpack.c.l.b16 %v9208
    %v10638 = vunpack.c.h.b16 %v9208
    %v10639 = vunpack.c.l.b16 %v9209
    %v10640 = vunpack.c.h.b16 %v9209
    %v10641 = vunpack.c.l.b16 %v9210
    %v10642 = vunpack.c.h.b16 %v9210
    %v10643 = vunpack.c.l.b16 %v9211
    %v10644 = vunpack.c.h.b16 %v9211
    %v10645 = vunpack.c.l.b16 %v9212
    %v10646 = vunpack.c.h.b16 %v9212
    %v10647 = vunpack.c.l.b16 %v9213
    %v10648 = vunpack.c.h.b16 %v9213
    %v10649 = vunpack.c.l.b16 %v9214
    %v10650 = vunpack.c.h.b16 %v9214
    %v10651 = vunpack.c.l.b16 %v9215
    %v10652 = vunpack.c.h.b16 %v9215
    %v10653 = vunpack.c.l.b16 %v9216
    %v10654 = vunpack.c.h.b16 %v9216
    %v10655 = vunpack.c.l.b16 %v9217
    %v10656 = vunpack.c.h.b16 %v9217
    %v10657 = vunpack.c.l.b16 %v9218
    %v10658 = vunpack.c.h.b16 %v9218
    %v10659 = vunpack.c.l.b16 %v9219
    %v10660 = vunpack.c.h.b16 %v9219
    %v10661 = vunpack.c.l.b16 %v9220
    %v10662 = vunpack.c.h.b16 %v9220
    %v10663 = vunpack.c.l.b16 %v9221
    %v10664 = vunpack.c.h.b16 %v9221
    %v10665 = vunpack.c.l.b16 %v9222
    %v10666 = vunpack.c.h.b16 %v9222
    %v10667 = vunpack.c.l.b16 %v9223
    %v10668 = vunpack.c.h.b16 %v9223
    %v10669 = vunpack.c.l.b16 %v9224
    %v10670 = vunpack.c.h.b16 %v9224
    %v10671 = vunpack.c.l.b16 %v9225
    %v10672 = vunpack.c.h.b16 %v9225
    %v10673 = vunpack.c.l.b16 %v9226
    %v10674 = vunpack.c.h.b16 %v9226
    %v10675 = vunpack.c.l.b16 %v9227
    %v10676 = vunpack.c.h.b16 %v9227
    %v10677 = vunpack.c.l.b16 %v9228
    %v10678 = vunpack.c.h.b16 %v9228
    %v10679 = vunpack.c.l.b16 %v9229
    %v10680 = vunpack.c.h.b16 %v9229
    %v10681 = vunpack.c.l.b16 %v9230
    %v10682 = vunpack.c.h.b16 %v9230
    %v10683 = vunpack.c.l.b16 %v9231
    %v10684 = vunpack.c.h.b16 %v9231
    %v10685 = vunpack.c.l.b16 %v9232
    %v10686 = vunpack.c.h.b16 %v9232
    %v10687 = vunpack.c.l.b16 %v9233
    %v10688 = vunpack.c.h.b16 %v9233
    %v10689 = vunpack.c.l.b16 %v9234
    %v10690 = vunpack.c.h.b16 %v9234
    %v10691 = vunpack.c.l.b16 %v9235
    %v10692 = vunpack.c.h.b16 %v9235
    %v10693 = vunpack.c.l.b16 %v9236
    %v10694 = vunpack.c.h.b16 %v9236
    %v10695 = vunpack.c.l.b16 %v9237
    %v10696 = vunpack.c.h.b16 %v9237
    %v10697 = vunpack.c.l.b16 %v9238
    %v10698 = vunpack.c.h.b16 %v9238
    %v10699 = vunpack.c.l.b16 %v9239
    %v10700 = vunpack.c.h.b16 %v9239
    %v10701 = vunpack.c.l.b16 %v9240
    %v10702 = vunpack.c.h.b16 %v9240
    %v10703 = vunpack.c.l.b16 %v9241
    %v10704 = vunpack.c.h.b16 %v9241
    %v10705 = vunpack.c.l.b16 %v9242
    %v10706 = vunpack.c.h.b16 %v9242
    %v10707 = vunpack.c.l.b16 %v9243
    %v10708 = vunpack.c.h.b16 %v9243
    %v10709 = vunpack.c.l.b16 %v9244
    %v10710 = vunpack.c.h.b16 %v9244
    %v10711 = vunpack.c.l.b16 %v9245
    %v10712 = vunpack.c.h.b16 %v9245
    %v10713 = vunpack.c.l.b16 %v9246
    %v10714 = vunpack.c.h.b16 %v9246
    %v10715 = vunpack.c.l.b16 %v9247
    %v10716 = vunpack.c.h.b16 %v9247
    %v10717 = vunpack.c.l.b16 %v9248
    %v10718 = vunpack.c.h.b16 %v9248
    %v10719 = vunpack.c.l.b16 %v9249
    %v10720 = vunpack.c.h.b16 %v9249
    %v10721 = vunpack.c.l.b16 %v9250
    %v10722 = vunpack.c.h.b16 %v9250
    %v10723 = vunpack.c.l.b16 %v9251
    %v10724 = vunpack.c.h.b16 %v9251
    %v10725 = vunpack.c.l.b16 %v9252
    %v10726 = vunpack.c.h.b16 %v9252
    %v10727 = vunpack.c.l.b16 %v9253
    %v10728 = vunpack.c.h.b16 %v9253
    %v10729 = vunpack.c.l.b16 %v9254
    %v10730 = vunpack.c.h.b16 %v9254
    %v10731 = vunpack.c.l.b16 %v9255
    %v10732 = vunpack.c.h.b16 %v9255
    %v10733 = vunpack.c.l.b16 %v9256
    %v10734 = vunpack.c.h.b16 %v9256
    %v10735 = vunpack.c.l.b16 %v9257
    %v10736 = vunpack.c.h.b16 %v9257
    %v10737 = vunpack.c.l.b16 %v9258
    %v10738 = vunpack.c.h.b16 %v9258
    %v10739 = vunpack.c.l.b16 %v9259
    %v10740 = vunpack.c.h.b16 %v9259
    %v10741 = vunpack.c.l.b16 %v9260
    %v10742 = vunpack.c.h.b16 %v9260
    %v10743 = vunpack.c.l.b16 %v9261
    %v10744 = vunpack.c.h.b16 %v9261
    %v10745 = vunpack.c.l.b16 %v9262
    %v10746 = vunpack.c.h.b16 %v9262
    %v10747 = vunpack.c.l.b16 %v9263
    %v10748 = vunpack.c.h.b16 %v9263
    %v10749 = vunpack.c.l.b16 %v9264
    %v10750 = vunpack.c.h.b16 %v9264
    %v10751 = vunpack.c.l.b16 %v9265
    %v10752 = vunpack.c.h.b16 %v9265
    %v10753 = vunpack.c.l.b16 %v9266
    %v10754 = vunpack.c.h.b16 %v9266
    %v10755 = vunpack.c.l.b16 %v9267
    %v10756 = vunpack.c.h.b16 %v9267
    %v10757 = vunpack.c.l.b16 %v9268
    %v10758 = vunpack.c.h.b16 %v9268
    %v10759 = vunpack.c.l.b16 %v9269
    %v10760 = vunpack.c.h.b16 %v9269
    %v10761 = vunpack.c.l.b16 %v9270
    %v10762 = vunpack.c.h.b16 %v9270
    %v10763 = vunpack.c.l.b16 %v9271
    %v10764 = vunpack.c.h.b16 %v9271
    %v10765 = vunpack.c.l.b16 %v9272
    %v10766 = vunpack.c.h.b16 %v9272
    %v10767 = vunpack.c.l.b16 %v9273
    %v10768 = vunpack.c.h.b16 %v9273
    %v10769 = vunpack.c.l.b16 %v9274
    %v10770 = vunpack.c.h.b16 %v9274
    %v10771 = vunpack.c.l.b16 %v9275
    %v10772 = vunpack.c.h.b16 %v9275
    %v10773 = vunpack.c.l.b16 %v9276
    %v10774 = vunpack.c.h.b16 %v9276
    %v10775 = vunpack.c.l.b16 %v9277
    %v10776 = vunpack.c.h.b16 %v9277
    %v10777 = vunpack.c.l.b16 %v9278
    %v10778 = vunpack.c.h.b16 %v9278
    %v10779 = vunpack.c.l.b16 %v9279
    %v10780 = vunpack.c.h.b16 %v9279
    %v10781 = vunpack.c.l.b16 %v9280
    %v10782 = vunpack.c.h.b16 %v9280
    %v10783 = vunpack.c.l.b16 %v9281
    %v10784 = vunpack.c.h.b16 %v9281
    %v10785 = vunpack.c.l.b16 %v9282
    %v10786 = vunpack.c.h.b16 %v9282
    %v10787 = vunpack.c.l.b16 %v9283
    %v10788 = vunpack.c.h.b16 %v9283
    %v10789 = vunpack.c.l.b16 %v9284
    %v10790 = vunpack.c.h.b16 %v9284
    %v10791 = vunpack.c.l.b16 %v9285
    %v10792 = vunpack.c.h.b16 %v9285
    %v10793 = vunpack.c.l.b16 %v9286
    %v10794 = vunpack.c.h.b16 %v9286
    %v10795 = vunpack.c.l.b16 %v9287
    %v10796 = vunpack.c.h.b16 %v9287
    %v10797 = vunpack.c.l.b16 %v9288
    %v10798 = vunpack.c.h.b16 %v9288
    %v10799 = vunpack.c.l.b16 %v9289
    %v10800 = vunpack.c.h.b16 %v9289
    %v10801 = vunpack.c.l.b16 %v9290
    %v10802 = vunpack.c.h.b16 %v9290
    %v10803 = vunpack.c.l.b16 %v9291
    %v10804 = vunpack.c.h.b16 %v9291
    %v10805 = vunpack.c.l.b16 %v9292
    %v10806 = vunpack.c.h.b16 %v9292
    %v10807 = vunpack.c.l.b16 %v9293
    %v10808 = vunpack.c.h.b16 %v9293
    %v10809 = vunpack.c.l.b16 %v9294
    %v10810 = vunpack.c.h.b16 %v9294
    %v10811 = vunpack.c.l.b16 %v9295
    %v10812 = vunpack.c.h.b16 %v9295
    %v10813 = vunpack.c.l.b16 %v9296
    %v10814 = vunpack.c.h.b16 %v9296
    %v10815 = vunpack.c.l.b16 %v9297
    %v10816 = vunpack.c.h.b16 %v9297
    %v10817 = vunpack.c.l.b16 %v9298
    %v10818 = vunpack.c.h.b16 %v9298
    %v10819 = vunpack.c.l.b16 %v9299
    %v10820 = vunpack.c.h.b16 %v9299
    %v10821 = vunpack.c.l.b16 %v9300
    %v10822 = vunpack.c.h.b16 %v9300
    %v10823 = vunpack.c.l.b16 %v9301
    %v10824 = vunpack.c.h.b16 %v9301
    %v10825 = vunpack.c.l.b16 %v9302
    %v10826 = vunpack.c.h.b16 %v9302
    %v10827 = vunpack.c.l.b16 %v9303
    %v10828 = vunpack.c.h.b16 %v9303
    %v10829 = vunpack.c.l.b16 %v9304
    %v10830 = vunpack.c.h.b16 %v9304
    %v10831 = vunpack.c.l.b16 %v9305
    %v10832 = vunpack.c.h.b16 %v9305
    %v10833 = vunpack.c.l.b16 %v9306
    %v10834 = vunpack.c.h.b16 %v9306
    %v10835 = vunpack.c.l.b16 %v9307
    %v10836 = vunpack.c.h.b16 %v9307
    %v10837 = vunpack.c.l.b16 %v9308
    %v10838 = vunpack.c.h.b16 %v9308
    %v10839 = vunpack.c.l.b16 %v9309
    %v10840 = vunpack.c.h.b16 %v9309
    %v10841 = vunpack.c.l.b16 %v9310
    %v10842 = vunpack.c.h.b16 %v9310
    %v10843 = vunpack.c.l.b16 %v9311
    %v10844 = vunpack.c.h.b16 %v9311
    %v10845 = vunpack.c.l.b16 %v9312
    %v10846 = vunpack.c.h.b16 %v9312
    %v10847 = vunpack.c.l.b16 %v9313
    %v10848 = vunpack.c.h.b16 %v9313
    %v10849 = vunpack.c.l.b16 %v9314
    %v10850 = vunpack.c.h.b16 %v9314
    %v10851 = vunpack.c.l.b16 %v9315
    %v10852 = vunpack.c.h.b16 %v9315
    %v10853 = vunpack.c.l.b16 %v9316
    %v10854 = vunpack.c.h.b16 %v9316
    %v10855 = vunpack.c.l.b16 %v9317
    %v10856 = vunpack.c.h.b16 %v9317
    %v10857 = vunpack.c.l.b16 %v9318
    %v10858 = vunpack.c.h.b16 %v9318
    %v10859 = vunpack.c.l.b16 %v9319
    %v10860 = vunpack.c.h.b16 %v9319
    %v10861 = vunpack.c.l.b16 %v9320
    %v10862 = vunpack.c.h.b16 %v9320
    %v10863 = vunpack.c.l.b16 %v9321
    %v10864 = vunpack.c.h.b16 %v9321
    %v10865 = vunpack.c.l.b16 %v9322
    %v10866 = vunpack.c.h.b16 %v9322
    %v10867 = vunpack.c.l.b16 %v9323
    %v10868 = vunpack.c.h.b16 %v9323
    %v10869 = vunpack.c.l.b16 %v9324
    %v10870 = vunpack.c.h.b16 %v9324
    %v10871 = vunpack.c.l.b16 %v9325
    %v10872 = vunpack.c.h.b16 %v9325
    %v10873 = vunpack.c.l.b16 %v9326
    %v10874 = vunpack.c.h.b16 %v9326
    %v10875 = vunpack.c.l.b16 %v9327
    %v10876 = vunpack.c.h.b16 %v9327
    %v10877 = vunpack.c.l.b16 %v9328
    %v10878 = vunpack.c.h.b16 %v9328
    %v10879 = vunpack.c.l.b16 %v9329
    %v10880 = vunpack.c.h.b16 %v9329
    %v10881 = vunpack.c.l.b16 %v9330
    %v10882 = vunpack.c.h.b16 %v9330
    %v10883 = vunpack.c.l.b16 %v9331
    %v10884 = vunpack.c.h.b16 %v9331
    %v10885 = vunpack.c.l.b16 %v9332
    %v10886 = vunpack.c.h.b16 %v9332
    %v10887 = vunpack.c.l.b16 %v9333
    %v10888 = vunpack.c.h.b16 %v9333
    %v10889 = vunpack.c.l.b16 %v9334
    %v10890 = vunpack.c.h.b16 %v9334
    %v10891 = vunpack.c.l.b16 %v9335
    %v10892 = vunpack.c.h.b16 %v9335
    %v10893 = vunpack.c.l.b16 %v9336
    %v10894 = vunpack.c.h.b16 %v9336
    %v10895 = vpack.c.b16 %v9875, %v9871
    %v10896 = vpack.c.b16 %v9876, %v9872
    %v10897 = vpack.c.b16 %v9877, %v9873
    %v10898 = vpack.c.b16 %v9878, %v9874
    %v10899 = vpack.c.b16 %v9883, %v9879
    %v10900 = vpack.c.b16 %v9884, %v9880
    %v10901 = vpack.c.b16 %v9885, %v9881
    %v10902 = vpack.c.b16 %v9886, %v9882
    %v10903 = vpack.c.b16 %v9891, %v9887
    %v10904 = vpack.c.b16 %v9892, %v9888
    %v10905 = vpack.c.b16 %v9893, %v9889
    %v10906 = vpack.c.b16 %v9894, %v9890
    %v10907 = vpack.c.b16 %v9899, %v9895
    %v10908 = vpack.c.b16 %v9900, %v9896
    %v10909 = vpack.c.b16 %v9901, %v9897
    %v10910 = vpack.c.b16 %v9902, %v9898
    %v10911 = vpack.c.b16 %v9907, %v9903
    %v10912 = vpack.c.b16 %v9908, %v9904
    %v10913 = vpack.c.b16 %v9909, %v9905
    %v10914 = vpack.c.b16 %v9910, %v9906
    %v10915 = vpack.c.b16 %v9915, %v9911
    %v10916 = vpack.c.b16 %v9916, %v9912
    %v10917 = vpack.c.b16 %v9917, %v9913
    %v10918 = vpack.c.b16 %v9918, %v9914
    %v10919 = vpack.c.b16 %v9923, %v9919
    %v10920 = vpack.c.b16 %v9924, %v9920
    %v10921 = vpack.c.b16 %v9925, %v9921
    %v10922 = vpack.c.b16 %v9926, %v9922
    %v10923 = vpack.c.b16 %v9931, %v9927
    %v10924 = vpack.c.b16 %v9932, %v9928
    %v10925 = vpack.c.b16 %v9933, %v9929
    %v10926 = vpack.c.b16 %v9934, %v9930
    %v10927 = vpack.c.b16 %v9939, %v9935
    %v10928 = vpack.c.b16 %v9940, %v9936
    %v10929 = vpack.c.b16 %v9941, %v9937
    %v10930 = vpack.c.b16 %v9942, %v9938
    %v10931 = vpack.c.b16 %v9947, %v9943
    %v10932 = vpack.c.b16 %v9948, %v9944
    %v10933 = vpack.c.b16 %v9949, %v9945
    %v10934 = vpack.c.b16 %v9950, %v9946
    %v10935 = vpack.c.b16 %v9955, %v9951
    %v10936 = vpack.c.b16 %v9956, %v9952
    %v10937 = vpack.c.b16 %v9957, %v9953
    %v10938 = vpack.c.b16 %v9958, %v9954
    %v10939 = vpack.c.b16 %v9963, %v9959
    %v10940 = vpack.c.b16 %v9964, %v9960
    %v10941 = vpack.c.b16 %v9965, %v9961
    %v10942 = vpack.c.b16 %v9966, %v9962
    %v10943 = vpack.c.b16 %v9971, %v9967
    %v10944 = vpack.c.b16 %v9972, %v9968
    %v10945 = vpack.c.b16 %v9973, %v9969
    %v10946 = vpack.c.b16 %v9974, %v9970
    %v10947 = vpack.c.b16 %v9979, %v9975
    %v10948 = vpack.c.b16 %v9980, %v9976
    %v10949 = vpack.c.b16 %v9981, %v9977
    %v10950 = vpack.c.b16 %v9982, %v9978
    %v10951 = vpack.c.b16 %v9987, %v9983
    %v10952 = vpack.c.b16 %v9988, %v9984
    %v10953 = vpack.c.b16 %v9989, %v9985
    %v10954 = vpack.c.b16 %v9990, %v9986
    %v10955 = vpack.c.b16 %v9995, %v9991
    %v10956 = vpack.c.b16 %v9996, %v9992
    %v10957 = vpack.c.b16 %v9997, %v9993
    %v10958 = vpack.c.b16 %v9998, %v9994
    %v10959 = vpack.c.b16 %v10003, %v9999
    %v10960 = vpack.c.b16 %v10004, %v10000
    %v10961 = vpack.c.b16 %v10005, %v10001
    %v10962 = vpack.c.b16 %v10006, %v10002
    %v10963 = vpack.c.b16 %v10011, %v10007
    %v10964 = vpack.c.b16 %v10012, %v10008
    %v10965 = vpack.c.b16 %v10013, %v10009
    %v10966 = vpack.c.b16 %v10014, %v10010
    %v10967 = vpack.c.b16 %v10019, %v10015
    %v10968 = vpack.c.b16 %v10020, %v10016
    %v10969 = vpack.c.b16 %v10021, %v10017
    %v10970 = vpack.c.b16 %v10022, %v10018
    %v10971 = vpack.c.b16 %v10027, %v10023
    %v10972 = vpack.c.b16 %v10028, %v10024
    %v10973 = vpack.c.b16 %v10029, %v10025
    %v10974 = vpack.c.b16 %v10030, %v10026
    %v10975 = vpack.c.b16 %v10035, %v10031
    %v10976 = vpack.c.b16 %v10036, %v10032
    %v10977 = vpack.c.b16 %v10037, %v10033
    %v10978 = vpack.c.b16 %v10038, %v10034
    %v10979 = vpack.c.b16 %v10043, %v10039
    %v10980 = vpack.c.b16 %v10044, %v10040
    %v10981 = vpack.c.b16 %v10045, %v10041
    %v10982 = vpack.c.b16 %v10046, %v10042
    %v10983 = vpack.c.b16 %v10051, %v10047
    %v10984 = vpack.c.b16 %v10052, %v10048
    %v10985 = vpack.c.b16 %v10053, %v10049
    %v10986 = vpack.c.b16 %v10054, %v10050
    %v10987 = vpack.c.b16 %v10059, %v10055
    %v10988 = vpack.c.b16 %v10060, %v10056
    %v10989 = vpack.c.b16 %v10061, %v10057
    %v10990 = vpack.c.b16 %v10062, %v10058
    %v10991 = vpack.c.b16 %v10067, %v10063
    %v10992 = vpack.c.b16 %v10068, %v10064
    %v10993 = vpack.c.b16 %v10069, %v10065
    %v10994 = vpack.c.b16 %v10070, %v10066
    %v10995 = vpack.c.b16 %v10075, %v10071
    %v10996 = vpack.c.b16 %v10076, %v10072
    %v10997 = vpack.c.b16 %v10077, %v10073
    %v10998 = vpack.c.b16 %v10078, %v10074
    %v10999 = vpack.c.b16 %v10083, %v10079
    %v11000 = vpack.c.b16 %v10084, %v10080
    %v11001 = vpack.c.b16 %v10085, %v10081
    %v11002 = vpack.c.b16 %v10086, %v10082
    %v11003 = vpack.c.b16 %v10091, %v10087
    %v11004 = vpack.c.b16 %v10092, %v10088
    %v11005 = vpack.c.b16 %v10093, %v10089
    %v11006 = vpack.c.b16 %v10094, %v10090
    %v11007 = vpack.c.b16 %v10099, %v10095
    %v11008 = vpack.c.b16 %v10100, %v10096
    %v11009 = vpack.c.b16 %v10101, %v10097
    %v11010 = vpack.c.b16 %v10102, %v10098
    %v11011 = vpack.c.b16 %v10107, %v10103
    %v11012 = vpack.c.b16 %v10108, %v10104
    %v11013 = vpack.c.b16 %v10109, %v10105
    %v11014 = vpack.c.b16 %v10110, %v10106
    %v11015 = vpack.c.b16 %v10115, %v10111
    %v11016 = vpack.c.b16 %v10116, %v10112
    %v11017 = vpack.c.b16 %v10117, %v10113
    %v11018 = vpack.c.b16 %v10118, %v10114
    %v11019 = vpack.c.b16 %v10123, %v10119
    %v11020 = vpack.c.b16 %v10124, %v10120
    %v11021 = vpack.c.b16 %v10125, %v10121
    %v11022 = vpack.c.b16 %v10126, %v10122
    %v11023 = vpack.c.b16 %v10131, %v10127
    %v11024 = vpack.c.b16 %v10132, %v10128
    %v11025 = vpack.c.b16 %v10133, %v10129
    %v11026 = vpack.c.b16 %v10134, %v10130
    %v11027 = vpack.c.b16 %v10139, %v10135
    %v11028 = vpack.c.b16 %v10140, %v10136
    %v11029 = vpack.c.b16 %v10141, %v10137
    %v11030 = vpack.c.b16 %v10142, %v10138
    %v11031 = vpack.c.b16 %v10147, %v10143
    %v11032 = vpack.c.b16 %v10148, %v10144
    %v11033 = vpack.c.b16 %v10149, %v10145
    %v11034 = vpack.c.b16 %v10150, %v10146
    %v11035 = vpack.c.b16 %v10155, %v10151
    %v11036 = vpack.c.b16 %v10156, %v10152
    %v11037 = vpack.c.b16 %v10157, %v10153
    %v11038 = vpack.c.b16 %v10158, %v10154
    %v11039 = vpack.c.b16 %v10163, %v10159
    %v11040 = vpack.c.b16 %v10164, %v10160
    %v11041 = vpack.c.b16 %v10165, %v10161
    %v11042 = vpack.c.b16 %v10166, %v10162
    %v11043 = vpack.c.b16 %v10171, %v10167
    %v11044 = vpack.c.b16 %v10172, %v10168
    %v11045 = vpack.c.b16 %v10173, %v10169
    %v11046 = vpack.c.b16 %v10174, %v10170
    %v11047 = vpack.c.b16 %v10179, %v10175
    %v11048 = vpack.c.b16 %v10180, %v10176
    %v11049 = vpack.c.b16 %v10181, %v10177
    %v11050 = vpack.c.b16 %v10182, %v10178
    %v11051 = vpack.c.b16 %v10187, %v10183
    %v11052 = vpack.c.b16 %v10188, %v10184
    %v11053 = vpack.c.b16 %v10189, %v10185
    %v11054 = vpack.c.b16 %v10190, %v10186
    %v11055 = vpack.c.b16 %v10195, %v10191
    %v11056 = vpack.c.b16 %v10196, %v10192
    %v11057 = vpack.c.b16 %v10197, %v10193
    %v11058 = vpack.c.b16 %v10198, %v10194
    %v11059 = vpack.c.b16 %v10203, %v10199
    %v11060 = vpack.c.b16 %v10204, %v10200
    %v11061 = vpack.c.b16 %v10205, %v10201
    %v11062 = vpack.c.b16 %v10206, %v10202
    %v11063 = vpack.c.b16 %v10211, %v10207
    %v11064 = vpack.c.b16 %v10212, %v10208
    %v11065 = vpack.c.b16 %v10213, %v10209
    %v11066 = vpack.c.b16 %v10214, %v10210
    %v11067 = vpack.c.b16 %v10219, %v10215
    %v11068 = vpack.c.b16 %v10220, %v10216
    %v11069 = vpack.c.b16 %v10221, %v10217
    %v11070 = vpack.c.b16 %v10222, %v10218
    %v11071 = vpack.c.b16 %v10227, %v10223
    %v11072 = vpack.c.b16 %v10228, %v10224
    %v11073 = vpack.c.b16 %v10229, %v10225
    %v11074 = vpack.c.b16 %v10230, %v10226
    %v11075 = vpack.c.b16 %v10235, %v10231
    %v11076 = vpack.c.b16 %v10236, %v10232
    %v11077 = vpack.c.b16 %v10237, %v10233
    %v11078 = vpack.c.b16 %v10238, %v10234
    %v11079 = vpack.c.b16 %v10243, %v10239
    %v11080 = vpack.c.b16 %v10244, %v10240
    %v11081 = vpack.c.b16 %v10245, %v10241
    %v11082 = vpack.c.b16 %v10246, %v10242
    %v11083 = vpack.c.b16 %v10251, %v10247
    %v11084 = vpack.c.b16 %v10252, %v10248
    %v11085 = vpack.c.b16 %v10253, %v10249
    %v11086 = vpack.c.b16 %v10254, %v10250
    %v11087 = vpack.c.b16 %v10259, %v10255
    %v11088 = vpack.c.b16 %v10260, %v10256
    %v11089 = vpack.c.b16 %v10261, %v10257
    %v11090 = vpack.c.b16 %v10262, %v10258
    %v11091 = vpack.c.b16 %v10267, %v10263
    %v11092 = vpack.c.b16 %v10268, %v10264
    %v11093 = vpack.c.b16 %v10269, %v10265
    %v11094 = vpack.c.b16 %v10270, %v10266
    %v11095 = vpack.c.b16 %v10275, %v10271
    %v11096 = vpack.c.b16 %v10276, %v10272
    %v11097 = vpack.c.b16 %v10277, %v10273
    %v11098 = vpack.c.b16 %v10278, %v10274
    %v11099 = vpack.c.b16 %v10283, %v10279
    %v11100 = vpack.c.b16 %v10284, %v10280
    %v11101 = vpack.c.b16 %v10285, %v10281
    %v11102 = vpack.c.b16 %v10286, %v10282
    %v11103 = vpack.c.b16 %v10291, %v10287
    %v11104 = vpack.c.b16 %v10292, %v10288
    %v11105 = vpack.c.b16 %v10293, %v10289
    %v11106 = vpack.c.b16 %v10294, %v10290
    %v11107 = vpack.c.b16 %v10299, %v10295
    %v11108 = vpack.c.b16 %v10300, %v10296
    %v11109 = vpack.c.b16 %v10301, %v10297
    %v11110 = vpack.c.b16 %v10302, %v10298
    %v11111 = vpack.c.b16 %v10307, %v10303
    %v11112 = vpack.c.b16 %v10308, %v10304
    %v11113 = vpack.c.b16 %v10309, %v10305
    %v11114 = vpack.c.b16 %v10310, %v10306
    %v11115 = vpack.c.b16 %v10315, %v10311
    %v11116 = vpack.c.b16 %v10316, %v10312
    %v11117 = vpack.c.b16 %v10317, %v10313
    %v11118 = vpack.c.b16 %v10318, %v10314
    %v11119 = vpack.c.b16 %v10323, %v10319
    %v11120 = vpack.c.b16 %v10324, %v10320
    %v11121 = vpack.c.b16 %v10325, %v10321
    %v11122 = vpack.c.b16 %v10326, %v10322
    %v11123 = vpack.c.b16 %v10331, %v10327
    %v11124 = vpack.c.b16 %v10332, %v10328
    %v11125 = vpack.c.b16 %v10333, %v10329
    %v11126 = vpack.c.b16 %v10334, %v10330
    %v11127 = vpack.c.b16 %v10339, %v10335
    %v11128 = vpack.c.b16 %v10340, %v10336
    %v11129 = vpack.c.b16 %v10341, %v10337
    %v11130 = vpack.c.b16 %v10342, %v10338
    %v11131 = vpack.c.b16 %v10347, %v10343
    %v11132 = vpack.c.b16 %v10348, %v10344
    %v11133 = vpack.c.b16 %v10349, %v10345
    %v11134 = vpack.c.b16 %v10350, %v10346
    %v11135 = vpack.c.b16 %v10355, %v10351
    %v11136 = vpack.c.b16 %v10356, %v10352
    %v11137 = vpack.c.b16 %v10357, %v10353
    %v11138 = vpack.c.b16 %v10358, %v10354
    %v11139 = vpack.c.b16 %v10363, %v10359
    %v11140 = vpack.c.b16 %v10364, %v10360
    %v11141 = vpack.c.b16 %v10365, %v10361
    %v11142 = vpack.c.b16 %v10366, %v10362
    %v11143 = vpack.c.b16 %v10371, %v10367
    %v11144 = vpack.c.b16 %v10372, %v10368
    %v11145 = vpack.c.b16 %v10373, %v10369
    %v11146 = vpack.c.b16 %v10374, %v10370
    %v11147 = vpack.c.b16 %v10379, %v10375
    %v11148 = vpack.c.b16 %v10380, %v10376
    %v11149 = vpack.c.b16 %v10381, %v10377
    %v11150 = vpack.c.b16 %v10382, %v10378
    %v11151 = vpack.c.b16 %v10387, %v10383
    %v11152 = vpack.c.b16 %v10388, %v10384
    %v11153 = vpack.c.b16 %v10389, %v10385
    %v11154 = vpack.c.b16 %v10390, %v10386
    %v11155 = vpack.c.b16 %v10395, %v10391
    %v11156 = vpack.c.b16 %v10396, %v10392
    %v11157 = vpack.c.b16 %v10397, %v10393
    %v11158 = vpack.c.b16 %v10398, %v10394
    %v11159 = vpack.c.b16 %v10403, %v10399
    %v11160 = vpack.c.b16 %v10404, %v10400
    %v11161 = vpack.c.b16 %v10405, %v10401
    %v11162 = vpack.c.b16 %v10406, %v10402
    %v11163 = vpack.c.b16 %v10411, %v10407
    %v11164 = vpack.c.b16 %v10412, %v10408
    %v11165 = vpack.c.b16 %v10413, %v10409
    %v11166 = vpack.c.b16 %v10414, %v10410
    %v11167 = vpack.c.b16 %v10419, %v10415
    %v11168 = vpack.c.b16 %v10420, %v10416
    %v11169 = vpack.c.b16 %v10421, %v10417
    %v11170 = vpack.c.b16 %v10422, %v10418
    %v11171 = vpack.c.b16 %v10427, %v10423
    %v11172 = vpack.c.b16 %v10428, %v10424
    %v11173 = vpack.c.b16 %v10429, %v10425
    %v11174 = vpack.c.b16 %v10430, %v10426
    %v11175 = vpack.c.b16 %v10435, %v10431
    %v11176 = vpack.c.b16 %v10436, %v10432
    %v11177 = vpack.c.b16 %v10437, %v10433
    %v11178 = vpack.c.b16 %v10438, %v10434
    %v11179 = vpack.c.b16 %v10443, %v10439
    %v11180 = vpack.c.b16 %v10444, %v10440
    %v11181 = vpack.c.b16 %v10445, %v10441
    %v11182 = vpack.c.b16 %v10446, %v10442
    %v11183 = vpack.c.b16 %v10451, %v10447
    %v11184 = vpack.c.b16 %v10452, %v10448
    %v11185 = vpack.c.b16 %v10453, %v10449
    %v11186 = vpack.c.b16 %v10454, %v10450
    %v11187 = vpack.c.b16 %v10459, %v10455
    %v11188 = vpack.c.b16 %v10460, %v10456
    %v11189 = vpack.c.b16 %v10461, %v10457
    %v11190 = vpack.c.b16 %v10462, %v10458
    %v11191 = vpack.c.b16 %v10467, %v10463
    %v11192 = vpack.c.b16 %v10468, %v10464
    %v11193 = vpack.c.b16 %v10469, %v10465
    %v11194 = vpack.c.b16 %v10470, %v10466
    %v11195 = vpack.c.b16 %v10475, %v10471
    %v11196 = vpack.c.b16 %v10476, %v10472
    %v11197 = vpack.c.b16 %v10477, %v10473
    %v11198 = vpack.c.b16 %v10478, %v10474
    %v11199 = vpack.c.b16 %v10483, %v10479
    %v11200 = vpack.c.b16 %v10484, %v10480
    %v11201 = vpack.c.b16 %v10485, %v10481
    %v11202 = vpack.c.b16 %v10486, %v10482
    %v11203 = vpack.c.b16 %v10491, %v10487
    %v11204 = vpack.c.b16 %v10492, %v10488
    %v11205 = vpack.c.b16 %v10493, %v10489
    %v11206 = vpack.c.b16 %v10494, %v10490
    %v11207 = vpack.c.b16 %v10499, %v10495
    %v11208 = vpack.c.b16 %v10500, %v10496
    %v11209 = vpack.c.b16 %v10501, %v10497
    %v11210 = vpack.c.b16 %v10502, %v10498
    %v11211 = vpack.c.b16 %v10507, %v10503
    %v11212 = vpack.c.b16 %v10508, %v10504
    %v11213 = vpack.c.b16 %v10509, %v10505
    %v11214 = vpack.c.b16 %v10510, %v10506
    %v11215 = vpack.c.b16 %v10515, %v10511
    %v11216 = vpack.c.b16 %v10516, %v10512
    %v11217 = vpack.c.b16 %v10517, %v10513
    %v11218 = vpack.c.b16 %v10518, %v10514
    %v11219 = vpack.c.b16 %v10523, %v10519
    %v11220 = vpack.c.b16 %v10524, %v10520
    %v11221 = vpack.c.b16 %v10525, %v10521
    %v11222 = vpack.c.b16 %v10526, %v10522
    %v11223 = vpack.c.b16 %v10531, %v10527
    %v11224 = vpack.c.b16 %v10532, %v10528
    %v11225 = vpack.c.b16 %v10533, %v10529
    %v11226 = vpack.c.b16 %v10534, %v10530
    %v11227 = vpack.c.b16 %v10539, %v10535
    %v11228 = vpack.c.b16 %v10540, %v10536
    %v11229 = vpack.c.b16 %v10541, %v10537
    %v11230 = vpack.c.b16 %v10542, %v10538
    %v11231 = vpack.c.b16 %v10547, %v10543
    %v11232 = vpack.c.b16 %v10548, %v10544
    %v11233 = vpack.c.b16 %v10549, %v10545
    %v11234 = vpack.c.b16 %v10550, %v10546
    %v11235 = vpack.c.b16 %v10555, %v10551
    %v11236 = vpack.c.b16 %v10556, %v10552
    %v11237 = vpack.c.b16 %v10557, %v10553
    %v11238 = vpack.c.b16 %v10558, %v10554
    %v11239 = vpack.c.b16 %v10563, %v10559
    %v11240 = vpack.c.b16 %v10564, %v10560
    %v11241 = vpack.c.b16 %v10565, %v10561
    %v11242 = vpack.c.b16 %v10566, %v10562
    %v11243 = vpack.c.b16 %v10571, %v10567
    %v11244 = vpack.c.b16 %v10572, %v10568
    %v11245 = vpack.c.b16 %v10573, %v10569
    %v11246 = vpack.c.b16 %v10574, %v10570
    %v11247 = vpack.c.b16 %v10579, %v10575
    %v11248 = vpack.c.b16 %v10580, %v10576
    %v11249 = vpack.c.b16 %v10581, %v10577
    %v11250 = vpack.c.b16 %v10582, %v10578
    %v11251 = vpack.c.b16 %v10587, %v10583
    %v11252 = vpack.c.b16 %v10588, %v10584
    %v11253 = vpack.c.b16 %v10589, %v10585
    %v11254 = vpack.c.b16 %v10590, %v10586
    %v11255 = vpack.c.b16 %v10595, %v10591
    %v11256 = vpack.c.b16 %v10596, %v10592
    %v11257 = vpack.c.b16 %v10597, %v10593
    %v11258 = vpack.c.b16 %v10598, %v10594
    %v11259 = vpack.c.b16 %v10603, %v10599
    %v11260 = vpack.c.b16 %v10604, %v10600
    %v11261 = vpack.c.b16 %v10605, %v10601
    %v11262 = vpack.c.b16 %v10606, %v10602
    %v11263 = vpack.c.b16 %v10611, %v10607
    %v11264 = vpack.c.b16 %v10612, %v10608
    %v11265 = vpack.c.b16 %v10613, %v10609
    %v11266 = vpack.c.b16 %v10614, %v10610
    %v11267 = vpack.c.b16 %v10619, %v10615
    %v11268 = vpack.c.b16 %v10620, %v10616
    %v11269 = vpack.c.b16 %v10621, %v10617
    %v11270 = vpack.c.b16 %v10622, %v10618
    %v11271 = vpack.c.b16 %v10627, %v10623
    %v11272 = vpack.c.b16 %v10628, %v10624
    %v11273 = vpack.c.b16 %v10629, %v10625
    %v11274 = vpack.c.b16 %v10630, %v10626
    %v11275 = vpack.c.b16 %v10635, %v10631
    %v11276 = vpack.c.b16 %v10636, %v10632
    %v11277 = vpack.c.b16 %v10637, %v10633
    %v11278 = vpack.c.b16 %v10638, %v10634
    %v11279 = vpack.c.b16 %v10643, %v10639
    %v11280 = vpack.c.b16 %v10644, %v10640
    %v11281 = vpack.c.b16 %v10645, %v10641
    %v11282 = vpack.c.b16 %v10646, %v10642
    %v11283 = vpack.c.b16 %v10651, %v10647
    %v11284 = vpack.c.b16 %v10652, %v10648
    %v11285 = vpack.c.b16 %v10653, %v10649
    %v11286 = vpack.c.b16 %v10654, %v10650
    %v11287 = vpack.c.b16 %v10659, %v10655
    %v11288 = vpack.c.b16 %v10660, %v10656
    %v11289 = vpack.c.b16 %v10661, %v10657
    %v11290 = vpack.c.b16 %v10662, %v10658
    %v11291 = vpack.c.b16 %v10667, %v10663
    %v11292 = vpack.c.b16 %v10668, %v10664
    %v11293 = vpack.c.b16 %v10669, %v10665
    %v11294 = vpack.c.b16 %v10670, %v10666
    %v11295 = vpack.c.b16 %v10675, %v10671
    %v11296 = vpack.c.b16 %v10676, %v10672
    %v11297 = vpack.c.b16 %v10677, %v10673
    %v11298 = vpack.c.b16 %v10678, %v10674
    %v11299 = vpack.c.b16 %v10683, %v10679
    %v11300 = vpack.c.b16 %v10684, %v10680
    %v11301 = vpack.c.b16 %v10685, %v10681
    %v11302 = vpack.c.b16 %v10686, %v10682
    %v11303 = vpack.c.b16 %v10691, %v10687
    %v11304 = vpack.c.b16 %v10692, %v10688
    %v11305 = vpack.c.b16 %v10693, %v10689
    %v11306 = vpack.c.b16 %v10694, %v10690
    %v11307 = vpack.c.b16 %v10699, %v10695
    %v11308 = vpack.c.b16 %v10700, %v10696
    %v11309 = vpack.c.b16 %v10701, %v10697
    %v11310 = vpack.c.b16 %v10702, %v10698
    %v11311 = vpack.c.b16 %v10707, %v10703
    %v11312 = vpack.c.b16 %v10708, %v10704
    %v11313 = vpack.c.b16 %v10709, %v10705
    %v11314 = vpack.c.b16 %v10710, %v10706
    %v11315 = vpack.c.b16 %v10715, %v10711
    %v11316 = vpack.c.b16 %v10716, %v10712
    %v11317 = vpack.c.b16 %v10717, %v10713
    %v11318 = vpack.c.b16 %v10718, %v10714
    %v11319 = vpack.c.b16 %v10723, %v10719
    %v11320 = vpack.c.b16 %v10724, %v10720
    %v11321 = vpack.c.b16 %v10725, %v10721
    %v11322 = vpack.c.b16 %v10726, %v10722
    %v11323 = vpack.c.b16 %v10731, %v10727
    %v11324 = vpack.c.b16 %v10732, %v10728
    %v11325 = vpack.c.b16 %v10733, %v10729
    %v11326 = vpack.c.b16 %v10734, %v10730
    %v11327 = vpack.c.b16 %v10739, %v10735
    %v11328 = vpack.c.b16 %v10740, %v10736
    %v11329 = vpack.c.b16 %v10741, %v10737
    %v11330 = vpack.c.b16 %v10742, %v10738
    %v11331 = vpack.c.b16 %v10747, %v10743
    %v11332 = vpack.c.b16 %v10748, %v10744
    %v11333 = vpack.c.b16 %v10749, %v10745
    %v11334 = vpack.c.b16 %v10750, %v10746
    %v11335 = vpack.c.b16 %v10755, %v10751
    %v11336 = vpack.c.b16 %v10756, %v10752
    %v11337 = vpack.c.b16 %v10757, %v10753
    %v11338 = vpack.c.b16 %v10758, %v10754
    %v11339 = vpack.c.b16 %v10763, %v10759
    %v11340 = vpack.c.b16 %v10764, %v10760
    %v11341 = vpack.c.b16 %v10765, %v10761
    %v11342 = vpack.c.b16 %v10766, %v10762
    %v11343 = vpack.c.b16 %v10771, %v10767
    %v11344 = vpack.c.b16 %v10772, %v10768
    %v11345 = vpack.c.b16 %v10773, %v10769
    %v11346 = vpack.c.b16 %v10774, %v10770
    %v11347 = vpack.c.b16 %v10779, %v10775
    %v11348 = vpack.c.b16 %v10780, %v10776
    %v11349 = vpack.c.b16 %v10781, %v10777
    %v11350 = vpack.c.b16 %v10782, %v10778
    %v11351 = vpack.c.b16 %v10787, %v10783
    %v11352 = vpack.c.b16 %v10788, %v10784
    %v11353 = vpack.c.b16 %v10789, %v10785
    %v11354 = vpack.c.b16 %v10790, %v10786
    %v11355 = vpack.c.b16 %v10795, %v10791
    %v11356 = vpack.c.b16 %v10796, %v10792
    %v11357 = vpack.c.b16 %v10797, %v10793
    %v11358 = vpack.c.b16 %v10798, %v10794
    %v11359 = vpack.c.b16 %v10803, %v10799
    %v11360 = vpack.c.b16 %v10804, %v10800
    %v11361 = vpack.c.b16 %v10805, %v10801
    %v11362 = vpack.c.b16 %v10806, %v10802
    %v11363 = vpack.c.b16 %v10811, %v10807
    %v11364 = vpack.c.b16 %v10812, %v10808
    %v11365 = vpack.c.b16 %v10813, %v10809
    %v11366 = vpack.c.b16 %v10814, %v10810
    %v11367 = vpack.c.b16 %v10819, %v10815
    %v11368 = vpack.c.b16 %v10820, %v10816
    %v11369 = vpack.c.b16 %v10821, %v10817
    %v11370 = vpack.c.b16 %v10822, %v10818
    %v11371 = vpack.c.b16 %v10827, %v10823
    %v11372 = vpack.c.b16 %v10828, %v10824
    %v11373 = vpack.c.b16 %v10829, %v10825
    %v11374 = vpack.c.b16 %v10830, %v10826
    %v11375 = vpack.c.b16 %v10835, %v10831
    %v11376 = vpack.c.b16 %v10836, %v10832
    %v11377 = vpack.c.b16 %v10837, %v10833
    %v11378 = vpack.c.b16 %v10838, %v10834
    %v11379 = vpack.c.b16 %v10843, %v10839
    %v11380 = vpack.c.b16 %v10844, %v10840
    %v11381 = vpack.c.b16 %v10845, %v10841
    %v11382 = vpack.c.b16 %v10846, %v10842
    %v11383 = vpack.c.b16 %v10851, %v10847
    %v11384 = vpack.c.b16 %v10852, %v10848
    %v11385 = vpack.c.b16 %v10853, %v10849
    %v11386 = vpack.c.b16 %v10854, %v10850
    %v11387 = vpack.c.b16 %v10859, %v10855
    %v11388 = vpack.c.b16 %v10860, %v10856
    %v11389 = vpack.c.b16 %v10861, %v10857
    %v11390 = vpack.c.b16 %v10862, %v10858
    %v11391 = vpack.c.b16 %v10867, %v10863
    %v11392 = vpack.c.b16 %v10868, %v10864
    %v11393 = vpack.c.b16 %v10869, %v10865
    %v11394 = vpack.c.b16 %v10870, %v10866
    %v11395 = vpack.c.b16 %v10875, %v10871
    %v11396 = vpack.c.b16 %v10876, %v10872
    %v11397 = vpack.c.b16 %v10877, %v10873
    %v11398 = vpack.c.b16 %v10878, %v10874
    %v11399 = vpack.c.b16 %v10883, %v10879
    %v11400 = vpack.c.b16 %v10884, %v10880
    %v11401 = vpack.c.b16 %v10885, %v10881
    %v11402 = vpack.c.b16 %v10886, %v10882
    %v11403 = vpack.c.b16 %v10891, %v10887
    %v11404 = vpack.c.b16 %v10892, %v10888
    %v11405 = vpack.c.b16 %v10893, %v10889
    %v11406 = vpack.c.b16 %v10894, %v10890
    %11919 = vmatprep.subr.bf16.mxu0 %v10896
    %11920 = vmatpush1.bf16.msra.mxu0 %v10895
    %11921 = vmatprep.subr.bf16.mxu0 %v10900
    %11922 = vmatpush1.bf16.msra.mxu0 %v10899
    %11923 = vmatprep.subr.bf16.mxu0 %v10904
    %11924 = vmatpush1.bf16.msra.mxu0 %v10903
    %11925 = vmatprep.subr.bf16.mxu0 %v10908
    %11926 = vmatpush1.bf16.msra.mxu0 %v10907
    %11927 = vmatprep.subr.bf16.mxu0 %v10912
    %11928 = vmatpush1.bf16.msra.mxu0 %v10911
    %11929 = vmatprep.subr.bf16.mxu0 %v10916
    %11930 = vmatpush1.bf16.msra.mxu0 %v10915
    %11931 = vmatprep.subr.bf16.mxu0 %v10920
    %11932 = vmatpush1.bf16.msra.mxu0 %v10919
    %11933 = vmatprep.subr.bf16.mxu0 %v10924
    %11934 = vmatpush1.bf16.msra.mxu0 %v10923
    %11935 = vmatprep.subr.bf16.mxu0 %v10928
    %11936 = vmatpush1.bf16.msra.mxu0 %v10927
    %11937 = vmatprep.subr.bf16.mxu0 %v10932
    %11938 = vmatpush1.bf16.msra.mxu0 %v10931
    %11939 = vmatprep.subr.bf16.mxu0 %v10936
    %11940 = vmatpush1.bf16.msra.mxu0 %v10935
    %11941 = vmatprep.subr.bf16.mxu0 %v10940
    %11942 = vmatpush1.bf16.msra.mxu0 %v10939
    %11943 = vmatprep.subr.bf16.mxu0 %v10944
    %11944 = vmatpush1.bf16.msra.mxu0 %v10943
    %11945 = vmatprep.subr.bf16.mxu0 %v10948
    %11946 = vmatpush1.bf16.msra.mxu0 %v10947
    %11947 = vmatprep.subr.bf16.mxu0 %v10952
    %11948 = vmatpush1.bf16.msra.mxu0 %v10951
    %11949 = vmatprep.subr.bf16.mxu0 %v10956
    %11950 = vmatpush1.bf16.msra.mxu0 %v10955
    %11951 = vmatprep.mubr.bf16.mxu0 %v8810
    %11952 = vmatmul.mubr.bf16.gmra.mrb[0].mxu0 %v8809
    %v11953 = vpop.f32.mrb[0].mxu0
    %v11954 = vadd.f32 %v9342, %v11953
    %v11955 = vpop.f32.mrb[0].mxu0
    %v11956 = vadd.f32 %v9346, %v11955
    %v11957 = vpop.f32.mrb[0].mxu0
    %v11958 = vpop.f32.mrb[0].mxu0
    %11959 = vdwg.mxu0
    %11960 = vmatprep.subr.bf16.mxu0 %v10960
    %11961 = vmatpush1.bf16.msra.mxu0 %v10959
    %11962 = vmatprep.subr.bf16.mxu0 %v10964
    %11963 = vmatpush1.bf16.msra.mxu0 %v10963
    %11964 = vmatprep.subr.bf16.mxu0 %v10968
    %11965 = vmatpush1.bf16.msra.mxu0 %v10967
    %11966 = vmatprep.subr.bf16.mxu0 %v10972
    %11967 = vmatpush1.bf16.msra.mxu0 %v10971
    %11968 = vmatprep.subr.bf16.mxu0 %v10976
    %11969 = vmatpush1.bf16.msra.mxu0 %v10975
    %11970 = vmatprep.subr.bf16.mxu0 %v10980
    %11971 = vmatpush1.bf16.msra.mxu0 %v10979
    %11972 = vmatprep.subr.bf16.mxu0 %v10984
    %11973 = vmatpush1.bf16.msra.mxu0 %v10983
    %11974 = vmatprep.subr.bf16.mxu0 %v10988
    %11975 = vmatpush1.bf16.msra.mxu0 %v10987
    %11976 = vmatprep.subr.bf16.mxu0 %v10992
    %11977 = vmatpush1.bf16.msra.mxu0 %v10991
    %11978 = vmatprep.subr.bf16.mxu0 %v10996
    %11979 = vmatpush1.bf16.msra.mxu0 %v10995
    %11980 = vmatprep.subr.bf16.mxu0 %v11000
    %11981 = vmatpush1.bf16.msra.mxu0 %v10999
    %11982 = vmatprep.subr.bf16.mxu0 %v11004
    %11983 = vmatpush1.bf16.msra.mxu0 %v11003
    %11984 = vmatprep.subr.bf16.mxu0 %v11008
    %11985 = vmatpush1.bf16.msra.mxu0 %v11007
    %11986 = vmatprep.subr.bf16.mxu0 %v11012
    %11987 = vmatpush1.bf16.msra.mxu0 %v11011
    %11988 = vmatprep.subr.bf16.mxu0 %v11016
    %11989 = vmatpush1.bf16.msra.mxu0 %v11015
    %11990 = vmatprep.subr.bf16.mxu0 %v11020
    %11991 = vmatpush1.bf16.msra.mxu0 %v11019
    %11992 = vmatprep.mubr.bf16.mxu0 %v8812
    %11993 = vmatmul.mubr.bf16.gmra.mrb[0].mxu0 %v8811
    %v11994 = vpop.f32.mrb[0].mxu0
    %v11995 = vadd.f32 %v11954, %v11994
    %v11996 = vpop.f32.mrb[0].mxu0
    %v11997 = vadd.f32 %v11956, %v11996
    %v11998 = vpop.f32.mrb[0].mxu0
    %v11999 = vpop.f32.mrb[0].mxu0
    %12000 = vdwg.mxu0
    %12001 = vmatprep.subr.bf16.mxu0 %v11024
    %12002 = vmatpush1.bf16.msra.mxu0 %v11023
    %12003 = vmatprep.subr.bf16.mxu0 %v11028
    %12004 = vmatpush1.bf16.msra.mxu0 %v11027
    %12005 = vmatprep.subr.bf16.mxu0 %v11032
    %12006 = vmatpush1.bf16.msra.mxu0 %v11031
    %12007 = vmatprep.subr.bf16.mxu0 %v11036
    %12008 = vmatpush1.bf16.msra.mxu0 %v11035
    %12009 = vmatprep.subr.bf16.mxu0 %v11040
    %12010 = vmatpush1.bf16.msra.mxu0 %v11039
    %12011 = vmatprep.subr.bf16.mxu0 %v11044
    %12012 = vmatpush1.bf16.msra.mxu0 %v11043
    %12013 = vmatprep.subr.bf16.mxu0 %v11048
    %12014 = vmatpush1.bf16.msra.mxu0 %v11047
    %12015 = vmatprep.subr.bf16.mxu0 %v11052
    %12016 = vmatpush1.bf16.msra.mxu0 %v11051
    %12017 = vmatprep.subr.bf16.mxu0 %v11056
    %12018 = vmatpush1.bf16.msra.mxu0 %v11055
    %12019 = vmatprep.subr.bf16.mxu0 %v11060
    %12020 = vmatpush1.bf16.msra.mxu0 %v11059
    %12021 = vmatprep.subr.bf16.mxu0 %v11064
    %12022 = vmatpush1.bf16.msra.mxu0 %v11063
    %12023 = vmatprep.subr.bf16.mxu0 %v11068
    %12024 = vmatpush1.bf16.msra.mxu0 %v11067
    %12025 = vmatprep.subr.bf16.mxu0 %v11072
    %12026 = vmatpush1.bf16.msra.mxu0 %v11071
    %12027 = vmatprep.subr.bf16.mxu0 %v11076
    %12028 = vmatpush1.bf16.msra.mxu0 %v11075
    %12029 = vmatprep.subr.bf16.mxu0 %v11080
    %12030 = vmatpush1.bf16.msra.mxu0 %v11079
    %12031 = vmatprep.subr.bf16.mxu0 %v11084
    %12032 = vmatpush1.bf16.msra.mxu0 %v11083
    %12033 = vmatprep.mubr.bf16.mxu0 %v8814
    %12034 = vmatmul.mubr.bf16.gmra.mrb[0].mxu0 %v8813
    %v12035 = vpop.f32.mrb[0].mxu0
    %v12036 = vadd.f32 %v11995, %v12035
    %v12037 = vpop.f32.mrb[0].mxu0
    %v12038 = vadd.f32 %v11997, %v12037
    %v12039 = vpop.f32.mrb[0].mxu0
    %v12040 = vpop.f32.mrb[0].mxu0
    %12041 = vdwg.mxu0
    %12042 = vmatprep.subr.bf16.mxu0 %v11088
    %12043 = vmatpush1.bf16.msra.mxu0 %v11087
    %12044 = vmatprep.subr.bf16.mxu0 %v11092
    %12045 = vmatpush1.bf16.msra.mxu0 %v11091
    %12046 = vmatprep.subr.bf16.mxu0 %v11096
    %12047 = vmatpush1.bf16.msra.mxu0 %v11095
    %12048 = vmatprep.subr.bf16.mxu0 %v11100
    %12049 = vmatpush1.bf16.msra.mxu0 %v11099
    %12050 = vmatprep.subr.bf16.mxu0 %v11104
    %12051 = vmatpush1.bf16.msra.mxu0 %v11103
    %12052 = vmatprep.subr.bf16.mxu0 %v11108
    %12053 = vmatpush1.bf16.msra.mxu0 %v11107
    %12054 = vmatprep.subr.bf16.mxu0 %v11112
    %12055 = vmatpush1.bf16.msra.mxu0 %v11111
    %12056 = vmatprep.subr.bf16.mxu0 %v11116
    %12057 = vmatpush1.bf16.msra.mxu0 %v11115
    %12058 = vmatprep.subr.bf16.mxu0 %v11120
    %12059 = vmatpush1.bf16.msra.mxu0 %v11119
    %12060 = vmatprep.subr.bf16.mxu0 %v11124
    %12061 = vmatpush1.bf16.msra.mxu0 %v11123
    %12062 = vmatprep.subr.bf16.mxu0 %v11128
    %12063 = vmatpush1.bf16.msra.mxu0 %v11127
    %12064 = vmatprep.subr.bf16.mxu0 %v11132
    %12065 = vmatpush1.bf16.msra.mxu0 %v11131
    %12066 = vmatprep.subr.bf16.mxu0 %v11136
    %12067 = vmatpush1.bf16.msra.mxu0 %v11135
    %12068 = vmatprep.subr.bf16.mxu0 %v11140
    %12069 = vmatpush1.bf16.msra.mxu0 %v11139
    %12070 = vmatprep.subr.bf16.mxu0 %v11144
    %12071 = vmatpush1.bf16.msra.mxu0 %v11143
    %12072 = vmatprep.subr.bf16.mxu0 %v11148
    %12073 = vmatpush1.bf16.msra.mxu0 %v11147
    %12074 = vmatprep.mubr.bf16.mxu0 %v8816
    %12075 = vmatmul.mubr.bf16.gmra.mrb[0].mxu0 %v8815
    %v12076 = vpop.f32.mrb[0].mxu0
    %v12077 = vadd.f32 %v12036, %v12076
    %v12078 = vpop.f32.mrb[0].mxu0
    %v12079 = vadd.f32 %v12038, %v12078
    %v12080 = vpop.f32.mrb[0].mxu0
    %v12081 = vpop.f32.mrb[0].mxu0
    %12082 = vdwg.mxu0
    %12083 = vmatprep.subr.bf16.mxu0 %v11152
    %12084 = vmatpush1.bf16.msra.mxu0 %v11151
    %12085 = vmatprep.subr.bf16.mxu0 %v11156
    %12086 = vmatpush1.bf16.msra.mxu0 %v11155
    %12087 = vmatprep.subr.bf16.mxu0 %v11160
    %12088 = vmatpush1.bf16.msra.mxu0 %v11159
    %12089 = vmatprep.subr.bf16.mxu0 %v11164
    %12090 = vmatpush1.bf16.msra.mxu0 %v11163
    %12091 = vmatprep.subr.bf16.mxu0 %v11168
    %12092 = vmatpush1.bf16.msra.mxu0 %v11167
    %12093 = vmatprep.subr.bf16.mxu0 %v11172
    %12094 = vmatpush1.bf16.msra.mxu0 %v11171
    %12095 = vmatprep.subr.bf16.mxu0 %v11176
    %12096 = vmatpush1.bf16.msra.mxu0 %v11175
    %12097 = vmatprep.subr.bf16.mxu0 %v11180
    %12098 = vmatpush1.bf16.msra.mxu0 %v11179
    %12099 = vmatprep.subr.bf16.mxu0 %v11184
    %12100 = vmatpush1.bf16.msra.mxu0 %v11183
    %12101 = vmatprep.subr.bf16.mxu0 %v11188
    %12102 = vmatpush1.bf16.msra.mxu0 %v11187
    %12103 = vmatprep.subr.bf16.mxu0 %v11192
    %12104 = vmatpush1.bf16.msra.mxu0 %v11191
    %12105 = vmatprep.subr.bf16.mxu0 %v11196
    %12106 = vmatpush1.bf16.msra.mxu0 %v11195
    %12107 = vmatprep.subr.bf16.mxu0 %v11200
    %12108 = vmatpush1.bf16.msra.mxu0 %v11199
    %12109 = vmatprep.subr.bf16.mxu0 %v11204
    %12110 = vmatpush1.bf16.msra.mxu0 %v11203
    %12111 = vmatprep.subr.bf16.mxu0 %v11208
    %12112 = vmatpush1.bf16.msra.mxu0 %v11207
    %12113 = vmatprep.subr.bf16.mxu0 %v11212
    %12114 = vmatpush1.bf16.msra.mxu0 %v11211
    %12115 = vmatprep.mubr.bf16.mxu0 %v8818
    %12116 = vmatmul.mubr.bf16.gmra.mrb[0].mxu0 %v8817
    %v12117 = vpop.f32.mrb[0].mxu0
    %v12118 = vadd.f32 %v12077, %v12117
    %v12119 = vpop.f32.mrb[0].mxu0
    %v12120 = vadd.f32 %v12079, %v12119
    %v12121 = vpop.f32.mrb[0].mxu0
    %v12122 = vpop.f32.mrb[0].mxu0
    %12123 = vdwg.mxu0
    %12124 = vmatprep.subr.bf16.mxu0 %v11216
    %12125 = vmatpush1.bf16.msra.mxu0 %v11215
    %12126 = vmatprep.subr.bf16.mxu0 %v11220
    %12127 = vmatpush1.bf16.msra.mxu0 %v11219
    %12128 = vmatprep.subr.bf16.mxu0 %v11224
    %12129 = vmatpush1.bf16.msra.mxu0 %v11223
    %12130 = vmatprep.subr.bf16.mxu0 %v11228
    %12131 = vmatpush1.bf16.msra.mxu0 %v11227
    %12132 = vmatprep.subr.bf16.mxu0 %v11232
    %12133 = vmatpush1.bf16.msra.mxu0 %v11231
    %12134 = vmatprep.subr.bf16.mxu0 %v11236
    %12135 = vmatpush1.bf16.msra.mxu0 %v11235
    %12136 = vmatprep.subr.bf16.mxu0 %v11240
    %12137 = vmatpush1.bf16.msra.mxu0 %v11239
    %12138 = vmatprep.subr.bf16.mxu0 %v11244
    %12139 = vmatpush1.bf16.msra.mxu0 %v11243
    %12140 = vmatprep.subr.bf16.mxu0 %v11248
    %12141 = vmatpush1.bf16.msra.mxu0 %v11247
    %12142 = vmatprep.subr.bf16.mxu0 %v11252
    %12143 = vmatpush1.bf16.msra.mxu0 %v11251
    %12144 = vmatprep.subr.bf16.mxu0 %v11256
    %12145 = vmatpush1.bf16.msra.mxu0 %v11255
    %12146 = vmatprep.subr.bf16.mxu0 %v11260
    %12147 = vmatpush1.bf16.msra.mxu0 %v11259
    %12148 = vmatprep.subr.bf16.mxu0 %v11264
    %12149 = vmatpush1.bf16.msra.mxu0 %v11263
    %12150 = vmatprep.subr.bf16.mxu0 %v11268
    %12151 = vmatpush1.bf16.msra.mxu0 %v11267
    %12152 = vmatprep.subr.bf16.mxu0 %v11272
    %12153 = vmatpush1.bf16.msra.mxu0 %v11271
    %12154 = vmatprep.subr.bf16.mxu0 %v11276
    %12155 = vmatpush1.bf16.msra.mxu0 %v11275
    %12156 = vmatprep.mubr.bf16.mxu0 %v8820
    %12157 = vmatmul.mubr.bf16.gmra.mrb[0].mxu0 %v8819
    %v12158 = vpop.f32.mrb[0].mxu0
    %v12159 = vadd.f32 %v12118, %v12158
    %v12160 = vpop.f32.mrb[0].mxu0
    %v12161 = vadd.f32 %v12120, %v12160
    %v12162 = vpop.f32.mrb[0].mxu0
    %v12163 = vpop.f32.mrb[0].mxu0
    %12164 = vdwg.mxu0
    %12165 = vmatprep.subr.bf16.mxu0 %v11280
    %12166 = vmatpush1.bf16.msra.mxu0 %v11279
    %12167 = vmatprep.subr.bf16.mxu0 %v11284
    %12168 = vmatpush1.bf16.msra.mxu0 %v11283
    %12169 = vmatprep.subr.bf16.mxu0 %v11288
    %12170 = vmatpush1.bf16.msra.mxu0 %v11287
    %12171 = vmatprep.subr.bf16.mxu0 %v11292
    %12172 = vmatpush1.bf16.msra.mxu0 %v11291
    %12173 = vmatprep.subr.bf16.mxu0 %v11296
    %12174 = vmatpush1.bf16.msra.mxu0 %v11295
    %12175 = vmatprep.subr.bf16.mxu0 %v11300
    %12176 = vmatpush1.bf16.msra.mxu0 %v11299
    %12177 = vmatprep.subr.bf16.mxu0 %v11304
    %12178 = vmatpush1.bf16.msra.mxu0 %v11303
    %12179 = vmatprep.subr.bf16.mxu0 %v11308
    %12180 = vmatpush1.bf16.msra.mxu0 %v11307
    %12181 = vmatprep.subr.bf16.mxu0 %v11312
    %12182 = vmatpush1.bf16.msra.mxu0 %v11311
    %12183 = vmatprep.subr.bf16.mxu0 %v11316
    %12184 = vmatpush1.bf16.msra.mxu0 %v11315
    %12185 = vmatprep.subr.bf16.mxu0 %v11320
    %12186 = vmatpush1.bf16.msra.mxu0 %v11319
    %12187 = vmatprep.subr.bf16.mxu0 %v11324
    %12188 = vmatpush1.bf16.msra.mxu0 %v11323
    %12189 = vmatprep.subr.bf16.mxu0 %v11328
    %12190 = vmatpush1.bf16.msra.mxu0 %v11327
    %12191 = vmatprep.subr.bf16.mxu0 %v11332
    %12192 = vmatpush1.bf16.msra.mxu0 %v11331
    %12193 = vmatprep.subr.bf16.mxu0 %v11336
    %12194 = vmatpush1.bf16.msra.mxu0 %v11335
    %12195 = vmatprep.subr.bf16.mxu0 %v11340
    %12196 = vmatpush1.bf16.msra.mxu0 %v11339
    %12197 = vmatprep.mubr.bf16.mxu0 %v8822
    %12198 = vmatmul.mubr.bf16.gmra.mrb[0].mxu0 %v8821
    %v12199 = vpop.f32.mrb[0].mxu0
    %v12200 = vadd.f32 %v12159, %v12199
    %v12201 = vpop.f32.mrb[0].mxu0
    %v12202 = vadd.f32 %v12161, %v12201
    %v12203 = vpop.f32.mrb[0].mxu0
    %v12204 = vpop.f32.mrb[0].mxu0
    %12205 = vdwg.mxu0
    %12206 = vmatprep.subr.bf16.mxu0 %v11344
    %12207 = vmatpush1.bf16.msra.mxu0 %v11343
    %12208 = vmatprep.subr.bf16.mxu0 %v11348
    %12209 = vmatpush1.bf16.msra.mxu0 %v11347
    %12210 = vmatprep.subr.bf16.mxu0 %v11352
    %12211 = vmatpush1.bf16.msra.mxu0 %v11351
    %12212 = vmatprep.subr.bf16.mxu0 %v11356
    %12213 = vmatpush1.bf16.msra.mxu0 %v11355
    %12214 = vmatprep.subr.bf16.mxu0 %v11360
    %12215 = vmatpush1.bf16.msra.mxu0 %v11359
    %12216 = vmatprep.subr.bf16.mxu0 %v11364
    %12217 = vmatpush1.bf16.msra.mxu0 %v11363
    %12218 = vmatprep.subr.bf16.mxu0 %v11368
    %12219 = vmatpush1.bf16.msra.mxu0 %v11367
    %12220 = vmatprep.subr.bf16.mxu0 %v11372
    %12221 = vmatpush1.bf16.msra.mxu0 %v11371
    %12222 = vmatprep.subr.bf16.mxu0 %v11376
    %12223 = vmatpush1.bf16.msra.mxu0 %v11375
    %12224 = vmatprep.subr.bf16.mxu0 %v11380
    %12225 = vmatpush1.bf16.msra.mxu0 %v11379
    %12226 = vmatprep.subr.bf16.mxu0 %v11384
    %12227 = vmatpush1.bf16.msra.mxu0 %v11383
    %12228 = vmatprep.subr.bf16.mxu0 %v11388
    %12229 = vmatpush1.bf16.msra.mxu0 %v11387
    %12230 = vmatprep.subr.bf16.mxu0 %v11392
    %12231 = vmatpush1.bf16.msra.mxu0 %v11391
    %12232 = vmatprep.subr.bf16.mxu0 %v11396
    %12233 = vmatpush1.bf16.msra.mxu0 %v11395
    %12234 = vmatprep.subr.bf16.mxu0 %v11400
    %12235 = vmatpush1.bf16.msra.mxu0 %v11399
    %12236 = vmatprep.subr.bf16.mxu0 %v11404
    %12237 = vmatpush1.bf16.msra.mxu0 %v11403
    %12238 = vmatprep.mubr.bf16.mxu0 %v8824
    %12239 = vmatmul.mubr.bf16.gmra.mrb[0].mxu0 %v8823
    %v12240 = vpop.f32.mrb[0].mxu0
    %v12241 = vadd.f32 %v12200, %v12240
    %v12242 = vpop.f32.mrb[0].mxu0
    %v12243 = vadd.f32 %v12202, %v12242
    %v12244 = vpop.f32.mrb[0].mxu0
    %v12245 = vpop.f32.mrb[0].mxu0
    %12246 = vdwg.mxu0
    %12247 = vmatprep.subr.bf16.mxu0 %v10898
    %12248 = vmatpush1.bf16.msra.mxu0 %v10897
    %12249 = vmatprep.subr.bf16.mxu0 %v10902
    %12250 = vmatpush1.bf16.msra.mxu0 %v10901
    %12251 = vmatprep.subr.bf16.mxu0 %v10906
    %12252 = vmatpush1.bf16.msra.mxu0 %v10905
    %12253 = vmatprep.subr.bf16.mxu0 %v10910
    %12254 = vmatpush1.bf16.msra.mxu0 %v10909
    %12255 = vmatprep.subr.bf16.mxu0 %v10914
    %12256 = vmatpush1.bf16.msra.mxu0 %v10913
    %12257 = vmatprep.subr.bf16.mxu0 %v10918
    %12258 = vmatpush1.bf16.msra.mxu0 %v10917
    %12259 = vmatprep.subr.bf16.mxu0 %v10922
    %12260 = vmatpush1.bf16.msra.mxu0 %v10921
    %12261 = vmatprep.subr.bf16.mxu0 %v10926
    %12262 = vmatpush1.bf16.msra.mxu0 %v10925
    %12263 = vmatprep.subr.bf16.mxu0 %v10930
    %12264 = vmatpush1.bf16.msra.mxu0 %v10929
    %12265 = vmatprep.subr.bf16.mxu0 %v10934
    %12266 = vmatpush1.bf16.msra.mxu0 %v10933
    %12267 = vmatprep.subr.bf16.mxu0 %v10938
    %12268 = vmatpush1.bf16.msra.mxu0 %v10937
    %12269 = vmatprep.subr.bf16.mxu0 %v10942
    %12270 = vmatpush1.bf16.msra.mxu0 %v10941
    %12271 = vmatprep.subr.bf16.mxu0 %v10946
    %12272 = vmatpush1.bf16.msra.mxu0 %v10945
    %12273 = vmatprep.subr.bf16.mxu0 %v10950
    %12274 = vmatpush1.bf16.msra.mxu0 %v10949
    %12275 = vmatprep.subr.bf16.mxu0 %v10954
    %12276 = vmatpush1.bf16.msra.mxu0 %v10953
    %12277 = vmatprep.subr.bf16.mxu0 %v10958
    %12278 = vmatpush1.bf16.msra.mxu0 %v10957
    %12279 = vmatprep.mubr.bf16.mxu0 %v8810
    %12280 = vmatmul.mubr.bf16.gmra.mrb[0].mxu0 %v8809
    %v12281 = vpop.f32.mrb[0].mxu0
    %v12282 = vadd.f32 %v9350, %v12281
    %v12283 = vpop.f32.mrb[0].mxu0
    %v12284 = vadd.f32 %v9354, %v12283
    %v12285 = vpop.f32.mrb[0].mxu0
    %v12286 = vpop.f32.mrb[0].mxu0
    %12287 = vdwg.mxu0
    %12288 = vmatprep.subr.bf16.mxu0 %v10962
    %12289 = vmatpush1.bf16.msra.mxu0 %v10961
    %12290 = vmatprep.subr.bf16.mxu0 %v10966
    %12291 = vmatpush1.bf16.msra.mxu0 %v10965
    %12292 = vmatprep.subr.bf16.mxu0 %v10970
    %12293 = vmatpush1.bf16.msra.mxu0 %v10969
    %12294 = vmatprep.subr.bf16.mxu0 %v10974
    %12295 = vmatpush1.bf16.msra.mxu0 %v10973
    %12296 = vmatprep.subr.bf16.mxu0 %v10978
    %12297 = vmatpush1.bf16.msra.mxu0 %v10977
    %12298 = vmatprep.subr.bf16.mxu0 %v10982
    %12299 = vmatpush1.bf16.msra.mxu0 %v10981
    %12300 = vmatprep.subr.bf16.mxu0 %v10986
    %12301 = vmatpush1.bf16.msra.mxu0 %v10985
    %12302 = vmatprep.subr.bf16.mxu0 %v10990
    %12303 = vmatpush1.bf16.msra.mxu0 %v10989
    %12304 = vmatprep.subr.bf16.mxu0 %v10994
    %12305 = vmatpush1.bf16.msra.mxu0 %v10993
    %12306 = vmatprep.subr.bf16.mxu0 %v10998
    %12307 = vmatpush1.bf16.msra.mxu0 %v10997
    %12308 = vmatprep.subr.bf16.mxu0 %v11002
    %12309 = vmatpush1.bf16.msra.mxu0 %v11001
    %12310 = vmatprep.subr.bf16.mxu0 %v11006
    %12311 = vmatpush1.bf16.msra.mxu0 %v11005
    %12312 = vmatprep.subr.bf16.mxu0 %v11010
    %12313 = vmatpush1.bf16.msra.mxu0 %v11009
    %12314 = vmatprep.subr.bf16.mxu0 %v11014
    %12315 = vmatpush1.bf16.msra.mxu0 %v11013
    %12316 = vmatprep.subr.bf16.mxu0 %v11018
    %12317 = vmatpush1.bf16.msra.mxu0 %v11017
    %12318 = vmatprep.subr.bf16.mxu0 %v11022
    %12319 = vmatpush1.bf16.msra.mxu0 %v11021
    %12320 = vmatprep.mubr.bf16.mxu0 %v8812
    %12321 = vmatmul.mubr.bf16.gmra.mrb[0].mxu0 %v8811
    %v12322 = vpop.f32.mrb[0].mxu0
    %v12323 = vadd.f32 %v12282, %v12322
    %v12324 = vpop.f32.mrb[0].mxu0
    %v12325 = vadd.f32 %v12284, %v12324
    %v12326 = vpop.f32.mrb[0].mxu0
    %v12327 = vpop.f32.mrb[0].mxu0
    %12328 = vdwg.mxu0
    %12329 = vmatprep.subr.bf16.mxu0 %v11026
    %12330 = vmatpush1.bf16.msra.mxu0 %v11025
    %12331 = vmatprep.subr.bf16.mxu0 %v11030
    %12332 = vmatpush1.bf16.msra.mxu0 %v11029
    %12333 = vmatprep.subr.bf16.mxu0 %v11034
    %12334 = vmatpush1.bf16.msra.mxu0 %v11033
    %12335 = vmatprep.subr.bf16.mxu0 %v11038
    %12336 = vmatpush1.bf16.msra.mxu0 %v11037
    %12337 = vmatprep.subr.bf16.mxu0 %v11042
    %12338 = vmatpush1.bf16.msra.mxu0 %v11041
    %12339 = vmatprep.subr.bf16.mxu0 %v11046
    %12340 = vmatpush1.bf16.msra.mxu0 %v11045
    %12341 = vmatprep.subr.bf16.mxu0 %v11050
    %12342 = vmatpush1.bf16.msra.mxu0 %v11049
    %12343 = vmatprep.subr.bf16.mxu0 %v11054
    %12344 = vmatpush1.bf16.msra.mxu0 %v11053
    %12345 = vmatprep.subr.bf16.mxu0 %v11058
    %12346 = vmatpush1.bf16.msra.mxu0 %v11057
    %12347 = vmatprep.subr.bf16.mxu0 %v11062
    %12348 = vmatpush1.bf16.msra.mxu0 %v11061
    %12349 = vmatprep.subr.bf16.mxu0 %v11066
    %12350 = vmatpush1.bf16.msra.mxu0 %v11065
    %12351 = vmatprep.subr.bf16.mxu0 %v11070
    %12352 = vmatpush1.bf16.msra.mxu0 %v11069
    %12353 = vmatprep.subr.bf16.mxu0 %v11074
    %12354 = vmatpush1.bf16.msra.mxu0 %v11073
    %12355 = vmatprep.subr.bf16.mxu0 %v11078
    %12356 = vmatpush1.bf16.msra.mxu0 %v11077
    %12357 = vmatprep.subr.bf16.mxu0 %v11082
    %12358 = vmatpush1.bf16.msra.mxu0 %v11081
    %12359 = vmatprep.subr.bf16.mxu0 %v11086
    %12360 = vmatpush1.bf16.msra.mxu0 %v11085
    %12361 = vmatprep.mubr.bf16.mxu0 %v8814
    %12362 = vmatmul.mubr.bf16.gmra.mrb[0].mxu0 %v8813
    %v12363 = vpop.f32.mrb[0].mxu0
    %v12364 = vadd.f32 %v12323, %v12363
    %v12365 = vpop.f32.mrb[0].mxu0
    %v12366 = vadd.f32 %v12325, %v12365
    %v12367 = vpop.f32.mrb[0].mxu0
    %v12368 = vpop.f32.mrb[0].mxu0
    %12369 = vdwg.mxu0
    %12370 = vmatprep.subr.bf16.mxu0 %v11090
    %12371 = vmatpush1.bf16.msra.mxu0 %v11089
    %12372 = vmatprep.subr.bf16.mxu0 %v11094
    %12373 = vmatpush1.bf16.msra.mxu0 %v11093
    %12374 = vmatprep.subr.bf16.mxu0 %v11098
    %12375 = vmatpush1.bf16.msra.mxu0 %v11097
    %12376 = vmatprep.subr.bf16.mxu0 %v11102
    %12377 = vmatpush1.bf16.msra.mxu0 %v11101
    %12378 = vmatprep.subr.bf16.mxu0 %v11106
    %12379 = vmatpush1.bf16.msra.mxu0 %v11105
    %12380 = vmatprep.subr.bf16.mxu0 %v11110
    %12381 = vmatpush1.bf16.msra.mxu0 %v11109
    %12382 = vmatprep.subr.bf16.mxu0 %v11114
    %12383 = vmatpush1.bf16.msra.mxu0 %v11113
    %12384 = vmatprep.subr.bf16.mxu0 %v11118
    %12385 = vmatpush1.bf16.msra.mxu0 %v11117
    %12386 = vmatprep.subr.bf16.mxu0 %v11122
    %12387 = vmatpush1.bf16.msra.mxu0 %v11121
    %12388 = vmatprep.subr.bf16.mxu0 %v11126
    %12389 = vmatpush1.bf16.msra.mxu0 %v11125
    %12390 = vmatprep.subr.bf16.mxu0 %v11130
    %12391 = vmatpush1.bf16.msra.mxu0 %v11129
    %12392 = vmatprep.subr.bf16.mxu0 %v11134
    %12393 = vmatpush1.bf16.msra.mxu0 %v11133
    %12394 = vmatprep.subr.bf16.mxu0 %v11138
    %12395 = vmatpush1.bf16.msra.mxu0 %v11137
    %12396 = vmatprep.subr.bf16.mxu0 %v11142
    %12397 = vmatpush1.bf16.msra.mxu0 %v11141
    %12398 = vmatprep.subr.bf16.mxu0 %v11146
    %12399 = vmatpush1.bf16.msra.mxu0 %v11145
    %12400 = vmatprep.subr.bf16.mxu0 %v11150
    %12401 = vmatpush1.bf16.msra.mxu0 %v11149
    %12402 = vmatprep.mubr.bf16.mxu0 %v8816
    %12403 = vmatmul.mubr.bf16.gmra.mrb[0].mxu0 %v8815
    %v12404 = vpop.f32.mrb[0].mxu0
    %v12405 = vadd.f32 %v12364, %v12404
    %v12406 = vpop.f32.mrb[0].mxu0
    %v12407 = vadd.f32 %v12366, %v12406
    %v12408 = vpop.f32.mrb[0].mxu0
    %v12409 = vpop.f32.mrb[0].mxu0
    %12410 = vdwg.mxu0
    %12411 = vmatprep.subr.bf16.mxu0 %v11154
    %12412 = vmatpush1.bf16.msra.mxu0 %v11153
    %12413 = vmatprep.subr.bf16.mxu0 %v11158
    %12414 = vmatpush1.bf16.msra.mxu0 %v11157
    %12415 = vmatprep.subr.bf16.mxu0 %v11162
    %12416 = vmatpush1.bf16.msra.mxu0 %v11161
    %12417 = vmatprep.subr.bf16.mxu0 %v11166
    %12418 = vmatpush1.bf16.msra.mxu0 %v11165
    %12419 = vmatprep.subr.bf16.mxu0 %v11170
    %12420 = vmatpush1.bf16.msra.mxu0 %v11169
    %12421 = vmatprep.subr.bf16.mxu0 %v11174
    %12422 = vmatpush1.bf16.msra.mxu0 %v11173
    %12423 = vmatprep.subr.bf16.mxu0 %v11178
    %12424 = vmatpush1.bf16.msra.mxu0 %v11177
    %12425 = vmatprep.subr.bf16.mxu0 %v11182
    %12426 = vmatpush1.bf16.msra.mxu0 %v11181
    %12427 = vmatprep.subr.bf16.mxu0 %v11186
    %12428 = vmatpush1.bf16.msra.mxu0 %v11185
    %12429 = vmatprep.subr.bf16.mxu0 %v11190
    %12430 = vmatpush1.bf16.msra.mxu0 %v11189
    %12431 = vmatprep.subr.bf16.mxu0 %v11194
    %12432 = vmatpush1.bf16.msra.mxu0 %v11193
    %12433 = vmatprep.subr.bf16.mxu0 %v11198
    %12434 = vmatpush1.bf16.msra.mxu0 %v11197
    %12435 = vmatprep.subr.bf16.mxu0 %v11202
    %12436 = vmatpush1.bf16.msra.mxu0 %v11201
    %12437 = vmatprep.subr.bf16.mxu0 %v11206
    %12438 = vmatpush1.bf16.msra.mxu0 %v11205
    %12439 = vmatprep.subr.bf16.mxu0 %v11210
    %12440 = vmatpush1.bf16.msra.mxu0 %v11209
    %12441 = vmatprep.subr.bf16.mxu0 %v11214
    %12442 = vmatpush1.bf16.msra.mxu0 %v11213
    %12443 = vmatprep.mubr.bf16.mxu0 %v8818
    %12444 = vmatmul.mubr.bf16.gmra.mrb[0].mxu0 %v8817
    %v12445 = vpop.f32.mrb[0].mxu0
    %v12446 = vadd.f32 %v12405, %v12445
    %v12447 = vpop.f32.mrb[0].mxu0
    %v12448 = vadd.f32 %v12407, %v12447
    %v12449 = vpop.f32.mrb[0].mxu0
    %v12450 = vpop.f32.mrb[0].mxu0
    %12451 = vdwg.mxu0
    %12452 = vmatprep.subr.bf16.mxu0 %v11218
    %12453 = vmatpush1.bf16.msra.mxu0 %v11217
    %12454 = vmatprep.subr.bf16.mxu0 %v11222
    %12455 = vmatpush1.bf16.msra.mxu0 %v11221
    %12456 = vmatprep.subr.bf16.mxu0 %v11226
    %12457 = vmatpush1.bf16.msra.mxu0 %v11225
    %12458 = vmatprep.subr.bf16.mxu0 %v11230
    %12459 = vmatpush1.bf16.msra.mxu0 %v11229
    %12460 = vmatprep.subr.bf16.mxu0 %v11234
    %12461 = vmatpush1.bf16.msra.mxu0 %v11233
    %12462 = vmatprep.subr.bf16.mxu0 %v11238
    %12463 = vmatpush1.bf16.msra.mxu0 %v11237
    %12464 = vmatprep.subr.bf16.mxu0 %v11242
    %12465 = vmatpush1.bf16.msra.mxu0 %v11241
    %12466 = vmatprep.subr.bf16.mxu0 %v11246
    %12467 = vmatpush1.bf16.msra.mxu0 %v11245
    %12468 = vmatprep.subr.bf16.mxu0 %v11250
    %12469 = vmatpush1.bf16.msra.mxu0 %v11249
    %12470 = vmatprep.subr.bf16.mxu0 %v11254
    %12471 = vmatpush1.bf16.msra.mxu0 %v11253
    %12472 = vmatprep.subr.bf16.mxu0 %v11258
    %12473 = vmatpush1.bf16.msra.mxu0 %v11257
    %12474 = vmatprep.subr.bf16.mxu0 %v11262
    %12475 = vmatpush1.bf16.msra.mxu0 %v11261
    %12476 = vmatprep.subr.bf16.mxu0 %v11266
    %12477 = vmatpush1.bf16.msra.mxu0 %v11265
    %12478 = vmatprep.subr.bf16.mxu0 %v11270
    %12479 = vmatpush1.bf16.msra.mxu0 %v11269
    %12480 = vmatprep.subr.bf16.mxu0 %v11274
    %12481 = vmatpush1.bf16.msra.mxu0 %v11273
    %12482 = vmatprep.subr.bf16.mxu0 %v11278
    %12483 = vmatpush1.bf16.msra.mxu0 %v11277
    %12484 = vmatprep.mubr.bf16.mxu0 %v8820
    %12485 = vmatmul.mubr.bf16.gmra.mrb[0].mxu0 %v8819
    %v12486 = vpop.f32.mrb[0].mxu0
    %v12487 = vadd.f32 %v12446, %v12486
    %v12488 = vpop.f32.mrb[0].mxu0
    %v12489 = vadd.f32 %v12448, %v12488
    %v12490 = vpop.f32.mrb[0].mxu0
    %v12491 = vpop.f32.mrb[0].mxu0
    %12492 = vdwg.mxu0
    %12493 = vmatprep.subr.bf16.mxu0 %v11282
    %12494 = vmatpush1.bf16.msra.mxu0 %v11281
    %12495 = vmatprep.subr.bf16.mxu0 %v11286
    %12496 = vmatpush1.bf16.msra.mxu0 %v11285
    %12497 = vmatprep.subr.bf16.mxu0 %v11290
    %12498 = vmatpush1.bf16.msra.mxu0 %v11289
    %12499 = vmatprep.subr.bf16.mxu0 %v11294
    %12500 = vmatpush1.bf16.msra.mxu0 %v11293
    %12501 = vmatprep.subr.bf16.mxu0 %v11298
    %12502 = vmatpush1.bf16.msra.mxu0 %v11297
    %12503 = vmatprep.subr.bf16.mxu0 %v11302
    %12504 = vmatpush1.bf16.msra.mxu0 %v11301
    %12505 = vmatprep.subr.bf16.mxu0 %v11306
    %12506 = vmatpush1.bf16.msra.mxu0 %v11305
    %12507 = vmatprep.subr.bf16.mxu0 %v11310
    %12508 = vmatpush1.bf16.msra.mxu0 %v11309
    %12509 = vmatprep.subr.bf16.mxu0 %v11314
    %12510 = vmatpush1.bf16.msra.mxu0 %v11313
    %12511 = vmatprep.subr.bf16.mxu0 %v11318
    %12512 = vmatpush1.bf16.msra.mxu0 %v11317
    %12513 = vmatprep.subr.bf16.mxu0 %v11322
    %12514 = vmatpush1.bf16.msra.mxu0 %v11321
    %12515 = vmatprep.subr.bf16.mxu0 %v11326
    %12516 = vmatpush1.bf16.msra.mxu0 %v11325
    %12517 = vmatprep.subr.bf16.mxu0 %v11330
    %12518 = vmatpush1.bf16.msra.mxu0 %v11329
    %12519 = vmatprep.subr.bf16.mxu0 %v11334
    %12520 = vmatpush1.bf16.msra.mxu0 %v11333
    %12521 = vmatprep.subr.bf16.mxu0 %v11338
    %12522 = vmatpush1.bf16.msra.mxu0 %v11337
    %12523 = vmatprep.subr.bf16.mxu0 %v11342
    %12524 = vmatpush1.bf16.msra.mxu0 %v11341
    %12525 = vmatprep.mubr.bf16.mxu0 %v8822
    %12526 = vmatmul.mubr.bf16.gmra.mrb[0].mxu0 %v8821
    %v12527 = vpop.f32.mrb[0].mxu0
    %v12528 = vadd.f32 %v12487, %v12527
    %v12529 = vpop.f32.mrb[0].mxu0
    %v12530 = vadd.f32 %v12489, %v12529
    %v12531 = vpop.f32.mrb[0].mxu0
    %v12532 = vpop.f32.mrb[0].mxu0
    %12533 = vdwg.mxu0
    %12534 = vmatprep.subr.bf16.mxu0 %v11346
    %12535 = vmatpush1.bf16.msra.mxu0 %v11345
    %12536 = vmatprep.subr.bf16.mxu0 %v11350
    %12537 = vmatpush1.bf16.msra.mxu0 %v11349
    %12538 = vmatprep.subr.bf16.mxu0 %v11354
    %12539 = vmatpush1.bf16.msra.mxu0 %v11353
    %12540 = vmatprep.subr.bf16.mxu0 %v11358
    %12541 = vmatpush1.bf16.msra.mxu0 %v11357
    %12542 = vmatprep.subr.bf16.mxu0 %v11362
    %12543 = vmatpush1.bf16.msra.mxu0 %v11361
    %12544 = vmatprep.subr.bf16.mxu0 %v11366
    %12545 = vmatpush1.bf16.msra.mxu0 %v11365
    %12546 = vmatprep.subr.bf16.mxu0 %v11370
    %12547 = vmatpush1.bf16.msra.mxu0 %v11369
    %12548 = vmatprep.subr.bf16.mxu0 %v11374
    %12549 = vmatpush1.bf16.msra.mxu0 %v11373
    %12550 = vmatprep.subr.bf16.mxu0 %v11378
    %12551 = vmatpush1.bf16.msra.mxu0 %v11377
    %12552 = vmatprep.subr.bf16.mxu0 %v11382
    %12553 = vmatpush1.bf16.msra.mxu0 %v11381
    %12554 = vmatprep.subr.bf16.mxu0 %v11386
    %12555 = vmatpush1.bf16.msra.mxu0 %v11385
    %12556 = vmatprep.subr.bf16.mxu0 %v11390
    %12557 = vmatpush1.bf16.msra.mxu0 %v11389
    %12558 = vmatprep.subr.bf16.mxu0 %v11394
    %12559 = vmatpush1.bf16.msra.mxu0 %v11393
    %12560 = vmatprep.subr.bf16.mxu0 %v11398
    %12561 = vmatpush1.bf16.msra.mxu0 %v11397
    %12562 = vmatprep.subr.bf16.mxu0 %v11402
    %12563 = vmatpush1.bf16.msra.mxu0 %v11401
    %12564 = vmatprep.subr.bf16.mxu0 %v11406
    %12565 = vmatpush1.bf16.msra.mxu0 %v11405
    %12566 = vmatprep.mubr.bf16.mxu0 %v8824
    %12567 = vmatmul.mubr.bf16.gmra.mrb[0].mxu0 %v8823
    %v12568 = vpop.f32.mrb[0].mxu0
    %v12569 = vadd.f32 %v12528, %v12568
    %v12570 = vpop.f32.mrb[0].mxu0
    %v12571 = vadd.f32 %v12530, %v12570
    %v12572 = vpop.f32.mrb[0].mxu0
    %v12573 = vpop.f32.mrb[0].mxu0
    %12574 = vdwg.mxu0
    %v12575 = vmax.f32 %v12241, 0.0
    %v12576 = vmax.f32 %v12243, 0.0
    %v12577 = vmax.f32 %v12569, 0.0
    %v12578 = vmax.f32 %v12571, 0.0
    %v12579 = vpack.c.bf16 %v12575, %v12575
    %v12580 = vpack.c.bf16 %v12576, %v12576
    %v12581 = vpack.c.bf16 %v12577, %v12577
    %v12582 = vpack.c.bf16 %v12578, %v12578
    %v12583 = vld [vmem:[#allocation30] sm:$0xff]
    %v12584 = vld [vmem:[#allocation30 + $0x8] sm:$0xff]
    %v12585 = vld [vmem:[#allocation30 + $0x10] sm:$0xff]
    %v12586 = vld [vmem:[#allocation30 + $0x18] sm:$0xff]
    %v12587 = vld [vmem:[#allocation30 + $0x20] sm:$0xff]
    %v12588 = vld [vmem:[#allocation30 + $0x28] sm:$0xff]
    %v12589 = vld [vmem:[#allocation30 + $0x30] sm:$0xff]
    %v12590 = vld [vmem:[#allocation30 + $0x38] sm:$0xff]
    %v12591 = vld [vmem:[#allocation30 + $0x40] sm:$0xff]
    %v12592 = vld [vmem:[#allocation30 + $0x48] sm:$0xff]
    %v12593 = vld [vmem:[#allocation30 + $0x50] sm:$0xff]
    %v12594 = vld [vmem:[#allocation30 + $0x58] sm:$0xff]
    %v12595 = vld [vmem:[#allocation30 + $0x60] sm:$0xff]
    %v12596 = vld [vmem:[#allocation30 + $0x68] sm:$0xff]
    %v12597 = vld [vmem:[#allocation30 + $0x70] sm:$0xff]
    %v12598 = vld [vmem:[#allocation30 + $0x78] sm:$0xff]
    %v12599 = vld [vmem:[#allocation30 + $0x80] sm:$0xff]
    %v12600 = vld [vmem:[#allocation30 + $0x88] sm:$0xff]
    %v12601 = vld [vmem:[#allocation30 + $0x90] sm:$0xff]
    %v12602 = vld [vmem:[#allocation30 + $0x98] sm:$0xff]
    %v12603 = vld [vmem:[#allocation30 + $0xa0] sm:$0xff]
    %v12604 = vld [vmem:[#allocation30 + $0xa8] sm:$0xff]
    %v12605 = vld [vmem:[#allocation30 + $0xb0] sm:$0xff]
    %v12606 = vld [vmem:[#allocation30 + $0xb8] sm:$0xff]
    %v12607 = vld [vmem:[#allocation30 + $0xc0] sm:$0xff]
    %v12608 = vld [vmem:[#allocation30 + $0xc8] sm:$0xff]
    %v12609 = vld [vmem:[#allocation30 + $0xd0] sm:$0xff]
    %v12610 = vld [vmem:[#allocation30 + $0xd8] sm:$0xff]
    %v12611 = vld [vmem:[#allocation30 + $0xe0] sm:$0xff]
    %v12612 = vld [vmem:[#allocation30 + $0xe8] sm:$0xff]
    %v12613 = vld [vmem:[#allocation30 + $0xf0] sm:$0xff]
    %v12614 = vld [vmem:[#allocation30 + $0xf8] sm:$0xff]
    %v12615 = vld [vmem:[#allocation30 + $0x100] sm:$0xff]
    %v12616 = vld [vmem:[#allocation30 + $0x108] sm:$0xff]
    %v12617 = vld [vmem:[#allocation30 + $0x110] sm:$0xff]
    %v12618 = vld [vmem:[#allocation30 + $0x118] sm:$0xff]
    %v12619 = vld [vmem:[#allocation30 + $0x120] sm:$0xff]
    %v12620 = vld [vmem:[#allocation30 + $0x128] sm:$0xff]
    %v12621 = vld [vmem:[#allocation30 + $0x130] sm:$0xff]
    %v12622 = vld [vmem:[#allocation30 + $0x138] sm:$0xff]
    %v12623 = vld [vmem:[#allocation30 + $0x140] sm:$0xff]
    %v12624 = vld [vmem:[#allocation30 + $0x148] sm:$0xff]
    %v12625 = vld [vmem:[#allocation30 + $0x150] sm:$0xff]
    %v12626 = vld [vmem:[#allocation30 + $0x158] sm:$0xff]
    %v12627 = vld [vmem:[#allocation30 + $0x160] sm:$0xff]
    %v12628 = vld [vmem:[#allocation30 + $0x168] sm:$0xff]
    %v12629 = vld [vmem:[#allocation30 + $0x170] sm:$0xff]
    %v12630 = vld [vmem:[#allocation30 + $0x178] sm:$0xff]
    %v12631 = vld [vmem:[#allocation30 + $0x180] sm:$0xff]
    %v12632 = vld [vmem:[#allocation30 + $0x188] sm:$0xff]
    %v12633 = vld [vmem:[#allocation30 + $0x190] sm:$0xff]
    %v12634 = vld [vmem:[#allocation30 + $0x198] sm:$0xff]
    %v12635 = vld [vmem:[#allocation30 + $0x1a0] sm:$0xff]
    %v12636 = vld [vmem:[#allocation30 + $0x1a8] sm:$0xff]
    %v12637 = vld [vmem:[#allocation30 + $0x1b0] sm:$0xff]
    %v12638 = vld [vmem:[#allocation30 + $0x1b8] sm:$0xff]
    %v12639 = vld [vmem:[#allocation30 + $0x1c0] sm:$0xff]
    %v12640 = vld [vmem:[#allocation30 + $0x1c8] sm:$0xff]
    %v12641 = vld [vmem:[#allocation30 + $0x1d0] sm:$0xff]
    %v12642 = vld [vmem:[#allocation30 + $0x1d8] sm:$0xff]
    %v12643 = vld [vmem:[#allocation30 + $0x1e0] sm:$0xff]
    %v12644 = vld [vmem:[#allocation30 + $0x1e8] sm:$0xff]
    %v12645 = vld [vmem:[#allocation30 + $0x1f0] sm:$0xff]
    %v12646 = vld [vmem:[#allocation30 + $0x1f8] sm:$0xff]
    %v12647 = vld [vmem:[#allocation30 + $0x200] sm:$0xff]
    %v12648 = vld [vmem:[#allocation30 + $0x208] sm:$0xff]
    %v12649 = vld [vmem:[#allocation30 + $0x210] sm:$0xff]
    %v12650 = vld [vmem:[#allocation30 + $0x218] sm:$0xff]
    %v12651 = vld [vmem:[#allocation30 + $0x220] sm:$0xff]
    %v12652 = vld [vmem:[#allocation30 + $0x228] sm:$0xff]
    %v12653 = vld [vmem:[#allocation30 + $0x230] sm:$0xff]
    %v12654 = vld [vmem:[#allocation30 + $0x238] sm:$0xff]
    %v12655 = vld [vmem:[#allocation30 + $0x240] sm:$0xff]
    %v12656 = vld [vmem:[#allocation30 + $0x248] sm:$0xff]
    %v12657 = vld [vmem:[#allocation30 + $0x250] sm:$0xff]
    %v12658 = vld [vmem:[#allocation30 + $0x258] sm:$0xff]
    %v12659 = vld [vmem:[#allocation30 + $0x260] sm:$0xff]
    %v12660 = vld [vmem:[#allocation30 + $0x268] sm:$0xff]
    %v12661 = vld [vmem:[#allocation30 + $0x270] sm:$0xff]
    %v12662 = vld [vmem:[#allocation30 + $0x278] sm:$0xff]
    %v12663 = vld [vmem:[#allocation30 + $0x280] sm:$0xff]
    %v12664 = vld [vmem:[#allocation30 + $0x288] sm:$0xff]
    %v12665 = vld [vmem:[#allocation30 + $0x290] sm:$0xff]
    %v12666 = vld [vmem:[#allocation30 + $0x298] sm:$0xff]
    %v12667 = vld [vmem:[#allocation30 + $0x2a0] sm:$0xff]
    %v12668 = vld [vmem:[#allocation30 + $0x2a8] sm:$0xff]
    %v12669 = vld [vmem:[#allocation30 + $0x2b0] sm:$0xff]
    %v12670 = vld [vmem:[#allocation30 + $0x2b8] sm:$0xff]
    %v12671 = vld [vmem:[#allocation30 + $0x2c0] sm:$0xff]
    %v12672 = vld [vmem:[#allocation30 + $0x2c8] sm:$0xff]
    %v12673 = vld [vmem:[#allocation30 + $0x2d0] sm:$0xff]
    %v12674 = vld [vmem:[#allocation30 + $0x2d8] sm:$0xff]
    %v12675 = vld [vmem:[#allocation30 + $0x2e0] sm:$0xff]
    %v12676 = vld [vmem:[#allocation30 + $0x2e8] sm:$0xff]
    %v12677 = vld [vmem:[#allocation30 + $0x2f0] sm:$0xff]
    %v12678 = vld [vmem:[#allocation30 + $0x2f8] sm:$0xff]
    %v12679 = vld [vmem:[#allocation30 + $0x300] sm:$0xff]
    %v12680 = vld [vmem:[#allocation30 + $0x308] sm:$0xff]
    %v12681 = vld [vmem:[#allocation30 + $0x310] sm:$0xff]
    %v12682 = vld [vmem:[#allocation30 + $0x318] sm:$0xff]
    %v12683 = vld [vmem:[#allocation30 + $0x320] sm:$0xff]
    %v12684 = vld [vmem:[#allocation30 + $0x328] sm:$0xff]
    %v12685 = vld [vmem:[#allocation30 + $0x330] sm:$0xff]
    %v12686 = vld [vmem:[#allocation30 + $0x338] sm:$0xff]
    %v12687 = vld [vmem:[#allocation30 + $0x340] sm:$0xff]
    %v12688 = vld [vmem:[#allocation30 + $0x348] sm:$0xff]
    %v12689 = vld [vmem:[#allocation30 + $0x350] sm:$0xff]
    %v12690 = vld [vmem:[#allocation30 + $0x358] sm:$0xff]
    %v12691 = vld [vmem:[#allocation30 + $0x360] sm:$0xff]
    %v12692 = vld [vmem:[#allocation30 + $0x368] sm:$0xff]
    %v12693 = vld [vmem:[#allocation30 + $0x370] sm:$0xff]
    %v12694 = vld [vmem:[#allocation30 + $0x378] sm:$0xff]
    %v12695 = vld [vmem:[#allocation30 + $0x380] sm:$0xff]
    %v12696 = vld [vmem:[#allocation30 + $0x388] sm:$0xff]
    %v12697 = vld [vmem:[#allocation30 + $0x390] sm:$0xff]
    %v12698 = vld [vmem:[#allocation30 + $0x398] sm:$0xff]
    %v12699 = vld [vmem:[#allocation30 + $0x3a0] sm:$0xff]
    %v12700 = vld [vmem:[#allocation30 + $0x3a8] sm:$0xff]
    %v12701 = vld [vmem:[#allocation30 + $0x3b0] sm:$0xff]
    %v12702 = vld [vmem:[#allocation30 + $0x3b8] sm:$0xff]
    %v12703 = vld [vmem:[#allocation30 + $0x3c0] sm:$0xff]
    %v12704 = vld [vmem:[#allocation30 + $0x3c8] sm:$0xff]
    %v12705 = vld [vmem:[#allocation30 + $0x3d0] sm:$0xff]
    %v12706 = vld [vmem:[#allocation30 + $0x3d8] sm:$0xff]
    %v12707 = vld [vmem:[#allocation30 + $0x3e0] sm:$0xff]
    %v12708 = vld [vmem:[#allocation30 + $0x3e8] sm:$0xff]
    %v12709 = vld [vmem:[#allocation30 + $0x3f0] sm:$0xff]
    %v12710 = vld [vmem:[#allocation30 + $0x3f8] sm:$0xff]
    %v12711 = vld [vmem:[#allocation31] sm:$0xf]
    %v12713 = vlaneseq
    %v12714 = vshrl.u32 %v12713, 7
    %v12715 = vsub.s32 0, %v12714
    %v12716 = vrot.slane %v12711, %v12715
    %v12717 = vlaneseq
    %v12718 = vshrl.u32 %v12717, 7
    %v12719 = vsub.s32 1, %v12718
    %v12720 = vrot.slane %v12711, %v12719
    %v12721 = vlaneseq
    %v12722 = vshrl.u32 %v12721, 7
    %v12723 = vsub.s32 2, %v12722
    %v12724 = vrot.slane %v12711, %v12723
    %v12725 = vlaneseq
    %v12726 = vshrl.u32 %v12725, 7
    %v12727 = vsub.s32 3, %v12726
    %v12728 = vrot.slane %v12711, %v12727
    %v12861 = vunpack.c.l.b16 %v12583
    %v12862 = vunpack.c.h.b16 %v12583
    %v12863 = vunpack.c.l.b16 %v12584
    %v12864 = vunpack.c.h.b16 %v12584
    %v12865 = vunpack.c.l.b16 %v12585
    %v12866 = vunpack.c.h.b16 %v12585
    %v12867 = vunpack.c.l.b16 %v12586
    %v12868 = vunpack.c.h.b16 %v12586
    %v12869 = vunpack.c.l.b16 %v12587
    %v12870 = vunpack.c.h.b16 %v12587
    %v12871 = vunpack.c.l.b16 %v12588
    %v12872 = vunpack.c.h.b16 %v12588
    %v12873 = vunpack.c.l.b16 %v12589
    %v12874 = vunpack.c.h.b16 %v12589
    %v12875 = vunpack.c.l.b16 %v12590
    %v12876 = vunpack.c.h.b16 %v12590
    %v12877 = vunpack.c.l.b16 %v12591
    %v12878 = vunpack.c.h.b16 %v12591
    %v12879 = vunpack.c.l.b16 %v12592
    %v12880 = vunpack.c.h.b16 %v12592
    %v12881 = vunpack.c.l.b16 %v12593
    %v12882 = vunpack.c.h.b16 %v12593
    %v12883 = vunpack.c.l.b16 %v12594
    %v12884 = vunpack.c.h.b16 %v12594
    %v12885 = vunpack.c.l.b16 %v12595
    %v12886 = vunpack.c.h.b16 %v12595
    %v12887 = vunpack.c.l.b16 %v12596
    %v12888 = vunpack.c.h.b16 %v12596
    %v12889 = vunpack.c.l.b16 %v12597
    %v12890 = vunpack.c.h.b16 %v12597
    %v12891 = vunpack.c.l.b16 %v12598
    %v12892 = vunpack.c.h.b16 %v12598
    %v12893 = vunpack.c.l.b16 %v12599
    %v12894 = vunpack.c.h.b16 %v12599
    %v12895 = vunpack.c.l.b16 %v12600
    %v12896 = vunpack.c.h.b16 %v12600
    %v12897 = vunpack.c.l.b16 %v12601
    %v12898 = vunpack.c.h.b16 %v12601
    %v12899 = vunpack.c.l.b16 %v12602
    %v12900 = vunpack.c.h.b16 %v12602
    %v12901 = vunpack.c.l.b16 %v12603
    %v12902 = vunpack.c.h.b16 %v12603
    %v12903 = vunpack.c.l.b16 %v12604
    %v12904 = vunpack.c.h.b16 %v12604
    %v12905 = vunpack.c.l.b16 %v12605
    %v12906 = vunpack.c.h.b16 %v12605
    %v12907 = vunpack.c.l.b16 %v12606
    %v12908 = vunpack.c.h.b16 %v12606
    %v12909 = vunpack.c.l.b16 %v12607
    %v12910 = vunpack.c.h.b16 %v12607
    %v12911 = vunpack.c.l.b16 %v12608
    %v12912 = vunpack.c.h.b16 %v12608
    %v12913 = vunpack.c.l.b16 %v12609
    %v12914 = vunpack.c.h.b16 %v12609
    %v12915 = vunpack.c.l.b16 %v12610
    %v12916 = vunpack.c.h.b16 %v12610
    %v12917 = vunpack.c.l.b16 %v12611
    %v12918 = vunpack.c.h.b16 %v12611
    %v12919 = vunpack.c.l.b16 %v12612
    %v12920 = vunpack.c.h.b16 %v12612
    %v12921 = vunpack.c.l.b16 %v12613
    %v12922 = vunpack.c.h.b16 %v12613
    %v12923 = vunpack.c.l.b16 %v12614
    %v12924 = vunpack.c.h.b16 %v12614
    %v12925 = vunpack.c.l.b16 %v12615
    %v12926 = vunpack.c.h.b16 %v12615
    %v12927 = vunpack.c.l.b16 %v12616
    %v12928 = vunpack.c.h.b16 %v12616
    %v12929 = vunpack.c.l.b16 %v12617
    %v12930 = vunpack.c.h.b16 %v12617
    %v12931 = vunpack.c.l.b16 %v12618
    %v12932 = vunpack.c.h.b16 %v12618
    %v12933 = vunpack.c.l.b16 %v12619
    %v12934 = vunpack.c.h.b16 %v12619
    %v12935 = vunpack.c.l.b16 %v12620
    %v12936 = vunpack.c.h.b16 %v12620
    %v12937 = vunpack.c.l.b16 %v12621
    %v12938 = vunpack.c.h.b16 %v12621
    %v12939 = vunpack.c.l.b16 %v12622
    %v12940 = vunpack.c.h.b16 %v12622
    %v12941 = vunpack.c.l.b16 %v12623
    %v12942 = vunpack.c.h.b16 %v12623
    %v12943 = vunpack.c.l.b16 %v12624
    %v12944 = vunpack.c.h.b16 %v12624
    %v12945 = vunpack.c.l.b16 %v12625
    %v12946 = vunpack.c.h.b16 %v12625
    %v12947 = vunpack.c.l.b16 %v12626
    %v12948 = vunpack.c.h.b16 %v12626
    %v12949 = vunpack.c.l.b16 %v12627
    %v12950 = vunpack.c.h.b16 %v12627
    %v12951 = vunpack.c.l.b16 %v12628
    %v12952 = vunpack.c.h.b16 %v12628
    %v12953 = vunpack.c.l.b16 %v12629
    %v12954 = vunpack.c.h.b16 %v12629
    %v12955 = vunpack.c.l.b16 %v12630
    %v12956 = vunpack.c.h.b16 %v12630
    %v12957 = vunpack.c.l.b16 %v12631
    %v12958 = vunpack.c.h.b16 %v12631
    %v12959 = vunpack.c.l.b16 %v12632
    %v12960 = vunpack.c.h.b16 %v12632
    %v12961 = vunpack.c.l.b16 %v12633
    %v12962 = vunpack.c.h.b16 %v12633
    %v12963 = vunpack.c.l.b16 %v12634
    %v12964 = vunpack.c.h.b16 %v12634
    %v12965 = vunpack.c.l.b16 %v12635
    %v12966 = vunpack.c.h.b16 %v12635
    %v12967 = vunpack.c.l.b16 %v12636
    %v12968 = vunpack.c.h.b16 %v12636
    %v12969 = vunpack.c.l.b16 %v12637
    %v12970 = vunpack.c.h.b16 %v12637
    %v12971 = vunpack.c.l.b16 %v12638
    %v12972 = vunpack.c.h.b16 %v12638
    %v12973 = vunpack.c.l.b16 %v12639
    %v12974 = vunpack.c.h.b16 %v12639
    %v12975 = vunpack.c.l.b16 %v12640
    %v12976 = vunpack.c.h.b16 %v12640
    %v12977 = vunpack.c.l.b16 %v12641
    %v12978 = vunpack.c.h.b16 %v12641
    %v12979 = vunpack.c.l.b16 %v12642
    %v12980 = vunpack.c.h.b16 %v12642
    %v12981 = vunpack.c.l.b16 %v12643
    %v12982 = vunpack.c.h.b16 %v12643
    %v12983 = vunpack.c.l.b16 %v12644
    %v12984 = vunpack.c.h.b16 %v12644
    %v12985 = vunpack.c.l.b16 %v12645
    %v12986 = vunpack.c.h.b16 %v12645
    %v12987 = vunpack.c.l.b16 %v12646
    %v12988 = vunpack.c.h.b16 %v12646
    %v12989 = vunpack.c.l.b16 %v12647
    %v12990 = vunpack.c.h.b16 %v12647
    %v12991 = vunpack.c.l.b16 %v12648
    %v12992 = vunpack.c.h.b16 %v12648
    %v12993 = vunpack.c.l.b16 %v12649
    %v12994 = vunpack.c.h.b16 %v12649
    %v12995 = vunpack.c.l.b16 %v12650
    %v12996 = vunpack.c.h.b16 %v12650
    %v12997 = vunpack.c.l.b16 %v12651
    %v12998 = vunpack.c.h.b16 %v12651
    %v12999 = vunpack.c.l.b16 %v12652
    %v13000 = vunpack.c.h.b16 %v12652
    %v13001 = vunpack.c.l.b16 %v12653
    %v13002 = vunpack.c.h.b16 %v12653
    %v13003 = vunpack.c.l.b16 %v12654
    %v13004 = vunpack.c.h.b16 %v12654
    %v13005 = vunpack.c.l.b16 %v12655
    %v13006 = vunpack.c.h.b16 %v12655
    %v13007 = vunpack.c.l.b16 %v12656
    %v13008 = vunpack.c.h.b16 %v12656
    %v13009 = vunpack.c.l.b16 %v12657
    %v13010 = vunpack.c.h.b16 %v12657
    %v13011 = vunpack.c.l.b16 %v12658
    %v13012 = vunpack.c.h.b16 %v12658
    %v13013 = vunpack.c.l.b16 %v12659
    %v13014 = vunpack.c.h.b16 %v12659
    %v13015 = vunpack.c.l.b16 %v12660
    %v13016 = vunpack.c.h.b16 %v12660
    %v13017 = vunpack.c.l.b16 %v12661
    %v13018 = vunpack.c.h.b16 %v12661
    %v13019 = vunpack.c.l.b16 %v12662
    %v13020 = vunpack.c.h.b16 %v12662
    %v13021 = vunpack.c.l.b16 %v12663
    %v13022 = vunpack.c.h.b16 %v12663
    %v13023 = vunpack.c.l.b16 %v12664
    %v13024 = vunpack.c.h.b16 %v12664
    %v13025 = vunpack.c.l.b16 %v12665
    %v13026 = vunpack.c.h.b16 %v12665
    %v13027 = vunpack.c.l.b16 %v12666
    %v13028 = vunpack.c.h.b16 %v12666
    %v13029 = vunpack.c.l.b16 %v12667
    %v13030 = vunpack.c.h.b16 %v12667
    %v13031 = vunpack.c.l.b16 %v12668
    %v13032 = vunpack.c.h.b16 %v12668
    %v13033 = vunpack.c.l.b16 %v12669
    %v13034 = vunpack.c.h.b16 %v12669
    %v13035 = vunpack.c.l.b16 %v12670
    %v13036 = vunpack.c.h.b16 %v12670
    %v13037 = vunpack.c.l.b16 %v12671
    %v13038 = vunpack.c.h.b16 %v12671
    %v13039 = vunpack.c.l.b16 %v12672
    %v13040 = vunpack.c.h.b16 %v12672
    %v13041 = vunpack.c.l.b16 %v12673
    %v13042 = vunpack.c.h.b16 %v12673
    %v13043 = vunpack.c.l.b16 %v12674
    %v13044 = vunpack.c.h.b16 %v12674
    %v13045 = vunpack.c.l.b16 %v12675
    %v13046 = vunpack.c.h.b16 %v12675
    %v13047 = vunpack.c.l.b16 %v12676
    %v13048 = vunpack.c.h.b16 %v12676
    %v13049 = vunpack.c.l.b16 %v12677
    %v13050 = vunpack.c.h.b16 %v12677
    %v13051 = vunpack.c.l.b16 %v12678
    %v13052 = vunpack.c.h.b16 %v12678
    %v13053 = vunpack.c.l.b16 %v12679
    %v13054 = vunpack.c.h.b16 %v12679
    %v13055 = vunpack.c.l.b16 %v12680
    %v13056 = vunpack.c.h.b16 %v12680
    %v13057 = vunpack.c.l.b16 %v12681
    %v13058 = vunpack.c.h.b16 %v12681
    %v13059 = vunpack.c.l.b16 %v12682
    %v13060 = vunpack.c.h.b16 %v12682
    %v13061 = vunpack.c.l.b16 %v12683
    %v13062 = vunpack.c.h.b16 %v12683
    %v13063 = vunpack.c.l.b16 %v12684
    %v13064 = vunpack.c.h.b16 %v12684
    %v13065 = vunpack.c.l.b16 %v12685
    %v13066 = vunpack.c.h.b16 %v12685
    %v13067 = vunpack.c.l.b16 %v12686
    %v13068 = vunpack.c.h.b16 %v12686
    %v13069 = vunpack.c.l.b16 %v12687
    %v13070 = vunpack.c.h.b16 %v12687
    %v13071 = vunpack.c.l.b16 %v12688
    %v13072 = vunpack.c.h.b16 %v12688
    %v13073 = vunpack.c.l.b16 %v12689
    %v13074 = vunpack.c.h.b16 %v12689
    %v13075 = vunpack.c.l.b16 %v12690
    %v13076 = vunpack.c.h.b16 %v12690
    %v13077 = vunpack.c.l.b16 %v12691
    %v13078 = vunpack.c.h.b16 %v12691
    %v13079 = vunpack.c.l.b16 %v12692
    %v13080 = vunpack.c.h.b16 %v12692
    %v13081 = vunpack.c.l.b16 %v12693
    %v13082 = vunpack.c.h.b16 %v12693
    %v13083 = vunpack.c.l.b16 %v12694
    %v13084 = vunpack.c.h.b16 %v12694
    %v13085 = vunpack.c.l.b16 %v12695
    %v13086 = vunpack.c.h.b16 %v12695
    %v13087 = vunpack.c.l.b16 %v12696
    %v13088 = vunpack.c.h.b16 %v12696
    %v13089 = vunpack.c.l.b16 %v12697
    %v13090 = vunpack.c.h.b16 %v12697
    %v13091 = vunpack.c.l.b16 %v12698
    %v13092 = vunpack.c.h.b16 %v12698
    %v13093 = vunpack.c.l.b16 %v12699
    %v13094 = vunpack.c.h.b16 %v12699
    %v13095 = vunpack.c.l.b16 %v12700
    %v13096 = vunpack.c.h.b16 %v12700
    %v13097 = vunpack.c.l.b16 %v12701
    %v13098 = vunpack.c.h.b16 %v12701
    %v13099 = vunpack.c.l.b16 %v12702
    %v13100 = vunpack.c.h.b16 %v12702
    %v13101 = vunpack.c.l.b16 %v12703
    %v13102 = vunpack.c.h.b16 %v12703
    %v13103 = vunpack.c.l.b16 %v12704
    %v13104 = vunpack.c.h.b16 %v12704
    %v13105 = vunpack.c.l.b16 %v12705
    %v13106 = vunpack.c.h.b16 %v12705
    %v13107 = vunpack.c.l.b16 %v12706
    %v13108 = vunpack.c.h.b16 %v12706
    %v13109 = vunpack.c.l.b16 %v12707
    %v13110 = vunpack.c.h.b16 %v12707
    %v13111 = vunpack.c.l.b16 %v12708
    %v13112 = vunpack.c.h.b16 %v12708
    %v13113 = vunpack.c.l.b16 %v12709
    %v13114 = vunpack.c.h.b16 %v12709
    %v13115 = vunpack.c.l.b16 %v12710
    %v13116 = vunpack.c.h.b16 %v12710
    %v13117 = vpack.c.b16 %v12865, %v12861
    %v13118 = vpack.c.b16 %v12866, %v12862
    %v13119 = vpack.c.b16 %v12867, %v12863
    %v13120 = vpack.c.b16 %v12868, %v12864
    %v13121 = vpack.c.b16 %v12873, %v12869
    %v13122 = vpack.c.b16 %v12874, %v12870
    %v13123 = vpack.c.b16 %v12875, %v12871
    %v13124 = vpack.c.b16 %v12876, %v12872
    %v13125 = vpack.c.b16 %v12881, %v12877
    %v13126 = vpack.c.b16 %v12882, %v12878
    %v13127 = vpack.c.b16 %v12883, %v12879
    %v13128 = vpack.c.b16 %v12884, %v12880
    %v13129 = vpack.c.b16 %v12889, %v12885
    %v13130 = vpack.c.b16 %v12890, %v12886
    %v13131 = vpack.c.b16 %v12891, %v12887
    %v13132 = vpack.c.b16 %v12892, %v12888
    %v13133 = vpack.c.b16 %v12897, %v12893
    %v13134 = vpack.c.b16 %v12898, %v12894
    %v13135 = vpack.c.b16 %v12899, %v12895
    %v13136 = vpack.c.b16 %v12900, %v12896
    %v13137 = vpack.c.b16 %v12905, %v12901
    %v13138 = vpack.c.b16 %v12906, %v12902
    %v13139 = vpack.c.b16 %v12907, %v12903
    %v13140 = vpack.c.b16 %v12908, %v12904
    %v13141 = vpack.c.b16 %v12913, %v12909
    %v13142 = vpack.c.b16 %v12914, %v12910
    %v13143 = vpack.c.b16 %v12915, %v12911
    %v13144 = vpack.c.b16 %v12916, %v12912
    %v13145 = vpack.c.b16 %v12921, %v12917
    %v13146 = vpack.c.b16 %v12922, %v12918
    %v13147 = vpack.c.b16 %v12923, %v12919
    %v13148 = vpack.c.b16 %v12924, %v12920
    %v13149 = vpack.c.b16 %v12929, %v12925
    %v13150 = vpack.c.b16 %v12930, %v12926
    %v13151 = vpack.c.b16 %v12931, %v12927
    %v13152 = vpack.c.b16 %v12932, %v12928
    %v13153 = vpack.c.b16 %v12937, %v12933
    %v13154 = vpack.c.b16 %v12938, %v12934
    %v13155 = vpack.c.b16 %v12939, %v12935
    %v13156 = vpack.c.b16 %v12940, %v12936
    %v13157 = vpack.c.b16 %v12945, %v12941
    %v13158 = vpack.c.b16 %v12946, %v12942
    %v13159 = vpack.c.b16 %v12947, %v12943
    %v13160 = vpack.c.b16 %v12948, %v12944
    %v13161 = vpack.c.b16 %v12953, %v12949
    %v13162 = vpack.c.b16 %v12954, %v12950
    %v13163 = vpack.c.b16 %v12955, %v12951
    %v13164 = vpack.c.b16 %v12956, %v12952
    %v13165 = vpack.c.b16 %v12961, %v12957
    %v13166 = vpack.c.b16 %v12962, %v12958
    %v13167 = vpack.c.b16 %v12963, %v12959
    %v13168 = vpack.c.b16 %v12964, %v12960
    %v13169 = vpack.c.b16 %v12969, %v12965
    %v13170 = vpack.c.b16 %v12970, %v12966
    %v13171 = vpack.c.b16 %v12971, %v12967
    %v13172 = vpack.c.b16 %v12972, %v12968
    %v13173 = vpack.c.b16 %v12977, %v12973
    %v13174 = vpack.c.b16 %v12978, %v12974
    %v13175 = vpack.c.b16 %v12979, %v12975
    %v13176 = vpack.c.b16 %v12980, %v12976
    %v13177 = vpack.c.b16 %v12985, %v12981
    %v13178 = vpack.c.b16 %v12986, %v12982
    %v13179 = vpack.c.b16 %v12987, %v12983
    %v13180 = vpack.c.b16 %v12988, %v12984
    %v13181 = vpack.c.b16 %v12993, %v12989
    %v13182 = vpack.c.b16 %v12994, %v12990
    %v13183 = vpack.c.b16 %v12995, %v12991
    %v13184 = vpack.c.b16 %v12996, %v12992
    %v13185 = vpack.c.b16 %v13001, %v12997
    %v13186 = vpack.c.b16 %v13002, %v12998
    %v13187 = vpack.c.b16 %v13003, %v12999
    %v13188 = vpack.c.b16 %v13004, %v13000
    %v13189 = vpack.c.b16 %v13009, %v13005
    %v13190 = vpack.c.b16 %v13010, %v13006
    %v13191 = vpack.c.b16 %v13011, %v13007
    %v13192 = vpack.c.b16 %v13012, %v13008
    %v13193 = vpack.c.b16 %v13017, %v13013
    %v13194 = vpack.c.b16 %v13018, %v13014
    %v13195 = vpack.c.b16 %v13019, %v13015
    %v13196 = vpack.c.b16 %v13020, %v13016
    %v13197 = vpack.c.b16 %v13025, %v13021
    %v13198 = vpack.c.b16 %v13026, %v13022
    %v13199 = vpack.c.b16 %v13027, %v13023
    %v13200 = vpack.c.b16 %v13028, %v13024
    %v13201 = vpack.c.b16 %v13033, %v13029
    %v13202 = vpack.c.b16 %v13034, %v13030
    %v13203 = vpack.c.b16 %v13035, %v13031
    %v13204 = vpack.c.b16 %v13036, %v13032
    %v13205 = vpack.c.b16 %v13041, %v13037
    %v13206 = vpack.c.b16 %v13042, %v13038
    %v13207 = vpack.c.b16 %v13043, %v13039
    %v13208 = vpack.c.b16 %v13044, %v13040
    %v13209 = vpack.c.b16 %v13049, %v13045
    %v13210 = vpack.c.b16 %v13050, %v13046
    %v13211 = vpack.c.b16 %v13051, %v13047
    %v13212 = vpack.c.b16 %v13052, %v13048
    %v13213 = vpack.c.b16 %v13057, %v13053
    %v13214 = vpack.c.b16 %v13058, %v13054
    %v13215 = vpack.c.b16 %v13059, %v13055
    %v13216 = vpack.c.b16 %v13060, %v13056
    %v13217 = vpack.c.b16 %v13065, %v13061
    %v13218 = vpack.c.b16 %v13066, %v13062
    %v13219 = vpack.c.b16 %v13067, %v13063
    %v13220 = vpack.c.b16 %v13068, %v13064
    %v13221 = vpack.c.b16 %v13073, %v13069
    %v13222 = vpack.c.b16 %v13074, %v13070
    %v13223 = vpack.c.b16 %v13075, %v13071
    %v13224 = vpack.c.b16 %v13076, %v13072
    %v13225 = vpack.c.b16 %v13081, %v13077
    %v13226 = vpack.c.b16 %v13082, %v13078
    %v13227 = vpack.c.b16 %v13083, %v13079
    %v13228 = vpack.c.b16 %v13084, %v13080
    %v13229 = vpack.c.b16 %v13089, %v13085
    %v13230 = vpack.c.b16 %v13090, %v13086
    %v13231 = vpack.c.b16 %v13091, %v13087
    %v13232 = vpack.c.b16 %v13092, %v13088
    %v13233 = vpack.c.b16 %v13097, %v13093
    %v13234 = vpack.c.b16 %v13098, %v13094
    %v13235 = vpack.c.b16 %v13099, %v13095
    %v13236 = vpack.c.b16 %v13100, %v13096
    %v13237 = vpack.c.b16 %v13105, %v13101
    %v13238 = vpack.c.b16 %v13106, %v13102
    %v13239 = vpack.c.b16 %v13107, %v13103
    %v13240 = vpack.c.b16 %v13108, %v13104
    %v13241 = vpack.c.b16 %v13113, %v13109
    %v13242 = vpack.c.b16 %v13114, %v13110
    %v13243 = vpack.c.b16 %v13115, %v13111
    %v13244 = vpack.c.b16 %v13116, %v13112
    %13373 = vmatprep.subr.bf16.mxu0 %v13118
    %13374 = vmatpush1.bf16.msra.mxu0 %v13117
    %13375 = vmatprep.subr.bf16.mxu0 %v13122
    %13376 = vmatpush1.bf16.msra.mxu0 %v13121
    %13377 = vmatprep.subr.bf16.mxu0 %v13126
    %13378 = vmatpush1.bf16.msra.mxu0 %v13125
    %13379 = vmatprep.subr.bf16.mxu0 %v13130
    %13380 = vmatpush1.bf16.msra.mxu0 %v13129
    %13381 = vmatprep.subr.bf16.mxu0 %v13134
    %13382 = vmatpush1.bf16.msra.mxu0 %v13133
    %13383 = vmatprep.subr.bf16.mxu0 %v13138
    %13384 = vmatpush1.bf16.msra.mxu0 %v13137
    %13385 = vmatprep.subr.bf16.mxu0 %v13142
    %13386 = vmatpush1.bf16.msra.mxu0 %v13141
    %13387 = vmatprep.subr.bf16.mxu0 %v13146
    %13388 = vmatpush1.bf16.msra.mxu0 %v13145
    %13389 = vmatprep.subr.bf16.mxu0 %v13150
    %13390 = vmatpush1.bf16.msra.mxu0 %v13149
    %13391 = vmatprep.subr.bf16.mxu0 %v13154
    %13392 = vmatpush1.bf16.msra.mxu0 %v13153
    %13393 = vmatprep.subr.bf16.mxu0 %v13158
    %13394 = vmatpush1.bf16.msra.mxu0 %v13157
    %13395 = vmatprep.subr.bf16.mxu0 %v13162
    %13396 = vmatpush1.bf16.msra.mxu0 %v13161
    %13397 = vmatprep.subr.bf16.mxu0 %v13166
    %13398 = vmatpush1.bf16.msra.mxu0 %v13165
    %13399 = vmatprep.subr.bf16.mxu0 %v13170
    %13400 = vmatpush1.bf16.msra.mxu0 %v13169
    %13401 = vmatprep.subr.bf16.mxu0 %v13174
    %13402 = vmatpush1.bf16.msra.mxu0 %v13173
    %13403 = vmatprep.subr.bf16.mxu0 %v13178
    %13404 = vmatpush1.bf16.msra.mxu0 %v13177
    %13405 = vmatprep.mubr.bf16.mxu0 %v12580
    %13406 = vmatmul.mubr.bf16.gmra.mrb[0].mxu0 %v12579
    %v13407 = vpop.f32.mrb[0].mxu0
    %v13408 = vadd.f32 %v12716, %v13407
    %v13409 = vpop.f32.mrb[0].mxu0
    %v13410 = vadd.f32 %v12720, %v13409
    %v13411 = vpop.f32.mrb[0].mxu0
    %v13412 = vpop.f32.mrb[0].mxu0
    %13413 = vdwg.mxu0
    %13414 = vmatprep.subr.bf16.mxu0 %v13182
    %13415 = vmatpush1.bf16.msra.mxu0 %v13181
    %13416 = vmatprep.subr.bf16.mxu0 %v13186
    %13417 = vmatpush1.bf16.msra.mxu0 %v13185
    %13418 = vmatprep.subr.bf16.mxu0 %v13190
    %13419 = vmatpush1.bf16.msra.mxu0 %v13189
    %13420 = vmatprep.subr.bf16.mxu0 %v13194
    %13421 = vmatpush1.bf16.msra.mxu0 %v13193
    %13422 = vmatprep.subr.bf16.mxu0 %v13198
    %13423 = vmatpush1.bf16.msra.mxu0 %v13197
    %13424 = vmatprep.subr.bf16.mxu0 %v13202
    %13425 = vmatpush1.bf16.msra.mxu0 %v13201
    %13426 = vmatprep.subr.bf16.mxu0 %v13206
    %13427 = vmatpush1.bf16.msra.mxu0 %v13205
    %13428 = vmatprep.subr.bf16.mxu0 %v13210
    %13429 = vmatpush1.bf16.msra.mxu0 %v13209
    %13430 = vmatprep.subr.bf16.mxu0 %v13214
    %13431 = vmatpush1.bf16.msra.mxu0 %v13213
    %13432 = vmatprep.subr.bf16.mxu0 %v13218
    %13433 = vmatpush1.bf16.msra.mxu0 %v13217
    %13434 = vmatprep.subr.bf16.mxu0 %v13222
    %13435 = vmatpush1.bf16.msra.mxu0 %v13221
    %13436 = vmatprep.subr.bf16.mxu0 %v13226
    %13437 = vmatpush1.bf16.msra.mxu0 %v13225
    %13438 = vmatprep.subr.bf16.mxu0 %v13230
    %13439 = vmatpush1.bf16.msra.mxu0 %v13229
    %13440 = vmatprep.subr.bf16.mxu0 %v13234
    %13441 = vmatpush1.bf16.msra.mxu0 %v13233
    %13442 = vmatprep.subr.bf16.mxu0 %v13238
    %13443 = vmatpush1.bf16.msra.mxu0 %v13237
    %13444 = vmatprep.subr.bf16.mxu0 %v13242
    %13445 = vmatpush1.bf16.msra.mxu0 %v13241
    %13446 = vmatprep.mubr.bf16.mxu0 %v12582
    %13447 = vmatmul.mubr.bf16.gmra.mrb[0].mxu0 %v12581
    %v13448 = vpop.f32.mrb[0].mxu0
    %v13449 = vadd.f32 %v13408, %v13448
    %v13450 = vpop.f32.mrb[0].mxu0
    %v13451 = vadd.f32 %v13410, %v13450
    %v13452 = vpop.f32.mrb[0].mxu0
    %v13453 = vpop.f32.mrb[0].mxu0
    %13454 = vdwg.mxu0
    %13455 = vmatprep.subr.bf16.mxu0 %v13120
    %13456 = vmatpush1.bf16.msra.mxu0 %v13119
    %13457 = vmatprep.subr.bf16.mxu0 %v13124
    %13458 = vmatpush1.bf16.msra.mxu0 %v13123
    %13459 = vmatprep.subr.bf16.mxu0 %v13128
    %13460 = vmatpush1.bf16.msra.mxu0 %v13127
    %13461 = vmatprep.subr.bf16.mxu0 %v13132
    %13462 = vmatpush1.bf16.msra.mxu0 %v13131
    %13463 = vmatprep.subr.bf16.mxu0 %v13136
    %13464 = vmatpush1.bf16.msra.mxu0 %v13135
    %13465 = vmatprep.subr.bf16.mxu0 %v13140
    %13466 = vmatpush1.bf16.msra.mxu0 %v13139
    %13467 = vmatprep.subr.bf16.mxu0 %v13144
    %13468 = vmatpush1.bf16.msra.mxu0 %v13143
    %13469 = vmatprep.subr.bf16.mxu0 %v13148
    %13470 = vmatpush1.bf16.msra.mxu0 %v13147
    %13471 = vmatprep.subr.bf16.mxu0 %v13152
    %13472 = vmatpush1.bf16.msra.mxu0 %v13151
    %13473 = vmatprep.subr.bf16.mxu0 %v13156
    %13474 = vmatpush1.bf16.msra.mxu0 %v13155
    %13475 = vmatprep.subr.bf16.mxu0 %v13160
    %13476 = vmatpush1.bf16.msra.mxu0 %v13159
    %13477 = vmatprep.subr.bf16.mxu0 %v13164
    %13478 = vmatpush1.bf16.msra.mxu0 %v13163
    %13479 = vmatprep.subr.bf16.mxu0 %v13168
    %13480 = vmatpush1.bf16.msra.mxu0 %v13167
    %13481 = vmatprep.subr.bf16.mxu0 %v13172
    %13482 = vmatpush1.bf16.msra.mxu0 %v13171
    %13483 = vmatprep.subr.bf16.mxu0 %v13176
    %13484 = vmatpush1.bf16.msra.mxu0 %v13175
    %13485 = vmatprep.subr.bf16.mxu0 %v13180
    %13486 = vmatpush1.bf16.msra.mxu0 %v13179
    %13487 = vmatprep.mubr.bf16.mxu0 %v12580
    %13488 = vmatmul.mubr.bf16.gmra.mrb[0].mxu0 %v12579
    %v13489 = vpop.f32.mrb[0].mxu0
    %v13490 = vadd.f32 %v12724, %v13489
    %v13491 = vpop.f32.mrb[0].mxu0
    %v13492 = vadd.f32 %v12728, %v13491
    %v13493 = vpop.f32.mrb[0].mxu0
    %v13494 = vpop.f32.mrb[0].mxu0
    %13495 = vdwg.mxu0
    %13496 = vmatprep.subr.bf16.mxu0 %v13184
    %13497 = vmatpush1.bf16.msra.mxu0 %v13183
    %13498 = vmatprep.subr.bf16.mxu0 %v13188
    %13499 = vmatpush1.bf16.msra.mxu0 %v13187
    %13500 = vmatprep.subr.bf16.mxu0 %v13192
    %13501 = vmatpush1.bf16.msra.mxu0 %v13191
    %13502 = vmatprep.subr.bf16.mxu0 %v13196
    %13503 = vmatpush1.bf16.msra.mxu0 %v13195
    %13504 = vmatprep.subr.bf16.mxu0 %v13200
    %13505 = vmatpush1.bf16.msra.mxu0 %v13199
    %13506 = vmatprep.subr.bf16.mxu0 %v13204
    %13507 = vmatpush1.bf16.msra.mxu0 %v13203
    %13508 = vmatprep.subr.bf16.mxu0 %v13208
    %13509 = vmatpush1.bf16.msra.mxu0 %v13207
    %13510 = vmatprep.subr.bf16.mxu0 %v13212
    %13511 = vmatpush1.bf16.msra.mxu0 %v13211
    %13512 = vmatprep.subr.bf16.mxu0 %v13216
    %13513 = vmatpush1.bf16.msra.mxu0 %v13215
    %13514 = vmatprep.subr.bf16.mxu0 %v13220
    %13515 = vmatpush1.bf16.msra.mxu0 %v13219
    %13516 = vmatprep.subr.bf16.mxu0 %v13224
    %13517 = vmatpush1.bf16.msra.mxu0 %v13223
    %13518 = vmatprep.subr.bf16.mxu0 %v13228
    %13519 = vmatpush1.bf16.msra.mxu0 %v13227
    %13520 = vmatprep.subr.bf16.mxu0 %v13232
    %13521 = vmatpush1.bf16.msra.mxu0 %v13231
    %13522 = vmatprep.subr.bf16.mxu0 %v13236
    %13523 = vmatpush1.bf16.msra.mxu0 %v13235
    %13524 = vmatprep.subr.bf16.mxu0 %v13240
    %13525 = vmatpush1.bf16.msra.mxu0 %v13239
    %13526 = vmatprep.subr.bf16.mxu0 %v13244
    %13527 = vmatpush1.bf16.msra.mxu0 %v13243
    %13528 = vmatprep.mubr.bf16.mxu0 %v12582
    %13529 = vmatmul.mubr.bf16.gmra.mrb[0].mxu0 %v12581
    %v13530 = vpop.f32.mrb[0].mxu0
    %v13531 = vadd.f32 %v13490, %v13530
    %v13532 = vpop.f32.mrb[0].mxu0
    %v13533 = vadd.f32 %v13492, %v13532
    %v13534 = vpop.f32.mrb[0].mxu0
    %v13535 = vpop.f32.mrb[0].mxu0
    %13536 = vdwg.mxu0
    %v13537 = vmax.f32 %v13449, 0.0
    %v13538 = vmax.f32 %v13451, 0.0
    %v13539 = vmax.f32 %v13531, 0.0
    %v13540 = vmax.f32 %v13533, 0.0
    %v13541 = vpack.c.bf16 %v13537, %v13537
    %v13542 = vpack.c.bf16 %v13538, %v13538
    %v13543 = vpack.c.bf16 %v13539, %v13539
    %v13544 = vpack.c.bf16 %v13540, %v13540
    %v13545 = vld [vmem:[#allocation33] sm:$0xf]
    %v13546 = vld [vmem:[#allocation33 + $0x4] sm:$0xf]
    %v13547 = vld [vmem:[#allocation33 + $0x8] sm:$0xf]
    %v13548 = vld [vmem:[#allocation33 + $0xc] sm:$0xf]
    %v13549 = vld [vmem:[#allocation33 + $0x10] sm:$0xf]
    %v13550 = vld [vmem:[#allocation33 + $0x14] sm:$0xf]
    %v13551 = vld [vmem:[#allocation33 + $0x18] sm:$0xf]
    %v13552 = vld [vmem:[#allocation33 + $0x1c] sm:$0xf]
    %v13553 = vld [vmem:[#allocation33 + $0x20] sm:$0xf]
    %v13554 = vld [vmem:[#allocation33 + $0x24] sm:$0xf]
    %v13555 = vld [vmem:[#allocation33 + $0x28] sm:$0xf]
    %v13556 = vld [vmem:[#allocation33 + $0x2c] sm:$0xf]
    %v13557 = vld [vmem:[#allocation33 + $0x30] sm:$0xf]
    %v13558 = vld [vmem:[#allocation33 + $0x34] sm:$0xf]
    %v13559 = vld [vmem:[#allocation33 + $0x38] sm:$0xf]
    %v13560 = vld [vmem:[#allocation33 + $0x3c] sm:$0xf]
    %v13561 = vld [vmem:[#allocation33 + $0x40] sm:$0xf]
    %v13562 = vld [vmem:[#allocation33 + $0x44] sm:$0xf]
    %v13563 = vld [vmem:[#allocation33 + $0x48] sm:$0xf]
    %v13564 = vld [vmem:[#allocation33 + $0x4c] sm:$0xf]
    %v13565 = vld [vmem:[#allocation33 + $0x50] sm:$0xf]
    %v13566 = vld [vmem:[#allocation33 + $0x54] sm:$0xf]
    %v13567 = vld [vmem:[#allocation33 + $0x58] sm:$0xf]
    %v13568 = vld [vmem:[#allocation33 + $0x5c] sm:$0xf]
    %v13569 = vld [vmem:[#allocation33 + $0x60] sm:$0xf]
    %v13570 = vld [vmem:[#allocation33 + $0x64] sm:$0xf]
    %v13571 = vld [vmem:[#allocation33 + $0x68] sm:$0xf]
    %v13572 = vld [vmem:[#allocation33 + $0x6c] sm:$0xf]
    %v13573 = vld [vmem:[#allocation33 + $0x70] sm:$0xf]
    %v13574 = vld [vmem:[#allocation33 + $0x74] sm:$0xf]
    %v13575 = vld [vmem:[#allocation33 + $0x78] sm:$0xf]
    %v13576 = vld [vmem:[#allocation33 + $0x7c] sm:$0xf]
    %v13577 = vld [vmem:[#allocation33 + $0x80] sm:$0xf]
    %v13578 = vld [vmem:[#allocation33 + $0x84] sm:$0xf]
    %v13579 = vld [vmem:[#allocation33 + $0x88] sm:$0xf]
    %v13580 = vld [vmem:[#allocation33 + $0x8c] sm:$0xf]
    %v13581 = vld [vmem:[#allocation33 + $0x90] sm:$0xf]
    %v13582 = vld [vmem:[#allocation33 + $0x94] sm:$0xf]
    %v13583 = vld [vmem:[#allocation33 + $0x98] sm:$0xf]
    %v13584 = vld [vmem:[#allocation33 + $0x9c] sm:$0xf]
    %v13585 = vld [vmem:[#allocation33 + $0xa0] sm:$0xf]
    %v13586 = vld [vmem:[#allocation33 + $0xa4] sm:$0xf]
    %v13587 = vld [vmem:[#allocation33 + $0xa8] sm:$0xf]
    %v13588 = vld [vmem:[#allocation33 + $0xac] sm:$0xf]
    %v13589 = vld [vmem:[#allocation33 + $0xb0] sm:$0xf]
    %v13590 = vld [vmem:[#allocation33 + $0xb4] sm:$0xf]
    %v13591 = vld [vmem:[#allocation33 + $0xb8] sm:$0xf]
    %v13592 = vld [vmem:[#allocation33 + $0xbc] sm:$0xf]
    %v13593 = vld [vmem:[#allocation33 + $0xc0] sm:$0xf]
    %v13594 = vld [vmem:[#allocation33 + $0xc4] sm:$0xf]
    %v13595 = vld [vmem:[#allocation33 + $0xc8] sm:$0xf]
    %v13596 = vld [vmem:[#allocation33 + $0xcc] sm:$0xf]
    %v13597 = vld [vmem:[#allocation33 + $0xd0] sm:$0xf]
    %v13598 = vld [vmem:[#allocation33 + $0xd4] sm:$0xf]
    %v13599 = vld [vmem:[#allocation33 + $0xd8] sm:$0xf]
    %v13600 = vld [vmem:[#allocation33 + $0xdc] sm:$0xf]
    %v13601 = vld [vmem:[#allocation33 + $0xe0] sm:$0xf]
    %v13602 = vld [vmem:[#allocation33 + $0xe4] sm:$0xf]
    %v13603 = vld [vmem:[#allocation33 + $0xe8] sm:$0xf]
    %v13604 = vld [vmem:[#allocation33 + $0xec] sm:$0xf]
    %v13605 = vld [vmem:[#allocation33 + $0xf0] sm:$0xf]
    %v13606 = vld [vmem:[#allocation33 + $0xf4] sm:$0xf]
    %v13607 = vld [vmem:[#allocation33 + $0xf8] sm:$0xf]
    %v13608 = vld [vmem:[#allocation33 + $0xfc] sm:$0xf]
    %v13609 = vld [vmem:[#allocation34] sm:$0x1]
    %v13611 = vlaneseq
    %v13612 = vshrl.u32 %v13611, 7
    %v13613 = vsub.s32 0, %v13612
    %v13614 = vrot.slane %v13609, %v13613
    %v13680 = vunpack.c.l.b16 %v13545
    %v13681 = vunpack.c.l.b16 %v13546
    %v13682 = vunpack.c.l.b16 %v13547
    %v13683 = vunpack.c.l.b16 %v13548
    %v13684 = vunpack.c.l.b16 %v13549
    %v13685 = vunpack.c.l.b16 %v13550
    %v13686 = vunpack.c.l.b16 %v13551
    %v13687 = vunpack.c.l.b16 %v13552
    %v13688 = vunpack.c.l.b16 %v13553
    %v13689 = vunpack.c.l.b16 %v13554
    %v13690 = vunpack.c.l.b16 %v13555
    %v13691 = vunpack.c.l.b16 %v13556
    %v13692 = vunpack.c.l.b16 %v13557
    %v13693 = vunpack.c.l.b16 %v13558
    %v13694 = vunpack.c.l.b16 %v13559
    %v13695 = vunpack.c.l.b16 %v13560
    %v13696 = vunpack.c.l.b16 %v13561
    %v13697 = vunpack.c.l.b16 %v13562
    %v13698 = vunpack.c.l.b16 %v13563
    %v13699 = vunpack.c.l.b16 %v13564
    %v13700 = vunpack.c.l.b16 %v13565
    %v13701 = vunpack.c.l.b16 %v13566
    %v13702 = vunpack.c.l.b16 %v13567
    %v13703 = vunpack.c.l.b16 %v13568
    %v13704 = vunpack.c.l.b16 %v13569
    %v13705 = vunpack.c.l.b16 %v13570
    %v13706 = vunpack.c.l.b16 %v13571
    %v13707 = vunpack.c.l.b16 %v13572
    %v13708 = vunpack.c.l.b16 %v13573
    %v13709 = vunpack.c.l.b16 %v13574
    %v13710 = vunpack.c.l.b16 %v13575
    %v13711 = vunpack.c.l.b16 %v13576
    %v13712 = vunpack.c.l.b16 %v13577
    %v13713 = vunpack.c.l.b16 %v13578
    %v13714 = vunpack.c.l.b16 %v13579
    %v13715 = vunpack.c.l.b16 %v13580
    %v13716 = vunpack.c.l.b16 %v13581
    %v13717 = vunpack.c.l.b16 %v13582
    %v13718 = vunpack.c.l.b16 %v13583
    %v13719 = vunpack.c.l.b16 %v13584
    %v13720 = vunpack.c.l.b16 %v13585
    %v13721 = vunpack.c.l.b16 %v13586
    %v13722 = vunpack.c.l.b16 %v13587
    %v13723 = vunpack.c.l.b16 %v13588
    %v13724 = vunpack.c.l.b16 %v13589
    %v13725 = vunpack.c.l.b16 %v13590
    %v13726 = vunpack.c.l.b16 %v13591
    %v13727 = vunpack.c.l.b16 %v13592
    %v13728 = vunpack.c.l.b16 %v13593
    %v13729 = vunpack.c.l.b16 %v13594
    %v13730 = vunpack.c.l.b16 %v13595
    %v13731 = vunpack.c.l.b16 %v13596
    %v13732 = vunpack.c.l.b16 %v13597
    %v13733 = vunpack.c.l.b16 %v13598
    %v13734 = vunpack.c.l.b16 %v13599
    %v13735 = vunpack.c.l.b16 %v13600
    %v13736 = vunpack.c.l.b16 %v13601
    %v13737 = vunpack.c.l.b16 %v13602
    %v13738 = vunpack.c.l.b16 %v13603
    %v13739 = vunpack.c.l.b16 %v13604
    %v13740 = vunpack.c.l.b16 %v13605
    %v13741 = vunpack.c.l.b16 %v13606
    %v13742 = vunpack.c.l.b16 %v13607
    %v13743 = vunpack.c.l.b16 %v13608
    %v13744 = vpack.c.b16 %v13681, %v13680
    %v13745 = vpack.c.b16 %v13683, %v13682
    %v13746 = vpack.c.b16 %v13685, %v13684
    %v13747 = vpack.c.b16 %v13687, %v13686
    %v13748 = vpack.c.b16 %v13689, %v13688
    %v13749 = vpack.c.b16 %v13691, %v13690
    %v13750 = vpack.c.b16 %v13693, %v13692
    %v13751 = vpack.c.b16 %v13695, %v13694
    %v13752 = vpack.c.b16 %v13697, %v13696
    %v13753 = vpack.c.b16 %v13699, %v13698
    %v13754 = vpack.c.b16 %v13701, %v13700
    %v13755 = vpack.c.b16 %v13703, %v13702
    %v13756 = vpack.c.b16 %v13705, %v13704
    %v13757 = vpack.c.b16 %v13707, %v13706
    %v13758 = vpack.c.b16 %v13709, %v13708
    %v13759 = vpack.c.b16 %v13711, %v13710
    %v13760 = vpack.c.b16 %v13713, %v13712
    %v13761 = vpack.c.b16 %v13715, %v13714
    %v13762 = vpack.c.b16 %v13717, %v13716
    %v13763 = vpack.c.b16 %v13719, %v13718
    %v13764 = vpack.c.b16 %v13721, %v13720
    %v13765 = vpack.c.b16 %v13723, %v13722
    %v13766 = vpack.c.b16 %v13725, %v13724
    %v13767 = vpack.c.b16 %v13727, %v13726
    %v13768 = vpack.c.b16 %v13729, %v13728
    %v13769 = vpack.c.b16 %v13731, %v13730
    %v13770 = vpack.c.b16 %v13733, %v13732
    %v13771 = vpack.c.b16 %v13735, %v13734
    %v13772 = vpack.c.b16 %v13737, %v13736
    %v13773 = vpack.c.b16 %v13739, %v13738
    %v13774 = vpack.c.b16 %v13741, %v13740
    %v13775 = vpack.c.b16 %v13743, %v13742
    %13808 = vmatprep.subr.bf16.mxu0 0
    %13809 = vmatpush1.bf16.msra.mxu0 %v13744
    %13810 = vmatprep.subr.bf16.mxu0 0
    %13811 = vmatpush1.bf16.msra.mxu0 %v13745
    %13812 = vmatprep.subr.bf16.mxu0 0
    %13813 = vmatpush1.bf16.msra.mxu0 %v13746
    %13814 = vmatprep.subr.bf16.mxu0 0
    %13815 = vmatpush1.bf16.msra.mxu0 %v13747
    %13816 = vmatprep.subr.bf16.mxu0 0
    %13817 = vmatpush1.bf16.msra.mxu0 %v13748
    %13818 = vmatprep.subr.bf16.mxu0 0
    %13819 = vmatpush1.bf16.msra.mxu0 %v13749
    %13820 = vmatprep.subr.bf16.mxu0 0
    %13821 = vmatpush1.bf16.msra.mxu0 %v13750
    %13822 = vmatprep.subr.bf16.mxu0 0
    %13823 = vmatpush1.bf16.msra.mxu0 %v13751
    %13824 = vmatprep.subr.bf16.mxu0 0
    %13825 = vmatpush1.bf16.msra.mxu0 %v13752
    %13826 = vmatprep.subr.bf16.mxu0 0
    %13827 = vmatpush1.bf16.msra.mxu0 %v13753
    %13828 = vmatprep.subr.bf16.mxu0 0
    %13829 = vmatpush1.bf16.msra.mxu0 %v13754
    %13830 = vmatprep.subr.bf16.mxu0 0
    %13831 = vmatpush1.bf16.msra.mxu0 %v13755
    %13832 = vmatprep.subr.bf16.mxu0 0
    %13833 = vmatpush1.bf16.msra.mxu0 %v13756
    %13834 = vmatprep.subr.bf16.mxu0 0
    %13835 = vmatpush1.bf16.msra.mxu0 %v13757
    %13836 = vmatprep.subr.bf16.mxu0 0
    %13837 = vmatpush1.bf16.msra.mxu0 %v13758
    %13838 = vmatprep.subr.bf16.mxu0 0
    %13839 = vmatpush1.bf16.msra.mxu0 %v13759
    %13840 = vmatprep.mubr.bf16.mxu0 %v13542
    %13841 = vmatmul.mubr.bf16.gmra.mrb[0].mxu0 %v13541
    %v13842 = vpop.f32.mrb[0].mxu0
    %v13843 = vadd.f32 %v13614, %v13842
    %v13844 = vpop.f32.mrb[0].mxu0
    %v13845 = vpop.f32.mrb[0].mxu0
    %v13846 = vpop.f32.mrb[0].mxu0
    %13847 = vdwg.mxu0
    %13848 = vmatprep.subr.bf16.mxu0 0
    %13849 = vmatpush1.bf16.msra.mxu0 %v13760
    %13850 = vmatprep.subr.bf16.mxu0 0
    %13851 = vmatpush1.bf16.msra.mxu0 %v13761
    %13852 = vmatprep.subr.bf16.mxu0 0
    %13853 = vmatpush1.bf16.msra.mxu0 %v13762
    %13854 = vmatprep.subr.bf16.mxu0 0
    %13855 = vmatpush1.bf16.msra.mxu0 %v13763
    %13856 = vmatprep.subr.bf16.mxu0 0
    %13857 = vmatpush1.bf16.msra.mxu0 %v13764
    %13858 = vmatprep.subr.bf16.mxu0 0
    %13859 = vmatpush1.bf16.msra.mxu0 %v13765
    %13860 = vmatprep.subr.bf16.mxu0 0
    %13861 = vmatpush1.bf16.msra.mxu0 %v13766
    %13862 = vmatprep.subr.bf16.mxu0 0
    %13863 = vmatpush1.bf16.msra.mxu0 %v13767
    %13864 = vmatprep.subr.bf16.mxu0 0
    %13865 = vmatpush1.bf16.msra.mxu0 %v13768
    %13866 = vmatprep.subr.bf16.mxu0 0
    %13867 = vmatpush1.bf16.msra.mxu0 %v13769
    %13868 = vmatprep.subr.bf16.mxu0 0
    %13869 = vmatpush1.bf16.msra.mxu0 %v13770
    %13870 = vmatprep.subr.bf16.mxu0 0
    %13871 = vmatpush1.bf16.msra.mxu0 %v13771
    %13872 = vmatprep.subr.bf16.mxu0 0
    %13873 = vmatpush1.bf16.msra.mxu0 %v13772
    %13874 = vmatprep.subr.bf16.mxu0 0
    %13875 = vmatpush1.bf16.msra.mxu0 %v13773
    %13876 = vmatprep.subr.bf16.mxu0 0
    %13877 = vmatpush1.bf16.msra.mxu0 %v13774
    %13878 = vmatprep.subr.bf16.mxu0 0
    %13879 = vmatpush1.bf16.msra.mxu0 %v13775
    %13880 = vmatprep.mubr.bf16.mxu0 %v13544
    %13881 = vmatmul.mubr.bf16.gmra.mrb[0].mxu0 %v13543
    %v13882 = vpop.f32.mrb[0].mxu0
    %v13883 = vadd.f32 %v13843, %v13882
    %v13884 = vpop.f32.mrb[0].mxu0
    %v13885 = vpop.f32.mrb[0].mxu0
    %v13886 = vpop.f32.mrb[0].mxu0
    %13887 = vdwg.mxu0
    %13888 = vst [vmem:[%s28] sm:$0xff] %v13883
    // Predicated region
    $region186: #{network_forward.1} parent=1 // pred_check
      _
    $region187: #{network_forward.1} parent=1 // pred_check_branch
      %13890 = sbr.rel (0) target = $region189
    $region188: #{network_forward.1} parent=1 // pred_region
      _
    $region189: #{network_forward.1} parent=1 // pred_fallthru
      _
    // Predicated region
    $region190: #{network_forward.1} parent=1 // pred_check
      _
    $region191: #{network_forward.1} parent=1 // pred_check_branch
      %13892 = sbr.rel (0) target = $region193
    $region192: #{network_forward.1} parent=1 // pred_region
      _
    $region193: #{network_forward.1} parent=1 // pred_fallthru
      _
    // Predicated region
    $region194: #{network_forward.1} parent=1 // pred_check
      _
    $region195: #{network_forward.1} parent=1 // pred_check_branch
      %13894 = sbr.rel (0) target = $region197
    $region196: #{network_forward.1} parent=1 // pred_region
      _
    $region197: #{network_forward.1} parent=1 // pred_fallthru
      _
    // Predicated region
    $region198: #{network_forward.1} parent=1 // pred_check
      _
    $region199: #{network_forward.1} parent=1 // pred_check_branch
      %13896 = sbr.rel (0) target = $region201
    $region200: #{network_forward.1} parent=1 // pred_region
      _
    $region201: #{network_forward.1} parent=1 // pred_fallthru
      _
    // Predicated region
    $region202: #{network_forward.1} parent=1 // pred_check
      _
    $region203: #{network_forward.1} parent=1 // pred_check_branch
      %13898 = sbr.rel (0) target = $region205
    $region204: #{network_forward.1} parent=1 // pred_region
      _
    $region205: #{network_forward.1} parent=1 // pred_fallthru
      _
    // Predicated region
    $region206: #{network_forward.1} parent=1 // pred_check
      _
    $region207: #{network_forward.1} parent=1 // pred_check_branch
      %13900 = sbr.rel (0) target = $region209
    $region208: #{network_forward.1} parent=1 // pred_region
      _
    $region209: #{network_forward.1} parent=1 // pred_fallthru
      _
    // Predicated region
    $region210: #{network_forward.1} parent=1 // pred_check
      _
    $region211: #{network_forward.1} parent=1 // pred_check_branch
      %13902 = sbr.rel (0) target = $region213
    $region212: #{network_forward.1} parent=1 // pred_region
      _
    $region213: #{network_forward.1} parent=1 // pred_fallthru
      _
    // Predicated region
    $region214: #{network_forward.1} parent=1 // pred_check
      _
    $region215: #{network_forward.1} parent=1 // pred_check_branch
      %13904 = sbr.rel (0) target = $region217
    $region216: #{network_forward.1} parent=1 // pred_region
      _
    $region217: #{network_forward.1} parent=1 // pred_fallthru
      _
    // Predicated region
    $region218: #{network_forward.1} parent=1 // pred_check
      _
    $region219: #{network_forward.1} parent=1 // pred_check_branch
      %13906 = sbr.rel (0) target = $region221
    $region220: #{network_forward.1} parent=1 // pred_region
      _
    $region221: #{network_forward.1} parent=1 // pred_fallthru
      _
    // Predicated region
    $region222: #{network_forward.1} parent=1 // pred_check
      _
    $region223: #{network_forward.1} parent=1 // pred_check_branch
      %13908 = sbr.rel (0) target = $region225
    $region224: #{network_forward.1} parent=1 // pred_region
      _
    $region225: #{network_forward.1} parent=1 // pred_fallthru
      _
    %13909 = vsyncpa [#allocation3], 1
    %13910 = vsyncpa [#allocation5], 1
    %13911 = vsyncpa [#allocation8], 1
    %13912 = vsyncpa [#allocation11], 1
    %13913 = vsyncpa [#allocation14], 1
    %13914 = vsyncpa [#allocation17], 1
    %13915 = vsyncpa [#allocation20], 1
    %13916 = vsyncpa [#allocation23], 1
    %13917 = vsyncpa [#allocation26], 1
    %13918 = vsyncpa [#allocation29], 1
    %13919 = vsyncpa [#allocation32], 1
    %13920 = vsyncpa [#allocation35], 1

</llo_original>
